<compile_context>
chip_gen: v5e
topology: v5e:2x2
jax: 0.10.0
libtpu: 0.0.40
codegen_flags: <defaults>
</compile_context>

<pallas_src>
import numpy as np

import jax
import jax.numpy as jnp
from jax import lax
from jax.experimental import pallas as pl
from jax.experimental.pallas import tpu as pltpu


# ---------------------------------------------------------------------------
# Fused Pallas kernel: conv1+relu+pool -> conv2+relu+pool -> fc1+relu -> fc2
# ---------------------------------------------------------------------------

def _cnn_fused_kernel(x_ref, a1_ref, b1_ref, a2_ref, b2_ref,
                      w1_ref, fb1_ref, w2_ref, fb2_ref, o_ref):
    """One batch tile of the whole network, entirely in VMEM.

    x_ref  : (BT, 28, 28)   f32   input images (Cin=1 squeezed away)
    a1_ref : (5, 28, 384)   f32   conv1 band mats, cols = parity-split (w=24, c=16)
    b1_ref : (1, 384)       f32
    a2_ref : (5, 192, 256)  bf16  conv2 band mats, rows=(w=12,c=16), cols=parity(w=8,c=32)
    b2_ref : (1, 256)       f32
    w1_ref : (4, 128, 256)  bf16  fc1 weights, one K=128 slab per pooled row h
    fb1_ref: (1, 256)       f32
    w2_ref : (256, 128)     bf16  fc2 weights, N padded 2 -> 128
    fb2_ref: (1, 128)       f32
    o_ref  : (BT, 128)      f32   logits (cols 0:2 valid)
    """
    BT = x_ref.shape[0]

    # ---- conv1 (5x5, 1->16) + bias + ReLU: 5 banded MXU passes over kh -----
    acc1 = jnp.zeros((BT * 24, 384), jnp.float32)
    for di in range(5):
        rows = x_ref[:, di:di + 24, :].reshape(BT * 24, 28)
        acc1 = acc1 + jnp.dot(rows, a1_ref[di],
                              preferred_element_type=jnp.float32)
    acc1 = jnp.maximum(acc1 + b1_ref[...], 0.0)

    # ---- 2x2/2 max pool: h = sublane-pair max, w = parity-half lane max ----
    a = jnp.max(acc1.reshape(BT, 12, 2, 384), axis=2)          # (BT, 12, 384)
    act1 = jnp.maximum(a[:, :, :192], a[:, :, 192:])           # (BT, 12, 192)

    # ---- conv2 (5x5, 16->32) + bias + ReLU: 5 banded MXU passes ------------
    acc2 = jnp.zeros((BT * 8, 256), jnp.float32)
    for di in range(5):
        rows = act1[:, di:di + 8, :].reshape(BT * 8, 192)
        acc2 = acc2 + jnp.dot(rows.astype(jnp.bfloat16), a2_ref[di],
                              preferred_element_type=jnp.float32)
    acc2 = jnp.maximum(acc2 + b2_ref[...], 0.0)

    # ---- 2x2/2 max pool -----------------------------------------------------
    a = jnp.max(acc2.reshape(BT, 4, 2, 256), axis=2)           # (BT, 4, 256)
    p2 = jnp.maximum(a[:, :, :128], a[:, :, 128:])             # (BT, 4, 128)

    # dropout1: eval mode -> identity
    # TODO(synk): training-mode dropout (pltpu.prng_* mask + scale) not implemented.

    # ---- fc1 (512->256) + ReLU: flatten permutation folded into w1 ---------
    hvec = jnp.zeros((BT, 256), jnp.float32)
    for hh in range(4):
        hvec = hvec + jnp.dot(p2[:, hh, :].astype(jnp.bfloat16), w1_ref[hh],
                              preferred_element_type=jnp.float32)
    hvec = jnp.maximum(hvec + fb1_ref[...], 0.0)

    # dropout2: eval mode -> identity

    # ---- fc2 (256->2, padded to 128 output lanes) ---------------------------
    out = jnp.dot(hvec.astype(jnp.bfloat16), w2_ref[...],
                  preferred_element_type=jnp.float32)
    o_ref[...] = (out + fb2_ref[...]).astype(o_ref.dtype)


# ---------------------------------------------------------------------------
# pallas_call wrapper (batch-tiled grid; weights resident across the grid)
# ---------------------------------------------------------------------------

def cnn_fused(x, prep, *, bt):
    B = x.shape[0]
    return pl.pallas_call(
        _cnn_fused_kernel,
        out_shape=jax.ShapeDtypeStruct((B, 128), jnp.float32),
        grid=(B // bt,),
        in_specs=[
            pl.BlockSpec((bt, 28, 28), lambda i: (i, 0, 0)),
            # Weights / biases: full-array blocks with constant index maps
            # (DMA'd once, resident in VMEM across the batch grid).
            pl.BlockSpec((5, 28, 384), lambda i: (0, 0, 0)),
            pl.BlockSpec((1, 384), lambda i: (0, 0)),
            pl.BlockSpec((5, 192, 256), lambda i: (0, 0, 0)),
            pl.BlockSpec((1, 256), lambda i: (0, 0)),
            pl.BlockSpec((4, 128, 256), lambda i: (0, 0, 0)),
            pl.BlockSpec((1, 256), lambda i: (0, 0)),
            pl.BlockSpec((256, 128), lambda i: (0, 0)),
            pl.BlockSpec((1, 128), lambda i: (0, 0)),
        ],
        out_specs=pl.BlockSpec((bt, 128), lambda i: (i, 0)),
        compiler_params=pltpu.CompilerParams(
            dimension_semantics=("parallel",),
            vmem_limit_bytes=32 * 1024 * 1024),
    )(x, prep["a1"], prep["b1"], prep["a2"], prep["b2"],
      prep["w1"], prep["fb1"], prep["w2"], prep["fb2"])


# ---------------------------------------------------------------------------
# Parameters (PyTorch layout) + one-time kernel-friendly re-layout
# ---------------------------------------------------------------------------

def init_params(key):
    ks = jax.random.split(key, 8)

    def uni(k, shape, fan_in):
        bound = 1.0 / jnp.sqrt(fan_in)
        return jax.random.uniform(k, shape, jnp.float32, -bound, bound)

    return {
        "conv1_w": uni(ks[0], (16, 1, 5, 5), 1 * 5 * 5),
        "conv1_b": uni(ks[1], (16,), 1 * 5 * 5),
        "conv2_w": uni(ks[2], (32, 16, 5, 5), 16 * 5 * 5),
        "conv2_b": uni(ks[3], (32,), 16 * 5 * 5),
        "fc1_w": uni(ks[4], (256, 512), 512),   # PyTorch Linear layout (out, in)
        "fc1_b": uni(ks[5], (256,), 512),
        "fc2_w": uni(ks[6], (2, 256), 256),
        "fc2_b": uni(ks[7], (2,), 256),
    }


def prepare_params(p):
    """One-time host-side re-layout of PyTorch params into banded / permuted mats."""
    w1 = np.asarray(p["conv1_w"], np.float32)    # (16, 1, 5, 5)
    b1 = np.asarray(p["conv1_b"], np.float32)    # (16,)
    w2 = np.asarray(p["conv2_w"], np.float32)    # (32, 16, 5, 5)
    b2 = np.asarray(p["conv2_b"], np.float32)    # (32,)
    f1 = np.asarray(p["fc1_w"], np.float32)      # (256, 512)
    f1b = np.asarray(p["fc1_b"], np.float32)     # (256,)
    f2 = np.asarray(p["fc2_w"], np.float32)      # (2, 256)
    f2b = np.asarray(p["fc2_b"], np.float32)     # (2,)

    # conv1 band matrices: acc1[(b,i), col1(jo,co)] = sum_{di,j} x[b,i+di,j]*A1[di,j,col1]
    # col1(jo,co) = (jo % 2)*192 + (jo // 2)*16 + co  (parity-split so the w-pool is
    # max(lanes[:192], lanes[192:]) in-kernel).
    A1 = np.zeros((5, 28, 384), np.float32)
    for di in range(5):
        for jo in range(24):
            base = (jo % 2) * 192 + (jo // 2) * 16
            for dj in range(5):
                A1[di, jo + dj, base:base + 16] = w1[:, 0, di, dj]
    b1row = np.tile(b1, 24).reshape(1, 384)           # col1 % 16 == co

    # conv2 band matrices on the pooled (w=12, c=16)-packed activation.
    # rows: jin*16 + ci ; cols: col2(jo,co) = (jo % 2)*128 + (jo // 2)*32 + co
    A2 = np.zeros((5, 192, 256), np.float32)
    for di in range(5):
        for jo in range(8):
            base = (jo % 2) * 128 + (jo // 2) * 32
            for dj in range(5):
                jin = jo + dj                          # 0..11
                for ci in range(16):
                    A2[di, jin * 16 + ci, base:base + 32] = w2[:, ci, di, dj]
    b2row = np.tile(b2, 8).reshape(1, 256)             # col2 % 32 == co

    # fc1: fold torch's channel-major flatten (view(-1, 32*4*4) on NCHW) and the
    # pooled (h, (w, c)) kernel layout into one (4, 128, 256) weight stack.
    W1 = np.zeros((4, 128, 256), np.float32)
    for h in range(4):
        for jp in range(4):
            for c in range(32):
                W1[h, jp * 32 + c, :] = f1[:, c * 16 + h * 4 + jp]

    # fc2: pad the 2 logits to 128 output lanes (unmasked stores); sliced outside.
    W2 = np.zeros((256, 128), np.float32)
    W2[:, :2] = f2.T
    f2b_pad = np.zeros((1, 128), np.float32)
    f2b_pad[0, :2] = f2b

    return {
        "a1": jnp.asarray(A1),                          # conv1 stays f32 (tiny K)
        "b1": jnp.asarray(b1row),
        "a2": jnp.asarray(A2, dtype=jnp.bfloat16),      # bf16 MXU operands,
        "b2": jnp.asarray(b2row),                       #   f32 accumulation
        "w1": jnp.asarray(W1, dtype=jnp.bfloat16),
        "fb1": jnp.asarray(f1b.reshape(1, 256)),
        "w2": jnp.asarray(W2, dtype=jnp.bfloat16),
        "fb2": jnp.asarray(f2b_pad),
    }


# ---------------------------------------------------------------------------
# Forward pass
# ---------------------------------------------------------------------------

@jax.jit
def cnn_forward(prep, x_nchw):
    B = x_nchw.shape[0]
    assert x_nchw.shape[1:] == (1, 28, 28), "CNN expects (B, 1, 28, 28) inputs"
    bt = 8                                   # conv-friendly tile; many grid steps at large B
    Bp = -(-B // bt) * bt
    x = x_nchw.reshape(B, 28, 28)            # squeeze the Cin=1 dim (no lane padding)
    if Bp != B:
        x = jnp.pad(x, ((0, Bp - B), (0, 0), (0, 0)))
    out = cnn_fused(x, prep, bt=bt)          # (Bp, 128)
    return out[:B, :2]


# ---------------------------------------------------------------------------
# Pure-JAX (XLA) eval-mode reference for validation
# ---------------------------------------------------------------------------

def reference_forward(params, x_nchw):
    dn = ("NCHW", "OIHW", "NCHW")
    x = lax.conv_general_dilated(x_nchw, params["conv1_w"], (1, 1), "VALID",
                                 dimension_numbers=dn)
    x = jax.nn.relu(x + params["conv1_b"][None, :, None, None])
    x = lax.reduce_window(x, -jnp.inf, lax.max, (1, 1, 2, 2), (1, 1, 2, 2), "VALID")
    x = lax.conv_general_dilated(x, params["conv2_w"], (1, 1), "VALID",
                                 dimension_numbers=dn)
    x = jax.nn.relu(x + params["conv2_b"][None, :, None, None])
    x = lax.reduce_window(x, -jnp.inf, lax.max, (1, 1, 2, 2), (1, 1, 2, 2), "VALID")
    x = x.reshape(x.shape[0], -1)                      # channel-major (NCHW) flatten
    x = jax.nn.relu(x @ params["fc1_w"].T + params["fc1_b"])
    return x @ params["fc2_w"].T + params["fc2_b"]


if __name__ == "__main__":
    key = jax.random.PRNGKey(0)
    k_param, k_x = jax.random.split(key)
    params = init_params(k_param)
    prep = prepare_params(params)
    # Input must be (B, 1, 28, 28) for the 32*4*4 flatten to hold.
    x = jax.random.normal(k_x, (2, 1, 28, 28), dtype=jnp.float32)

    out = cnn_forward(prep, x)
    jax.block_until_ready(out)
    assert out.shape == (2, 2)

    # Sanity check vs. the pure-JAX reference (loose tol: bf16 MXU operands).
    ref = reference_forward(params, x)
    err = float(jnp.max(jnp.abs(out - ref)))
    assert err < 5e-2, f"kernel/reference mismatch: max abs err = {err}"

    print("KERNEL_OK")
</pallas_src>

<mosaic_0001>
module attributes {stable_mosaic.version = 11 : i64} {
  func.func @_cnn_fused_kernel(%arg0: i32, %arg1: memref<8x28x28xf32, #tpu.memory_space<vmem>>, %arg2: memref<5x28x384xf32, #tpu.memory_space<vmem>>, %arg3: memref<1x384xf32, #tpu.memory_space<vmem>>, %arg4: memref<5x192x256xbf16, #tpu.memory_space<vmem>>, %arg5: memref<1x256xf32, #tpu.memory_space<vmem>>, %arg6: memref<4x128x256xbf16, #tpu.memory_space<vmem>>, %arg7: memref<1x256xf32, #tpu.memory_space<vmem>>, %arg8: memref<256x128xbf16, #tpu.memory_space<vmem>>, %arg9: memref<1x128xf32, #tpu.memory_space<vmem>>, %arg10: memref<8x128xf32, #tpu.memory_space<vmem>>) attributes {dimension_semantics = [#tpu.dimension_semantics<parallel>], iteration_bounds = array<i64: 1>, scalar_prefetch = 0 : i64, scratch_operands = 0 : i64, tpu.core_type = #tpu.core_type<tc>, window_params = [{transform_indices = @transform_0, window_bounds = array<i64: 8, 28, 28>}, {pipeline_mode = #tpu.pipeline_mode<synchronous>, transform_indices = @transform_1, window_bounds = array<i64: 5, 28, 384>}, {pipeline_mode = #tpu.pipeline_mode<synchronous>, transform_indices = @transform_2, window_bounds = array<i64: 1, 384>}, {pipeline_mode = #tpu.pipeline_mode<synchronous>, transform_indices = @transform_3, window_bounds = array<i64: 5, 192, 256>}, {pipeline_mode = #tpu.pipeline_mode<synchronous>, transform_indices = @transform_4, window_bounds = array<i64: 1, 256>}, {pipeline_mode = #tpu.pipeline_mode<synchronous>, transform_indices = @transform_5, window_bounds = array<i64: 4, 128, 256>}, {pipeline_mode = #tpu.pipeline_mode<synchronous>, transform_indices = @transform_6, window_bounds = array<i64: 1, 256>}, {pipeline_mode = #tpu.pipeline_mode<synchronous>, transform_indices = @transform_7, window_bounds = array<i64: 256, 128>}, {pipeline_mode = #tpu.pipeline_mode<synchronous>, transform_indices = @transform_8, window_bounds = array<i64: 1, 128>}, {transform_indices = @transform_9, window_bounds = array<i64: 8, 128>}]} {
    %cst = arith.constant 0.000000e+00 : f32
    %0 = vector.broadcast %cst : f32 to vector<192x384xf32>
    %c0 = arith.constant 0 : index
    %c0_0 = arith.constant 0 : index
    %c0_1 = arith.constant 0 : index
    %1 = vector.load %arg1[%c0, %c0_0, %c0_1] : memref<8x28x28xf32, #tpu.memory_space<vmem>>, vector<8x24x28xf32>
    %2 = vector.shape_cast %1 : vector<8x24x28xf32> to vector<192x28xf32>
    %c0_2 = arith.constant 0 : index
    %c0_3 = arith.constant 0 : index
    %c0_4 = arith.constant 0 : index
    %3 = vector.load %arg2[%c0_2, %c0_3, %c0_4] : memref<5x28x384xf32, #tpu.memory_space<vmem>>, vector<1x28x384xf32>
    %4 = vector.shape_cast %3 : vector<1x28x384xf32> to vector<28x384xf32>
    %cst_5 = arith.constant dense<0.000000e+00> : vector<192x384xf32>
    %5 = tpu.matmul %2, %4, %cst_5 {dimension_numbers = #tpu.dot_dimension_numbers<[1], [0], [0], [1], [0, 0, 1, 1], [], []>} : vector<192x28xf32>, vector<28x384xf32>, vector<192x384xf32> -> vector<192x384xf32>
    %6 = arith.addf %0, %5 : vector<192x384xf32>
    %c0_6 = arith.constant 0 : index
    %c1 = arith.constant 1 : index
    %c0_7 = arith.constant 0 : index
    %7 = vector.load %arg1[%c0_6, %c1, %c0_7] : memref<8x28x28xf32, #tpu.memory_space<vmem>>, vector<8x24x28xf32>
    %8 = vector.shape_cast %7 : vector<8x24x28xf32> to vector<192x28xf32>
    %c1_8 = arith.constant 1 : index
    %c0_9 = arith.constant 0 : index
    %c0_10 = arith.constant 0 : index
    %9 = vector.load %arg2[%c1_8, %c0_9, %c0_10] : memref<5x28x384xf32, #tpu.memory_space<vmem>>, vector<1x28x384xf32>
    %10 = vector.shape_cast %9 : vector<1x28x384xf32> to vector<28x384xf32>
    %cst_11 = arith.constant dense<0.000000e+00> : vector<192x384xf32>
    %11 = tpu.matmul %8, %10, %cst_11 {dimension_numbers = #tpu.dot_dimension_numbers<[1], [0], [0], [1], [0, 0, 1, 1], [], []>} : vector<192x28xf32>, vector<28x384xf32>, vector<192x384xf32> -> vector<192x384xf32>
    %12 = arith.addf %6, %11 : vector<192x384xf32>
    %c0_12 = arith.constant 0 : index
    %c2 = arith.constant 2 : index
    %c0_13 = arith.constant 0 : index
    %13 = vector.load %arg1[%c0_12, %c2, %c0_13] : memref<8x28x28xf32, #tpu.memory_space<vmem>>, vector<8x24x28xf32>
    %14 = vector.shape_cast %13 : vector<8x24x28xf32> to vector<192x28xf32>
    %c2_14 = arith.constant 2 : index
    %c0_15 = arith.constant 0 : index
    %c0_16 = arith.constant 0 : index
    %15 = vector.load %arg2[%c2_14, %c0_15, %c0_16] : memref<5x28x384xf32, #tpu.memory_space<vmem>>, vector<1x28x384xf32>
    %16 = vector.shape_cast %15 : vector<1x28x384xf32> to vector<28x384xf32>
    %cst_17 = arith.constant dense<0.000000e+00> : vector<192x384xf32>
    %17 = tpu.matmul %14, %16, %cst_17 {dimension_numbers = #tpu.dot_dimension_numbers<[1], [0], [0], [1], [0, 0, 1, 1], [], []>} : vector<192x28xf32>, vector<28x384xf32>, vector<192x384xf32> -> vector<192x384xf32>
    %18 = arith.addf %12, %17 : vector<192x384xf32>
    %c0_18 = arith.constant 0 : index
    %c3 = arith.constant 3 : index
    %c0_19 = arith.constant 0 : index
    %19 = vector.load %arg1[%c0_18, %c3, %c0_19] : memref<8x28x28xf32, #tpu.memory_space<vmem>>, vector<8x24x28xf32>
    %20 = vector.shape_cast %19 : vector<8x24x28xf32> to vector<192x28xf32>
    %c3_20 = arith.constant 3 : index
    %c0_21 = arith.constant 0 : index
    %c0_22 = arith.constant 0 : index
    %21 = vector.load %arg2[%c3_20, %c0_21, %c0_22] : memref<5x28x384xf32, #tpu.memory_space<vmem>>, vector<1x28x384xf32>
    %22 = vector.shape_cast %21 : vector<1x28x384xf32> to vector<28x384xf32>
    %cst_23 = arith.constant dense<0.000000e+00> : vector<192x384xf32>
    %23 = tpu.matmul %20, %22, %cst_23 {dimension_numbers = #tpu.dot_dimension_numbers<[1], [0], [0], [1], [0, 0, 1, 1], [], []>} : vector<192x28xf32>, vector<28x384xf32>, vector<192x384xf32> -> vector<192x384xf32>
    %24 = arith.addf %18, %23 : vector<192x384xf32>
    %c0_24 = arith.constant 0 : index
    %c4 = arith.constant 4 : index
    %c0_25 = arith.constant 0 : index
    %25 = vector.load %arg1[%c0_24, %c4, %c0_25] : memref<8x28x28xf32, #tpu.memory_space<vmem>>, vector<8x24x28xf32>
    %26 = vector.shape_cast %25 : vector<8x24x28xf32> to vector<192x28xf32>
    %c4_26 = arith.constant 4 : index
    %c0_27 = arith.constant 0 : index
    %c0_28 = arith.constant 0 : index
    %27 = vector.load %arg2[%c4_26, %c0_27, %c0_28] : memref<5x28x384xf32, #tpu.memory_space<vmem>>, vector<1x28x384xf32>
    %28 = vector.shape_cast %27 : vector<1x28x384xf32> to vector<28x384xf32>
    %cst_29 = arith.constant dense<0.000000e+00> : vector<192x384xf32>
    %29 = tpu.matmul %26, %28, %cst_29 {dimension_numbers = #tpu.dot_dimension_numbers<[1], [0], [0], [1], [0, 0, 1, 1], [], []>} : vector<192x28xf32>, vector<28x384xf32>, vector<192x384xf32> -> vector<192x384xf32>
    %30 = arith.addf %24, %29 : vector<192x384xf32>
    %c0_30 = arith.constant 0 : index
    %c0_31 = arith.constant 0 : index
    %31 = vector.load %arg3[%c0_30, %c0_31] : memref<1x384xf32, #tpu.memory_space<vmem>>, vector<1x384xf32>
    %32 = vector.broadcast %31 : vector<1x384xf32> to vector<192x384xf32>
    %33 = arith.addf %30, %32 : vector<192x384xf32>
    %cst_32 = arith.constant 0.000000e+00 : f32
    %34 = vector.broadcast %cst_32 : f32 to vector<192x384xf32>
    %35 = arith.maximumf %33, %34 : vector<192x384xf32>
    %36 = vector.shape_cast %35 : vector<192x384xf32> to vector<8x12x2x384xf32>
    %cst_33 = arith.constant dense<0xFF800000> : vector<8x12x384xf32>
    %37 = vector.multi_reduction <maximumf>, %36, %cst_33 [2] : vector<8x12x2x384xf32> to vector<8x12x384xf32>
    %38 = vector.extract_strided_slice %37 {offsets = [0, 0, 0], sizes = [8, 12, 192], strides = [1, 1, 1]} : vector<8x12x384xf32> to vector<8x12x192xf32>
    %39 = vector.extract_strided_slice %37 {offsets = [0, 0, 192], sizes = [8, 12, 192], strides = [1, 1, 1]} : vector<8x12x384xf32> to vector<8x12x192xf32>
    %40 = arith.maximumf %38, %39 : vector<8x12x192xf32>
    %cst_34 = arith.constant 0.000000e+00 : f32
    %41 = vector.broadcast %cst_34 : f32 to vector<64x256xf32>
    %42 = vector.extract_strided_slice %40 {offsets = [0, 0, 0], sizes = [8, 8, 192], strides = [1, 1, 1]} : vector<8x12x192xf32> to vector<8x8x192xf32>
    %43 = vector.shape_cast %42 : vector<8x8x192xf32> to vector<64x192xf32>
    %44 = arith.truncf %43 : vector<64x192xf32> to vector<64x192xbf16>
    %c0_35 = arith.constant 0 : index
    %c0_36 = arith.constant 0 : index
    %c0_37 = arith.constant 0 : index
    %45 = vector.load %arg4[%c0_35, %c0_36, %c0_37] : memref<5x192x256xbf16, #tpu.memory_space<vmem>>, vector<1x192x256xbf16>
    %46 = vector.shape_cast %45 : vector<1x192x256xbf16> to vector<192x256xbf16>
    %cst_38 = arith.constant dense<0.000000e+00> : vector<64x256xf32>
    %47 = tpu.matmul %44, %46, %cst_38 {dimension_numbers = #tpu.dot_dimension_numbers<[1], [0], [0], [1], [0, 0, 1, 1], [], []>} : vector<64x192xbf16>, vector<192x256xbf16>, vector<64x256xf32> -> vector<64x256xf32>
    %48 = arith.addf %41, %47 : vector<64x256xf32>
    %49 = vector.extract_strided_slice %40 {offsets = [0, 1, 0], sizes = [8, 8, 192], strides = [1, 1, 1]} : vector<8x12x192xf32> to vector<8x8x192xf32>
    %50 = vector.shape_cast %49 : vector<8x8x192xf32> to vector<64x192xf32>
    %51 = arith.truncf %50 : vector<64x192xf32> to vector<64x192xbf16>
    %c1_39 = arith.constant 1 : index
    %c0_40 = arith.constant 0 : index
    %c0_41 = arith.constant 0 : index
    %52 = vector.load %arg4[%c1_39, %c0_40, %c0_41] : memref<5x192x256xbf16, #tpu.memory_space<vmem>>, vector<1x192x256xbf16>
    %53 = vector.shape_cast %52 : vector<1x192x256xbf16> to vector<192x256xbf16>
    %cst_42 = arith.constant dense<0.000000e+00> : vector<64x256xf32>
    %54 = tpu.matmul %51, %53, %cst_42 {dimension_numbers = #tpu.dot_dimension_numbers<[1], [0], [0], [1], [0, 0, 1, 1], [], []>} : vector<64x192xbf16>, vector<192x256xbf16>, vector<64x256xf32> -> vector<64x256xf32>
    %55 = arith.addf %48, %54 : vector<64x256xf32>
    %56 = vector.extract_strided_slice %40 {offsets = [0, 2, 0], sizes = [8, 8, 192], strides = [1, 1, 1]} : vector<8x12x192xf32> to vector<8x8x192xf32>
    %57 = vector.shape_cast %56 : vector<8x8x192xf32> to vector<64x192xf32>
    %58 = arith.truncf %57 : vector<64x192xf32> to vector<64x192xbf16>
    %c2_43 = arith.constant 2 : index
    %c0_44 = arith.constant 0 : index
    %c0_45 = arith.constant 0 : index
    %59 = vector.load %arg4[%c2_43, %c0_44, %c0_45] : memref<5x192x256xbf16, #tpu.memory_space<vmem>>, vector<1x192x256xbf16>
    %60 = vector.shape_cast %59 : vector<1x192x256xbf16> to vector<192x256xbf16>
    %cst_46 = arith.constant dense<0.000000e+00> : vector<64x256xf32>
    %61 = tpu.matmul %58, %60, %cst_46 {dimension_numbers = #tpu.dot_dimension_numbers<[1], [0], [0], [1], [0, 0, 1, 1], [], []>} : vector<64x192xbf16>, vector<192x256xbf16>, vector<64x256xf32> -> vector<64x256xf32>
    %62 = arith.addf %55, %61 : vector<64x256xf32>
    %63 = vector.extract_strided_slice %40 {offsets = [0, 3, 0], sizes = [8, 8, 192], strides = [1, 1, 1]} : vector<8x12x192xf32> to vector<8x8x192xf32>
    %64 = vector.shape_cast %63 : vector<8x8x192xf32> to vector<64x192xf32>
    %65 = arith.truncf %64 : vector<64x192xf32> to vector<64x192xbf16>
    %c3_47 = arith.constant 3 : index
    %c0_48 = arith.constant 0 : index
    %c0_49 = arith.constant 0 : index
    %66 = vector.load %arg4[%c3_47, %c0_48, %c0_49] : memref<5x192x256xbf16, #tpu.memory_space<vmem>>, vector<1x192x256xbf16>
    %67 = vector.shape_cast %66 : vector<1x192x256xbf16> to vector<192x256xbf16>
    %cst_50 = arith.constant dense<0.000000e+00> : vector<64x256xf32>
    %68 = tpu.matmul %65, %67, %cst_50 {dimension_numbers = #tpu.dot_dimension_numbers<[1], [0], [0], [1], [0, 0, 1, 1], [], []>} : vector<64x192xbf16>, vector<192x256xbf16>, vector<64x256xf32> -> vector<64x256xf32>
    %69 = arith.addf %62, %68 : vector<64x256xf32>
    %70 = vector.extract_strided_slice %40 {offsets = [0, 4, 0], sizes = [8, 8, 192], strides = [1, 1, 1]} : vector<8x12x192xf32> to vector<8x8x192xf32>
    %71 = vector.shape_cast %70 : vector<8x8x192xf32> to vector<64x192xf32>
    %72 = arith.truncf %71 : vector<64x192xf32> to vector<64x192xbf16>
    %c4_51 = arith.constant 4 : index
    %c0_52 = arith.constant 0 : index
    %c0_53 = arith.constant 0 : index
    %73 = vector.load %arg4[%c4_51, %c0_52, %c0_53] : memref<5x192x256xbf16, #tpu.memory_space<vmem>>, vector<1x192x256xbf16>
    %74 = vector.shape_cast %73 : vector<1x192x256xbf16> to vector<192x256xbf16>
    %cst_54 = arith.constant dense<0.000000e+00> : vector<64x256xf32>
    %75 = tpu.matmul %72, %74, %cst_54 {dimension_numbers = #tpu.dot_dimension_numbers<[1], [0], [0], [1], [0, 0, 1, 1], [], []>} : vector<64x192xbf16>, vector<192x256xbf16>, vector<64x256xf32> -> vector<64x256xf32>
    %76 = arith.addf %69, %75 : vector<64x256xf32>
    %c0_55 = arith.constant 0 : index
    %c0_56 = arith.constant 0 : index
    %77 = vector.load %arg5[%c0_55, %c0_56] : memref<1x256xf32, #tpu.memory_space<vmem>>, vector<1x256xf32>
    %78 = vector.broadcast %77 : vector<1x256xf32> to vector<64x256xf32>
    %79 = arith.addf %76, %78 : vector<64x256xf32>
    %cst_57 = arith.constant 0.000000e+00 : f32
    %80 = vector.broadcast %cst_57 : f32 to vector<64x256xf32>
    %81 = arith.maximumf %79, %80 : vector<64x256xf32>
    %82 = vector.shape_cast %81 : vector<64x256xf32> to vector<8x4x2x256xf32>
    %cst_58 = arith.constant dense<0xFF800000> : vector<8x4x256xf32>
    %83 = vector.multi_reduction <maximumf>, %82, %cst_58 [2] : vector<8x4x2x256xf32> to vector<8x4x256xf32>
    %84 = vector.extract_strided_slice %83 {offsets = [0, 0, 0], sizes = [8, 4, 128], strides = [1, 1, 1]} : vector<8x4x256xf32> to vector<8x4x128xf32>
    %85 = vector.extract_strided_slice %83 {offsets = [0, 0, 128], sizes = [8, 4, 128], strides = [1, 1, 1]} : vector<8x4x256xf32> to vector<8x4x128xf32>
    %86 = arith.maximumf %84, %85 : vector<8x4x128xf32>
    %cst_59 = arith.constant 0.000000e+00 : f32
    %87 = vector.broadcast %cst_59 : f32 to vector<8x256xf32>
    %88 = vector.extract_strided_slice %86 {offsets = [0, 0, 0], sizes = [8, 1, 128], strides = [1, 1, 1]} : vector<8x4x128xf32> to vector<8x1x128xf32>
    %89 = vector.shape_cast %88 : vector<8x1x128xf32> to vector<8x128xf32>
    %90 = arith.truncf %89 : vector<8x128xf32> to vector<8x128xbf16>
    %c0_60 = arith.constant 0 : index
    %c0_61 = arith.constant 0 : index
    %c0_62 = arith.constant 0 : index
    %91 = vector.load %arg6[%c0_60, %c0_61, %c0_62] : memref<4x128x256xbf16, #tpu.memory_space<vmem>>, vector<1x128x256xbf16>
    %92 = vector.shape_cast %91 : vector<1x128x256xbf16> to vector<128x256xbf16>
    %cst_63 = arith.constant dense<0.000000e+00> : vector<8x256xf32>
    %93 = tpu.matmul %90, %92, %cst_63 {dimension_numbers = #tpu.dot_dimension_numbers<[1], [0], [0], [1], [0, 0, 1, 1], [], []>} : vector<8x128xbf16>, vector<128x256xbf16>, vector<8x256xf32> -> vector<8x256xf32>
    %94 = arith.addf %87, %93 : vector<8x256xf32>
    %95 = vector.extract_strided_slice %86 {offsets = [0, 1, 0], sizes = [8, 1, 128], strides = [1, 1, 1]} : vector<8x4x128xf32> to vector<8x1x128xf32>
    %96 = vector.shape_cast %95 : vector<8x1x128xf32> to vector<8x128xf32>
    %97 = arith.truncf %96 : vector<8x128xf32> to vector<8x128xbf16>
    %c1_64 = arith.constant 1 : index
    %c0_65 = arith.constant 0 : index
    %c0_66 = arith.constant 0 : index
    %98 = vector.load %arg6[%c1_64, %c0_65, %c0_66] : memref<4x128x256xbf16, #tpu.memory_space<vmem>>, vector<1x128x256xbf16>
    %99 = vector.shape_cast %98 : vector<1x128x256xbf16> to vector<128x256xbf16>
    %cst_67 = arith.constant dense<0.000000e+00> : vector<8x256xf32>
    %100 = tpu.matmul %97, %99, %cst_67 {dimension_numbers = #tpu.dot_dimension_numbers<[1], [0], [0], [1], [0, 0, 1, 1], [], []>} : vector<8x128xbf16>, vector<128x256xbf16>, vector<8x256xf32> -> vector<8x256xf32>
    %101 = arith.addf %94, %100 : vector<8x256xf32>
    %102 = vector.extract_strided_slice %86 {offsets = [0, 2, 0], sizes = [8, 1, 128], strides = [1, 1, 1]} : vector<8x4x128xf32> to vector<8x1x128xf32>
    %103 = vector.shape_cast %102 : vector<8x1x128xf32> to vector<8x128xf32>
    %104 = arith.truncf %103 : vector<8x128xf32> to vector<8x128xbf16>
    %c2_68 = arith.constant 2 : index
    %c0_69 = arith.constant 0 : index
    %c0_70 = arith.constant 0 : index
    %105 = vector.load %arg6[%c2_68, %c0_69, %c0_70] : memref<4x128x256xbf16, #tpu.memory_space<vmem>>, vector<1x128x256xbf16>
    %106 = vector.shape_cast %105 : vector<1x128x256xbf16> to vector<128x256xbf16>
    %cst_71 = arith.constant dense<0.000000e+00> : vector<8x256xf32>
    %107 = tpu.matmul %104, %106, %cst_71 {dimension_numbers = #tpu.dot_dimension_numbers<[1], [0], [0], [1], [0, 0, 1, 1], [], []>} : vector<8x128xbf16>, vector<128x256xbf16>, vector<8x256xf32> -> vector<8x256xf32>
    %108 = arith.addf %101, %107 : vector<8x256xf32>
    %109 = vector.extract_strided_slice %86 {offsets = [0, 3, 0], sizes = [8, 1, 128], strides = [1, 1, 1]} : vector<8x4x128xf32> to vector<8x1x128xf32>
    %110 = vector.shape_cast %109 : vector<8x1x128xf32> to vector<8x128xf32>
    %111 = arith.truncf %110 : vector<8x128xf32> to vector<8x128xbf16>
    %c3_72 = arith.constant 3 : index
    %c0_73 = arith.constant 0 : index
    %c0_74 = arith.constant 0 : index
    %112 = vector.load %arg6[%c3_72, %c0_73, %c0_74] : memref<4x128x256xbf16, #tpu.memory_space<vmem>>, vector<1x128x256xbf16>
    %113 = vector.shape_cast %112 : vector<1x128x256xbf16> to vector<128x256xbf16>
    %cst_75 = arith.constant dense<0.000000e+00> : vector<8x256xf32>
    %114 = tpu.matmul %111, %113, %cst_75 {dimension_numbers = #tpu.dot_dimension_numbers<[1], [0], [0], [1], [0, 0, 1, 1], [], []>} : vector<8x128xbf16>, vector<128x256xbf16>, vector<8x256xf32> -> vector<8x256xf32>
    %115 = arith.addf %108, %114 : vector<8x256xf32>
    %c0_76 = arith.constant 0 : index
    %c0_77 = arith.constant 0 : index
    %116 = vector.load %arg7[%c0_76, %c0_77] : memref<1x256xf32, #tpu.memory_space<vmem>>, vector<1x256xf32>
    %117 = vector.broadcast %116 : vector<1x256xf32> to vector<8x256xf32>
    %118 = arith.addf %115, %117 : vector<8x256xf32>
    %cst_78 = arith.constant 0.000000e+00 : f32
    %119 = vector.broadcast %cst_78 : f32 to vector<8x256xf32>
    %120 = arith.maximumf %118, %119 : vector<8x256xf32>
    %121 = arith.truncf %120 : vector<8x256xf32> to vector<8x256xbf16>
    %c0_79 = arith.constant 0 : index
    %c0_80 = arith.constant 0 : index
    %122 = vector.load %arg8[%c0_79, %c0_80] : memref<256x128xbf16, #tpu.memory_space<vmem>>, vector<256x128xbf16>
    %cst_81 = arith.constant dense<0.000000e+00> : vector<8x128xf32>
    %123 = tpu.matmul %121, %122, %cst_81 {dimension_numbers = #tpu.dot_dimension_numbers<[1], [0], [0], [1], [0, 0, 1, 1], [], []>} : vector<8x256xbf16>, vector<256x128xbf16>, vector<8x128xf32> -> vector<8x128xf32>
    %c0_82 = arith.constant 0 : index
    %c0_83 = arith.constant 0 : index
    %124 = vector.load %arg9[%c0_82, %c0_83] : memref<1x128xf32, #tpu.memory_space<vmem>>, vector<1x128xf32>
    %125 = vector.broadcast %124 : vector<1x128xf32> to vector<8x128xf32>
    %126 = arith.addf %123, %125 : vector<8x128xf32>
    %c0_84 = arith.constant 0 : index
    %c0_85 = arith.constant 0 : index
    %127 = vector.load %arg10[%c0_84, %c0_85] : memref<8x128xf32, #tpu.memory_space<vmem>>, vector<8x128xf32>
    tpu.vector_store %arg10[%c0_84, %c0_85], %126 {strides = array<i32>} : memref<8x128xf32, #tpu.memory_space<vmem>>, vector<8x128xf32>,
    return
  }
  func.func @transform_0(%arg0: i32) -> (i32, i32, i32) {
    %c0_i32 = arith.constant 0 : i32
    %c0_i32_0 = arith.constant 0 : i32
    %c0_i32_1 = arith.constant 0 : i32
    return %arg0, %c0_i32, %c0_i32_0 : i32, i32, i32
  }
  func.func @transform_1(%arg0: i32) -> (i32, i32, i32) {
    %c0_i32 = arith.constant 0 : i32
    %c0_i32_0 = arith.constant 0 : i32
    %c0_i32_1 = arith.constant 0 : i32
    %c0_i32_2 = arith.constant 0 : i32
    return %c0_i32, %c0_i32_0, %c0_i32_1 : i32, i32, i32
  }
  func.func @transform_2(%arg0: i32) -> (i32, i32) {
    %c0_i32 = arith.constant 0 : i32
    %c0_i32_0 = arith.constant 0 : i32
    %c0_i32_1 = arith.constant 0 : i32
    return %c0_i32, %c0_i32_0 : i32, i32
  }
  func.func @transform_3(%arg0: i32) -> (i32, i32, i32) {
    %c0_i32 = arith.constant 0 : i32
    %c0_i32_0 = arith.constant 0 : i32
    %c0_i32_1 = arith.constant 0 : i32
    %c0_i32_2 = arith.constant 0 : i32
    return %c0_i32, %c0_i32_0, %c0_i32_1 : i32, i32, i32
  }
  func.func @transform_4(%arg0: i32) -> (i32, i32) {
    %c0_i32 = arith.constant 0 : i32
    %c0_i32_0 = arith.constant 0 : i32
    %c0_i32_1 = arith.constant 0 : i32
    return %c0_i32, %c0_i32_0 : i32, i32
  }
  func.func @transform_5(%arg0: i32) -> (i32, i32, i32) {
    %c0_i32 = arith.constant 0 : i32
    %c0_i32_0 = arith.constant 0 : i32
    %c0_i32_1 = arith.constant 0 : i32
    %c0_i32_2 = arith.constant 0 : i32
    return %c0_i32, %c0_i32_0, %c0_i32_1 : i32, i32, i32
  }
  func.func @transform_6(%arg0: i32) -> (i32, i32) {
    %c0_i32 = arith.constant 0 : i32
    %c0_i32_0 = arith.constant 0 : i32
    %c0_i32_1 = arith.constant 0 : i32
    return %c0_i32, %c0_i32_0 : i32, i32
  }
  func.func @transform_7(%arg0: i32) -> (i32, i32) {
    %c0_i32 = arith.constant 0 : i32
    %c0_i32_0 = arith.constant 0 : i32
    %c0_i32_1 = arith.constant 0 : i32
    return %c0_i32, %c0_i32_0 : i32, i32
  }
  func.func @transform_8(%arg0: i32) -> (i32, i32) {
    %c0_i32 = arith.constant 0 : i32
    %c0_i32_0 = arith.constant 0 : i32
    %c0_i32_1 = arith.constant 0 : i32
    return %c0_i32, %c0_i32_0 : i32, i32
  }
  func.func @transform_9(%arg0: i32) -> (i32, i32) {
    %c0_i32 = arith.constant 0 : i32
    %c0_i32_0 = arith.constant 0 : i32
    return %arg0, %c0_i32 : i32, i32
  }
}

</mosaic_0001>

<llo_original>
// kernel: cnn_forward.1
$region0: #{cnn_forward.1}
  #allocation0 [shape = 'u32[]', space=smem, size = 0x4, offset = 0x4, fixed_abs, tag = 'smem constant byte address 0x4 - core index']
  #allocation1 [shape = 'u32[72,128]{1,0:T(1,128)}', space=vmem, size = 0x9000, scoped, tag = 'internal scratch']
  %s0 = inlined_call_operand.vmem [shape: f32[8,28,28], index: 0, kind: input, shape index: {}]
  %s1 = inlined_call_operand.hbm [shape: f32[5,28,384], index: 1, kind: input, shape index: {}]
  %s2 = inlined_call_operand.vmem [shape: f32[1,384], index: 2, kind: input, shape index: {}]
  %s3 = inlined_call_operand.hbm [shape: bf16[5,192,256], index: 3, kind: input, shape index: {}]
  %s4 = inlined_call_operand.vmem [shape: f32[1,256], index: 4, kind: input, shape index: {}]
  %s5 = inlined_call_operand.vmem [shape: bf16[4,128,256], index: 5, kind: input, shape index: {}]
  %s6 = inlined_call_operand.vmem [shape: f32[1,256], index: 6, kind: input, shape index: {}]
  %s7 = inlined_call_operand.hbm [shape: bf16[256,128], index: 7, kind: input, shape index: {}]
  %s8 = inlined_call_operand.vmem [shape: f32[1,128], index: 8, kind: input, shape index: {}]
  %s9 = inlined_call_operand.vmem [shape: f32[8,128], index: 9, kind: output, shape index: {}]
  %s10 = sld [smem:[#allocation0]]
  $region58: #{cnn_forward.1} parent=0
    _
  %s12 = ssub.s32 1, %s10
  %s13 = scalar_select 0, %s12, %s10
  $region1: #{cnn_forward.1} parent=0
    #allocation2 [shape = 'u8[245760]{0}', space=vmem, size = 0x3c000, scoped, tag = 'input window, operand 1, single buffered']
    #allocation3 [shape = 's32[1]{0}', space=sflag, size = 0x4, scoped, tag = 'scoped memory for cnn_forward.1']
    #allocation4 [shape = 'u8[491520]{0}', space=vmem, size = 0x78000, scoped, tag = 'input window, operand 3, single buffered']
    #allocation5 [shape = 's32[1]{0}', space=sflag, size = 0x4, scoped, tag = 'scoped memory for cnn_forward.1']
    #allocation6 [shape = 'u8[65536]{0}', space=vmem, size = 0x10000, scoped, tag = 'input window, operand 7, single buffered']
    %14 = vsyncpa [#allocation3], 0
    %15 = vsyncpa [#allocation5], 0
    // Predicated region
    $region2: #{cnn_forward.1} parent=1 // pred_check
      _
    $region3: #{cnn_forward.1} parent=1 // pred_check_branch
      %17 = sbr.rel (0) target = $region5
    $region4: #{cnn_forward.1} parent=1 // pred_region
      _
    $region5: #{cnn_forward.1} parent=1 // pred_fallthru
      _
    // Predicated region
    $region6: #{cnn_forward.1} parent=1 // pred_check
      _
    $region7: #{cnn_forward.1} parent=1 // pred_check_branch
      %19 = sbr.rel (0) target = $region9
    $region8: #{cnn_forward.1} parent=1 // pred_region
      %21 = vsyncadd [#allocation3], 0
      %s22 = sshll.u32 %s1, 4
      %s23 = int_to_ptr.hbm [resolvable:$true] %s22
      %s24 = sshll.u32 [#allocation2], 4
      %s25 = int_to_ptr.vmem [resolvable:$true] %s24
      %30 = dma.hbm_to_vmem [thread:$0]  %s23, 7680, %s25, [#allocation3], 384, 384, 24
    $region9: #{cnn_forward.1} parent=1 // pred_fallthru
      _
    // Predicated region
    $region10: #{cnn_forward.1} parent=1 // pred_check
      _
    $region11: #{cnn_forward.1} parent=1 // pred_check_branch
      %32 = sbr.rel (0) target = $region13
    $region12: #{cnn_forward.1} parent=1 // pred_region
      _
    $region13: #{cnn_forward.1} parent=1 // pred_fallthru
      _
    // Predicated region
    $region14: #{cnn_forward.1} parent=1 // pred_check
      _
    $region15: #{cnn_forward.1} parent=1 // pred_check_branch
      %34 = sbr.rel (0) target = $region17
    $region16: #{cnn_forward.1} parent=1 // pred_region
      %36 = vsyncadd [#allocation5], 0
      %s37 = sshll.u32 %s3, 4
      %s38 = int_to_ptr.hbm [resolvable:$true] %s37
      %s39 = sshll.u32 [#allocation4], 4
      %s40 = int_to_ptr.vmem [resolvable:$true] %s39
      %45 = dma.hbm_to_vmem [thread:$0]  %s38, 15360, %s40, [#allocation5], 128, 128, 8
    $region17: #{cnn_forward.1} parent=1 // pred_fallthru
      _
    // Predicated region
    $region18: #{cnn_forward.1} parent=1 // pred_check
      _
    $region19: #{cnn_forward.1} parent=1 // pred_check_branch
      %47 = sbr.rel (0) target = $region21
    $region20: #{cnn_forward.1} parent=1 // pred_region
      _
    $region21: #{cnn_forward.1} parent=1 // pred_fallthru
      _
    // Predicated region
    $region22: #{cnn_forward.1} parent=1 // pred_check
      _
    $region23: #{cnn_forward.1} parent=1 // pred_check_branch
      %49 = sbr.rel (0) target = $region25
    $region24: #{cnn_forward.1} parent=1 // pred_region
      _
    $region25: #{cnn_forward.1} parent=1 // pred_fallthru
      _
    // Predicated region
    $region26: #{cnn_forward.1} parent=1 // pred_check
      _
    $region27: #{cnn_forward.1} parent=1 // pred_check_branch
      %51 = sbr.rel (0) target = $region29
    $region28: #{cnn_forward.1} parent=1 // pred_region
      _
    $region29: #{cnn_forward.1} parent=1 // pred_fallthru
      _
    // Predicated region
    $region30: #{cnn_forward.1} parent=1 // pred_check
      _
    $region31: #{cnn_forward.1} parent=1 // pred_check_branch
      %53 = sbr.rel (0) target = $region33
    $region32: #{cnn_forward.1} parent=1 // pred_region
      %55 = vsyncadd [#allocation5], 0
      %s56 = sshll.u32 %s7, 4
      %s57 = int_to_ptr.hbm [resolvable:$true] %s56
      %s58 = sshll.u32 [#allocation6], 4
      %s59 = int_to_ptr.vmem [resolvable:$true] %s58
      %64 = dma.hbm_to_vmem [thread:$0]  %s57, 2048, %s59, [#allocation5], 64, 64, 4
    $region33: #{cnn_forward.1} parent=1 // pred_fallthru
      _
    // Predicated region
    $region34: #{cnn_forward.1} parent=1 // pred_check
      _
    $region35: #{cnn_forward.1} parent=1 // pred_check_branch
      %66 = sbr.rel (0) target = $region37
    $region36: #{cnn_forward.1} parent=1 // pred_region
      _
    $region37: #{cnn_forward.1} parent=1 // pred_fallthru
      _
    // Predicated region
    $region38: #{cnn_forward.1} parent=1 // pred_check
      _
    $region39: #{cnn_forward.1} parent=1 // pred_check_branch
      %68 = sbr.rel (0) target = $region41
    $region40: #{cnn_forward.1} parent=1 // pred_region
      %70 = dma.done [#allocation3], 7680
    $region41: #{cnn_forward.1} parent=1 // pred_fallthru
      _
    // Predicated region
    $region42: #{cnn_forward.1} parent=1 // pred_check
      _
    $region43: #{cnn_forward.1} parent=1 // pred_check_branch
      %72 = sbr.rel (0) target = $region45
    $region44: #{cnn_forward.1} parent=1 // pred_region
      %74 = dma.done [#allocation5], 15360
    $region45: #{cnn_forward.1} parent=1 // pred_fallthru
      _
    // Predicated region
    $region46: #{cnn_forward.1} parent=1 // pred_check
      _
    $region47: #{cnn_forward.1} parent=1 // pred_check_branch
      %76 = sbr.rel (0) target = $region49
    $region48: #{cnn_forward.1} parent=1 // pred_region
      %78 = dma.done [#allocation5], 2048
    $region49: #{cnn_forward.1} parent=1 // pred_fallthru
      _
    %v80 = vld [vmem:[%s0] sm:$0xff]
    %v81 = vld [vmem:[%s0 + $0x8] sm:$0xff]
    %v82 = vld [vmem:[%s0 + $0x10] sm:$0xff]
    %v83 = vld [vmem:[%s0 + $0x20] sm:$0xff]
    %v84 = vld [vmem:[%s0 + $0x28] sm:$0xff]
    %v85 = vld [vmem:[%s0 + $0x30] sm:$0xff]
    %v86 = vld [vmem:[%s0 + $0x40] sm:$0xff]
    %v87 = vld [vmem:[%s0 + $0x48] sm:$0xff]
    %v88 = vld [vmem:[%s0 + $0x50] sm:$0xff]
    %v89 = vld [vmem:[%s0 + $0x60] sm:$0xff]
    %v90 = vld [vmem:[%s0 + $0x68] sm:$0xff]
    %v91 = vld [vmem:[%s0 + $0x70] sm:$0xff]
    %v92 = vld [vmem:[%s0 + $0x80] sm:$0xff]
    %v93 = vld [vmem:[%s0 + $0x88] sm:$0xff]
    %v94 = vld [vmem:[%s0 + $0x90] sm:$0xff]
    %v95 = vld [vmem:[%s0 + $0xa0] sm:$0xff]
    %v96 = vld [vmem:[%s0 + $0xa8] sm:$0xff]
    %v97 = vld [vmem:[%s0 + $0xb0] sm:$0xff]
    %v98 = vld [vmem:[%s0 + $0xc0] sm:$0xff]
    %v99 = vld [vmem:[%s0 + $0xc8] sm:$0xff]
    %v100 = vld [vmem:[%s0 + $0xd0] sm:$0xff]
    %v101 = vld [vmem:[%s0 + $0xe0] sm:$0xff]
    %v102 = vld [vmem:[%s0 + $0xe8] sm:$0xff]
    %v103 = vld [vmem:[%s0 + $0xf0] sm:$0xff]
    %v104 = vld [vmem:[#allocation2] sm:$0xff]
    %v105 = vld [vmem:[#allocation2 + $0x8] sm:$0xff]
    %v106 = vld [vmem:[#allocation2 + $0x10] sm:$0xff]
    %v107 = vld [vmem:[#allocation2 + $0x18] sm:$0xff]
    %v108 = vld [vmem:[#allocation2 + $0x20] sm:$0xff]
    %v109 = vld [vmem:[#allocation2 + $0x28] sm:$0xff]
    %v110 = vld [vmem:[#allocation2 + $0x30] sm:$0xff]
    %v111 = vld [vmem:[#allocation2 + $0x38] sm:$0xff]
    %v112 = vld [vmem:[#allocation2 + $0x40] sm:$0xff]
    %v113 = vld [vmem:[#allocation2 + $0x48] sm:$0xf]
    %v114 = vld [vmem:[#allocation2 + $0x50] sm:$0xf]
    %v115 = vld [vmem:[#allocation2 + $0x58] sm:$0xf]
    %v116 = vld [vmem:[%s0 + $0x1] sm:$0xff]
    %v117 = vld [vmem:[%s0 + $0x9] sm:$0xff]
    %v118 = vld [vmem:[%s0 + $0x11] sm:$0xff]
    %v119 = vld [vmem:[%s0 + $0x21] sm:$0xff]
    %v120 = vld [vmem:[%s0 + $0x29] sm:$0xff]
    %v121 = vld [vmem:[%s0 + $0x31] sm:$0xff]
    %v122 = vld [vmem:[%s0 + $0x41] sm:$0xff]
    %v123 = vld [vmem:[%s0 + $0x49] sm:$0xff]
    %v124 = vld [vmem:[%s0 + $0x51] sm:$0xff]
    %v125 = vld [vmem:[%s0 + $0x61] sm:$0xff]
    %v126 = vld [vmem:[%s0 + $0x69] sm:$0xff]
    %v127 = vld [vmem:[%s0 + $0x71] sm:$0xff]
    %v128 = vld [vmem:[%s0 + $0x81] sm:$0xff]
    %v129 = vld [vmem:[%s0 + $0x89] sm:$0xff]
    %v130 = vld [vmem:[%s0 + $0x91] sm:$0xff]
    %v131 = vld [vmem:[%s0 + $0xa1] sm:$0xff]
    %v132 = vld [vmem:[%s0 + $0xa9] sm:$0xff]
    %v133 = vld [vmem:[%s0 + $0xb1] sm:$0xff]
    %v134 = vld [vmem:[%s0 + $0xc1] sm:$0xff]
    %v135 = vld [vmem:[%s0 + $0xc9] sm:$0xff]
    %v136 = vld [vmem:[%s0 + $0xd1] sm:$0xff]
    %v137 = vld [vmem:[%s0 + $0xe1] sm:$0xff]
    %v138 = vld [vmem:[%s0 + $0xe9] sm:$0xff]
    %v139 = vld [vmem:[%s0 + $0xf1] sm:$0xff]
    %s140 = scalar_lea.vmem [#allocation2], 96
    %v141 = vld [vmem:[%s140] sm:$0xff]
    %v142 = vld [vmem:[%s140 + $0x8] sm:$0xff]
    %v143 = vld [vmem:[%s140 + $0x10] sm:$0xff]
    %v144 = vld [vmem:[%s140 + $0x18] sm:$0xff]
    %v145 = vld [vmem:[%s140 + $0x20] sm:$0xff]
    %v146 = vld [vmem:[%s140 + $0x28] sm:$0xff]
    %v147 = vld [vmem:[%s140 + $0x30] sm:$0xff]
    %v148 = vld [vmem:[%s140 + $0x38] sm:$0xff]
    %v149 = vld [vmem:[%s140 + $0x40] sm:$0xff]
    %v150 = vld [vmem:[%s140 + $0x48] sm:$0xf]
    %v151 = vld [vmem:[%s140 + $0x50] sm:$0xf]
    %v152 = vld [vmem:[%s140 + $0x58] sm:$0xf]
    %vm153 = vcmask 228352
    %v155 = vsel %vm153, %v116, 0
    %v158 = vsel %vm153, %v117, 0
    %v161 = vsel %vm153, %v118, 0
    %v164 = vsel %vm153, %v119, 0
    %v167 = vsel %vm153, %v120, 0
    %v170 = vsel %vm153, %v121, 0
    %v173 = vsel %vm153, %v122, 0
    %v176 = vsel %vm153, %v123, 0
    %v179 = vsel %vm153, %v124, 0
    %v182 = vsel %vm153, %v125, 0
    %v185 = vsel %vm153, %v126, 0
    %v188 = vsel %vm153, %v127, 0
    %v191 = vsel %vm153, %v128, 0
    %v194 = vsel %vm153, %v129, 0
    %v197 = vsel %vm153, %v130, 0
    %v200 = vsel %vm153, %v131, 0
    %v203 = vsel %vm153, %v132, 0
    %v206 = vsel %vm153, %v133, 0
    %v209 = vsel %vm153, %v134, 0
    %v212 = vsel %vm153, %v135, 0
    %v215 = vsel %vm153, %v136, 0
    %v218 = vsel %vm153, %v137, 0
    %v221 = vsel %vm153, %v138, 0
    %v224 = vsel %vm153, %v139, 0
    %vm226 = vcmask 1043456
    %v228 = vsel %vm226, %v150, 0
    %v231 = vsel %vm226, %v151, 0
    %v234 = vsel %vm226, %v152, 0
    %236 = vmatpush.msra.mxu0 0.0
    %237 = vmatpush.msra.mxu0 0.0
    %238 = vmatpush.msra.mxu0 0.0
    %239 = vmatpush.msra.mxu0 0.0
    %240 = vmatpush.msra.mxu0 0.0
    %241 = vmatpush.msra.mxu0 0.0
    %242 = vmatpush.msra.mxu0 0.0
    %243 = vmatpush.msra.mxu0 0.0
    %244 = vmatpush.msra.mxu0 0.0
    %245 = vmatpush.msra.mxu0 0.0
    %246 = vmatpush.msra.mxu0 0.0
    %247 = vmatpush.msra.mxu0 0.0
    %248 = vmatpush.msra.mxu0 %v228
    %249 = vmatpush.msra.mxu0 %v147
    %250 = vmatpush.msra.mxu0 %v144
    %251 = vmatpush.msra.mxu0 %v141
    %252 = vmatmul.f32.gmra.mxu0 %v155
    %v253 = vpop.f32.mrf.mxu0
    %v254 = vadd.f32 0.0, %v253
    %255 = vmatmul.f32.gmra.mxu0 %v158
    %v256 = vpop.f32.mrf.mxu0
    %v257 = vadd.f32 0.0, %v256
    %258 = vmatmul.f32.gmra.mxu0 %v161
    %v259 = vpop.f32.mrf.mxu0
    %v260 = vadd.f32 0.0, %v259
    %261 = vmatmul.f32.gmra.mxu0 %v164
    %v262 = vpop.f32.mrf.mxu0
    %v263 = vadd.f32 0.0, %v262
    %264 = vmatmul.f32.gmra.mxu0 %v167
    %v265 = vpop.f32.mrf.mxu0
    %v266 = vadd.f32 0.0, %v265
    %267 = vmatmul.f32.gmra.mxu0 %v170
    %v268 = vpop.f32.mrf.mxu0
    %v269 = vadd.f32 0.0, %v268
    %270 = vmatmul.f32.gmra.mxu0 %v173
    %v271 = vpop.f32.mrf.mxu0
    %v272 = vadd.f32 0.0, %v271
    %273 = vmatmul.f32.gmra.mxu0 %v176
    %v274 = vpop.f32.mrf.mxu0
    %v275 = vadd.f32 0.0, %v274
    %276 = vmatmul.f32.gmra.mxu0 %v179
    %v277 = vpop.f32.mrf.mxu0
    %v278 = vadd.f32 0.0, %v277
    %279 = vmatmul.f32.gmra.mxu0 %v182
    %v280 = vpop.f32.mrf.mxu0
    %v281 = vadd.f32 0.0, %v280
    %282 = vmatmul.f32.gmra.mxu0 %v185
    %v283 = vpop.f32.mrf.mxu0
    %v284 = vadd.f32 0.0, %v283
    %285 = vmatmul.f32.gmra.mxu0 %v188
    %v286 = vpop.f32.mrf.mxu0
    %v287 = vadd.f32 0.0, %v286
    %288 = vmatmul.f32.gmra.mxu0 %v191
    %v289 = vpop.f32.mrf.mxu0
    %v290 = vadd.f32 0.0, %v289
    %291 = vmatmul.f32.gmra.mxu0 %v194
    %v292 = vpop.f32.mrf.mxu0
    %v293 = vadd.f32 0.0, %v292
    %294 = vmatmul.f32.gmra.mxu0 %v197
    %v295 = vpop.f32.mrf.mxu0
    %v296 = vadd.f32 0.0, %v295
    %297 = vmatmul.f32.gmra.mxu0 %v200
    %v298 = vpop.f32.mrf.mxu0
    %v299 = vadd.f32 0.0, %v298
    %300 = vmatmul.f32.gmra.mxu0 %v203
    %v301 = vpop.f32.mrf.mxu0
    %v302 = vadd.f32 0.0, %v301
    %303 = vmatmul.f32.gmra.mxu0 %v206
    %v304 = vpop.f32.mrf.mxu0
    %v305 = vadd.f32 0.0, %v304
    %306 = vmatmul.f32.gmra.mxu0 %v209
    %v307 = vpop.f32.mrf.mxu0
    %v308 = vadd.f32 0.0, %v307
    %309 = vmatmul.f32.gmra.mxu0 %v212
    %v310 = vpop.f32.mrf.mxu0
    %v311 = vadd.f32 0.0, %v310
    %312 = vmatmul.f32.gmra.mxu0 %v215
    %v313 = vpop.f32.mrf.mxu0
    %v314 = vadd.f32 0.0, %v313
    %315 = vmatmul.f32.gmra.mxu0 %v218
    %v316 = vpop.f32.mrf.mxu0
    %v317 = vadd.f32 0.0, %v316
    %318 = vmatmul.f32.gmra.mxu0 %v221
    %v319 = vpop.f32.mrf.mxu0
    %v320 = vadd.f32 0.0, %v319
    %321 = vmatmul.f32.gmra.mxu0 %v224
    %v322 = vpop.f32.mrf.mxu0
    %v323 = vadd.f32 0.0, %v322
    %324 = vdwg.mxu0
    %325 = vmatpush.msra.mxu0 0.0
    %326 = vmatpush.msra.mxu0 0.0
    %327 = vmatpush.msra.mxu0 0.0
    %328 = vmatpush.msra.mxu0 0.0
    %329 = vmatpush.msra.mxu0 0.0
    %330 = vmatpush.msra.mxu0 0.0
    %331 = vmatpush.msra.mxu0 0.0
    %332 = vmatpush.msra.mxu0 0.0
    %333 = vmatpush.msra.mxu0 0.0
    %334 = vmatpush.msra.mxu0 0.0
    %335 = vmatpush.msra.mxu0 0.0
    %336 = vmatpush.msra.mxu0 0.0
    %337 = vmatpush.msra.mxu0 %v231
    %338 = vmatpush.msra.mxu0 %v148
    %339 = vmatpush.msra.mxu0 %v145
    %340 = vmatpush.msra.mxu0 %v142
    %341 = vmatmul.f32.gmra.mxu0 %v155
    %v342 = vpop.f32.mrf.mxu0
    %v343 = vadd.f32 0.0, %v342
    %344 = vmatmul.f32.gmra.mxu0 %v158
    %v345 = vpop.f32.mrf.mxu0
    %v346 = vadd.f32 0.0, %v345
    %347 = vmatmul.f32.gmra.mxu0 %v161
    %v348 = vpop.f32.mrf.mxu0
    %v349 = vadd.f32 0.0, %v348
    %350 = vmatmul.f32.gmra.mxu0 %v164
    %v351 = vpop.f32.mrf.mxu0
    %v352 = vadd.f32 0.0, %v351
    %353 = vmatmul.f32.gmra.mxu0 %v167
    %v354 = vpop.f32.mrf.mxu0
    %v355 = vadd.f32 0.0, %v354
    %356 = vmatmul.f32.gmra.mxu0 %v170
    %v357 = vpop.f32.mrf.mxu0
    %v358 = vadd.f32 0.0, %v357
    %359 = vmatmul.f32.gmra.mxu0 %v173
    %v360 = vpop.f32.mrf.mxu0
    %v361 = vadd.f32 0.0, %v360
    %362 = vmatmul.f32.gmra.mxu0 %v176
    %v363 = vpop.f32.mrf.mxu0
    %v364 = vadd.f32 0.0, %v363
    %365 = vmatmul.f32.gmra.mxu0 %v179
    %v366 = vpop.f32.mrf.mxu0
    %v367 = vadd.f32 0.0, %v366
    %368 = vmatmul.f32.gmra.mxu0 %v182
    %v369 = vpop.f32.mrf.mxu0
    %v370 = vadd.f32 0.0, %v369
    %371 = vmatmul.f32.gmra.mxu0 %v185
    %v372 = vpop.f32.mrf.mxu0
    %v373 = vadd.f32 0.0, %v372
    %374 = vmatmul.f32.gmra.mxu0 %v188
    %v375 = vpop.f32.mrf.mxu0
    %v376 = vadd.f32 0.0, %v375
    %377 = vmatmul.f32.gmra.mxu0 %v191
    %v378 = vpop.f32.mrf.mxu0
    %v379 = vadd.f32 0.0, %v378
    %380 = vmatmul.f32.gmra.mxu0 %v194
    %v381 = vpop.f32.mrf.mxu0
    %v382 = vadd.f32 0.0, %v381
    %383 = vmatmul.f32.gmra.mxu0 %v197
    %v384 = vpop.f32.mrf.mxu0
    %v385 = vadd.f32 0.0, %v384
    %386 = vmatmul.f32.gmra.mxu0 %v200
    %v387 = vpop.f32.mrf.mxu0
    %v388 = vadd.f32 0.0, %v387
    %389 = vmatmul.f32.gmra.mxu0 %v203
    %v390 = vpop.f32.mrf.mxu0
    %v391 = vadd.f32 0.0, %v390
    %392 = vmatmul.f32.gmra.mxu0 %v206
    %v393 = vpop.f32.mrf.mxu0
    %v394 = vadd.f32 0.0, %v393
    %395 = vmatmul.f32.gmra.mxu0 %v209
    %v396 = vpop.f32.mrf.mxu0
    %v397 = vadd.f32 0.0, %v396
    %398 = vmatmul.f32.gmra.mxu0 %v212
    %v399 = vpop.f32.mrf.mxu0
    %v400 = vadd.f32 0.0, %v399
    %401 = vmatmul.f32.gmra.mxu0 %v215
    %v402 = vpop.f32.mrf.mxu0
    %v403 = vadd.f32 0.0, %v402
    %404 = vmatmul.f32.gmra.mxu0 %v218
    %v405 = vpop.f32.mrf.mxu0
    %v406 = vadd.f32 0.0, %v405
    %407 = vmatmul.f32.gmra.mxu0 %v221
    %v408 = vpop.f32.mrf.mxu0
    %v409 = vadd.f32 0.0, %v408
    %410 = vmatmul.f32.gmra.mxu0 %v224
    %v411 = vpop.f32.mrf.mxu0
    %v412 = vadd.f32 0.0, %v411
    %413 = vdwg.mxu0
    %414 = vmatpush.msra.mxu0 0.0
    %415 = vmatpush.msra.mxu0 0.0
    %416 = vmatpush.msra.mxu0 0.0
    %417 = vmatpush.msra.mxu0 0.0
    %418 = vmatpush.msra.mxu0 0.0
    %419 = vmatpush.msra.mxu0 0.0
    %420 = vmatpush.msra.mxu0 0.0
    %421 = vmatpush.msra.mxu0 0.0
    %422 = vmatpush.msra.mxu0 0.0
    %423 = vmatpush.msra.mxu0 0.0
    %424 = vmatpush.msra.mxu0 0.0
    %425 = vmatpush.msra.mxu0 0.0
    %426 = vmatpush.msra.mxu0 %v234
    %427 = vmatpush.msra.mxu0 %v149
    %428 = vmatpush.msra.mxu0 %v146
    %429 = vmatpush.msra.mxu0 %v143
    %430 = vmatmul.f32.gmra.mxu0 %v155
    %v431 = vpop.f32.mrf.mxu0
    %v432 = vadd.f32 0.0, %v431
    %433 = vmatmul.f32.gmra.mxu0 %v158
    %v434 = vpop.f32.mrf.mxu0
    %v435 = vadd.f32 0.0, %v434
    %436 = vmatmul.f32.gmra.mxu0 %v161
    %v437 = vpop.f32.mrf.mxu0
    %v438 = vadd.f32 0.0, %v437
    %439 = vmatmul.f32.gmra.mxu0 %v164
    %v440 = vpop.f32.mrf.mxu0
    %v441 = vadd.f32 0.0, %v440
    %442 = vmatmul.f32.gmra.mxu0 %v167
    %v443 = vpop.f32.mrf.mxu0
    %v444 = vadd.f32 0.0, %v443
    %445 = vmatmul.f32.gmra.mxu0 %v170
    %v446 = vpop.f32.mrf.mxu0
    %v447 = vadd.f32 0.0, %v446
    %448 = vmatmul.f32.gmra.mxu0 %v173
    %v449 = vpop.f32.mrf.mxu0
    %v450 = vadd.f32 0.0, %v449
    %451 = vmatmul.f32.gmra.mxu0 %v176
    %v452 = vpop.f32.mrf.mxu0
    %v453 = vadd.f32 0.0, %v452
    %454 = vmatmul.f32.gmra.mxu0 %v179
    %v455 = vpop.f32.mrf.mxu0
    %v456 = vadd.f32 0.0, %v455
    %457 = vmatmul.f32.gmra.mxu0 %v182
    %v458 = vpop.f32.mrf.mxu0
    %v459 = vadd.f32 0.0, %v458
    %460 = vmatmul.f32.gmra.mxu0 %v185
    %v461 = vpop.f32.mrf.mxu0
    %v462 = vadd.f32 0.0, %v461
    %463 = vmatmul.f32.gmra.mxu0 %v188
    %v464 = vpop.f32.mrf.mxu0
    %v465 = vadd.f32 0.0, %v464
    %466 = vmatmul.f32.gmra.mxu0 %v191
    %v467 = vpop.f32.mrf.mxu0
    %v468 = vadd.f32 0.0, %v467
    %469 = vmatmul.f32.gmra.mxu0 %v194
    %v470 = vpop.f32.mrf.mxu0
    %v471 = vadd.f32 0.0, %v470
    %472 = vmatmul.f32.gmra.mxu0 %v197
    %v473 = vpop.f32.mrf.mxu0
    %v474 = vadd.f32 0.0, %v473
    %475 = vmatmul.f32.gmra.mxu0 %v200
    %v476 = vpop.f32.mrf.mxu0
    %v477 = vadd.f32 0.0, %v476
    %478 = vmatmul.f32.gmra.mxu0 %v203
    %v479 = vpop.f32.mrf.mxu0
    %v480 = vadd.f32 0.0, %v479
    %481 = vmatmul.f32.gmra.mxu0 %v206
    %v482 = vpop.f32.mrf.mxu0
    %v483 = vadd.f32 0.0, %v482
    %484 = vmatmul.f32.gmra.mxu0 %v209
    %v485 = vpop.f32.mrf.mxu0
    %v486 = vadd.f32 0.0, %v485
    %487 = vmatmul.f32.gmra.mxu0 %v212
    %v488 = vpop.f32.mrf.mxu0
    %v489 = vadd.f32 0.0, %v488
    %490 = vmatmul.f32.gmra.mxu0 %v215
    %v491 = vpop.f32.mrf.mxu0
    %v492 = vadd.f32 0.0, %v491
    %493 = vmatmul.f32.gmra.mxu0 %v218
    %v494 = vpop.f32.mrf.mxu0
    %v495 = vadd.f32 0.0, %v494
    %496 = vmatmul.f32.gmra.mxu0 %v221
    %v497 = vpop.f32.mrf.mxu0
    %v498 = vadd.f32 0.0, %v497
    %499 = vmatmul.f32.gmra.mxu0 %v224
    %v500 = vpop.f32.mrf.mxu0
    %v501 = vadd.f32 0.0, %v500
    %502 = vdwg.mxu0
    %v504 = vsel %vm153, %v80, 0
    %v507 = vsel %vm153, %v81, 0
    %v510 = vsel %vm153, %v82, 0
    %v513 = vsel %vm153, %v83, 0
    %v516 = vsel %vm153, %v84, 0
    %v519 = vsel %vm153, %v85, 0
    %v522 = vsel %vm153, %v86, 0
    %v525 = vsel %vm153, %v87, 0
    %v528 = vsel %vm153, %v88, 0
    %v531 = vsel %vm153, %v89, 0
    %v534 = vsel %vm153, %v90, 0
    %v537 = vsel %vm153, %v91, 0
    %v540 = vsel %vm153, %v92, 0
    %v543 = vsel %vm153, %v93, 0
    %v546 = vsel %vm153, %v94, 0
    %v549 = vsel %vm153, %v95, 0
    %v552 = vsel %vm153, %v96, 0
    %v555 = vsel %vm153, %v97, 0
    %v558 = vsel %vm153, %v98, 0
    %v561 = vsel %vm153, %v99, 0
    %v564 = vsel %vm153, %v100, 0
    %v567 = vsel %vm153, %v101, 0
    %v570 = vsel %vm153, %v102, 0
    %v573 = vsel %vm153, %v103, 0
    %v576 = vsel %vm226, %v113, 0
    %v579 = vsel %vm226, %v114, 0
    %v582 = vsel %vm226, %v115, 0
    %584 = vmatpush.msra.mxu0 0.0
    %585 = vmatpush.msra.mxu0 0.0
    %586 = vmatpush.msra.mxu0 0.0
    %587 = vmatpush.msra.mxu0 0.0
    %588 = vmatpush.msra.mxu0 0.0
    %589 = vmatpush.msra.mxu0 0.0
    %590 = vmatpush.msra.mxu0 0.0
    %591 = vmatpush.msra.mxu0 0.0
    %592 = vmatpush.msra.mxu0 0.0
    %593 = vmatpush.msra.mxu0 0.0
    %594 = vmatpush.msra.mxu0 0.0
    %595 = vmatpush.msra.mxu0 0.0
    %596 = vmatpush.msra.mxu0 %v576
    %597 = vmatpush.msra.mxu0 %v110
    %598 = vmatpush.msra.mxu0 %v107
    %599 = vmatpush.msra.mxu0 %v104
    %600 = vmatmul.f32.gmra.mxu0 %v504
    %v601 = vpop.f32.mrf.mxu0
    %v602 = vadd.f32 %v254, %v601
    %603 = vmatmul.f32.gmra.mxu0 %v507
    %v604 = vpop.f32.mrf.mxu0
    %v605 = vadd.f32 %v257, %v604
    %606 = vmatmul.f32.gmra.mxu0 %v510
    %v607 = vpop.f32.mrf.mxu0
    %v608 = vadd.f32 %v260, %v607
    %609 = vmatmul.f32.gmra.mxu0 %v513
    %v610 = vpop.f32.mrf.mxu0
    %v611 = vadd.f32 %v263, %v610
    %612 = vmatmul.f32.gmra.mxu0 %v516
    %v613 = vpop.f32.mrf.mxu0
    %v614 = vadd.f32 %v266, %v613
    %615 = vmatmul.f32.gmra.mxu0 %v519
    %v616 = vpop.f32.mrf.mxu0
    %v617 = vadd.f32 %v269, %v616
    %618 = vmatmul.f32.gmra.mxu0 %v522
    %v619 = vpop.f32.mrf.mxu0
    %v620 = vadd.f32 %v272, %v619
    %621 = vmatmul.f32.gmra.mxu0 %v525
    %v622 = vpop.f32.mrf.mxu0
    %v623 = vadd.f32 %v275, %v622
    %624 = vmatmul.f32.gmra.mxu0 %v528
    %v625 = vpop.f32.mrf.mxu0
    %v626 = vadd.f32 %v278, %v625
    %627 = vmatmul.f32.gmra.mxu0 %v531
    %v628 = vpop.f32.mrf.mxu0
    %v629 = vadd.f32 %v281, %v628
    %630 = vmatmul.f32.gmra.mxu0 %v534
    %v631 = vpop.f32.mrf.mxu0
    %v632 = vadd.f32 %v284, %v631
    %633 = vmatmul.f32.gmra.mxu0 %v537
    %v634 = vpop.f32.mrf.mxu0
    %v635 = vadd.f32 %v287, %v634
    %636 = vmatmul.f32.gmra.mxu0 %v540
    %v637 = vpop.f32.mrf.mxu0
    %v638 = vadd.f32 %v290, %v637
    %639 = vmatmul.f32.gmra.mxu0 %v543
    %v640 = vpop.f32.mrf.mxu0
    %v641 = vadd.f32 %v293, %v640
    %642 = vmatmul.f32.gmra.mxu0 %v546
    %v643 = vpop.f32.mrf.mxu0
    %v644 = vadd.f32 %v296, %v643
    %645 = vmatmul.f32.gmra.mxu0 %v549
    %v646 = vpop.f32.mrf.mxu0
    %v647 = vadd.f32 %v299, %v646
    %648 = vmatmul.f32.gmra.mxu0 %v552
    %v649 = vpop.f32.mrf.mxu0
    %v650 = vadd.f32 %v302, %v649
    %651 = vmatmul.f32.gmra.mxu0 %v555
    %v652 = vpop.f32.mrf.mxu0
    %v653 = vadd.f32 %v305, %v652
    %654 = vmatmul.f32.gmra.mxu0 %v558
    %v655 = vpop.f32.mrf.mxu0
    %v656 = vadd.f32 %v308, %v655
    %657 = vmatmul.f32.gmra.mxu0 %v561
    %v658 = vpop.f32.mrf.mxu0
    %v659 = vadd.f32 %v311, %v658
    %660 = vmatmul.f32.gmra.mxu0 %v564
    %v661 = vpop.f32.mrf.mxu0
    %v662 = vadd.f32 %v314, %v661
    %663 = vmatmul.f32.gmra.mxu0 %v567
    %v664 = vpop.f32.mrf.mxu0
    %v665 = vadd.f32 %v317, %v664
    %666 = vmatmul.f32.gmra.mxu0 %v570
    %v667 = vpop.f32.mrf.mxu0
    %v668 = vadd.f32 %v320, %v667
    %669 = vmatmul.f32.gmra.mxu0 %v573
    %v670 = vpop.f32.mrf.mxu0
    %v671 = vadd.f32 %v323, %v670
    %672 = vdwg.mxu0
    %673 = vmatpush.msra.mxu0 0.0
    %674 = vmatpush.msra.mxu0 0.0
    %675 = vmatpush.msra.mxu0 0.0
    %676 = vmatpush.msra.mxu0 0.0
    %677 = vmatpush.msra.mxu0 0.0
    %678 = vmatpush.msra.mxu0 0.0
    %679 = vmatpush.msra.mxu0 0.0
    %680 = vmatpush.msra.mxu0 0.0
    %681 = vmatpush.msra.mxu0 0.0
    %682 = vmatpush.msra.mxu0 0.0
    %683 = vmatpush.msra.mxu0 0.0
    %684 = vmatpush.msra.mxu0 0.0
    %685 = vmatpush.msra.mxu0 %v579
    %686 = vmatpush.msra.mxu0 %v111
    %687 = vmatpush.msra.mxu0 %v108
    %688 = vmatpush.msra.mxu0 %v105
    %689 = vmatmul.f32.gmra.mxu0 %v504
    %v690 = vpop.f32.mrf.mxu0
    %v691 = vadd.f32 %v343, %v690
    %692 = vmatmul.f32.gmra.mxu0 %v507
    %v693 = vpop.f32.mrf.mxu0
    %v694 = vadd.f32 %v346, %v693
    %695 = vmatmul.f32.gmra.mxu0 %v510
    %v696 = vpop.f32.mrf.mxu0
    %v697 = vadd.f32 %v349, %v696
    %698 = vmatmul.f32.gmra.mxu0 %v513
    %v699 = vpop.f32.mrf.mxu0
    %v700 = vadd.f32 %v352, %v699
    %701 = vmatmul.f32.gmra.mxu0 %v516
    %v702 = vpop.f32.mrf.mxu0
    %v703 = vadd.f32 %v355, %v702
    %704 = vmatmul.f32.gmra.mxu0 %v519
    %v705 = vpop.f32.mrf.mxu0
    %v706 = vadd.f32 %v358, %v705
    %707 = vmatmul.f32.gmra.mxu0 %v522
    %v708 = vpop.f32.mrf.mxu0
    %v709 = vadd.f32 %v361, %v708
    %710 = vmatmul.f32.gmra.mxu0 %v525
    %v711 = vpop.f32.mrf.mxu0
    %v712 = vadd.f32 %v364, %v711
    %713 = vmatmul.f32.gmra.mxu0 %v528
    %v714 = vpop.f32.mrf.mxu0
    %v715 = vadd.f32 %v367, %v714
    %716 = vmatmul.f32.gmra.mxu0 %v531
    %v717 = vpop.f32.mrf.mxu0
    %v718 = vadd.f32 %v370, %v717
    %719 = vmatmul.f32.gmra.mxu0 %v534
    %v720 = vpop.f32.mrf.mxu0
    %v721 = vadd.f32 %v373, %v720
    %722 = vmatmul.f32.gmra.mxu0 %v537
    %v723 = vpop.f32.mrf.mxu0
    %v724 = vadd.f32 %v376, %v723
    %725 = vmatmul.f32.gmra.mxu0 %v540
    %v726 = vpop.f32.mrf.mxu0
    %v727 = vadd.f32 %v379, %v726
    %728 = vmatmul.f32.gmra.mxu0 %v543
    %v729 = vpop.f32.mrf.mxu0
    %v730 = vadd.f32 %v382, %v729
    %731 = vmatmul.f32.gmra.mxu0 %v546
    %v732 = vpop.f32.mrf.mxu0
    %v733 = vadd.f32 %v385, %v732
    %734 = vmatmul.f32.gmra.mxu0 %v549
    %v735 = vpop.f32.mrf.mxu0
    %v736 = vadd.f32 %v388, %v735
    %737 = vmatmul.f32.gmra.mxu0 %v552
    %v738 = vpop.f32.mrf.mxu0
    %v739 = vadd.f32 %v391, %v738
    %740 = vmatmul.f32.gmra.mxu0 %v555
    %v741 = vpop.f32.mrf.mxu0
    %v742 = vadd.f32 %v394, %v741
    %743 = vmatmul.f32.gmra.mxu0 %v558
    %v744 = vpop.f32.mrf.mxu0
    %v745 = vadd.f32 %v397, %v744
    %746 = vmatmul.f32.gmra.mxu0 %v561
    %v747 = vpop.f32.mrf.mxu0
    %v748 = vadd.f32 %v400, %v747
    %749 = vmatmul.f32.gmra.mxu0 %v564
    %v750 = vpop.f32.mrf.mxu0
    %v751 = vadd.f32 %v403, %v750
    %752 = vmatmul.f32.gmra.mxu0 %v567
    %v753 = vpop.f32.mrf.mxu0
    %v754 = vadd.f32 %v406, %v753
    %755 = vmatmul.f32.gmra.mxu0 %v570
    %v756 = vpop.f32.mrf.mxu0
    %v757 = vadd.f32 %v409, %v756
    %758 = vmatmul.f32.gmra.mxu0 %v573
    %v759 = vpop.f32.mrf.mxu0
    %v760 = vadd.f32 %v412, %v759
    %761 = vdwg.mxu0
    %762 = vmatpush.msra.mxu0 0.0
    %763 = vmatpush.msra.mxu0 0.0
    %764 = vmatpush.msra.mxu0 0.0
    %765 = vmatpush.msra.mxu0 0.0
    %766 = vmatpush.msra.mxu0 0.0
    %767 = vmatpush.msra.mxu0 0.0
    %768 = vmatpush.msra.mxu0 0.0
    %769 = vmatpush.msra.mxu0 0.0
    %770 = vmatpush.msra.mxu0 0.0
    %771 = vmatpush.msra.mxu0 0.0
    %772 = vmatpush.msra.mxu0 0.0
    %773 = vmatpush.msra.mxu0 0.0
    %774 = vmatpush.msra.mxu0 %v582
    %775 = vmatpush.msra.mxu0 %v112
    %776 = vmatpush.msra.mxu0 %v109
    %777 = vmatpush.msra.mxu0 %v106
    %778 = vmatmul.f32.gmra.mxu0 %v504
    %v779 = vpop.f32.mrf.mxu0
    %v780 = vadd.f32 %v432, %v779
    %781 = vmatmul.f32.gmra.mxu0 %v507
    %v782 = vpop.f32.mrf.mxu0
    %v783 = vadd.f32 %v435, %v782
    %784 = vmatmul.f32.gmra.mxu0 %v510
    %v785 = vpop.f32.mrf.mxu0
    %v786 = vadd.f32 %v438, %v785
    %787 = vmatmul.f32.gmra.mxu0 %v513
    %v788 = vpop.f32.mrf.mxu0
    %v789 = vadd.f32 %v441, %v788
    %790 = vmatmul.f32.gmra.mxu0 %v516
    %v791 = vpop.f32.mrf.mxu0
    %v792 = vadd.f32 %v444, %v791
    %793 = vmatmul.f32.gmra.mxu0 %v519
    %v794 = vpop.f32.mrf.mxu0
    %v795 = vadd.f32 %v447, %v794
    %796 = vmatmul.f32.gmra.mxu0 %v522
    %v797 = vpop.f32.mrf.mxu0
    %v798 = vadd.f32 %v450, %v797
    %799 = vmatmul.f32.gmra.mxu0 %v525
    %v800 = vpop.f32.mrf.mxu0
    %v801 = vadd.f32 %v453, %v800
    %802 = vmatmul.f32.gmra.mxu0 %v528
    %v803 = vpop.f32.mrf.mxu0
    %v804 = vadd.f32 %v456, %v803
    %805 = vmatmul.f32.gmra.mxu0 %v531
    %v806 = vpop.f32.mrf.mxu0
    %v807 = vadd.f32 %v459, %v806
    %808 = vmatmul.f32.gmra.mxu0 %v534
    %v809 = vpop.f32.mrf.mxu0
    %v810 = vadd.f32 %v462, %v809
    %811 = vmatmul.f32.gmra.mxu0 %v537
    %v812 = vpop.f32.mrf.mxu0
    %v813 = vadd.f32 %v465, %v812
    %814 = vmatmul.f32.gmra.mxu0 %v540
    %v815 = vpop.f32.mrf.mxu0
    %v816 = vadd.f32 %v468, %v815
    %817 = vmatmul.f32.gmra.mxu0 %v543
    %v818 = vpop.f32.mrf.mxu0
    %v819 = vadd.f32 %v471, %v818
    %820 = vmatmul.f32.gmra.mxu0 %v546
    %v821 = vpop.f32.mrf.mxu0
    %v822 = vadd.f32 %v474, %v821
    %823 = vmatmul.f32.gmra.mxu0 %v549
    %v824 = vpop.f32.mrf.mxu0
    %v825 = vadd.f32 %v477, %v824
    %826 = vmatmul.f32.gmra.mxu0 %v552
    %v827 = vpop.f32.mrf.mxu0
    %v828 = vadd.f32 %v480, %v827
    %829 = vmatmul.f32.gmra.mxu0 %v555
    %v830 = vpop.f32.mrf.mxu0
    %v831 = vadd.f32 %v483, %v830
    %832 = vmatmul.f32.gmra.mxu0 %v558
    %v833 = vpop.f32.mrf.mxu0
    %v834 = vadd.f32 %v486, %v833
    %835 = vmatmul.f32.gmra.mxu0 %v561
    %v836 = vpop.f32.mrf.mxu0
    %v837 = vadd.f32 %v489, %v836
    %838 = vmatmul.f32.gmra.mxu0 %v564
    %v839 = vpop.f32.mrf.mxu0
    %v840 = vadd.f32 %v492, %v839
    %841 = vmatmul.f32.gmra.mxu0 %v567
    %v842 = vpop.f32.mrf.mxu0
    %v843 = vadd.f32 %v495, %v842
    %844 = vmatmul.f32.gmra.mxu0 %v570
    %v845 = vpop.f32.mrf.mxu0
    %v846 = vadd.f32 %v498, %v845
    %847 = vmatmul.f32.gmra.mxu0 %v573
    %v848 = vpop.f32.mrf.mxu0
    %v849 = vadd.f32 %v501, %v848
    %850 = vdwg.mxu0
    %v851 = vld [vmem:[%s0 + $0x2] sm:$0xff]
    %v852 = vld [vmem:[%s0 + $0xa] sm:$0xff]
    %v853 = vld [vmem:[%s0 + $0x12] sm:$0xff]
    %v854 = vld [vmem:[%s0 + $0x22] sm:$0xff]
    %v855 = vld [vmem:[%s0 + $0x2a] sm:$0xff]
    %v856 = vld [vmem:[%s0 + $0x32] sm:$0xff]
    %v857 = vld [vmem:[%s0 + $0x42] sm:$0xff]
    %v858 = vld [vmem:[%s0 + $0x4a] sm:$0xff]
    %v859 = vld [vmem:[%s0 + $0x52] sm:$0xff]
    %v860 = vld [vmem:[%s0 + $0x62] sm:$0xff]
    %v861 = vld [vmem:[%s0 + $0x6a] sm:$0xff]
    %v862 = vld [vmem:[%s0 + $0x72] sm:$0xff]
    %v863 = vld [vmem:[%s0 + $0x82] sm:$0xff]
    %v864 = vld [vmem:[%s0 + $0x8a] sm:$0xff]
    %v865 = vld [vmem:[%s0 + $0x92] sm:$0xff]
    %v866 = vld [vmem:[%s0 + $0xa2] sm:$0xff]
    %v867 = vld [vmem:[%s0 + $0xaa] sm:$0xff]
    %v868 = vld [vmem:[%s0 + $0xb2] sm:$0xff]
    %v869 = vld [vmem:[%s0 + $0xc2] sm:$0xff]
    %v870 = vld [vmem:[%s0 + $0xca] sm:$0xff]
    %v871 = vld [vmem:[%s0 + $0xd2] sm:$0xff]
    %v872 = vld [vmem:[%s0 + $0xe2] sm:$0xff]
    %v873 = vld [vmem:[%s0 + $0xea] sm:$0xff]
    %v874 = vld [vmem:[%s0 + $0xf2] sm:$0xff]
    %s875 = scalar_lea.vmem [#allocation2], 192
    %v876 = vld [vmem:[%s875] sm:$0xff]
    %v877 = vld [vmem:[%s875 + $0x8] sm:$0xff]
    %v878 = vld [vmem:[%s875 + $0x10] sm:$0xff]
    %v879 = vld [vmem:[%s875 + $0x18] sm:$0xff]
    %v880 = vld [vmem:[%s875 + $0x20] sm:$0xff]
    %v881 = vld [vmem:[%s875 + $0x28] sm:$0xff]
    %v882 = vld [vmem:[%s875 + $0x30] sm:$0xff]
    %v883 = vld [vmem:[%s875 + $0x38] sm:$0xff]
    %v884 = vld [vmem:[%s875 + $0x40] sm:$0xff]
    %v885 = vld [vmem:[%s875 + $0x48] sm:$0xf]
    %v886 = vld [vmem:[%s875 + $0x50] sm:$0xf]
    %v887 = vld [vmem:[%s875 + $0x58] sm:$0xf]
    %v889 = vsel %vm153, %v851, 0
    %v892 = vsel %vm153, %v852, 0
    %v895 = vsel %vm153, %v853, 0
    %v898 = vsel %vm153, %v854, 0
    %v901 = vsel %vm153, %v855, 0
    %v904 = vsel %vm153, %v856, 0
    %v907 = vsel %vm153, %v857, 0
    %v910 = vsel %vm153, %v858, 0
    %v913 = vsel %vm153, %v859, 0
    %v916 = vsel %vm153, %v860, 0
    %v919 = vsel %vm153, %v861, 0
    %v922 = vsel %vm153, %v862, 0
    %v925 = vsel %vm153, %v863, 0
    %v928 = vsel %vm153, %v864, 0
    %v931 = vsel %vm153, %v865, 0
    %v934 = vsel %vm153, %v866, 0
    %v937 = vsel %vm153, %v867, 0
    %v940 = vsel %vm153, %v868, 0
    %v943 = vsel %vm153, %v869, 0
    %v946 = vsel %vm153, %v870, 0
    %v949 = vsel %vm153, %v871, 0
    %v952 = vsel %vm153, %v872, 0
    %v955 = vsel %vm153, %v873, 0
    %v958 = vsel %vm153, %v874, 0
    %v961 = vsel %vm226, %v885, 0
    %v964 = vsel %vm226, %v886, 0
    %v967 = vsel %vm226, %v887, 0
    %969 = vmatpush.msra.mxu0 0.0
    %970 = vmatpush.msra.mxu0 0.0
    %971 = vmatpush.msra.mxu0 0.0
    %972 = vmatpush.msra.mxu0 0.0
    %973 = vmatpush.msra.mxu0 0.0
    %974 = vmatpush.msra.mxu0 0.0
    %975 = vmatpush.msra.mxu0 0.0
    %976 = vmatpush.msra.mxu0 0.0
    %977 = vmatpush.msra.mxu0 0.0
    %978 = vmatpush.msra.mxu0 0.0
    %979 = vmatpush.msra.mxu0 0.0
    %980 = vmatpush.msra.mxu0 0.0
    %981 = vmatpush.msra.mxu0 %v961
    %982 = vmatpush.msra.mxu0 %v882
    %983 = vmatpush.msra.mxu0 %v879
    %984 = vmatpush.msra.mxu0 %v876
    %985 = vmatmul.f32.gmra.mxu0 %v889
    %v986 = vpop.f32.mrf.mxu0
    %v987 = vadd.f32 0.0, %v986
    %988 = vmatmul.f32.gmra.mxu0 %v892
    %v989 = vpop.f32.mrf.mxu0
    %v990 = vadd.f32 0.0, %v989
    %991 = vmatmul.f32.gmra.mxu0 %v895
    %v992 = vpop.f32.mrf.mxu0
    %v993 = vadd.f32 0.0, %v992
    %994 = vmatmul.f32.gmra.mxu0 %v898
    %v995 = vpop.f32.mrf.mxu0
    %v996 = vadd.f32 0.0, %v995
    %997 = vmatmul.f32.gmra.mxu0 %v901
    %v998 = vpop.f32.mrf.mxu0
    %v999 = vadd.f32 0.0, %v998
    %1000 = vmatmul.f32.gmra.mxu0 %v904
    %v1001 = vpop.f32.mrf.mxu0
    %v1002 = vadd.f32 0.0, %v1001
    %1003 = vmatmul.f32.gmra.mxu0 %v907
    %v1004 = vpop.f32.mrf.mxu0
    %v1005 = vadd.f32 0.0, %v1004
    %1006 = vmatmul.f32.gmra.mxu0 %v910
    %v1007 = vpop.f32.mrf.mxu0
    %v1008 = vadd.f32 0.0, %v1007
    %1009 = vmatmul.f32.gmra.mxu0 %v913
    %v1010 = vpop.f32.mrf.mxu0
    %v1011 = vadd.f32 0.0, %v1010
    %1012 = vmatmul.f32.gmra.mxu0 %v916
    %v1013 = vpop.f32.mrf.mxu0
    %v1014 = vadd.f32 0.0, %v1013
    %1015 = vmatmul.f32.gmra.mxu0 %v919
    %v1016 = vpop.f32.mrf.mxu0
    %v1017 = vadd.f32 0.0, %v1016
    %1018 = vmatmul.f32.gmra.mxu0 %v922
    %v1019 = vpop.f32.mrf.mxu0
    %v1020 = vadd.f32 0.0, %v1019
    %1021 = vmatmul.f32.gmra.mxu0 %v925
    %v1022 = vpop.f32.mrf.mxu0
    %v1023 = vadd.f32 0.0, %v1022
    %1024 = vmatmul.f32.gmra.mxu0 %v928
    %v1025 = vpop.f32.mrf.mxu0
    %v1026 = vadd.f32 0.0, %v1025
    %1027 = vmatmul.f32.gmra.mxu0 %v931
    %v1028 = vpop.f32.mrf.mxu0
    %v1029 = vadd.f32 0.0, %v1028
    %1030 = vmatmul.f32.gmra.mxu0 %v934
    %v1031 = vpop.f32.mrf.mxu0
    %v1032 = vadd.f32 0.0, %v1031
    %1033 = vmatmul.f32.gmra.mxu0 %v937
    %v1034 = vpop.f32.mrf.mxu0
    %v1035 = vadd.f32 0.0, %v1034
    %1036 = vmatmul.f32.gmra.mxu0 %v940
    %v1037 = vpop.f32.mrf.mxu0
    %v1038 = vadd.f32 0.0, %v1037
    %1039 = vmatmul.f32.gmra.mxu0 %v943
    %v1040 = vpop.f32.mrf.mxu0
    %v1041 = vadd.f32 0.0, %v1040
    %1042 = vmatmul.f32.gmra.mxu0 %v946
    %v1043 = vpop.f32.mrf.mxu0
    %v1044 = vadd.f32 0.0, %v1043
    %1045 = vmatmul.f32.gmra.mxu0 %v949
    %v1046 = vpop.f32.mrf.mxu0
    %v1047 = vadd.f32 0.0, %v1046
    %1048 = vmatmul.f32.gmra.mxu0 %v952
    %v1049 = vpop.f32.mrf.mxu0
    %v1050 = vadd.f32 0.0, %v1049
    %1051 = vmatmul.f32.gmra.mxu0 %v955
    %v1052 = vpop.f32.mrf.mxu0
    %v1053 = vadd.f32 0.0, %v1052
    %1054 = vmatmul.f32.gmra.mxu0 %v958
    %v1055 = vpop.f32.mrf.mxu0
    %v1056 = vadd.f32 0.0, %v1055
    %1057 = vdwg.mxu0
    %1058 = vmatpush.msra.mxu0 0.0
    %1059 = vmatpush.msra.mxu0 0.0
    %1060 = vmatpush.msra.mxu0 0.0
    %1061 = vmatpush.msra.mxu0 0.0
    %1062 = vmatpush.msra.mxu0 0.0
    %1063 = vmatpush.msra.mxu0 0.0
    %1064 = vmatpush.msra.mxu0 0.0
    %1065 = vmatpush.msra.mxu0 0.0
    %1066 = vmatpush.msra.mxu0 0.0
    %1067 = vmatpush.msra.mxu0 0.0
    %1068 = vmatpush.msra.mxu0 0.0
    %1069 = vmatpush.msra.mxu0 0.0
    %1070 = vmatpush.msra.mxu0 %v964
    %1071 = vmatpush.msra.mxu0 %v883
    %1072 = vmatpush.msra.mxu0 %v880
    %1073 = vmatpush.msra.mxu0 %v877
    %1074 = vmatmul.f32.gmra.mxu0 %v889
    %v1075 = vpop.f32.mrf.mxu0
    %v1076 = vadd.f32 0.0, %v1075
    %1077 = vmatmul.f32.gmra.mxu0 %v892
    %v1078 = vpop.f32.mrf.mxu0
    %v1079 = vadd.f32 0.0, %v1078
    %1080 = vmatmul.f32.gmra.mxu0 %v895
    %v1081 = vpop.f32.mrf.mxu0
    %v1082 = vadd.f32 0.0, %v1081
    %1083 = vmatmul.f32.gmra.mxu0 %v898
    %v1084 = vpop.f32.mrf.mxu0
    %v1085 = vadd.f32 0.0, %v1084
    %1086 = vmatmul.f32.gmra.mxu0 %v901
    %v1087 = vpop.f32.mrf.mxu0
    %v1088 = vadd.f32 0.0, %v1087
    %1089 = vmatmul.f32.gmra.mxu0 %v904
    %v1090 = vpop.f32.mrf.mxu0
    %v1091 = vadd.f32 0.0, %v1090
    %1092 = vmatmul.f32.gmra.mxu0 %v907
    %v1093 = vpop.f32.mrf.mxu0
    %v1094 = vadd.f32 0.0, %v1093
    %1095 = vmatmul.f32.gmra.mxu0 %v910
    %v1096 = vpop.f32.mrf.mxu0
    %v1097 = vadd.f32 0.0, %v1096
    %1098 = vmatmul.f32.gmra.mxu0 %v913
    %v1099 = vpop.f32.mrf.mxu0
    %v1100 = vadd.f32 0.0, %v1099
    %1101 = vmatmul.f32.gmra.mxu0 %v916
    %v1102 = vpop.f32.mrf.mxu0
    %v1103 = vadd.f32 0.0, %v1102
    %1104 = vmatmul.f32.gmra.mxu0 %v919
    %v1105 = vpop.f32.mrf.mxu0
    %v1106 = vadd.f32 0.0, %v1105
    %1107 = vmatmul.f32.gmra.mxu0 %v922
    %v1108 = vpop.f32.mrf.mxu0
    %v1109 = vadd.f32 0.0, %v1108
    %1110 = vmatmul.f32.gmra.mxu0 %v925
    %v1111 = vpop.f32.mrf.mxu0
    %v1112 = vadd.f32 0.0, %v1111
    %1113 = vmatmul.f32.gmra.mxu0 %v928
    %v1114 = vpop.f32.mrf.mxu0
    %v1115 = vadd.f32 0.0, %v1114
    %1116 = vmatmul.f32.gmra.mxu0 %v931
    %v1117 = vpop.f32.mrf.mxu0
    %v1118 = vadd.f32 0.0, %v1117
    %1119 = vmatmul.f32.gmra.mxu0 %v934
    %v1120 = vpop.f32.mrf.mxu0
    %v1121 = vadd.f32 0.0, %v1120
    %1122 = vmatmul.f32.gmra.mxu0 %v937
    %v1123 = vpop.f32.mrf.mxu0
    %v1124 = vadd.f32 0.0, %v1123
    %1125 = vmatmul.f32.gmra.mxu0 %v940
    %v1126 = vpop.f32.mrf.mxu0
    %v1127 = vadd.f32 0.0, %v1126
    %1128 = vmatmul.f32.gmra.mxu0 %v943
    %v1129 = vpop.f32.mrf.mxu0
    %v1130 = vadd.f32 0.0, %v1129
    %1131 = vmatmul.f32.gmra.mxu0 %v946
    %v1132 = vpop.f32.mrf.mxu0
    %v1133 = vadd.f32 0.0, %v1132
    %1134 = vmatmul.f32.gmra.mxu0 %v949
    %v1135 = vpop.f32.mrf.mxu0
    %v1136 = vadd.f32 0.0, %v1135
    %1137 = vmatmul.f32.gmra.mxu0 %v952
    %v1138 = vpop.f32.mrf.mxu0
    %v1139 = vadd.f32 0.0, %v1138
    %1140 = vmatmul.f32.gmra.mxu0 %v955
    %v1141 = vpop.f32.mrf.mxu0
    %v1142 = vadd.f32 0.0, %v1141
    %1143 = vmatmul.f32.gmra.mxu0 %v958
    %v1144 = vpop.f32.mrf.mxu0
    %v1145 = vadd.f32 0.0, %v1144
    %1146 = vdwg.mxu0
    %1147 = vmatpush.msra.mxu0 0.0
    %1148 = vmatpush.msra.mxu0 0.0
    %1149 = vmatpush.msra.mxu0 0.0
    %1150 = vmatpush.msra.mxu0 0.0
    %1151 = vmatpush.msra.mxu0 0.0
    %1152 = vmatpush.msra.mxu0 0.0
    %1153 = vmatpush.msra.mxu0 0.0
    %1154 = vmatpush.msra.mxu0 0.0
    %1155 = vmatpush.msra.mxu0 0.0
    %1156 = vmatpush.msra.mxu0 0.0
    %1157 = vmatpush.msra.mxu0 0.0
    %1158 = vmatpush.msra.mxu0 0.0
    %1159 = vmatpush.msra.mxu0 %v967
    %1160 = vmatpush.msra.mxu0 %v884
    %1161 = vmatpush.msra.mxu0 %v881
    %1162 = vmatpush.msra.mxu0 %v878
    %1163 = vmatmul.f32.gmra.mxu0 %v889
    %v1164 = vpop.f32.mrf.mxu0
    %v1165 = vadd.f32 0.0, %v1164
    %1166 = vmatmul.f32.gmra.mxu0 %v892
    %v1167 = vpop.f32.mrf.mxu0
    %v1168 = vadd.f32 0.0, %v1167
    %1169 = vmatmul.f32.gmra.mxu0 %v895
    %v1170 = vpop.f32.mrf.mxu0
    %v1171 = vadd.f32 0.0, %v1170
    %1172 = vmatmul.f32.gmra.mxu0 %v898
    %v1173 = vpop.f32.mrf.mxu0
    %v1174 = vadd.f32 0.0, %v1173
    %1175 = vmatmul.f32.gmra.mxu0 %v901
    %v1176 = vpop.f32.mrf.mxu0
    %v1177 = vadd.f32 0.0, %v1176
    %1178 = vmatmul.f32.gmra.mxu0 %v904
    %v1179 = vpop.f32.mrf.mxu0
    %v1180 = vadd.f32 0.0, %v1179
    %1181 = vmatmul.f32.gmra.mxu0 %v907
    %v1182 = vpop.f32.mrf.mxu0
    %v1183 = vadd.f32 0.0, %v1182
    %1184 = vmatmul.f32.gmra.mxu0 %v910
    %v1185 = vpop.f32.mrf.mxu0
    %v1186 = vadd.f32 0.0, %v1185
    %1187 = vmatmul.f32.gmra.mxu0 %v913
    %v1188 = vpop.f32.mrf.mxu0
    %v1189 = vadd.f32 0.0, %v1188
    %1190 = vmatmul.f32.gmra.mxu0 %v916
    %v1191 = vpop.f32.mrf.mxu0
    %v1192 = vadd.f32 0.0, %v1191
    %1193 = vmatmul.f32.gmra.mxu0 %v919
    %v1194 = vpop.f32.mrf.mxu0
    %v1195 = vadd.f32 0.0, %v1194
    %1196 = vmatmul.f32.gmra.mxu0 %v922
    %v1197 = vpop.f32.mrf.mxu0
    %v1198 = vadd.f32 0.0, %v1197
    %1199 = vmatmul.f32.gmra.mxu0 %v925
    %v1200 = vpop.f32.mrf.mxu0
    %v1201 = vadd.f32 0.0, %v1200
    %1202 = vmatmul.f32.gmra.mxu0 %v928
    %v1203 = vpop.f32.mrf.mxu0
    %v1204 = vadd.f32 0.0, %v1203
    %1205 = vmatmul.f32.gmra.mxu0 %v931
    %v1206 = vpop.f32.mrf.mxu0
    %v1207 = vadd.f32 0.0, %v1206
    %1208 = vmatmul.f32.gmra.mxu0 %v934
    %v1209 = vpop.f32.mrf.mxu0
    %v1210 = vadd.f32 0.0, %v1209
    %1211 = vmatmul.f32.gmra.mxu0 %v937
    %v1212 = vpop.f32.mrf.mxu0
    %v1213 = vadd.f32 0.0, %v1212
    %1214 = vmatmul.f32.gmra.mxu0 %v940
    %v1215 = vpop.f32.mrf.mxu0
    %v1216 = vadd.f32 0.0, %v1215
    %1217 = vmatmul.f32.gmra.mxu0 %v943
    %v1218 = vpop.f32.mrf.mxu0
    %v1219 = vadd.f32 0.0, %v1218
    %1220 = vmatmul.f32.gmra.mxu0 %v946
    %v1221 = vpop.f32.mrf.mxu0
    %v1222 = vadd.f32 0.0, %v1221
    %1223 = vmatmul.f32.gmra.mxu0 %v949
    %v1224 = vpop.f32.mrf.mxu0
    %v1225 = vadd.f32 0.0, %v1224
    %1226 = vmatmul.f32.gmra.mxu0 %v952
    %v1227 = vpop.f32.mrf.mxu0
    %v1228 = vadd.f32 0.0, %v1227
    %1229 = vmatmul.f32.gmra.mxu0 %v955
    %v1230 = vpop.f32.mrf.mxu0
    %v1231 = vadd.f32 0.0, %v1230
    %1232 = vmatmul.f32.gmra.mxu0 %v958
    %v1233 = vpop.f32.mrf.mxu0
    %v1234 = vadd.f32 0.0, %v1233
    %1235 = vdwg.mxu0
    %v1236 = vadd.f32 %v602, %v987
    %v1237 = vadd.f32 %v691, %v1076
    %v1238 = vadd.f32 %v780, %v1165
    %v1239 = vadd.f32 %v605, %v990
    %v1240 = vadd.f32 %v694, %v1079
    %v1241 = vadd.f32 %v783, %v1168
    %v1242 = vadd.f32 %v608, %v993
    %v1243 = vadd.f32 %v697, %v1082
    %v1244 = vadd.f32 %v786, %v1171
    %v1245 = vadd.f32 %v611, %v996
    %v1246 = vadd.f32 %v700, %v1085
    %v1247 = vadd.f32 %v789, %v1174
    %v1248 = vadd.f32 %v614, %v999
    %v1249 = vadd.f32 %v703, %v1088
    %v1250 = vadd.f32 %v792, %v1177
    %v1251 = vadd.f32 %v617, %v1002
    %v1252 = vadd.f32 %v706, %v1091
    %v1253 = vadd.f32 %v795, %v1180
    %v1254 = vadd.f32 %v620, %v1005
    %v1255 = vadd.f32 %v709, %v1094
    %v1256 = vadd.f32 %v798, %v1183
    %v1257 = vadd.f32 %v623, %v1008
    %v1258 = vadd.f32 %v712, %v1097
    %v1259 = vadd.f32 %v801, %v1186
    %v1260 = vadd.f32 %v626, %v1011
    %v1261 = vadd.f32 %v715, %v1100
    %v1262 = vadd.f32 %v804, %v1189
    %v1263 = vadd.f32 %v629, %v1014
    %v1264 = vadd.f32 %v718, %v1103
    %v1265 = vadd.f32 %v807, %v1192
    %v1266 = vadd.f32 %v632, %v1017
    %v1267 = vadd.f32 %v721, %v1106
    %v1268 = vadd.f32 %v810, %v1195
    %v1269 = vadd.f32 %v635, %v1020
    %v1270 = vadd.f32 %v724, %v1109
    %v1271 = vadd.f32 %v813, %v1198
    %v1272 = vadd.f32 %v638, %v1023
    %v1273 = vadd.f32 %v727, %v1112
    %v1274 = vadd.f32 %v816, %v1201
    %v1275 = vadd.f32 %v641, %v1026
    %v1276 = vadd.f32 %v730, %v1115
    %v1277 = vadd.f32 %v819, %v1204
    %v1278 = vadd.f32 %v644, %v1029
    %v1279 = vadd.f32 %v733, %v1118
    %v1280 = vadd.f32 %v822, %v1207
    %v1281 = vadd.f32 %v647, %v1032
    %v1282 = vadd.f32 %v736, %v1121
    %v1283 = vadd.f32 %v825, %v1210
    %v1284 = vadd.f32 %v650, %v1035
    %v1285 = vadd.f32 %v739, %v1124
    %v1286 = vadd.f32 %v828, %v1213
    %v1287 = vadd.f32 %v653, %v1038
    %v1288 = vadd.f32 %v742, %v1127
    %v1289 = vadd.f32 %v831, %v1216
    %v1290 = vadd.f32 %v656, %v1041
    %v1291 = vadd.f32 %v745, %v1130
    %v1292 = vadd.f32 %v834, %v1219
    %v1293 = vadd.f32 %v659, %v1044
    %v1294 = vadd.f32 %v748, %v1133
    %v1295 = vadd.f32 %v837, %v1222
    %v1296 = vadd.f32 %v662, %v1047
    %v1297 = vadd.f32 %v751, %v1136
    %v1298 = vadd.f32 %v840, %v1225
    %v1299 = vadd.f32 %v665, %v1050
    %v1300 = vadd.f32 %v754, %v1139
    %v1301 = vadd.f32 %v843, %v1228
    %v1302 = vadd.f32 %v668, %v1053
    %v1303 = vadd.f32 %v757, %v1142
    %v1304 = vadd.f32 %v846, %v1231
    %v1305 = vadd.f32 %v671, %v1056
    %v1306 = vadd.f32 %v760, %v1145
    %v1307 = vadd.f32 %v849, %v1234
    %v1308 = vld [vmem:[%s0 + $0x3] sm:$0xff]
    %v1309 = vld [vmem:[%s0 + $0xb] sm:$0xff]
    %v1310 = vld [vmem:[%s0 + $0x13] sm:$0xff]
    %v1311 = vld [vmem:[%s0 + $0x23] sm:$0xff]
    %v1312 = vld [vmem:[%s0 + $0x2b] sm:$0xff]
    %v1313 = vld [vmem:[%s0 + $0x33] sm:$0xff]
    %v1314 = vld [vmem:[%s0 + $0x43] sm:$0xff]
    %v1315 = vld [vmem:[%s0 + $0x4b] sm:$0xff]
    %v1316 = vld [vmem:[%s0 + $0x53] sm:$0xff]
    %v1317 = vld [vmem:[%s0 + $0x63] sm:$0xff]
    %v1318 = vld [vmem:[%s0 + $0x6b] sm:$0xff]
    %v1319 = vld [vmem:[%s0 + $0x73] sm:$0xff]
    %v1320 = vld [vmem:[%s0 + $0x83] sm:$0xff]
    %v1321 = vld [vmem:[%s0 + $0x8b] sm:$0xff]
    %v1322 = vld [vmem:[%s0 + $0x93] sm:$0xff]
    %v1323 = vld [vmem:[%s0 + $0xa3] sm:$0xff]
    %v1324 = vld [vmem:[%s0 + $0xab] sm:$0xff]
    %v1325 = vld [vmem:[%s0 + $0xb3] sm:$0xff]
    %v1326 = vld [vmem:[%s0 + $0xc3] sm:$0xff]
    %v1327 = vld [vmem:[%s0 + $0xcb] sm:$0xff]
    %v1328 = vld [vmem:[%s0 + $0xd3] sm:$0xff]
    %v1329 = vld [vmem:[%s0 + $0xe3] sm:$0xff]
    %v1330 = vld [vmem:[%s0 + $0xeb] sm:$0xff]
    %v1331 = vld [vmem:[%s0 + $0xf3] sm:$0xff]
    %s1332 = scalar_lea.vmem [#allocation2], 288
    %v1333 = vld [vmem:[%s1332] sm:$0xff]
    %v1334 = vld [vmem:[%s1332 + $0x8] sm:$0xff]
    %v1335 = vld [vmem:[%s1332 + $0x10] sm:$0xff]
    %v1336 = vld [vmem:[%s1332 + $0x18] sm:$0xff]
    %v1337 = vld [vmem:[%s1332 + $0x20] sm:$0xff]
    %v1338 = vld [vmem:[%s1332 + $0x28] sm:$0xff]
    %v1339 = vld [vmem:[%s1332 + $0x30] sm:$0xff]
    %v1340 = vld [vmem:[%s1332 + $0x38] sm:$0xff]
    %v1341 = vld [vmem:[%s1332 + $0x40] sm:$0xff]
    %v1342 = vld [vmem:[%s1332 + $0x48] sm:$0xf]
    %v1343 = vld [vmem:[%s1332 + $0x50] sm:$0xf]
    %v1344 = vld [vmem:[%s1332 + $0x58] sm:$0xf]
    %v1346 = vsel %vm153, %v1308, 0
    %v1349 = vsel %vm153, %v1309, 0
    %v1352 = vsel %vm153, %v1310, 0
    %v1355 = vsel %vm153, %v1311, 0
    %v1358 = vsel %vm153, %v1312, 0
    %v1361 = vsel %vm153, %v1313, 0
    %v1364 = vsel %vm153, %v1314, 0
    %v1367 = vsel %vm153, %v1315, 0
    %v1370 = vsel %vm153, %v1316, 0
    %v1373 = vsel %vm153, %v1317, 0
    %v1376 = vsel %vm153, %v1318, 0
    %v1379 = vsel %vm153, %v1319, 0
    %v1382 = vsel %vm153, %v1320, 0
    %v1385 = vsel %vm153, %v1321, 0
    %v1388 = vsel %vm153, %v1322, 0
    %v1391 = vsel %vm153, %v1323, 0
    %v1394 = vsel %vm153, %v1324, 0
    %v1397 = vsel %vm153, %v1325, 0
    %v1400 = vsel %vm153, %v1326, 0
    %v1403 = vsel %vm153, %v1327, 0
    %v1406 = vsel %vm153, %v1328, 0
    %v1409 = vsel %vm153, %v1329, 0
    %v1412 = vsel %vm153, %v1330, 0
    %v1415 = vsel %vm153, %v1331, 0
    %v1418 = vsel %vm226, %v1342, 0
    %v1421 = vsel %vm226, %v1343, 0
    %v1424 = vsel %vm226, %v1344, 0
    %1426 = vmatpush.msra.mxu0 0.0
    %1427 = vmatpush.msra.mxu0 0.0
    %1428 = vmatpush.msra.mxu0 0.0
    %1429 = vmatpush.msra.mxu0 0.0
    %1430 = vmatpush.msra.mxu0 0.0
    %1431 = vmatpush.msra.mxu0 0.0
    %1432 = vmatpush.msra.mxu0 0.0
    %1433 = vmatpush.msra.mxu0 0.0
    %1434 = vmatpush.msra.mxu0 0.0
    %1435 = vmatpush.msra.mxu0 0.0
    %1436 = vmatpush.msra.mxu0 0.0
    %1437 = vmatpush.msra.mxu0 0.0
    %1438 = vmatpush.msra.mxu0 %v1418
    %1439 = vmatpush.msra.mxu0 %v1339
    %1440 = vmatpush.msra.mxu0 %v1336
    %1441 = vmatpush.msra.mxu0 %v1333
    %1442 = vmatmul.f32.gmra.mxu0 %v1346
    %v1443 = vpop.f32.mrf.mxu0
    %v1444 = vadd.f32 0.0, %v1443
    %1445 = vmatmul.f32.gmra.mxu0 %v1349
    %v1446 = vpop.f32.mrf.mxu0
    %v1447 = vadd.f32 0.0, %v1446
    %1448 = vmatmul.f32.gmra.mxu0 %v1352
    %v1449 = vpop.f32.mrf.mxu0
    %v1450 = vadd.f32 0.0, %v1449
    %1451 = vmatmul.f32.gmra.mxu0 %v1355
    %v1452 = vpop.f32.mrf.mxu0
    %v1453 = vadd.f32 0.0, %v1452
    %1454 = vmatmul.f32.gmra.mxu0 %v1358
    %v1455 = vpop.f32.mrf.mxu0
    %v1456 = vadd.f32 0.0, %v1455
    %1457 = vmatmul.f32.gmra.mxu0 %v1361
    %v1458 = vpop.f32.mrf.mxu0
    %v1459 = vadd.f32 0.0, %v1458
    %1460 = vmatmul.f32.gmra.mxu0 %v1364
    %v1461 = vpop.f32.mrf.mxu0
    %v1462 = vadd.f32 0.0, %v1461
    %1463 = vmatmul.f32.gmra.mxu0 %v1367
    %v1464 = vpop.f32.mrf.mxu0
    %v1465 = vadd.f32 0.0, %v1464
    %1466 = vmatmul.f32.gmra.mxu0 %v1370
    %v1467 = vpop.f32.mrf.mxu0
    %v1468 = vadd.f32 0.0, %v1467
    %1469 = vmatmul.f32.gmra.mxu0 %v1373
    %v1470 = vpop.f32.mrf.mxu0
    %v1471 = vadd.f32 0.0, %v1470
    %1472 = vmatmul.f32.gmra.mxu0 %v1376
    %v1473 = vpop.f32.mrf.mxu0
    %v1474 = vadd.f32 0.0, %v1473
    %1475 = vmatmul.f32.gmra.mxu0 %v1379
    %v1476 = vpop.f32.mrf.mxu0
    %v1477 = vadd.f32 0.0, %v1476
    %1478 = vmatmul.f32.gmra.mxu0 %v1382
    %v1479 = vpop.f32.mrf.mxu0
    %v1480 = vadd.f32 0.0, %v1479
    %1481 = vmatmul.f32.gmra.mxu0 %v1385
    %v1482 = vpop.f32.mrf.mxu0
    %v1483 = vadd.f32 0.0, %v1482
    %1484 = vmatmul.f32.gmra.mxu0 %v1388
    %v1485 = vpop.f32.mrf.mxu0
    %v1486 = vadd.f32 0.0, %v1485
    %1487 = vmatmul.f32.gmra.mxu0 %v1391
    %v1488 = vpop.f32.mrf.mxu0
    %v1489 = vadd.f32 0.0, %v1488
    %1490 = vmatmul.f32.gmra.mxu0 %v1394
    %v1491 = vpop.f32.mrf.mxu0
    %v1492 = vadd.f32 0.0, %v1491
    %1493 = vmatmul.f32.gmra.mxu0 %v1397
    %v1494 = vpop.f32.mrf.mxu0
    %v1495 = vadd.f32 0.0, %v1494
    %1496 = vmatmul.f32.gmra.mxu0 %v1400
    %v1497 = vpop.f32.mrf.mxu0
    %v1498 = vadd.f32 0.0, %v1497
    %1499 = vmatmul.f32.gmra.mxu0 %v1403
    %v1500 = vpop.f32.mrf.mxu0
    %v1501 = vadd.f32 0.0, %v1500
    %1502 = vmatmul.f32.gmra.mxu0 %v1406
    %v1503 = vpop.f32.mrf.mxu0
    %v1504 = vadd.f32 0.0, %v1503
    %1505 = vmatmul.f32.gmra.mxu0 %v1409
    %v1506 = vpop.f32.mrf.mxu0
    %v1507 = vadd.f32 0.0, %v1506
    %1508 = vmatmul.f32.gmra.mxu0 %v1412
    %v1509 = vpop.f32.mrf.mxu0
    %v1510 = vadd.f32 0.0, %v1509
    %1511 = vmatmul.f32.gmra.mxu0 %v1415
    %v1512 = vpop.f32.mrf.mxu0
    %v1513 = vadd.f32 0.0, %v1512
    %1514 = vdwg.mxu0
    %1515 = vmatpush.msra.mxu0 0.0
    %1516 = vmatpush.msra.mxu0 0.0
    %1517 = vmatpush.msra.mxu0 0.0
    %1518 = vmatpush.msra.mxu0 0.0
    %1519 = vmatpush.msra.mxu0 0.0
    %1520 = vmatpush.msra.mxu0 0.0
    %1521 = vmatpush.msra.mxu0 0.0
    %1522 = vmatpush.msra.mxu0 0.0
    %1523 = vmatpush.msra.mxu0 0.0
    %1524 = vmatpush.msra.mxu0 0.0
    %1525 = vmatpush.msra.mxu0 0.0
    %1526 = vmatpush.msra.mxu0 0.0
    %1527 = vmatpush.msra.mxu0 %v1421
    %1528 = vmatpush.msra.mxu0 %v1340
    %1529 = vmatpush.msra.mxu0 %v1337
    %1530 = vmatpush.msra.mxu0 %v1334
    %1531 = vmatmul.f32.gmra.mxu0 %v1346
    %v1532 = vpop.f32.mrf.mxu0
    %v1533 = vadd.f32 0.0, %v1532
    %1534 = vmatmul.f32.gmra.mxu0 %v1349
    %v1535 = vpop.f32.mrf.mxu0
    %v1536 = vadd.f32 0.0, %v1535
    %1537 = vmatmul.f32.gmra.mxu0 %v1352
    %v1538 = vpop.f32.mrf.mxu0
    %v1539 = vadd.f32 0.0, %v1538
    %1540 = vmatmul.f32.gmra.mxu0 %v1355
    %v1541 = vpop.f32.mrf.mxu0
    %v1542 = vadd.f32 0.0, %v1541
    %1543 = vmatmul.f32.gmra.mxu0 %v1358
    %v1544 = vpop.f32.mrf.mxu0
    %v1545 = vadd.f32 0.0, %v1544
    %1546 = vmatmul.f32.gmra.mxu0 %v1361
    %v1547 = vpop.f32.mrf.mxu0
    %v1548 = vadd.f32 0.0, %v1547
    %1549 = vmatmul.f32.gmra.mxu0 %v1364
    %v1550 = vpop.f32.mrf.mxu0
    %v1551 = vadd.f32 0.0, %v1550
    %1552 = vmatmul.f32.gmra.mxu0 %v1367
    %v1553 = vpop.f32.mrf.mxu0
    %v1554 = vadd.f32 0.0, %v1553
    %1555 = vmatmul.f32.gmra.mxu0 %v1370
    %v1556 = vpop.f32.mrf.mxu0
    %v1557 = vadd.f32 0.0, %v1556
    %1558 = vmatmul.f32.gmra.mxu0 %v1373
    %v1559 = vpop.f32.mrf.mxu0
    %v1560 = vadd.f32 0.0, %v1559
    %1561 = vmatmul.f32.gmra.mxu0 %v1376
    %v1562 = vpop.f32.mrf.mxu0
    %v1563 = vadd.f32 0.0, %v1562
    %1564 = vmatmul.f32.gmra.mxu0 %v1379
    %v1565 = vpop.f32.mrf.mxu0
    %v1566 = vadd.f32 0.0, %v1565
    %1567 = vmatmul.f32.gmra.mxu0 %v1382
    %v1568 = vpop.f32.mrf.mxu0
    %v1569 = vadd.f32 0.0, %v1568
    %1570 = vmatmul.f32.gmra.mxu0 %v1385
    %v1571 = vpop.f32.mrf.mxu0
    %v1572 = vadd.f32 0.0, %v1571
    %1573 = vmatmul.f32.gmra.mxu0 %v1388
    %v1574 = vpop.f32.mrf.mxu0
    %v1575 = vadd.f32 0.0, %v1574
    %1576 = vmatmul.f32.gmra.mxu0 %v1391
    %v1577 = vpop.f32.mrf.mxu0
    %v1578 = vadd.f32 0.0, %v1577
    %1579 = vmatmul.f32.gmra.mxu0 %v1394
    %v1580 = vpop.f32.mrf.mxu0
    %v1581 = vadd.f32 0.0, %v1580
    %1582 = vmatmul.f32.gmra.mxu0 %v1397
    %v1583 = vpop.f32.mrf.mxu0
    %v1584 = vadd.f32 0.0, %v1583
    %1585 = vmatmul.f32.gmra.mxu0 %v1400
    %v1586 = vpop.f32.mrf.mxu0
    %v1587 = vadd.f32 0.0, %v1586
    %1588 = vmatmul.f32.gmra.mxu0 %v1403
    %v1589 = vpop.f32.mrf.mxu0
    %v1590 = vadd.f32 0.0, %v1589
    %1591 = vmatmul.f32.gmra.mxu0 %v1406
    %v1592 = vpop.f32.mrf.mxu0
    %v1593 = vadd.f32 0.0, %v1592
    %1594 = vmatmul.f32.gmra.mxu0 %v1409
    %v1595 = vpop.f32.mrf.mxu0
    %v1596 = vadd.f32 0.0, %v1595
    %1597 = vmatmul.f32.gmra.mxu0 %v1412
    %v1598 = vpop.f32.mrf.mxu0
    %v1599 = vadd.f32 0.0, %v1598
    %1600 = vmatmul.f32.gmra.mxu0 %v1415
    %v1601 = vpop.f32.mrf.mxu0
    %v1602 = vadd.f32 0.0, %v1601
    %1603 = vdwg.mxu0
    %1604 = vmatpush.msra.mxu0 0.0
    %1605 = vmatpush.msra.mxu0 0.0
    %1606 = vmatpush.msra.mxu0 0.0
    %1607 = vmatpush.msra.mxu0 0.0
    %1608 = vmatpush.msra.mxu0 0.0
    %1609 = vmatpush.msra.mxu0 0.0
    %1610 = vmatpush.msra.mxu0 0.0
    %1611 = vmatpush.msra.mxu0 0.0
    %1612 = vmatpush.msra.mxu0 0.0
    %1613 = vmatpush.msra.mxu0 0.0
    %1614 = vmatpush.msra.mxu0 0.0
    %1615 = vmatpush.msra.mxu0 0.0
    %1616 = vmatpush.msra.mxu0 %v1424
    %1617 = vmatpush.msra.mxu0 %v1341
    %1618 = vmatpush.msra.mxu0 %v1338
    %1619 = vmatpush.msra.mxu0 %v1335
    %1620 = vmatmul.f32.gmra.mxu0 %v1346
    %v1621 = vpop.f32.mrf.mxu0
    %v1622 = vadd.f32 0.0, %v1621
    %1623 = vmatmul.f32.gmra.mxu0 %v1349
    %v1624 = vpop.f32.mrf.mxu0
    %v1625 = vadd.f32 0.0, %v1624
    %1626 = vmatmul.f32.gmra.mxu0 %v1352
    %v1627 = vpop.f32.mrf.mxu0
    %v1628 = vadd.f32 0.0, %v1627
    %1629 = vmatmul.f32.gmra.mxu0 %v1355
    %v1630 = vpop.f32.mrf.mxu0
    %v1631 = vadd.f32 0.0, %v1630
    %1632 = vmatmul.f32.gmra.mxu0 %v1358
    %v1633 = vpop.f32.mrf.mxu0
    %v1634 = vadd.f32 0.0, %v1633
    %1635 = vmatmul.f32.gmra.mxu0 %v1361
    %v1636 = vpop.f32.mrf.mxu0
    %v1637 = vadd.f32 0.0, %v1636
    %1638 = vmatmul.f32.gmra.mxu0 %v1364
    %v1639 = vpop.f32.mrf.mxu0
    %v1640 = vadd.f32 0.0, %v1639
    %1641 = vmatmul.f32.gmra.mxu0 %v1367
    %v1642 = vpop.f32.mrf.mxu0
    %v1643 = vadd.f32 0.0, %v1642
    %1644 = vmatmul.f32.gmra.mxu0 %v1370
    %v1645 = vpop.f32.mrf.mxu0
    %v1646 = vadd.f32 0.0, %v1645
    %1647 = vmatmul.f32.gmra.mxu0 %v1373
    %v1648 = vpop.f32.mrf.mxu0
    %v1649 = vadd.f32 0.0, %v1648
    %1650 = vmatmul.f32.gmra.mxu0 %v1376
    %v1651 = vpop.f32.mrf.mxu0
    %v1652 = vadd.f32 0.0, %v1651
    %1653 = vmatmul.f32.gmra.mxu0 %v1379
    %v1654 = vpop.f32.mrf.mxu0
    %v1655 = vadd.f32 0.0, %v1654
    %1656 = vmatmul.f32.gmra.mxu0 %v1382
    %v1657 = vpop.f32.mrf.mxu0
    %v1658 = vadd.f32 0.0, %v1657
    %1659 = vmatmul.f32.gmra.mxu0 %v1385
    %v1660 = vpop.f32.mrf.mxu0
    %v1661 = vadd.f32 0.0, %v1660
    %1662 = vmatmul.f32.gmra.mxu0 %v1388
    %v1663 = vpop.f32.mrf.mxu0
    %v1664 = vadd.f32 0.0, %v1663
    %1665 = vmatmul.f32.gmra.mxu0 %v1391
    %v1666 = vpop.f32.mrf.mxu0
    %v1667 = vadd.f32 0.0, %v1666
    %1668 = vmatmul.f32.gmra.mxu0 %v1394
    %v1669 = vpop.f32.mrf.mxu0
    %v1670 = vadd.f32 0.0, %v1669
    %1671 = vmatmul.f32.gmra.mxu0 %v1397
    %v1672 = vpop.f32.mrf.mxu0
    %v1673 = vadd.f32 0.0, %v1672
    %1674 = vmatmul.f32.gmra.mxu0 %v1400
    %v1675 = vpop.f32.mrf.mxu0
    %v1676 = vadd.f32 0.0, %v1675
    %1677 = vmatmul.f32.gmra.mxu0 %v1403
    %v1678 = vpop.f32.mrf.mxu0
    %v1679 = vadd.f32 0.0, %v1678
    %1680 = vmatmul.f32.gmra.mxu0 %v1406
    %v1681 = vpop.f32.mrf.mxu0
    %v1682 = vadd.f32 0.0, %v1681
    %1683 = vmatmul.f32.gmra.mxu0 %v1409
    %v1684 = vpop.f32.mrf.mxu0
    %v1685 = vadd.f32 0.0, %v1684
    %1686 = vmatmul.f32.gmra.mxu0 %v1412
    %v1687 = vpop.f32.mrf.mxu0
    %v1688 = vadd.f32 0.0, %v1687
    %1689 = vmatmul.f32.gmra.mxu0 %v1415
    %v1690 = vpop.f32.mrf.mxu0
    %v1691 = vadd.f32 0.0, %v1690
    %1692 = vdwg.mxu0
    %v1693 = vadd.f32 %v1236, %v1444
    %v1694 = vadd.f32 %v1237, %v1533
    %v1695 = vadd.f32 %v1238, %v1622
    %v1696 = vadd.f32 %v1239, %v1447
    %v1697 = vadd.f32 %v1240, %v1536
    %v1698 = vadd.f32 %v1241, %v1625
    %v1699 = vadd.f32 %v1242, %v1450
    %v1700 = vadd.f32 %v1243, %v1539
    %v1701 = vadd.f32 %v1244, %v1628
    %v1702 = vadd.f32 %v1245, %v1453
    %v1703 = vadd.f32 %v1246, %v1542
    %v1704 = vadd.f32 %v1247, %v1631
    %v1705 = vadd.f32 %v1248, %v1456
    %v1706 = vadd.f32 %v1249, %v1545
    %v1707 = vadd.f32 %v1250, %v1634
    %v1708 = vadd.f32 %v1251, %v1459
    %v1709 = vadd.f32 %v1252, %v1548
    %v1710 = vadd.f32 %v1253, %v1637
    %v1711 = vadd.f32 %v1254, %v1462
    %v1712 = vadd.f32 %v1255, %v1551
    %v1713 = vadd.f32 %v1256, %v1640
    %v1714 = vadd.f32 %v1257, %v1465
    %v1715 = vadd.f32 %v1258, %v1554
    %v1716 = vadd.f32 %v1259, %v1643
    %v1717 = vadd.f32 %v1260, %v1468
    %v1718 = vadd.f32 %v1261, %v1557
    %v1719 = vadd.f32 %v1262, %v1646
    %v1720 = vadd.f32 %v1263, %v1471
    %v1721 = vadd.f32 %v1264, %v1560
    %v1722 = vadd.f32 %v1265, %v1649
    %v1723 = vadd.f32 %v1266, %v1474
    %v1724 = vadd.f32 %v1267, %v1563
    %v1725 = vadd.f32 %v1268, %v1652
    %v1726 = vadd.f32 %v1269, %v1477
    %v1727 = vadd.f32 %v1270, %v1566
    %v1728 = vadd.f32 %v1271, %v1655
    %v1729 = vadd.f32 %v1272, %v1480
    %v1730 = vadd.f32 %v1273, %v1569
    %v1731 = vadd.f32 %v1274, %v1658
    %v1732 = vadd.f32 %v1275, %v1483
    %v1733 = vadd.f32 %v1276, %v1572
    %v1734 = vadd.f32 %v1277, %v1661
    %v1735 = vadd.f32 %v1278, %v1486
    %v1736 = vadd.f32 %v1279, %v1575
    %v1737 = vadd.f32 %v1280, %v1664
    %v1738 = vadd.f32 %v1281, %v1489
    %v1739 = vadd.f32 %v1282, %v1578
    %v1740 = vadd.f32 %v1283, %v1667
    %v1741 = vadd.f32 %v1284, %v1492
    %v1742 = vadd.f32 %v1285, %v1581
    %v1743 = vadd.f32 %v1286, %v1670
    %v1744 = vadd.f32 %v1287, %v1495
    %v1745 = vadd.f32 %v1288, %v1584
    %v1746 = vadd.f32 %v1289, %v1673
    %v1747 = vadd.f32 %v1290, %v1498
    %v1748 = vadd.f32 %v1291, %v1587
    %v1749 = vadd.f32 %v1292, %v1676
    %v1750 = vadd.f32 %v1293, %v1501
    %v1751 = vadd.f32 %v1294, %v1590
    %v1752 = vadd.f32 %v1295, %v1679
    %v1753 = vadd.f32 %v1296, %v1504
    %v1754 = vadd.f32 %v1297, %v1593
    %v1755 = vadd.f32 %v1298, %v1682
    %v1756 = vadd.f32 %v1299, %v1507
    %v1757 = vadd.f32 %v1300, %v1596
    %v1758 = vadd.f32 %v1301, %v1685
    %v1759 = vadd.f32 %v1302, %v1510
    %v1760 = vadd.f32 %v1303, %v1599
    %v1761 = vadd.f32 %v1304, %v1688
    %v1762 = vadd.f32 %v1305, %v1513
    %v1763 = vadd.f32 %v1306, %v1602
    %v1764 = vadd.f32 %v1307, %v1691
    %v1765 = vld [vmem:[%s0 + $0x4] sm:$0xff]
    %v1766 = vld [vmem:[%s0 + $0xc] sm:$0xff]
    %v1767 = vld [vmem:[%s0 + $0x14] sm:$0xff]
    %v1768 = vld [vmem:[%s0 + $0x24] sm:$0xff]
    %v1769 = vld [vmem:[%s0 + $0x2c] sm:$0xff]
    %v1770 = vld [vmem:[%s0 + $0x34] sm:$0xff]
    %v1771 = vld [vmem:[%s0 + $0x44] sm:$0xff]
    %v1772 = vld [vmem:[%s0 + $0x4c] sm:$0xff]
    %v1773 = vld [vmem:[%s0 + $0x54] sm:$0xff]
    %v1774 = vld [vmem:[%s0 + $0x64] sm:$0xff]
    %v1775 = vld [vmem:[%s0 + $0x6c] sm:$0xff]
    %v1776 = vld [vmem:[%s0 + $0x74] sm:$0xff]
    %v1777 = vld [vmem:[%s0 + $0x84] sm:$0xff]
    %v1778 = vld [vmem:[%s0 + $0x8c] sm:$0xff]
    %v1779 = vld [vmem:[%s0 + $0x94] sm:$0xff]
    %v1780 = vld [vmem:[%s0 + $0xa4] sm:$0xff]
    %v1781 = vld [vmem:[%s0 + $0xac] sm:$0xff]
    %v1782 = vld [vmem:[%s0 + $0xb4] sm:$0xff]
    %v1783 = vld [vmem:[%s0 + $0xc4] sm:$0xff]
    %v1784 = vld [vmem:[%s0 + $0xcc] sm:$0xff]
    %v1785 = vld [vmem:[%s0 + $0xd4] sm:$0xff]
    %v1786 = vld [vmem:[%s0 + $0xe4] sm:$0xff]
    %v1787 = vld [vmem:[%s0 + $0xec] sm:$0xff]
    %v1788 = vld [vmem:[%s0 + $0xf4] sm:$0xff]
    %s1789 = scalar_lea.vmem [#allocation2], 384
    %v1790 = vld [vmem:[%s1789] sm:$0xff]
    %v1791 = vld [vmem:[%s1789 + $0x8] sm:$0xff]
    %v1792 = vld [vmem:[%s1789 + $0x10] sm:$0xff]
    %v1793 = vld [vmem:[%s1789 + $0x18] sm:$0xff]
    %v1794 = vld [vmem:[%s1789 + $0x20] sm:$0xff]
    %v1795 = vld [vmem:[%s1789 + $0x28] sm:$0xff]
    %v1796 = vld [vmem:[%s1789 + $0x30] sm:$0xff]
    %v1797 = vld [vmem:[%s1789 + $0x38] sm:$0xff]
    %v1798 = vld [vmem:[%s1789 + $0x40] sm:$0xff]
    %v1799 = vld [vmem:[%s1789 + $0x48] sm:$0xf]
    %v1800 = vld [vmem:[%s1789 + $0x50] sm:$0xf]
    %v1801 = vld [vmem:[%s1789 + $0x58] sm:$0xf]
    %v1803 = vsel %vm153, %v1765, 0
    %v1806 = vsel %vm153, %v1766, 0
    %v1809 = vsel %vm153, %v1767, 0
    %v1812 = vsel %vm153, %v1768, 0
    %v1815 = vsel %vm153, %v1769, 0
    %v1818 = vsel %vm153, %v1770, 0
    %v1821 = vsel %vm153, %v1771, 0
    %v1824 = vsel %vm153, %v1772, 0
    %v1827 = vsel %vm153, %v1773, 0
    %v1830 = vsel %vm153, %v1774, 0
    %v1833 = vsel %vm153, %v1775, 0
    %v1836 = vsel %vm153, %v1776, 0
    %v1839 = vsel %vm153, %v1777, 0
    %v1842 = vsel %vm153, %v1778, 0
    %v1845 = vsel %vm153, %v1779, 0
    %v1848 = vsel %vm153, %v1780, 0
    %v1851 = vsel %vm153, %v1781, 0
    %v1854 = vsel %vm153, %v1782, 0
    %v1857 = vsel %vm153, %v1783, 0
    %v1860 = vsel %vm153, %v1784, 0
    %v1863 = vsel %vm153, %v1785, 0
    %v1866 = vsel %vm153, %v1786, 0
    %v1869 = vsel %vm153, %v1787, 0
    %v1872 = vsel %vm153, %v1788, 0
    %v1875 = vsel %vm226, %v1799, 0
    %v1878 = vsel %vm226, %v1800, 0
    %v1881 = vsel %vm226, %v1801, 0
    %1883 = vmatpush.msra.mxu0 0.0
    %1884 = vmatpush.msra.mxu0 0.0
    %1885 = vmatpush.msra.mxu0 0.0
    %1886 = vmatpush.msra.mxu0 0.0
    %1887 = vmatpush.msra.mxu0 0.0
    %1888 = vmatpush.msra.mxu0 0.0
    %1889 = vmatpush.msra.mxu0 0.0
    %1890 = vmatpush.msra.mxu0 0.0
    %1891 = vmatpush.msra.mxu0 0.0
    %1892 = vmatpush.msra.mxu0 0.0
    %1893 = vmatpush.msra.mxu0 0.0
    %1894 = vmatpush.msra.mxu0 0.0
    %1895 = vmatpush.msra.mxu0 %v1875
    %1896 = vmatpush.msra.mxu0 %v1796
    %1897 = vmatpush.msra.mxu0 %v1793
    %1898 = vmatpush.msra.mxu0 %v1790
    %1899 = vmatmul.f32.gmra.mxu0 %v1803
    %v1900 = vpop.f32.mrf.mxu0
    %v1901 = vadd.f32 0.0, %v1900
    %1902 = vmatmul.f32.gmra.mxu0 %v1806
    %v1903 = vpop.f32.mrf.mxu0
    %v1904 = vadd.f32 0.0, %v1903
    %1905 = vmatmul.f32.gmra.mxu0 %v1809
    %v1906 = vpop.f32.mrf.mxu0
    %v1907 = vadd.f32 0.0, %v1906
    %1908 = vmatmul.f32.gmra.mxu0 %v1812
    %v1909 = vpop.f32.mrf.mxu0
    %v1910 = vadd.f32 0.0, %v1909
    %1911 = vmatmul.f32.gmra.mxu0 %v1815
    %v1912 = vpop.f32.mrf.mxu0
    %v1913 = vadd.f32 0.0, %v1912
    %1914 = vmatmul.f32.gmra.mxu0 %v1818
    %v1915 = vpop.f32.mrf.mxu0
    %v1916 = vadd.f32 0.0, %v1915
    %1917 = vmatmul.f32.gmra.mxu0 %v1821
    %v1918 = vpop.f32.mrf.mxu0
    %v1919 = vadd.f32 0.0, %v1918
    %1920 = vmatmul.f32.gmra.mxu0 %v1824
    %v1921 = vpop.f32.mrf.mxu0
    %v1922 = vadd.f32 0.0, %v1921
    %1923 = vmatmul.f32.gmra.mxu0 %v1827
    %v1924 = vpop.f32.mrf.mxu0
    %v1925 = vadd.f32 0.0, %v1924
    %1926 = vmatmul.f32.gmra.mxu0 %v1830
    %v1927 = vpop.f32.mrf.mxu0
    %v1928 = vadd.f32 0.0, %v1927
    %1929 = vmatmul.f32.gmra.mxu0 %v1833
    %v1930 = vpop.f32.mrf.mxu0
    %v1931 = vadd.f32 0.0, %v1930
    %1932 = vmatmul.f32.gmra.mxu0 %v1836
    %v1933 = vpop.f32.mrf.mxu0
    %v1934 = vadd.f32 0.0, %v1933
    %1935 = vmatmul.f32.gmra.mxu0 %v1839
    %v1936 = vpop.f32.mrf.mxu0
    %v1937 = vadd.f32 0.0, %v1936
    %1938 = vmatmul.f32.gmra.mxu0 %v1842
    %v1939 = vpop.f32.mrf.mxu0
    %v1940 = vadd.f32 0.0, %v1939
    %1941 = vmatmul.f32.gmra.mxu0 %v1845
    %v1942 = vpop.f32.mrf.mxu0
    %v1943 = vadd.f32 0.0, %v1942
    %1944 = vmatmul.f32.gmra.mxu0 %v1848
    %v1945 = vpop.f32.mrf.mxu0
    %v1946 = vadd.f32 0.0, %v1945
    %1947 = vmatmul.f32.gmra.mxu0 %v1851
    %v1948 = vpop.f32.mrf.mxu0
    %v1949 = vadd.f32 0.0, %v1948
    %1950 = vmatmul.f32.gmra.mxu0 %v1854
    %v1951 = vpop.f32.mrf.mxu0
    %v1952 = vadd.f32 0.0, %v1951
    %1953 = vmatmul.f32.gmra.mxu0 %v1857
    %v1954 = vpop.f32.mrf.mxu0
    %v1955 = vadd.f32 0.0, %v1954
    %1956 = vmatmul.f32.gmra.mxu0 %v1860
    %v1957 = vpop.f32.mrf.mxu0
    %v1958 = vadd.f32 0.0, %v1957
    %1959 = vmatmul.f32.gmra.mxu0 %v1863
    %v1960 = vpop.f32.mrf.mxu0
    %v1961 = vadd.f32 0.0, %v1960
    %1962 = vmatmul.f32.gmra.mxu0 %v1866
    %v1963 = vpop.f32.mrf.mxu0
    %v1964 = vadd.f32 0.0, %v1963
    %1965 = vmatmul.f32.gmra.mxu0 %v1869
    %v1966 = vpop.f32.mrf.mxu0
    %v1967 = vadd.f32 0.0, %v1966
    %1968 = vmatmul.f32.gmra.mxu0 %v1872
    %v1969 = vpop.f32.mrf.mxu0
    %v1970 = vadd.f32 0.0, %v1969
    %1971 = vdwg.mxu0
    %1972 = vmatpush.msra.mxu0 0.0
    %1973 = vmatpush.msra.mxu0 0.0
    %1974 = vmatpush.msra.mxu0 0.0
    %1975 = vmatpush.msra.mxu0 0.0
    %1976 = vmatpush.msra.mxu0 0.0
    %1977 = vmatpush.msra.mxu0 0.0
    %1978 = vmatpush.msra.mxu0 0.0
    %1979 = vmatpush.msra.mxu0 0.0
    %1980 = vmatpush.msra.mxu0 0.0
    %1981 = vmatpush.msra.mxu0 0.0
    %1982 = vmatpush.msra.mxu0 0.0
    %1983 = vmatpush.msra.mxu0 0.0
    %1984 = vmatpush.msra.mxu0 %v1878
    %1985 = vmatpush.msra.mxu0 %v1797
    %1986 = vmatpush.msra.mxu0 %v1794
    %1987 = vmatpush.msra.mxu0 %v1791
    %1988 = vmatmul.f32.gmra.mxu0 %v1803
    %v1989 = vpop.f32.mrf.mxu0
    %v1990 = vadd.f32 0.0, %v1989
    %1991 = vmatmul.f32.gmra.mxu0 %v1806
    %v1992 = vpop.f32.mrf.mxu0
    %v1993 = vadd.f32 0.0, %v1992
    %1994 = vmatmul.f32.gmra.mxu0 %v1809
    %v1995 = vpop.f32.mrf.mxu0
    %v1996 = vadd.f32 0.0, %v1995
    %1997 = vmatmul.f32.gmra.mxu0 %v1812
    %v1998 = vpop.f32.mrf.mxu0
    %v1999 = vadd.f32 0.0, %v1998
    %2000 = vmatmul.f32.gmra.mxu0 %v1815
    %v2001 = vpop.f32.mrf.mxu0
    %v2002 = vadd.f32 0.0, %v2001
    %2003 = vmatmul.f32.gmra.mxu0 %v1818
    %v2004 = vpop.f32.mrf.mxu0
    %v2005 = vadd.f32 0.0, %v2004
    %2006 = vmatmul.f32.gmra.mxu0 %v1821
    %v2007 = vpop.f32.mrf.mxu0
    %v2008 = vadd.f32 0.0, %v2007
    %2009 = vmatmul.f32.gmra.mxu0 %v1824
    %v2010 = vpop.f32.mrf.mxu0
    %v2011 = vadd.f32 0.0, %v2010
    %2012 = vmatmul.f32.gmra.mxu0 %v1827
    %v2013 = vpop.f32.mrf.mxu0
    %v2014 = vadd.f32 0.0, %v2013
    %2015 = vmatmul.f32.gmra.mxu0 %v1830
    %v2016 = vpop.f32.mrf.mxu0
    %v2017 = vadd.f32 0.0, %v2016
    %2018 = vmatmul.f32.gmra.mxu0 %v1833
    %v2019 = vpop.f32.mrf.mxu0
    %v2020 = vadd.f32 0.0, %v2019
    %2021 = vmatmul.f32.gmra.mxu0 %v1836
    %v2022 = vpop.f32.mrf.mxu0
    %v2023 = vadd.f32 0.0, %v2022
    %2024 = vmatmul.f32.gmra.mxu0 %v1839
    %v2025 = vpop.f32.mrf.mxu0
    %v2026 = vadd.f32 0.0, %v2025
    %2027 = vmatmul.f32.gmra.mxu0 %v1842
    %v2028 = vpop.f32.mrf.mxu0
    %v2029 = vadd.f32 0.0, %v2028
    %2030 = vmatmul.f32.gmra.mxu0 %v1845
    %v2031 = vpop.f32.mrf.mxu0
    %v2032 = vadd.f32 0.0, %v2031
    %2033 = vmatmul.f32.gmra.mxu0 %v1848
    %v2034 = vpop.f32.mrf.mxu0
    %v2035 = vadd.f32 0.0, %v2034
    %2036 = vmatmul.f32.gmra.mxu0 %v1851
    %v2037 = vpop.f32.mrf.mxu0
    %v2038 = vadd.f32 0.0, %v2037
    %2039 = vmatmul.f32.gmra.mxu0 %v1854
    %v2040 = vpop.f32.mrf.mxu0
    %v2041 = vadd.f32 0.0, %v2040
    %2042 = vmatmul.f32.gmra.mxu0 %v1857
    %v2043 = vpop.f32.mrf.mxu0
    %v2044 = vadd.f32 0.0, %v2043
    %2045 = vmatmul.f32.gmra.mxu0 %v1860
    %v2046 = vpop.f32.mrf.mxu0
    %v2047 = vadd.f32 0.0, %v2046
    %2048 = vmatmul.f32.gmra.mxu0 %v1863
    %v2049 = vpop.f32.mrf.mxu0
    %v2050 = vadd.f32 0.0, %v2049
    %2051 = vmatmul.f32.gmra.mxu0 %v1866
    %v2052 = vpop.f32.mrf.mxu0
    %v2053 = vadd.f32 0.0, %v2052
    %2054 = vmatmul.f32.gmra.mxu0 %v1869
    %v2055 = vpop.f32.mrf.mxu0
    %v2056 = vadd.f32 0.0, %v2055
    %2057 = vmatmul.f32.gmra.mxu0 %v1872
    %v2058 = vpop.f32.mrf.mxu0
    %v2059 = vadd.f32 0.0, %v2058
    %2060 = vdwg.mxu0
    %2061 = vmatpush.msra.mxu0 0.0
    %2062 = vmatpush.msra.mxu0 0.0
    %2063 = vmatpush.msra.mxu0 0.0
    %2064 = vmatpush.msra.mxu0 0.0
    %2065 = vmatpush.msra.mxu0 0.0
    %2066 = vmatpush.msra.mxu0 0.0
    %2067 = vmatpush.msra.mxu0 0.0
    %2068 = vmatpush.msra.mxu0 0.0
    %2069 = vmatpush.msra.mxu0 0.0
    %2070 = vmatpush.msra.mxu0 0.0
    %2071 = vmatpush.msra.mxu0 0.0
    %2072 = vmatpush.msra.mxu0 0.0
    %2073 = vmatpush.msra.mxu0 %v1881
    %2074 = vmatpush.msra.mxu0 %v1798
    %2075 = vmatpush.msra.mxu0 %v1795
    %2076 = vmatpush.msra.mxu0 %v1792
    %2077 = vmatmul.f32.gmra.mxu0 %v1803
    %v2078 = vpop.f32.mrf.mxu0
    %v2079 = vadd.f32 0.0, %v2078
    %2080 = vmatmul.f32.gmra.mxu0 %v1806
    %v2081 = vpop.f32.mrf.mxu0
    %v2082 = vadd.f32 0.0, %v2081
    %2083 = vmatmul.f32.gmra.mxu0 %v1809
    %v2084 = vpop.f32.mrf.mxu0
    %v2085 = vadd.f32 0.0, %v2084
    %2086 = vmatmul.f32.gmra.mxu0 %v1812
    %v2087 = vpop.f32.mrf.mxu0
    %v2088 = vadd.f32 0.0, %v2087
    %2089 = vmatmul.f32.gmra.mxu0 %v1815
    %v2090 = vpop.f32.mrf.mxu0
    %v2091 = vadd.f32 0.0, %v2090
    %2092 = vmatmul.f32.gmra.mxu0 %v1818
    %v2093 = vpop.f32.mrf.mxu0
    %v2094 = vadd.f32 0.0, %v2093
    %2095 = vmatmul.f32.gmra.mxu0 %v1821
    %v2096 = vpop.f32.mrf.mxu0
    %v2097 = vadd.f32 0.0, %v2096
    %2098 = vmatmul.f32.gmra.mxu0 %v1824
    %v2099 = vpop.f32.mrf.mxu0
    %v2100 = vadd.f32 0.0, %v2099
    %2101 = vmatmul.f32.gmra.mxu0 %v1827
    %v2102 = vpop.f32.mrf.mxu0
    %v2103 = vadd.f32 0.0, %v2102
    %2104 = vmatmul.f32.gmra.mxu0 %v1830
    %v2105 = vpop.f32.mrf.mxu0
    %v2106 = vadd.f32 0.0, %v2105
    %2107 = vmatmul.f32.gmra.mxu0 %v1833
    %v2108 = vpop.f32.mrf.mxu0
    %v2109 = vadd.f32 0.0, %v2108
    %2110 = vmatmul.f32.gmra.mxu0 %v1836
    %v2111 = vpop.f32.mrf.mxu0
    %v2112 = vadd.f32 0.0, %v2111
    %2113 = vmatmul.f32.gmra.mxu0 %v1839
    %v2114 = vpop.f32.mrf.mxu0
    %v2115 = vadd.f32 0.0, %v2114
    %2116 = vmatmul.f32.gmra.mxu0 %v1842
    %v2117 = vpop.f32.mrf.mxu0
    %v2118 = vadd.f32 0.0, %v2117
    %2119 = vmatmul.f32.gmra.mxu0 %v1845
    %v2120 = vpop.f32.mrf.mxu0
    %v2121 = vadd.f32 0.0, %v2120
    %2122 = vmatmul.f32.gmra.mxu0 %v1848
    %v2123 = vpop.f32.mrf.mxu0
    %v2124 = vadd.f32 0.0, %v2123
    %2125 = vmatmul.f32.gmra.mxu0 %v1851
    %v2126 = vpop.f32.mrf.mxu0
    %v2127 = vadd.f32 0.0, %v2126
    %2128 = vmatmul.f32.gmra.mxu0 %v1854
    %v2129 = vpop.f32.mrf.mxu0
    %v2130 = vadd.f32 0.0, %v2129
    %2131 = vmatmul.f32.gmra.mxu0 %v1857
    %v2132 = vpop.f32.mrf.mxu0
    %v2133 = vadd.f32 0.0, %v2132
    %2134 = vmatmul.f32.gmra.mxu0 %v1860
    %v2135 = vpop.f32.mrf.mxu0
    %v2136 = vadd.f32 0.0, %v2135
    %2137 = vmatmul.f32.gmra.mxu0 %v1863
    %v2138 = vpop.f32.mrf.mxu0
    %v2139 = vadd.f32 0.0, %v2138
    %2140 = vmatmul.f32.gmra.mxu0 %v1866
    %v2141 = vpop.f32.mrf.mxu0
    %v2142 = vadd.f32 0.0, %v2141
    %2143 = vmatmul.f32.gmra.mxu0 %v1869
    %v2144 = vpop.f32.mrf.mxu0
    %v2145 = vadd.f32 0.0, %v2144
    %2146 = vmatmul.f32.gmra.mxu0 %v1872
    %v2147 = vpop.f32.mrf.mxu0
    %v2148 = vadd.f32 0.0, %v2147
    %2149 = vdwg.mxu0
    %v2150 = vadd.f32 %v1693, %v1901
    %v2151 = vadd.f32 %v1694, %v1990
    %v2152 = vadd.f32 %v1695, %v2079
    %v2153 = vadd.f32 %v1696, %v1904
    %v2154 = vadd.f32 %v1697, %v1993
    %v2155 = vadd.f32 %v1698, %v2082
    %v2156 = vadd.f32 %v1699, %v1907
    %v2157 = vadd.f32 %v1700, %v1996
    %v2158 = vadd.f32 %v1701, %v2085
    %v2159 = vadd.f32 %v1702, %v1910
    %v2160 = vadd.f32 %v1703, %v1999
    %v2161 = vadd.f32 %v1704, %v2088
    %v2162 = vadd.f32 %v1705, %v1913
    %v2163 = vadd.f32 %v1706, %v2002
    %v2164 = vadd.f32 %v1707, %v2091
    %v2165 = vadd.f32 %v1708, %v1916
    %v2166 = vadd.f32 %v1709, %v2005
    %v2167 = vadd.f32 %v1710, %v2094
    %v2168 = vadd.f32 %v1711, %v1919
    %v2169 = vadd.f32 %v1712, %v2008
    %v2170 = vadd.f32 %v1713, %v2097
    %v2171 = vadd.f32 %v1714, %v1922
    %v2172 = vadd.f32 %v1715, %v2011
    %v2173 = vadd.f32 %v1716, %v2100
    %v2174 = vadd.f32 %v1717, %v1925
    %v2175 = vadd.f32 %v1718, %v2014
    %v2176 = vadd.f32 %v1719, %v2103
    %v2177 = vadd.f32 %v1720, %v1928
    %v2178 = vadd.f32 %v1721, %v2017
    %v2179 = vadd.f32 %v1722, %v2106
    %v2180 = vadd.f32 %v1723, %v1931
    %v2181 = vadd.f32 %v1724, %v2020
    %v2182 = vadd.f32 %v1725, %v2109
    %v2183 = vadd.f32 %v1726, %v1934
    %v2184 = vadd.f32 %v1727, %v2023
    %v2185 = vadd.f32 %v1728, %v2112
    %v2186 = vadd.f32 %v1729, %v1937
    %v2187 = vadd.f32 %v1730, %v2026
    %v2188 = vadd.f32 %v1731, %v2115
    %v2189 = vadd.f32 %v1732, %v1940
    %v2190 = vadd.f32 %v1733, %v2029
    %v2191 = vadd.f32 %v1734, %v2118
    %v2192 = vadd.f32 %v1735, %v1943
    %v2193 = vadd.f32 %v1736, %v2032
    %v2194 = vadd.f32 %v1737, %v2121
    %v2195 = vadd.f32 %v1738, %v1946
    %v2196 = vadd.f32 %v1739, %v2035
    %v2197 = vadd.f32 %v1740, %v2124
    %v2198 = vadd.f32 %v1741, %v1949
    %v2199 = vadd.f32 %v1742, %v2038
    %v2200 = vadd.f32 %v1743, %v2127
    %v2201 = vadd.f32 %v1744, %v1952
    %v2202 = vadd.f32 %v1745, %v2041
    %v2203 = vadd.f32 %v1746, %v2130
    %v2204 = vadd.f32 %v1747, %v1955
    %v2205 = vadd.f32 %v1748, %v2044
    %v2206 = vadd.f32 %v1749, %v2133
    %v2207 = vadd.f32 %v1750, %v1958
    %v2208 = vadd.f32 %v1751, %v2047
    %v2209 = vadd.f32 %v1752, %v2136
    %v2210 = vadd.f32 %v1753, %v1961
    %v2211 = vadd.f32 %v1754, %v2050
    %v2212 = vadd.f32 %v1755, %v2139
    %v2213 = vadd.f32 %v1756, %v1964
    %v2214 = vadd.f32 %v1757, %v2053
    %v2215 = vadd.f32 %v1758, %v2142
    %v2216 = vadd.f32 %v1759, %v1967
    %v2217 = vadd.f32 %v1760, %v2056
    %v2218 = vadd.f32 %v1761, %v2145
    %v2219 = vadd.f32 %v1762, %v1970
    %v2220 = vadd.f32 %v1763, %v2059
    %v2221 = vadd.f32 %v1764, %v2148
    %v2222 = vld [vmem:[%s2] sm:$0x7]
    %v2224 = vperm.slane %v2222, 0
    %v2225 = vperm.slane %v2222, 1
    %v2226 = vperm.slane %v2222, 2
    %v2230 = vadd.f32 %v2150, %v2224
    %v2231 = vadd.f32 %v2151, %v2225
    %v2232 = vadd.f32 %v2152, %v2226
    %v2233 = vadd.f32 %v2153, %v2224
    %v2234 = vadd.f32 %v2154, %v2225
    %v2235 = vadd.f32 %v2155, %v2226
    %v2236 = vadd.f32 %v2156, %v2224
    %v2237 = vadd.f32 %v2157, %v2225
    %v2238 = vadd.f32 %v2158, %v2226
    %v2239 = vadd.f32 %v2159, %v2224
    %v2240 = vadd.f32 %v2160, %v2225
    %v2241 = vadd.f32 %v2161, %v2226
    %v2242 = vadd.f32 %v2162, %v2224
    %v2243 = vadd.f32 %v2163, %v2225
    %v2244 = vadd.f32 %v2164, %v2226
    %v2245 = vadd.f32 %v2165, %v2224
    %v2246 = vadd.f32 %v2166, %v2225
    %v2247 = vadd.f32 %v2167, %v2226
    %v2248 = vadd.f32 %v2168, %v2224
    %v2249 = vadd.f32 %v2169, %v2225
    %v2250 = vadd.f32 %v2170, %v2226
    %v2251 = vadd.f32 %v2171, %v2224
    %v2252 = vadd.f32 %v2172, %v2225
    %v2253 = vadd.f32 %v2173, %v2226
    %v2254 = vadd.f32 %v2174, %v2224
    %v2255 = vadd.f32 %v2175, %v2225
    %v2256 = vadd.f32 %v2176, %v2226
    %v2257 = vadd.f32 %v2177, %v2224
    %v2258 = vadd.f32 %v2178, %v2225
    %v2259 = vadd.f32 %v2179, %v2226
    %v2260 = vadd.f32 %v2180, %v2224
    %v2261 = vadd.f32 %v2181, %v2225
    %v2262 = vadd.f32 %v2182, %v2226
    %v2263 = vadd.f32 %v2183, %v2224
    %v2264 = vadd.f32 %v2184, %v2225
    %v2265 = vadd.f32 %v2185, %v2226
    %v2266 = vadd.f32 %v2186, %v2224
    %v2267 = vadd.f32 %v2187, %v2225
    %v2268 = vadd.f32 %v2188, %v2226
    %v2269 = vadd.f32 %v2189, %v2224
    %v2270 = vadd.f32 %v2190, %v2225
    %v2271 = vadd.f32 %v2191, %v2226
    %v2272 = vadd.f32 %v2192, %v2224
    %v2273 = vadd.f32 %v2193, %v2225
    %v2274 = vadd.f32 %v2194, %v2226
    %v2275 = vadd.f32 %v2195, %v2224
    %v2276 = vadd.f32 %v2196, %v2225
    %v2277 = vadd.f32 %v2197, %v2226
    %v2278 = vadd.f32 %v2198, %v2224
    %v2279 = vadd.f32 %v2199, %v2225
    %v2280 = vadd.f32 %v2200, %v2226
    %v2281 = vadd.f32 %v2201, %v2224
    %v2282 = vadd.f32 %v2202, %v2225
    %v2283 = vadd.f32 %v2203, %v2226
    %v2284 = vadd.f32 %v2204, %v2224
    %v2285 = vadd.f32 %v2205, %v2225
    %v2286 = vadd.f32 %v2206, %v2226
    %v2287 = vadd.f32 %v2207, %v2224
    %v2288 = vadd.f32 %v2208, %v2225
    %v2289 = vadd.f32 %v2209, %v2226
    %v2290 = vadd.f32 %v2210, %v2224
    %v2291 = vadd.f32 %v2211, %v2225
    %v2292 = vadd.f32 %v2212, %v2226
    %v2293 = vadd.f32 %v2213, %v2224
    %v2294 = vadd.f32 %v2214, %v2225
    %v2295 = vadd.f32 %v2215, %v2226
    %v2296 = vadd.f32 %v2216, %v2224
    %v2297 = vadd.f32 %v2217, %v2225
    %v2298 = vadd.f32 %v2218, %v2226
    %v2299 = vadd.f32 %v2219, %v2224
    %v2300 = vadd.f32 %v2220, %v2225
    %v2301 = vadd.f32 %v2221, %v2226
    %v2302 = vmax.f32 %v2230, 0.0
    %v2303 = vmax.f32 %v2231, 0.0
    %v2304 = vmax.f32 %v2232, 0.0
    %v2305 = vmax.f32 %v2233, 0.0
    %v2306 = vmax.f32 %v2234, 0.0
    %v2307 = vmax.f32 %v2235, 0.0
    %v2308 = vmax.f32 %v2236, 0.0
    %v2309 = vmax.f32 %v2237, 0.0
    %v2310 = vmax.f32 %v2238, 0.0
    %v2311 = vmax.f32 %v2239, 0.0
    %v2312 = vmax.f32 %v2240, 0.0
    %v2313 = vmax.f32 %v2241, 0.0
    %v2314 = vmax.f32 %v2242, 0.0
    %v2315 = vmax.f32 %v2243, 0.0
    %v2316 = vmax.f32 %v2244, 0.0
    %v2317 = vmax.f32 %v2245, 0.0
    %v2318 = vmax.f32 %v2246, 0.0
    %v2319 = vmax.f32 %v2247, 0.0
    %v2320 = vmax.f32 %v2248, 0.0
    %v2321 = vmax.f32 %v2249, 0.0
    %v2322 = vmax.f32 %v2250, 0.0
    %v2323 = vmax.f32 %v2251, 0.0
    %v2324 = vmax.f32 %v2252, 0.0
    %v2325 = vmax.f32 %v2253, 0.0
    %v2326 = vmax.f32 %v2254, 0.0
    %v2327 = vmax.f32 %v2255, 0.0
    %v2328 = vmax.f32 %v2256, 0.0
    %v2329 = vmax.f32 %v2257, 0.0
    %v2330 = vmax.f32 %v2258, 0.0
    %v2331 = vmax.f32 %v2259, 0.0
    %v2332 = vmax.f32 %v2260, 0.0
    %v2333 = vmax.f32 %v2261, 0.0
    %v2334 = vmax.f32 %v2262, 0.0
    %v2335 = vmax.f32 %v2263, 0.0
    %v2336 = vmax.f32 %v2264, 0.0
    %v2337 = vmax.f32 %v2265, 0.0
    %v2338 = vmax.f32 %v2266, 0.0
    %v2339 = vmax.f32 %v2267, 0.0
    %v2340 = vmax.f32 %v2268, 0.0
    %v2341 = vmax.f32 %v2269, 0.0
    %v2342 = vmax.f32 %v2270, 0.0
    %v2343 = vmax.f32 %v2271, 0.0
    %v2344 = vmax.f32 %v2272, 0.0
    %v2345 = vmax.f32 %v2273, 0.0
    %v2346 = vmax.f32 %v2274, 0.0
    %v2347 = vmax.f32 %v2275, 0.0
    %v2348 = vmax.f32 %v2276, 0.0
    %v2349 = vmax.f32 %v2277, 0.0
    %v2350 = vmax.f32 %v2278, 0.0
    %v2351 = vmax.f32 %v2279, 0.0
    %v2352 = vmax.f32 %v2280, 0.0
    %v2353 = vmax.f32 %v2281, 0.0
    %v2354 = vmax.f32 %v2282, 0.0
    %v2355 = vmax.f32 %v2283, 0.0
    %v2356 = vmax.f32 %v2284, 0.0
    %v2357 = vmax.f32 %v2285, 0.0
    %v2358 = vmax.f32 %v2286, 0.0
    %v2359 = vmax.f32 %v2287, 0.0
    %v2360 = vmax.f32 %v2288, 0.0
    %v2361 = vmax.f32 %v2289, 0.0
    %v2362 = vmax.f32 %v2290, 0.0
    %v2363 = vmax.f32 %v2291, 0.0
    %v2364 = vmax.f32 %v2292, 0.0
    %v2365 = vmax.f32 %v2293, 0.0
    %v2366 = vmax.f32 %v2294, 0.0
    %v2367 = vmax.f32 %v2295, 0.0
    %v2368 = vmax.f32 %v2296, 0.0
    %v2369 = vmax.f32 %v2297, 0.0
    %v2370 = vmax.f32 %v2298, 0.0
    %v2371 = vmax.f32 %v2299, 0.0
    %v2372 = vmax.f32 %v2300, 0.0
    %v2373 = vmax.f32 %v2301, 0.0
    %v2446 = vrot.slane %v2303, 6
    %v2447 = vrot.slane %v2304, 4
    %v2448 = vrot.slane %v2306, 6
    %v2449 = vrot.slane %v2307, 4
    %v2450 = vrot.slane %v2309, 6
    %v2451 = vrot.slane %v2310, 4
    %v2452 = vrot.slane %v2312, 6
    %v2453 = vrot.slane %v2313, 4
    %v2454 = vrot.slane %v2315, 6
    %v2455 = vrot.slane %v2316, 4
    %v2456 = vrot.slane %v2318, 6
    %v2457 = vrot.slane %v2319, 4
    %v2458 = vrot.slane %v2321, 6
    %v2459 = vrot.slane %v2322, 4
    %v2460 = vrot.slane %v2324, 6
    %v2461 = vrot.slane %v2325, 4
    %v2462 = vrot.slane %v2327, 6
    %v2463 = vrot.slane %v2328, 4
    %v2464 = vrot.slane %v2330, 6
    %v2465 = vrot.slane %v2331, 4
    %v2466 = vrot.slane %v2333, 6
    %v2467 = vrot.slane %v2334, 4
    %v2468 = vrot.slane %v2336, 6
    %v2469 = vrot.slane %v2337, 4
    %v2470 = vrot.slane %v2339, 6
    %v2471 = vrot.slane %v2340, 4
    %v2472 = vrot.slane %v2342, 6
    %v2473 = vrot.slane %v2343, 4
    %v2474 = vrot.slane %v2345, 6
    %v2475 = vrot.slane %v2346, 4
    %v2476 = vrot.slane %v2348, 6
    %v2477 = vrot.slane %v2349, 4
    %v2478 = vrot.slane %v2351, 6
    %v2479 = vrot.slane %v2352, 4
    %v2480 = vrot.slane %v2354, 6
    %v2481 = vrot.slane %v2355, 4
    %v2482 = vrot.slane %v2357, 6
    %v2483 = vrot.slane %v2358, 4
    %v2484 = vrot.slane %v2360, 6
    %v2485 = vrot.slane %v2361, 4
    %v2486 = vrot.slane %v2363, 6
    %v2487 = vrot.slane %v2364, 4
    %v2488 = vrot.slane %v2366, 6
    %v2489 = vrot.slane %v2367, 4
    %v2490 = vrot.slane %v2369, 6
    %v2491 = vrot.slane %v2370, 4
    %v2492 = vrot.slane %v2372, 6
    %v2493 = vrot.slane %v2373, 4
    %vm2494 = vcmask 1041408
    %v2495 = vsel %vm2494, %v2302, %v2446
    %v2496 = vsel %vm226, %v2495, %v2447
    %vm2497 = vcmask 1043458
    %v2498 = vsel %vm2497, %v2302, %v2446
    %vm2499 = vcmask 1045506
    %v2500 = vsel %vm2499, %v2498, %v2447
    %v2501 = vrot.slane %v2500, 2
    %vm2502 = vcmask 1045508
    %v2503 = vsel %vm2502, %v2302, %v2446
    %v2504 = vsel %vm226, %v2447, %v2503
    %v2505 = vrot.slane %v2504, 4
    %vm2506 = vcmask 1045504
    %v2507 = vsel %vm2506, %v2446, %v2302
    %v2508 = vsel %vm2499, %v2447, %v2507
    %v2509 = vrot.slane %v2508, 6
    %v2510 = vsel %vm2494, %v2305, %v2448
    %v2511 = vsel %vm226, %v2510, %v2449
    %v2512 = vsel %vm2497, %v2305, %v2448
    %v2513 = vsel %vm2499, %v2512, %v2449
    %v2514 = vrot.slane %v2513, 2
    %v2515 = vsel %vm2502, %v2305, %v2448
    %v2516 = vsel %vm226, %v2449, %v2515
    %v2517 = vrot.slane %v2516, 4
    %v2518 = vsel %vm2506, %v2448, %v2305
    %v2519 = vsel %vm2499, %v2449, %v2518
    %v2520 = vrot.slane %v2519, 6
    %v2521 = vsel %vm2494, %v2308, %v2450
    %v2522 = vsel %vm226, %v2521, %v2451
    %v2523 = vsel %vm2497, %v2308, %v2450
    %v2524 = vsel %vm2499, %v2523, %v2451
    %v2525 = vrot.slane %v2524, 2
    %v2526 = vsel %vm2502, %v2308, %v2450
    %v2527 = vsel %vm226, %v2451, %v2526
    %v2528 = vrot.slane %v2527, 4
    %v2529 = vsel %vm2506, %v2450, %v2308
    %v2530 = vsel %vm2499, %v2451, %v2529
    %v2531 = vrot.slane %v2530, 6
    %v2532 = vsel %vm2494, %v2311, %v2452
    %v2533 = vsel %vm226, %v2532, %v2453
    %v2534 = vsel %vm2497, %v2311, %v2452
    %v2535 = vsel %vm2499, %v2534, %v2453
    %v2536 = vrot.slane %v2535, 2
    %v2537 = vsel %vm2502, %v2311, %v2452
    %v2538 = vsel %vm226, %v2453, %v2537
    %v2539 = vrot.slane %v2538, 4
    %v2540 = vsel %vm2506, %v2452, %v2311
    %v2541 = vsel %vm2499, %v2453, %v2540
    %v2542 = vrot.slane %v2541, 6
    %v2543 = vsel %vm2494, %v2314, %v2454
    %v2544 = vsel %vm226, %v2543, %v2455
    %v2545 = vsel %vm2497, %v2314, %v2454
    %v2546 = vsel %vm2499, %v2545, %v2455
    %v2547 = vrot.slane %v2546, 2
    %v2548 = vsel %vm2502, %v2314, %v2454
    %v2549 = vsel %vm226, %v2455, %v2548
    %v2550 = vrot.slane %v2549, 4
    %v2551 = vsel %vm2506, %v2454, %v2314
    %v2552 = vsel %vm2499, %v2455, %v2551
    %v2553 = vrot.slane %v2552, 6
    %v2554 = vsel %vm2494, %v2317, %v2456
    %v2555 = vsel %vm226, %v2554, %v2457
    %v2556 = vsel %vm2497, %v2317, %v2456
    %v2557 = vsel %vm2499, %v2556, %v2457
    %v2558 = vrot.slane %v2557, 2
    %v2559 = vsel %vm2502, %v2317, %v2456
    %v2560 = vsel %vm226, %v2457, %v2559
    %v2561 = vrot.slane %v2560, 4
    %v2562 = vsel %vm2506, %v2456, %v2317
    %v2563 = vsel %vm2499, %v2457, %v2562
    %v2564 = vrot.slane %v2563, 6
    %v2565 = vsel %vm2494, %v2320, %v2458
    %v2566 = vsel %vm226, %v2565, %v2459
    %v2567 = vsel %vm2497, %v2320, %v2458
    %v2568 = vsel %vm2499, %v2567, %v2459
    %v2569 = vrot.slane %v2568, 2
    %v2570 = vsel %vm2502, %v2320, %v2458
    %v2571 = vsel %vm226, %v2459, %v2570
    %v2572 = vrot.slane %v2571, 4
    %v2573 = vsel %vm2506, %v2458, %v2320
    %v2574 = vsel %vm2499, %v2459, %v2573
    %v2575 = vrot.slane %v2574, 6
    %v2576 = vsel %vm2494, %v2323, %v2460
    %v2577 = vsel %vm226, %v2576, %v2461
    %v2578 = vsel %vm2497, %v2323, %v2460
    %v2579 = vsel %vm2499, %v2578, %v2461
    %v2580 = vrot.slane %v2579, 2
    %v2581 = vsel %vm2502, %v2323, %v2460
    %v2582 = vsel %vm226, %v2461, %v2581
    %v2583 = vrot.slane %v2582, 4
    %v2584 = vsel %vm2506, %v2460, %v2323
    %v2585 = vsel %vm2499, %v2461, %v2584
    %v2586 = vrot.slane %v2585, 6
    %v2587 = vsel %vm2494, %v2326, %v2462
    %v2588 = vsel %vm226, %v2587, %v2463
    %v2589 = vsel %vm2497, %v2326, %v2462
    %v2590 = vsel %vm2499, %v2589, %v2463
    %v2591 = vrot.slane %v2590, 2
    %v2592 = vsel %vm2502, %v2326, %v2462
    %v2593 = vsel %vm226, %v2463, %v2592
    %v2594 = vrot.slane %v2593, 4
    %v2595 = vsel %vm2506, %v2462, %v2326
    %v2596 = vsel %vm2499, %v2463, %v2595
    %v2597 = vrot.slane %v2596, 6
    %v2598 = vsel %vm2494, %v2329, %v2464
    %v2599 = vsel %vm226, %v2598, %v2465
    %v2600 = vsel %vm2497, %v2329, %v2464
    %v2601 = vsel %vm2499, %v2600, %v2465
    %v2602 = vrot.slane %v2601, 2
    %v2603 = vsel %vm2502, %v2329, %v2464
    %v2604 = vsel %vm226, %v2465, %v2603
    %v2605 = vrot.slane %v2604, 4
    %v2606 = vsel %vm2506, %v2464, %v2329
    %v2607 = vsel %vm2499, %v2465, %v2606
    %v2608 = vrot.slane %v2607, 6
    %v2609 = vsel %vm2494, %v2332, %v2466
    %v2610 = vsel %vm226, %v2609, %v2467
    %v2611 = vsel %vm2497, %v2332, %v2466
    %v2612 = vsel %vm2499, %v2611, %v2467
    %v2613 = vrot.slane %v2612, 2
    %v2614 = vsel %vm2502, %v2332, %v2466
    %v2615 = vsel %vm226, %v2467, %v2614
    %v2616 = vrot.slane %v2615, 4
    %v2617 = vsel %vm2506, %v2466, %v2332
    %v2618 = vsel %vm2499, %v2467, %v2617
    %v2619 = vrot.slane %v2618, 6
    %v2620 = vsel %vm2494, %v2335, %v2468
    %v2621 = vsel %vm226, %v2620, %v2469
    %v2622 = vsel %vm2497, %v2335, %v2468
    %v2623 = vsel %vm2499, %v2622, %v2469
    %v2624 = vrot.slane %v2623, 2
    %v2625 = vsel %vm2502, %v2335, %v2468
    %v2626 = vsel %vm226, %v2469, %v2625
    %v2627 = vrot.slane %v2626, 4
    %v2628 = vsel %vm2506, %v2468, %v2335
    %v2629 = vsel %vm2499, %v2469, %v2628
    %v2630 = vrot.slane %v2629, 6
    %v2631 = vsel %vm2494, %v2338, %v2470
    %v2632 = vsel %vm226, %v2631, %v2471
    %v2633 = vsel %vm2497, %v2338, %v2470
    %v2634 = vsel %vm2499, %v2633, %v2471
    %v2635 = vrot.slane %v2634, 2
    %v2636 = vsel %vm2502, %v2338, %v2470
    %v2637 = vsel %vm226, %v2471, %v2636
    %v2638 = vrot.slane %v2637, 4
    %v2639 = vsel %vm2506, %v2470, %v2338
    %v2640 = vsel %vm2499, %v2471, %v2639
    %v2641 = vrot.slane %v2640, 6
    %v2642 = vsel %vm2494, %v2341, %v2472
    %v2643 = vsel %vm226, %v2642, %v2473
    %v2644 = vsel %vm2497, %v2341, %v2472
    %v2645 = vsel %vm2499, %v2644, %v2473
    %v2646 = vrot.slane %v2645, 2
    %v2647 = vsel %vm2502, %v2341, %v2472
    %v2648 = vsel %vm226, %v2473, %v2647
    %v2649 = vrot.slane %v2648, 4
    %v2650 = vsel %vm2506, %v2472, %v2341
    %v2651 = vsel %vm2499, %v2473, %v2650
    %v2652 = vrot.slane %v2651, 6
    %v2653 = vsel %vm2494, %v2344, %v2474
    %v2654 = vsel %vm226, %v2653, %v2475
    %v2655 = vsel %vm2497, %v2344, %v2474
    %v2656 = vsel %vm2499, %v2655, %v2475
    %v2657 = vrot.slane %v2656, 2
    %v2658 = vsel %vm2502, %v2344, %v2474
    %v2659 = vsel %vm226, %v2475, %v2658
    %v2660 = vrot.slane %v2659, 4
    %v2661 = vsel %vm2506, %v2474, %v2344
    %v2662 = vsel %vm2499, %v2475, %v2661
    %v2663 = vrot.slane %v2662, 6
    %v2664 = vsel %vm2494, %v2347, %v2476
    %v2665 = vsel %vm226, %v2664, %v2477
    %v2666 = vsel %vm2497, %v2347, %v2476
    %v2667 = vsel %vm2499, %v2666, %v2477
    %v2668 = vrot.slane %v2667, 2
    %v2669 = vsel %vm2502, %v2347, %v2476
    %v2670 = vsel %vm226, %v2477, %v2669
    %v2671 = vrot.slane %v2670, 4
    %v2672 = vsel %vm2506, %v2476, %v2347
    %v2673 = vsel %vm2499, %v2477, %v2672
    %v2674 = vrot.slane %v2673, 6
    %v2675 = vsel %vm2494, %v2350, %v2478
    %v2676 = vsel %vm226, %v2675, %v2479
    %v2677 = vsel %vm2497, %v2350, %v2478
    %v2678 = vsel %vm2499, %v2677, %v2479
    %v2679 = vrot.slane %v2678, 2
    %v2680 = vsel %vm2502, %v2350, %v2478
    %v2681 = vsel %vm226, %v2479, %v2680
    %v2682 = vrot.slane %v2681, 4
    %v2683 = vsel %vm2506, %v2478, %v2350
    %v2684 = vsel %vm2499, %v2479, %v2683
    %v2685 = vrot.slane %v2684, 6
    %v2686 = vsel %vm2494, %v2353, %v2480
    %v2687 = vsel %vm226, %v2686, %v2481
    %v2688 = vsel %vm2497, %v2353, %v2480
    %v2689 = vsel %vm2499, %v2688, %v2481
    %v2690 = vrot.slane %v2689, 2
    %v2691 = vsel %vm2502, %v2353, %v2480
    %v2692 = vsel %vm226, %v2481, %v2691
    %v2693 = vrot.slane %v2692, 4
    %v2694 = vsel %vm2506, %v2480, %v2353
    %v2695 = vsel %vm2499, %v2481, %v2694
    %v2696 = vrot.slane %v2695, 6
    %v2697 = vsel %vm2494, %v2356, %v2482
    %v2698 = vsel %vm226, %v2697, %v2483
    %v2699 = vsel %vm2497, %v2356, %v2482
    %v2700 = vsel %vm2499, %v2699, %v2483
    %v2701 = vrot.slane %v2700, 2
    %v2702 = vsel %vm2502, %v2356, %v2482
    %v2703 = vsel %vm226, %v2483, %v2702
    %v2704 = vrot.slane %v2703, 4
    %v2705 = vsel %vm2506, %v2482, %v2356
    %v2706 = vsel %vm2499, %v2483, %v2705
    %v2707 = vrot.slane %v2706, 6
    %v2708 = vsel %vm2494, %v2359, %v2484
    %v2709 = vsel %vm226, %v2708, %v2485
    %v2710 = vsel %vm2497, %v2359, %v2484
    %v2711 = vsel %vm2499, %v2710, %v2485
    %v2712 = vrot.slane %v2711, 2
    %v2713 = vsel %vm2502, %v2359, %v2484
    %v2714 = vsel %vm226, %v2485, %v2713
    %v2715 = vrot.slane %v2714, 4
    %v2716 = vsel %vm2506, %v2484, %v2359
    %v2717 = vsel %vm2499, %v2485, %v2716
    %v2718 = vrot.slane %v2717, 6
    %v2719 = vsel %vm2494, %v2362, %v2486
    %v2720 = vsel %vm226, %v2719, %v2487
    %v2721 = vsel %vm2497, %v2362, %v2486
    %v2722 = vsel %vm2499, %v2721, %v2487
    %v2723 = vrot.slane %v2722, 2
    %v2724 = vsel %vm2502, %v2362, %v2486
    %v2725 = vsel %vm226, %v2487, %v2724
    %v2726 = vrot.slane %v2725, 4
    %v2727 = vsel %vm2506, %v2486, %v2362
    %v2728 = vsel %vm2499, %v2487, %v2727
    %v2729 = vrot.slane %v2728, 6
    %v2730 = vsel %vm2494, %v2365, %v2488
    %v2731 = vsel %vm226, %v2730, %v2489
    %v2732 = vsel %vm2497, %v2365, %v2488
    %v2733 = vsel %vm2499, %v2732, %v2489
    %v2734 = vrot.slane %v2733, 2
    %v2735 = vsel %vm2502, %v2365, %v2488
    %v2736 = vsel %vm226, %v2489, %v2735
    %v2737 = vrot.slane %v2736, 4
    %v2738 = vsel %vm2506, %v2488, %v2365
    %v2739 = vsel %vm2499, %v2489, %v2738
    %v2740 = vrot.slane %v2739, 6
    %v2741 = vsel %vm2494, %v2368, %v2490
    %v2742 = vsel %vm226, %v2741, %v2491
    %v2743 = vsel %vm2497, %v2368, %v2490
    %v2744 = vsel %vm2499, %v2743, %v2491
    %v2745 = vrot.slane %v2744, 2
    %v2746 = vsel %vm2502, %v2368, %v2490
    %v2747 = vsel %vm226, %v2491, %v2746
    %v2748 = vrot.slane %v2747, 4
    %v2749 = vsel %vm2506, %v2490, %v2368
    %v2750 = vsel %vm2499, %v2491, %v2749
    %v2751 = vrot.slane %v2750, 6
    %v2752 = vsel %vm2494, %v2371, %v2492
    %v2753 = vsel %vm226, %v2752, %v2493
    %v2754 = vsel %vm2497, %v2371, %v2492
    %v2755 = vsel %vm2499, %v2754, %v2493
    %v2756 = vrot.slane %v2755, 2
    %v2757 = vsel %vm2502, %v2371, %v2492
    %v2758 = vsel %vm226, %v2493, %v2757
    %v2759 = vrot.slane %v2758, 4
    %v2760 = vsel %vm2506, %v2492, %v2371
    %v2761 = vsel %vm2499, %v2493, %v2760
    %v2762 = vrot.slane %v2761, 6
    %2763 = vst [vmem:[#allocation1] ss:$4 sm:$0xff] %v2496
    %v2764 = vld.sshfl [vmem:[#allocation1] sm:$0xff pattern:$0x73625140]
    %v2765 = vld.sshfl [vmem:[#allocation1 + $0x8] sm:$0xff pattern:$0x73625140]
    %v2766 = vld.sshfl [vmem:[#allocation1 + $0x10] sm:$0xff pattern:$0x73625140]
    %s2767 = scalar_lea.vmem [#allocation1], 32
    %2768 = vst [vmem:[%s2767] ss:$4 sm:$0xff] %v2501
    %v2769 = vld.sshfl [vmem:[#allocation1 + $0x20] sm:$0xff pattern:$0x73625140]
    %v2770 = vld.sshfl [vmem:[#allocation1 + $0x28] sm:$0xff pattern:$0x73625140]
    %v2771 = vld.sshfl [vmem:[#allocation1 + $0x30] sm:$0xff pattern:$0x73625140]
    %2772 = vst [vmem:[#allocation1] ss:$4 sm:$0xff] %v2505
    %v2773 = vld.sshfl [vmem:[#allocation1] sm:$0xff pattern:$0x73625140]
    %v2774 = vld.sshfl [vmem:[#allocation1 + $0x8] sm:$0xff pattern:$0x73625140]
    %v2775 = vld.sshfl [vmem:[#allocation1 + $0x10] sm:$0xff pattern:$0x73625140]
    %2776 = vst [vmem:[%s2767] ss:$4 sm:$0xff] %v2509
    %v2777 = vld.sshfl [vmem:[#allocation1 + $0x20] sm:$0xff pattern:$0x73625140]
    %v2778 = vld.sshfl [vmem:[#allocation1 + $0x28] sm:$0xff pattern:$0x73625140]
    %v2779 = vld.sshfl [vmem:[#allocation1 + $0x30] sm:$0xff pattern:$0x73625140]
    %2780 = vst [vmem:[#allocation1] ss:$4 sm:$0xff] %v2511
    %v2781 = vld.sshfl [vmem:[#allocation1] sm:$0xff pattern:$0x73625140]
    %v2782 = vld.sshfl [vmem:[#allocation1 + $0x8] sm:$0xff pattern:$0x73625140]
    %v2783 = vld.sshfl [vmem:[#allocation1 + $0x10] sm:$0xff pattern:$0x73625140]
    %2784 = vst [vmem:[%s2767] ss:$4 sm:$0xff] %v2514
    %v2785 = vld.sshfl [vmem:[#allocation1 + $0x20] sm:$0xff pattern:$0x73625140]
    %v2786 = vld.sshfl [vmem:[#allocation1 + $0x28] sm:$0xff pattern:$0x73625140]
    %v2787 = vld.sshfl [vmem:[#allocation1 + $0x30] sm:$0xff pattern:$0x73625140]
    %2788 = vst [vmem:[#allocation1] ss:$4 sm:$0xff] %v2517
    %v2789 = vld.sshfl [vmem:[#allocation1] sm:$0xff pattern:$0x73625140]
    %v2790 = vld.sshfl [vmem:[#allocation1 + $0x8] sm:$0xff pattern:$0x73625140]
    %v2791 = vld.sshfl [vmem:[#allocation1 + $0x10] sm:$0xff pattern:$0x73625140]
    %2792 = vst [vmem:[%s2767] ss:$4 sm:$0xff] %v2520
    %v2793 = vld.sshfl [vmem:[#allocation1 + $0x20] sm:$0xff pattern:$0x73625140]
    %v2794 = vld.sshfl [vmem:[#allocation1 + $0x28] sm:$0xff pattern:$0x73625140]
    %v2795 = vld.sshfl [vmem:[#allocation1 + $0x30] sm:$0xff pattern:$0x73625140]
    %2796 = vst [vmem:[#allocation1] ss:$4 sm:$0xff] %v2522
    %v2797 = vld.sshfl [vmem:[#allocation1] sm:$0xff pattern:$0x73625140]
    %v2798 = vld.sshfl [vmem:[#allocation1 + $0x8] sm:$0xff pattern:$0x73625140]
    %v2799 = vld.sshfl [vmem:[#allocation1 + $0x10] sm:$0xff pattern:$0x73625140]
    %2800 = vst [vmem:[%s2767] ss:$4 sm:$0xff] %v2525
    %v2801 = vld.sshfl [vmem:[#allocation1 + $0x20] sm:$0xff pattern:$0x73625140]
    %v2802 = vld.sshfl [vmem:[#allocation1 + $0x28] sm:$0xff pattern:$0x73625140]
    %v2803 = vld.sshfl [vmem:[#allocation1 + $0x30] sm:$0xff pattern:$0x73625140]
    %2804 = vst [vmem:[#allocation1] ss:$4 sm:$0xff] %v2528
    %v2805 = vld.sshfl [vmem:[#allocation1] sm:$0xff pattern:$0x73625140]
    %v2806 = vld.sshfl [vmem:[#allocation1 + $0x8] sm:$0xff pattern:$0x73625140]
    %v2807 = vld.sshfl [vmem:[#allocation1 + $0x10] sm:$0xff pattern:$0x73625140]
    %2808 = vst [vmem:[%s2767] ss:$4 sm:$0xff] %v2531
    %v2809 = vld.sshfl [vmem:[#allocation1 + $0x20] sm:$0xff pattern:$0x73625140]
    %v2810 = vld.sshfl [vmem:[#allocation1 + $0x28] sm:$0xff pattern:$0x73625140]
    %v2811 = vld.sshfl [vmem:[#allocation1 + $0x30] sm:$0xff pattern:$0x73625140]
    %2812 = vst [vmem:[#allocation1] ss:$4 sm:$0xff] %v2533
    %v2813 = vld.sshfl [vmem:[#allocation1] sm:$0xff pattern:$0x73625140]
    %v2814 = vld.sshfl [vmem:[#allocation1 + $0x8] sm:$0xff pattern:$0x73625140]
    %v2815 = vld.sshfl [vmem:[#allocation1 + $0x10] sm:$0xff pattern:$0x73625140]
    %2816 = vst [vmem:[%s2767] ss:$4 sm:$0xff] %v2536
    %v2817 = vld.sshfl [vmem:[#allocation1 + $0x20] sm:$0xff pattern:$0x73625140]
    %v2818 = vld.sshfl [vmem:[#allocation1 + $0x28] sm:$0xff pattern:$0x73625140]
    %v2819 = vld.sshfl [vmem:[#allocation1 + $0x30] sm:$0xff pattern:$0x73625140]
    %2820 = vst [vmem:[#allocation1] ss:$4 sm:$0xff] %v2539
    %v2821 = vld.sshfl [vmem:[#allocation1] sm:$0xff pattern:$0x73625140]
    %v2822 = vld.sshfl [vmem:[#allocation1 + $0x8] sm:$0xff pattern:$0x73625140]
    %v2823 = vld.sshfl [vmem:[#allocation1 + $0x10] sm:$0xff pattern:$0x73625140]
    %2824 = vst [vmem:[%s2767] ss:$4 sm:$0xff] %v2542
    %v2825 = vld.sshfl [vmem:[#allocation1 + $0x20] sm:$0xff pattern:$0x73625140]
    %v2826 = vld.sshfl [vmem:[#allocation1 + $0x28] sm:$0xff pattern:$0x73625140]
    %v2827 = vld.sshfl [vmem:[#allocation1 + $0x30] sm:$0xff pattern:$0x73625140]
    %2828 = vst [vmem:[#allocation1] ss:$4 sm:$0xff] %v2544
    %v2829 = vld.sshfl [vmem:[#allocation1] sm:$0xff pattern:$0x73625140]
    %v2830 = vld.sshfl [vmem:[#allocation1 + $0x8] sm:$0xff pattern:$0x73625140]
    %v2831 = vld.sshfl [vmem:[#allocation1 + $0x10] sm:$0xff pattern:$0x73625140]
    %2832 = vst [vmem:[%s2767] ss:$4 sm:$0xff] %v2547
    %v2833 = vld.sshfl [vmem:[#allocation1 + $0x20] sm:$0xff pattern:$0x73625140]
    %v2834 = vld.sshfl [vmem:[#allocation1 + $0x28] sm:$0xff pattern:$0x73625140]
    %v2835 = vld.sshfl [vmem:[#allocation1 + $0x30] sm:$0xff pattern:$0x73625140]
    %2836 = vst [vmem:[#allocation1] ss:$4 sm:$0xff] %v2550
    %v2837 = vld.sshfl [vmem:[#allocation1] sm:$0xff pattern:$0x73625140]
    %v2838 = vld.sshfl [vmem:[#allocation1 + $0x8] sm:$0xff pattern:$0x73625140]
    %v2839 = vld.sshfl [vmem:[#allocation1 + $0x10] sm:$0xff pattern:$0x73625140]
    %2840 = vst [vmem:[%s2767] ss:$4 sm:$0xff] %v2553
    %v2841 = vld.sshfl [vmem:[#allocation1 + $0x20] sm:$0xff pattern:$0x73625140]
    %v2842 = vld.sshfl [vmem:[#allocation1 + $0x28] sm:$0xff pattern:$0x73625140]
    %v2843 = vld.sshfl [vmem:[#allocation1 + $0x30] sm:$0xff pattern:$0x73625140]
    %2844 = vst [vmem:[#allocation1] ss:$4 sm:$0xff] %v2555
    %v2845 = vld.sshfl [vmem:[#allocation1] sm:$0xff pattern:$0x73625140]
    %v2846 = vld.sshfl [vmem:[#allocation1 + $0x8] sm:$0xff pattern:$0x73625140]
    %v2847 = vld.sshfl [vmem:[#allocation1 + $0x10] sm:$0xff pattern:$0x73625140]
    %2848 = vst [vmem:[%s2767] ss:$4 sm:$0xff] %v2558
    %v2849 = vld.sshfl [vmem:[#allocation1 + $0x20] sm:$0xff pattern:$0x73625140]
    %v2850 = vld.sshfl [vmem:[#allocation1 + $0x28] sm:$0xff pattern:$0x73625140]
    %v2851 = vld.sshfl [vmem:[#allocation1 + $0x30] sm:$0xff pattern:$0x73625140]
    %2852 = vst [vmem:[#allocation1] ss:$4 sm:$0xff] %v2561
    %v2853 = vld.sshfl [vmem:[#allocation1] sm:$0xff pattern:$0x73625140]
    %v2854 = vld.sshfl [vmem:[#allocation1 + $0x8] sm:$0xff pattern:$0x73625140]
    %v2855 = vld.sshfl [vmem:[#allocation1 + $0x10] sm:$0xff pattern:$0x73625140]
    %2856 = vst [vmem:[%s2767] ss:$4 sm:$0xff] %v2564
    %v2857 = vld.sshfl [vmem:[#allocation1 + $0x20] sm:$0xff pattern:$0x73625140]
    %v2858 = vld.sshfl [vmem:[#allocation1 + $0x28] sm:$0xff pattern:$0x73625140]
    %v2859 = vld.sshfl [vmem:[#allocation1 + $0x30] sm:$0xff pattern:$0x73625140]
    %2860 = vst [vmem:[#allocation1] ss:$4 sm:$0xff] %v2566
    %v2861 = vld.sshfl [vmem:[#allocation1] sm:$0xff pattern:$0x73625140]
    %v2862 = vld.sshfl [vmem:[#allocation1 + $0x8] sm:$0xff pattern:$0x73625140]
    %v2863 = vld.sshfl [vmem:[#allocation1 + $0x10] sm:$0xff pattern:$0x73625140]
    %2864 = vst [vmem:[%s2767] ss:$4 sm:$0xff] %v2569
    %v2865 = vld.sshfl [vmem:[#allocation1 + $0x20] sm:$0xff pattern:$0x73625140]
    %v2866 = vld.sshfl [vmem:[#allocation1 + $0x28] sm:$0xff pattern:$0x73625140]
    %v2867 = vld.sshfl [vmem:[#allocation1 + $0x30] sm:$0xff pattern:$0x73625140]
    %2868 = vst [vmem:[#allocation1] ss:$4 sm:$0xff] %v2572
    %v2869 = vld.sshfl [vmem:[#allocation1] sm:$0xff pattern:$0x73625140]
    %v2870 = vld.sshfl [vmem:[#allocation1 + $0x8] sm:$0xff pattern:$0x73625140]
    %v2871 = vld.sshfl [vmem:[#allocation1 + $0x10] sm:$0xff pattern:$0x73625140]
    %2872 = vst [vmem:[%s2767] ss:$4 sm:$0xff] %v2575
    %v2873 = vld.sshfl [vmem:[#allocation1 + $0x20] sm:$0xff pattern:$0x73625140]
    %v2874 = vld.sshfl [vmem:[#allocation1 + $0x28] sm:$0xff pattern:$0x73625140]
    %v2875 = vld.sshfl [vmem:[#allocation1 + $0x30] sm:$0xff pattern:$0x73625140]
    %2876 = vst [vmem:[#allocation1] ss:$4 sm:$0xff] %v2577
    %v2877 = vld.sshfl [vmem:[#allocation1] sm:$0xff pattern:$0x73625140]
    %v2878 = vld.sshfl [vmem:[#allocation1 + $0x8] sm:$0xff pattern:$0x73625140]
    %v2879 = vld.sshfl [vmem:[#allocation1 + $0x10] sm:$0xff pattern:$0x73625140]
    %2880 = vst [vmem:[%s2767] ss:$4 sm:$0xff] %v2580
    %v2881 = vld.sshfl [vmem:[#allocation1 + $0x20] sm:$0xff pattern:$0x73625140]
    %v2882 = vld.sshfl [vmem:[#allocation1 + $0x28] sm:$0xff pattern:$0x73625140]
    %v2883 = vld.sshfl [vmem:[#allocation1 + $0x30] sm:$0xff pattern:$0x73625140]
    %2884 = vst [vmem:[#allocation1] ss:$4 sm:$0xff] %v2583
    %v2885 = vld.sshfl [vmem:[#allocation1] sm:$0xff pattern:$0x73625140]
    %v2886 = vld.sshfl [vmem:[#allocation1 + $0x8] sm:$0xff pattern:$0x73625140]
    %v2887 = vld.sshfl [vmem:[#allocation1 + $0x10] sm:$0xff pattern:$0x73625140]
    %2888 = vst [vmem:[%s2767] ss:$4 sm:$0xff] %v2586
    %v2889 = vld.sshfl [vmem:[#allocation1 + $0x20] sm:$0xff pattern:$0x73625140]
    %v2890 = vld.sshfl [vmem:[#allocation1 + $0x28] sm:$0xff pattern:$0x73625140]
    %v2891 = vld.sshfl [vmem:[#allocation1 + $0x30] sm:$0xff pattern:$0x73625140]
    %2892 = vst [vmem:[#allocation1] ss:$4 sm:$0xff] %v2588
    %v2893 = vld.sshfl [vmem:[#allocation1] sm:$0xff pattern:$0x73625140]
    %v2894 = vld.sshfl [vmem:[#allocation1 + $0x8] sm:$0xff pattern:$0x73625140]
    %v2895 = vld.sshfl [vmem:[#allocation1 + $0x10] sm:$0xff pattern:$0x73625140]
    %2896 = vst [vmem:[%s2767] ss:$4 sm:$0xff] %v2591
    %v2897 = vld.sshfl [vmem:[#allocation1 + $0x20] sm:$0xff pattern:$0x73625140]
    %v2898 = vld.sshfl [vmem:[#allocation1 + $0x28] sm:$0xff pattern:$0x73625140]
    %v2899 = vld.sshfl [vmem:[#allocation1 + $0x30] sm:$0xff pattern:$0x73625140]
    %2900 = vst [vmem:[#allocation1] ss:$4 sm:$0xff] %v2594
    %v2901 = vld.sshfl [vmem:[#allocation1] sm:$0xff pattern:$0x73625140]
    %v2902 = vld.sshfl [vmem:[#allocation1 + $0x8] sm:$0xff pattern:$0x73625140]
    %v2903 = vld.sshfl [vmem:[#allocation1 + $0x10] sm:$0xff pattern:$0x73625140]
    %2904 = vst [vmem:[%s2767] ss:$4 sm:$0xff] %v2597
    %v2905 = vld.sshfl [vmem:[#allocation1 + $0x20] sm:$0xff pattern:$0x73625140]
    %v2906 = vld.sshfl [vmem:[#allocation1 + $0x28] sm:$0xff pattern:$0x73625140]
    %v2907 = vld.sshfl [vmem:[#allocation1 + $0x30] sm:$0xff pattern:$0x73625140]
    %2908 = vst [vmem:[#allocation1] ss:$4 sm:$0xff] %v2599
    %v2909 = vld.sshfl [vmem:[#allocation1] sm:$0xff pattern:$0x73625140]
    %v2910 = vld.sshfl [vmem:[#allocation1 + $0x8] sm:$0xff pattern:$0x73625140]
    %v2911 = vld.sshfl [vmem:[#allocation1 + $0x10] sm:$0xff pattern:$0x73625140]
    %2912 = vst [vmem:[%s2767] ss:$4 sm:$0xff] %v2602
    %v2913 = vld.sshfl [vmem:[#allocation1 + $0x20] sm:$0xff pattern:$0x73625140]
    %v2914 = vld.sshfl [vmem:[#allocation1 + $0x28] sm:$0xff pattern:$0x73625140]
    %v2915 = vld.sshfl [vmem:[#allocation1 + $0x30] sm:$0xff pattern:$0x73625140]
    %2916 = vst [vmem:[#allocation1] ss:$4 sm:$0xff] %v2605
    %v2917 = vld.sshfl [vmem:[#allocation1] sm:$0xff pattern:$0x73625140]
    %v2918 = vld.sshfl [vmem:[#allocation1 + $0x8] sm:$0xff pattern:$0x73625140]
    %v2919 = vld.sshfl [vmem:[#allocation1 + $0x10] sm:$0xff pattern:$0x73625140]
    %2920 = vst [vmem:[%s2767] ss:$4 sm:$0xff] %v2608
    %v2921 = vld.sshfl [vmem:[#allocation1 + $0x20] sm:$0xff pattern:$0x73625140]
    %v2922 = vld.sshfl [vmem:[#allocation1 + $0x28] sm:$0xff pattern:$0x73625140]
    %v2923 = vld.sshfl [vmem:[#allocation1 + $0x30] sm:$0xff pattern:$0x73625140]
    %2924 = vst [vmem:[#allocation1] ss:$4 sm:$0xff] %v2610
    %v2925 = vld.sshfl [vmem:[#allocation1] sm:$0xff pattern:$0x73625140]
    %v2926 = vld.sshfl [vmem:[#allocation1 + $0x8] sm:$0xff pattern:$0x73625140]
    %v2927 = vld.sshfl [vmem:[#allocation1 + $0x10] sm:$0xff pattern:$0x73625140]
    %2928 = vst [vmem:[%s2767] ss:$4 sm:$0xff] %v2613
    %v2929 = vld.sshfl [vmem:[#allocation1 + $0x20] sm:$0xff pattern:$0x73625140]
    %v2930 = vld.sshfl [vmem:[#allocation1 + $0x28] sm:$0xff pattern:$0x73625140]
    %v2931 = vld.sshfl [vmem:[#allocation1 + $0x30] sm:$0xff pattern:$0x73625140]
    %2932 = vst [vmem:[#allocation1] ss:$4 sm:$0xff] %v2616
    %v2933 = vld.sshfl [vmem:[#allocation1] sm:$0xff pattern:$0x73625140]
    %v2934 = vld.sshfl [vmem:[#allocation1 + $0x8] sm:$0xff pattern:$0x73625140]
    %v2935 = vld.sshfl [vmem:[#allocation1 + $0x10] sm:$0xff pattern:$0x73625140]
    %2936 = vst [vmem:[%s2767] ss:$4 sm:$0xff] %v2619
    %v2937 = vld.sshfl [vmem:[#allocation1 + $0x20] sm:$0xff pattern:$0x73625140]
    %v2938 = vld.sshfl [vmem:[#allocation1 + $0x28] sm:$0xff pattern:$0x73625140]
    %v2939 = vld.sshfl [vmem:[#allocation1 + $0x30] sm:$0xff pattern:$0x73625140]
    %2940 = vst [vmem:[#allocation1] ss:$4 sm:$0xff] %v2621
    %v2941 = vld.sshfl [vmem:[#allocation1] sm:$0xff pattern:$0x73625140]
    %v2942 = vld.sshfl [vmem:[#allocation1 + $0x8] sm:$0xff pattern:$0x73625140]
    %v2943 = vld.sshfl [vmem:[#allocation1 + $0x10] sm:$0xff pattern:$0x73625140]
    %2944 = vst [vmem:[%s2767] ss:$4 sm:$0xff] %v2624
    %v2945 = vld.sshfl [vmem:[#allocation1 + $0x20] sm:$0xff pattern:$0x73625140]
    %v2946 = vld.sshfl [vmem:[#allocation1 + $0x28] sm:$0xff pattern:$0x73625140]
    %v2947 = vld.sshfl [vmem:[#allocation1 + $0x30] sm:$0xff pattern:$0x73625140]
    %2948 = vst [vmem:[#allocation1] ss:$4 sm:$0xff] %v2627
    %v2949 = vld.sshfl [vmem:[#allocation1] sm:$0xff pattern:$0x73625140]
    %v2950 = vld.sshfl [vmem:[#allocation1 + $0x8] sm:$0xff pattern:$0x73625140]
    %v2951 = vld.sshfl [vmem:[#allocation1 + $0x10] sm:$0xff pattern:$0x73625140]
    %2952 = vst [vmem:[%s2767] ss:$4 sm:$0xff] %v2630
    %v2953 = vld.sshfl [vmem:[#allocation1 + $0x20] sm:$0xff pattern:$0x73625140]
    %v2954 = vld.sshfl [vmem:[#allocation1 + $0x28] sm:$0xff pattern:$0x73625140]
    %v2955 = vld.sshfl [vmem:[#allocation1 + $0x30] sm:$0xff pattern:$0x73625140]
    %2956 = vst [vmem:[#allocation1] ss:$4 sm:$0xff] %v2632
    %v2957 = vld.sshfl [vmem:[#allocation1] sm:$0xff pattern:$0x73625140]
    %v2958 = vld.sshfl [vmem:[#allocation1 + $0x8] sm:$0xff pattern:$0x73625140]
    %v2959 = vld.sshfl [vmem:[#allocation1 + $0x10] sm:$0xff pattern:$0x73625140]
    %2960 = vst [vmem:[%s2767] ss:$4 sm:$0xff] %v2635
    %v2961 = vld.sshfl [vmem:[#allocation1 + $0x20] sm:$0xff pattern:$0x73625140]
    %v2962 = vld.sshfl [vmem:[#allocation1 + $0x28] sm:$0xff pattern:$0x73625140]
    %v2963 = vld.sshfl [vmem:[#allocation1 + $0x30] sm:$0xff pattern:$0x73625140]
    %2964 = vst [vmem:[#allocation1] ss:$4 sm:$0xff] %v2638
    %v2965 = vld.sshfl [vmem:[#allocation1] sm:$0xff pattern:$0x73625140]
    %v2966 = vld.sshfl [vmem:[#allocation1 + $0x8] sm:$0xff pattern:$0x73625140]
    %v2967 = vld.sshfl [vmem:[#allocation1 + $0x10] sm:$0xff pattern:$0x73625140]
    %2968 = vst [vmem:[%s2767] ss:$4 sm:$0xff] %v2641
    %v2969 = vld.sshfl [vmem:[#allocation1 + $0x20] sm:$0xff pattern:$0x73625140]
    %v2970 = vld.sshfl [vmem:[#allocation1 + $0x28] sm:$0xff pattern:$0x73625140]
    %v2971 = vld.sshfl [vmem:[#allocation1 + $0x30] sm:$0xff pattern:$0x73625140]
    %2972 = vst [vmem:[#allocation1] ss:$4 sm:$0xff] %v2643
    %v2973 = vld.sshfl [vmem:[#allocation1] sm:$0xff pattern:$0x73625140]
    %v2974 = vld.sshfl [vmem:[#allocation1 + $0x8] sm:$0xff pattern:$0x73625140]
    %v2975 = vld.sshfl [vmem:[#allocation1 + $0x10] sm:$0xff pattern:$0x73625140]
    %2976 = vst [vmem:[%s2767] ss:$4 sm:$0xff] %v2646
    %v2977 = vld.sshfl [vmem:[#allocation1 + $0x20] sm:$0xff pattern:$0x73625140]
    %v2978 = vld.sshfl [vmem:[#allocation1 + $0x28] sm:$0xff pattern:$0x73625140]
    %v2979 = vld.sshfl [vmem:[#allocation1 + $0x30] sm:$0xff pattern:$0x73625140]
    %2980 = vst [vmem:[#allocation1] ss:$4 sm:$0xff] %v2649
    %v2981 = vld.sshfl [vmem:[#allocation1] sm:$0xff pattern:$0x73625140]
    %v2982 = vld.sshfl [vmem:[#allocation1 + $0x8] sm:$0xff pattern:$0x73625140]
    %v2983 = vld.sshfl [vmem:[#allocation1 + $0x10] sm:$0xff pattern:$0x73625140]
    %2984 = vst [vmem:[%s2767] ss:$4 sm:$0xff] %v2652
    %v2985 = vld.sshfl [vmem:[#allocation1 + $0x20] sm:$0xff pattern:$0x73625140]
    %v2986 = vld.sshfl [vmem:[#allocation1 + $0x28] sm:$0xff pattern:$0x73625140]
    %v2987 = vld.sshfl [vmem:[#allocation1 + $0x30] sm:$0xff pattern:$0x73625140]
    %2988 = vst [vmem:[#allocation1] ss:$4 sm:$0xff] %v2654
    %v2989 = vld.sshfl [vmem:[#allocation1] sm:$0xff pattern:$0x73625140]
    %v2990 = vld.sshfl [vmem:[#allocation1 + $0x8] sm:$0xff pattern:$0x73625140]
    %v2991 = vld.sshfl [vmem:[#allocation1 + $0x10] sm:$0xff pattern:$0x73625140]
    %2992 = vst [vmem:[%s2767] ss:$4 sm:$0xff] %v2657
    %v2993 = vld.sshfl [vmem:[#allocation1 + $0x20] sm:$0xff pattern:$0x73625140]
    %v2994 = vld.sshfl [vmem:[#allocation1 + $0x28] sm:$0xff pattern:$0x73625140]
    %v2995 = vld.sshfl [vmem:[#allocation1 + $0x30] sm:$0xff pattern:$0x73625140]
    %2996 = vst [vmem:[#allocation1] ss:$4 sm:$0xff] %v2660
    %v2997 = vld.sshfl [vmem:[#allocation1] sm:$0xff pattern:$0x73625140]
    %v2998 = vld.sshfl [vmem:[#allocation1 + $0x8] sm:$0xff pattern:$0x73625140]
    %v2999 = vld.sshfl [vmem:[#allocation1 + $0x10] sm:$0xff pattern:$0x73625140]
    %3000 = vst [vmem:[%s2767] ss:$4 sm:$0xff] %v2663
    %v3001 = vld.sshfl [vmem:[#allocation1 + $0x20] sm:$0xff pattern:$0x73625140]
    %v3002 = vld.sshfl [vmem:[#allocation1 + $0x28] sm:$0xff pattern:$0x73625140]
    %v3003 = vld.sshfl [vmem:[#allocation1 + $0x30] sm:$0xff pattern:$0x73625140]
    %3004 = vst [vmem:[#allocation1] ss:$4 sm:$0xff] %v2665
    %v3005 = vld.sshfl [vmem:[#allocation1] sm:$0xff pattern:$0x73625140]
    %v3006 = vld.sshfl [vmem:[#allocation1 + $0x8] sm:$0xff pattern:$0x73625140]
    %v3007 = vld.sshfl [vmem:[#allocation1 + $0x10] sm:$0xff pattern:$0x73625140]
    %3008 = vst [vmem:[%s2767] ss:$4 sm:$0xff] %v2668
    %v3009 = vld.sshfl [vmem:[#allocation1 + $0x20] sm:$0xff pattern:$0x73625140]
    %v3010 = vld.sshfl [vmem:[#allocation1 + $0x28] sm:$0xff pattern:$0x73625140]
    %v3011 = vld.sshfl [vmem:[#allocation1 + $0x30] sm:$0xff pattern:$0x73625140]
    %3012 = vst [vmem:[#allocation1] ss:$4 sm:$0xff] %v2671
    %v3013 = vld.sshfl [vmem:[#allocation1] sm:$0xff pattern:$0x73625140]
    %v3014 = vld.sshfl [vmem:[#allocation1 + $0x8] sm:$0xff pattern:$0x73625140]
    %v3015 = vld.sshfl [vmem:[#allocation1 + $0x10] sm:$0xff pattern:$0x73625140]
    %3016 = vst [vmem:[%s2767] ss:$4 sm:$0xff] %v2674
    %v3017 = vld.sshfl [vmem:[#allocation1 + $0x20] sm:$0xff pattern:$0x73625140]
    %v3018 = vld.sshfl [vmem:[#allocation1 + $0x28] sm:$0xff pattern:$0x73625140]
    %v3019 = vld.sshfl [vmem:[#allocation1 + $0x30] sm:$0xff pattern:$0x73625140]
    %3020 = vst [vmem:[#allocation1] ss:$4 sm:$0xff] %v2676
    %v3021 = vld.sshfl [vmem:[#allocation1] sm:$0xff pattern:$0x73625140]
    %v3022 = vld.sshfl [vmem:[#allocation1 + $0x8] sm:$0xff pattern:$0x73625140]
    %v3023 = vld.sshfl [vmem:[#allocation1 + $0x10] sm:$0xff pattern:$0x73625140]
    %3024 = vst [vmem:[%s2767] ss:$4 sm:$0xff] %v2679
    %v3025 = vld.sshfl [vmem:[#allocation1 + $0x20] sm:$0xff pattern:$0x73625140]
    %v3026 = vld.sshfl [vmem:[#allocation1 + $0x28] sm:$0xff pattern:$0x73625140]
    %v3027 = vld.sshfl [vmem:[#allocation1 + $0x30] sm:$0xff pattern:$0x73625140]
    %3028 = vst [vmem:[#allocation1] ss:$4 sm:$0xff] %v2682
    %v3029 = vld.sshfl [vmem:[#allocation1] sm:$0xff pattern:$0x73625140]
    %v3030 = vld.sshfl [vmem:[#allocation1 + $0x8] sm:$0xff pattern:$0x73625140]
    %v3031 = vld.sshfl [vmem:[#allocation1 + $0x10] sm:$0xff pattern:$0x73625140]
    %3032 = vst [vmem:[%s2767] ss:$4 sm:$0xff] %v2685
    %v3033 = vld.sshfl [vmem:[#allocation1 + $0x20] sm:$0xff pattern:$0x73625140]
    %v3034 = vld.sshfl [vmem:[#allocation1 + $0x28] sm:$0xff pattern:$0x73625140]
    %v3035 = vld.sshfl [vmem:[#allocation1 + $0x30] sm:$0xff pattern:$0x73625140]
    %3036 = vst [vmem:[#allocation1] ss:$4 sm:$0xff] %v2687
    %v3037 = vld.sshfl [vmem:[#allocation1] sm:$0xff pattern:$0x73625140]
    %v3038 = vld.sshfl [vmem:[#allocation1 + $0x8] sm:$0xff pattern:$0x73625140]
    %v3039 = vld.sshfl [vmem:[#allocation1 + $0x10] sm:$0xff pattern:$0x73625140]
    %3040 = vst [vmem:[%s2767] ss:$4 sm:$0xff] %v2690
    %v3041 = vld.sshfl [vmem:[#allocation1 + $0x20] sm:$0xff pattern:$0x73625140]
    %v3042 = vld.sshfl [vmem:[#allocation1 + $0x28] sm:$0xff pattern:$0x73625140]
    %v3043 = vld.sshfl [vmem:[#allocation1 + $0x30] sm:$0xff pattern:$0x73625140]
    %3044 = vst [vmem:[#allocation1] ss:$4 sm:$0xff] %v2693
    %v3045 = vld.sshfl [vmem:[#allocation1] sm:$0xff pattern:$0x73625140]
    %v3046 = vld.sshfl [vmem:[#allocation1 + $0x8] sm:$0xff pattern:$0x73625140]
    %v3047 = vld.sshfl [vmem:[#allocation1 + $0x10] sm:$0xff pattern:$0x73625140]
    %3048 = vst [vmem:[%s2767] ss:$4 sm:$0xff] %v2696
    %v3049 = vld.sshfl [vmem:[#allocation1 + $0x20] sm:$0xff pattern:$0x73625140]
    %v3050 = vld.sshfl [vmem:[#allocation1 + $0x28] sm:$0xff pattern:$0x73625140]
    %v3051 = vld.sshfl [vmem:[#allocation1 + $0x30] sm:$0xff pattern:$0x73625140]
    %3052 = vst [vmem:[#allocation1] ss:$4 sm:$0xff] %v2698
    %v3053 = vld.sshfl [vmem:[#allocation1] sm:$0xff pattern:$0x73625140]
    %v3054 = vld.sshfl [vmem:[#allocation1 + $0x8] sm:$0xff pattern:$0x73625140]
    %v3055 = vld.sshfl [vmem:[#allocation1 + $0x10] sm:$0xff pattern:$0x73625140]
    %3056 = vst [vmem:[%s2767] ss:$4 sm:$0xff] %v2701
    %v3057 = vld.sshfl [vmem:[#allocation1 + $0x20] sm:$0xff pattern:$0x73625140]
    %v3058 = vld.sshfl [vmem:[#allocation1 + $0x28] sm:$0xff pattern:$0x73625140]
    %v3059 = vld.sshfl [vmem:[#allocation1 + $0x30] sm:$0xff pattern:$0x73625140]
    %3060 = vst [vmem:[#allocation1] ss:$4 sm:$0xff] %v2704
    %v3061 = vld.sshfl [vmem:[#allocation1] sm:$0xff pattern:$0x73625140]
    %v3062 = vld.sshfl [vmem:[#allocation1 + $0x8] sm:$0xff pattern:$0x73625140]
    %v3063 = vld.sshfl [vmem:[#allocation1 + $0x10] sm:$0xff pattern:$0x73625140]
    %3064 = vst [vmem:[%s2767] ss:$4 sm:$0xff] %v2707
    %v3065 = vld.sshfl [vmem:[#allocation1 + $0x20] sm:$0xff pattern:$0x73625140]
    %v3066 = vld.sshfl [vmem:[#allocation1 + $0x28] sm:$0xff pattern:$0x73625140]
    %v3067 = vld.sshfl [vmem:[#allocation1 + $0x30] sm:$0xff pattern:$0x73625140]
    %3068 = vst [vmem:[#allocation1] ss:$4 sm:$0xff] %v2709
    %v3069 = vld.sshfl [vmem:[#allocation1] sm:$0xff pattern:$0x73625140]
    %v3070 = vld.sshfl [vmem:[#allocation1 + $0x8] sm:$0xff pattern:$0x73625140]
    %v3071 = vld.sshfl [vmem:[#allocation1 + $0x10] sm:$0xff pattern:$0x73625140]
    %3072 = vst [vmem:[%s2767] ss:$4 sm:$0xff] %v2712
    %v3073 = vld.sshfl [vmem:[#allocation1 + $0x20] sm:$0xff pattern:$0x73625140]
    %v3074 = vld.sshfl [vmem:[#allocation1 + $0x28] sm:$0xff pattern:$0x73625140]
    %v3075 = vld.sshfl [vmem:[#allocation1 + $0x30] sm:$0xff pattern:$0x73625140]
    %3076 = vst [vmem:[#allocation1] ss:$4 sm:$0xff] %v2715
    %v3077 = vld.sshfl [vmem:[#allocation1] sm:$0xff pattern:$0x73625140]
    %v3078 = vld.sshfl [vmem:[#allocation1 + $0x8] sm:$0xff pattern:$0x73625140]
    %v3079 = vld.sshfl [vmem:[#allocation1 + $0x10] sm:$0xff pattern:$0x73625140]
    %3080 = vst [vmem:[%s2767] ss:$4 sm:$0xff] %v2718
    %v3081 = vld.sshfl [vmem:[#allocation1 + $0x20] sm:$0xff pattern:$0x73625140]
    %v3082 = vld.sshfl [vmem:[#allocation1 + $0x28] sm:$0xff pattern:$0x73625140]
    %v3083 = vld.sshfl [vmem:[#allocation1 + $0x30] sm:$0xff pattern:$0x73625140]
    %3084 = vst [vmem:[#allocation1] ss:$4 sm:$0xff] %v2720
    %v3085 = vld.sshfl [vmem:[#allocation1] sm:$0xff pattern:$0x73625140]
    %v3086 = vld.sshfl [vmem:[#allocation1 + $0x8] sm:$0xff pattern:$0x73625140]
    %v3087 = vld.sshfl [vmem:[#allocation1 + $0x10] sm:$0xff pattern:$0x73625140]
    %3088 = vst [vmem:[%s2767] ss:$4 sm:$0xff] %v2723
    %v3089 = vld.sshfl [vmem:[#allocation1 + $0x20] sm:$0xff pattern:$0x73625140]
    %v3090 = vld.sshfl [vmem:[#allocation1 + $0x28] sm:$0xff pattern:$0x73625140]
    %v3091 = vld.sshfl [vmem:[#allocation1 + $0x30] sm:$0xff pattern:$0x73625140]
    %3092 = vst [vmem:[#allocation1] ss:$4 sm:$0xff] %v2726
    %v3093 = vld.sshfl [vmem:[#allocation1] sm:$0xff pattern:$0x73625140]
    %v3094 = vld.sshfl [vmem:[#allocation1 + $0x8] sm:$0xff pattern:$0x73625140]
    %v3095 = vld.sshfl [vmem:[#allocation1 + $0x10] sm:$0xff pattern:$0x73625140]
    %3096 = vst [vmem:[%s2767] ss:$4 sm:$0xff] %v2729
    %v3097 = vld.sshfl [vmem:[#allocation1 + $0x20] sm:$0xff pattern:$0x73625140]
    %v3098 = vld.sshfl [vmem:[#allocation1 + $0x28] sm:$0xff pattern:$0x73625140]
    %v3099 = vld.sshfl [vmem:[#allocation1 + $0x30] sm:$0xff pattern:$0x73625140]
    %3100 = vst [vmem:[#allocation1] ss:$4 sm:$0xff] %v2731
    %v3101 = vld.sshfl [vmem:[#allocation1] sm:$0xff pattern:$0x73625140]
    %v3102 = vld.sshfl [vmem:[#allocation1 + $0x8] sm:$0xff pattern:$0x73625140]
    %v3103 = vld.sshfl [vmem:[#allocation1 + $0x10] sm:$0xff pattern:$0x73625140]
    %3104 = vst [vmem:[%s2767] ss:$4 sm:$0xff] %v2734
    %v3105 = vld.sshfl [vmem:[#allocation1 + $0x20] sm:$0xff pattern:$0x73625140]
    %v3106 = vld.sshfl [vmem:[#allocation1 + $0x28] sm:$0xff pattern:$0x73625140]
    %v3107 = vld.sshfl [vmem:[#allocation1 + $0x30] sm:$0xff pattern:$0x73625140]
    %3108 = vst [vmem:[#allocation1] ss:$4 sm:$0xff] %v2737
    %v3109 = vld.sshfl [vmem:[#allocation1] sm:$0xff pattern:$0x73625140]
    %v3110 = vld.sshfl [vmem:[#allocation1 + $0x8] sm:$0xff pattern:$0x73625140]
    %v3111 = vld.sshfl [vmem:[#allocation1 + $0x10] sm:$0xff pattern:$0x73625140]
    %3112 = vst [vmem:[%s2767] ss:$4 sm:$0xff] %v2740
    %v3113 = vld.sshfl [vmem:[#allocation1 + $0x20] sm:$0xff pattern:$0x73625140]
    %v3114 = vld.sshfl [vmem:[#allocation1 + $0x28] sm:$0xff pattern:$0x73625140]
    %v3115 = vld.sshfl [vmem:[#allocation1 + $0x30] sm:$0xff pattern:$0x73625140]
    %3116 = vst [vmem:[#allocation1] ss:$4 sm:$0xff] %v2742
    %v3117 = vld.sshfl [vmem:[#allocation1] sm:$0xff pattern:$0x73625140]
    %v3118 = vld.sshfl [vmem:[#allocation1 + $0x8] sm:$0xff pattern:$0x73625140]
    %v3119 = vld.sshfl [vmem:[#allocation1 + $0x10] sm:$0xff pattern:$0x73625140]
    %3120 = vst [vmem:[%s2767] ss:$4 sm:$0xff] %v2745
    %v3121 = vld.sshfl [vmem:[#allocation1 + $0x20] sm:$0xff pattern:$0x73625140]
    %v3122 = vld.sshfl [vmem:[#allocation1 + $0x28] sm:$0xff pattern:$0x73625140]
    %v3123 = vld.sshfl [vmem:[#allocation1 + $0x30] sm:$0xff pattern:$0x73625140]
    %3124 = vst [vmem:[#allocation1] ss:$4 sm:$0xff] %v2748
    %v3125 = vld.sshfl [vmem:[#allocation1] sm:$0xff pattern:$0x73625140]
    %v3126 = vld.sshfl [vmem:[#allocation1 + $0x8] sm:$0xff pattern:$0x73625140]
    %v3127 = vld.sshfl [vmem:[#allocation1 + $0x10] sm:$0xff pattern:$0x73625140]
    %3128 = vst [vmem:[%s2767] ss:$4 sm:$0xff] %v2751
    %v3129 = vld.sshfl [vmem:[#allocation1 + $0x20] sm:$0xff pattern:$0x73625140]
    %v3130 = vld.sshfl [vmem:[#allocation1 + $0x28] sm:$0xff pattern:$0x73625140]
    %v3131 = vld.sshfl [vmem:[#allocation1 + $0x30] sm:$0xff pattern:$0x73625140]
    %3132 = vst [vmem:[#allocation1] ss:$4 sm:$0xff] %v2753
    %v3133 = vld.sshfl [vmem:[#allocation1] sm:$0xff pattern:$0x73625140]
    %v3134 = vld.sshfl [vmem:[#allocation1 + $0x8] sm:$0xff pattern:$0x73625140]
    %v3135 = vld.sshfl [vmem:[#allocation1 + $0x10] sm:$0xff pattern:$0x73625140]
    %3136 = vst [vmem:[%s2767] ss:$4 sm:$0xff] %v2756
    %v3137 = vld.sshfl [vmem:[#allocation1 + $0x20] sm:$0xff pattern:$0x73625140]
    %v3138 = vld.sshfl [vmem:[#allocation1 + $0x28] sm:$0xff pattern:$0x73625140]
    %v3139 = vld.sshfl [vmem:[#allocation1 + $0x30] sm:$0xff pattern:$0x73625140]
    %3140 = vst [vmem:[#allocation1] ss:$4 sm:$0xff] %v2759
    %v3141 = vld.sshfl [vmem:[#allocation1] sm:$0xff pattern:$0x73625140]
    %v3142 = vld.sshfl [vmem:[#allocation1 + $0x8] sm:$0xff pattern:$0x73625140]
    %v3143 = vld.sshfl [vmem:[#allocation1 + $0x10] sm:$0xff pattern:$0x73625140]
    %3144 = vst [vmem:[%s2767] ss:$4 sm:$0xff] %v2762
    %v3145 = vld.sshfl [vmem:[#allocation1 + $0x20] sm:$0xff pattern:$0x73625140]
    %v3146 = vld.sshfl [vmem:[#allocation1 + $0x28] sm:$0xff pattern:$0x73625140]
    %v3147 = vld.sshfl [vmem:[#allocation1 + $0x30] sm:$0xff pattern:$0x73625140]
    %v3436 = vsel %vm2494, %v2764, -inf
    %v3437 = vrot.slane %v3436, 4
    %v3438 = vmax.f32 %v3436, %v3437
    %v3439 = vrot.slane %v3438, 2
    %v3440 = vmax.f32 %v3438, %v3439
    %v3441 = vrot.slane %v3440, 1
    %v3442 = vmax.f32 %v3440, %v3441
    %v3443 = vsel %vm2494, %v2765, -inf
    %v3444 = vrot.slane %v3443, 4
    %v3445 = vmax.f32 %v3443, %v3444
    %v3446 = vrot.slane %v3445, 2
    %v3447 = vmax.f32 %v3445, %v3446
    %v3448 = vrot.slane %v3447, 1
    %v3449 = vmax.f32 %v3447, %v3448
    %v3450 = vsel %vm2494, %v2766, -inf
    %v3451 = vrot.slane %v3450, 4
    %v3452 = vmax.f32 %v3450, %v3451
    %v3453 = vrot.slane %v3452, 2
    %v3454 = vmax.f32 %v3452, %v3453
    %v3455 = vrot.slane %v3454, 1
    %v3456 = vmax.f32 %v3454, %v3455
    %v3457 = vsel %vm2494, %v2769, -inf
    %v3458 = vrot.slane %v3457, 4
    %v3459 = vmax.f32 %v3457, %v3458
    %v3460 = vrot.slane %v3459, 2
    %v3461 = vmax.f32 %v3459, %v3460
    %v3462 = vrot.slane %v3461, 1
    %v3463 = vmax.f32 %v3461, %v3462
    %v3464 = vsel %vm2494, %v2770, -inf
    %v3465 = vrot.slane %v3464, 4
    %v3466 = vmax.f32 %v3464, %v3465
    %v3467 = vrot.slane %v3466, 2
    %v3468 = vmax.f32 %v3466, %v3467
    %v3469 = vrot.slane %v3468, 1
    %v3470 = vmax.f32 %v3468, %v3469
    %v3471 = vsel %vm2494, %v2771, -inf
    %v3472 = vrot.slane %v3471, 4
    %v3473 = vmax.f32 %v3471, %v3472
    %v3474 = vrot.slane %v3473, 2
    %v3475 = vmax.f32 %v3473, %v3474
    %v3476 = vrot.slane %v3475, 1
    %v3477 = vmax.f32 %v3475, %v3476
    %v3478 = vsel %vm2494, %v2773, -inf
    %v3479 = vrot.slane %v3478, 4
    %v3480 = vmax.f32 %v3478, %v3479
    %v3481 = vrot.slane %v3480, 2
    %v3482 = vmax.f32 %v3480, %v3481
    %v3483 = vrot.slane %v3482, 1
    %v3484 = vmax.f32 %v3482, %v3483
    %v3485 = vsel %vm2494, %v2774, -inf
    %v3486 = vrot.slane %v3485, 4
    %v3487 = vmax.f32 %v3485, %v3486
    %v3488 = vrot.slane %v3487, 2
    %v3489 = vmax.f32 %v3487, %v3488
    %v3490 = vrot.slane %v3489, 1
    %v3491 = vmax.f32 %v3489, %v3490
    %v3492 = vsel %vm2494, %v2775, -inf
    %v3493 = vrot.slane %v3492, 4
    %v3494 = vmax.f32 %v3492, %v3493
    %v3495 = vrot.slane %v3494, 2
    %v3496 = vmax.f32 %v3494, %v3495
    %v3497 = vrot.slane %v3496, 1
    %v3498 = vmax.f32 %v3496, %v3497
    %v3499 = vsel %vm2494, %v2777, -inf
    %v3500 = vrot.slane %v3499, 4
    %v3501 = vmax.f32 %v3499, %v3500
    %v3502 = vrot.slane %v3501, 2
    %v3503 = vmax.f32 %v3501, %v3502
    %v3504 = vrot.slane %v3503, 1
    %v3505 = vmax.f32 %v3503, %v3504
    %v3506 = vsel %vm2494, %v2778, -inf
    %v3507 = vrot.slane %v3506, 4
    %v3508 = vmax.f32 %v3506, %v3507
    %v3509 = vrot.slane %v3508, 2
    %v3510 = vmax.f32 %v3508, %v3509
    %v3511 = vrot.slane %v3510, 1
    %v3512 = vmax.f32 %v3510, %v3511
    %v3513 = vsel %vm2494, %v2779, -inf
    %v3514 = vrot.slane %v3513, 4
    %v3515 = vmax.f32 %v3513, %v3514
    %v3516 = vrot.slane %v3515, 2
    %v3517 = vmax.f32 %v3515, %v3516
    %v3518 = vrot.slane %v3517, 1
    %v3519 = vmax.f32 %v3517, %v3518
    %v3520 = vsel %vm2494, %v2781, -inf
    %v3521 = vrot.slane %v3520, 4
    %v3522 = vmax.f32 %v3520, %v3521
    %v3523 = vrot.slane %v3522, 2
    %v3524 = vmax.f32 %v3522, %v3523
    %v3525 = vrot.slane %v3524, 1
    %v3526 = vmax.f32 %v3524, %v3525
    %v3527 = vsel %vm2494, %v2782, -inf
    %v3528 = vrot.slane %v3527, 4
    %v3529 = vmax.f32 %v3527, %v3528
    %v3530 = vrot.slane %v3529, 2
    %v3531 = vmax.f32 %v3529, %v3530
    %v3532 = vrot.slane %v3531, 1
    %v3533 = vmax.f32 %v3531, %v3532
    %v3534 = vsel %vm2494, %v2783, -inf
    %v3535 = vrot.slane %v3534, 4
    %v3536 = vmax.f32 %v3534, %v3535
    %v3537 = vrot.slane %v3536, 2
    %v3538 = vmax.f32 %v3536, %v3537
    %v3539 = vrot.slane %v3538, 1
    %v3540 = vmax.f32 %v3538, %v3539
    %v3541 = vsel %vm2494, %v2785, -inf
    %v3542 = vrot.slane %v3541, 4
    %v3543 = vmax.f32 %v3541, %v3542
    %v3544 = vrot.slane %v3543, 2
    %v3545 = vmax.f32 %v3543, %v3544
    %v3546 = vrot.slane %v3545, 1
    %v3547 = vmax.f32 %v3545, %v3546
    %v3548 = vsel %vm2494, %v2786, -inf
    %v3549 = vrot.slane %v3548, 4
    %v3550 = vmax.f32 %v3548, %v3549
    %v3551 = vrot.slane %v3550, 2
    %v3552 = vmax.f32 %v3550, %v3551
    %v3553 = vrot.slane %v3552, 1
    %v3554 = vmax.f32 %v3552, %v3553
    %v3555 = vsel %vm2494, %v2787, -inf
    %v3556 = vrot.slane %v3555, 4
    %v3557 = vmax.f32 %v3555, %v3556
    %v3558 = vrot.slane %v3557, 2
    %v3559 = vmax.f32 %v3557, %v3558
    %v3560 = vrot.slane %v3559, 1
    %v3561 = vmax.f32 %v3559, %v3560
    %v3562 = vsel %vm2494, %v2789, -inf
    %v3563 = vrot.slane %v3562, 4
    %v3564 = vmax.f32 %v3562, %v3563
    %v3565 = vrot.slane %v3564, 2
    %v3566 = vmax.f32 %v3564, %v3565
    %v3567 = vrot.slane %v3566, 1
    %v3568 = vmax.f32 %v3566, %v3567
    %v3569 = vsel %vm2494, %v2790, -inf
    %v3570 = vrot.slane %v3569, 4
    %v3571 = vmax.f32 %v3569, %v3570
    %v3572 = vrot.slane %v3571, 2
    %v3573 = vmax.f32 %v3571, %v3572
    %v3574 = vrot.slane %v3573, 1
    %v3575 = vmax.f32 %v3573, %v3574
    %v3576 = vsel %vm2494, %v2791, -inf
    %v3577 = vrot.slane %v3576, 4
    %v3578 = vmax.f32 %v3576, %v3577
    %v3579 = vrot.slane %v3578, 2
    %v3580 = vmax.f32 %v3578, %v3579
    %v3581 = vrot.slane %v3580, 1
    %v3582 = vmax.f32 %v3580, %v3581
    %v3583 = vsel %vm2494, %v2793, -inf
    %v3584 = vrot.slane %v3583, 4
    %v3585 = vmax.f32 %v3583, %v3584
    %v3586 = vrot.slane %v3585, 2
    %v3587 = vmax.f32 %v3585, %v3586
    %v3588 = vrot.slane %v3587, 1
    %v3589 = vmax.f32 %v3587, %v3588
    %v3590 = vsel %vm2494, %v2794, -inf
    %v3591 = vrot.slane %v3590, 4
    %v3592 = vmax.f32 %v3590, %v3591
    %v3593 = vrot.slane %v3592, 2
    %v3594 = vmax.f32 %v3592, %v3593
    %v3595 = vrot.slane %v3594, 1
    %v3596 = vmax.f32 %v3594, %v3595
    %v3597 = vsel %vm2494, %v2795, -inf
    %v3598 = vrot.slane %v3597, 4
    %v3599 = vmax.f32 %v3597, %v3598
    %v3600 = vrot.slane %v3599, 2
    %v3601 = vmax.f32 %v3599, %v3600
    %v3602 = vrot.slane %v3601, 1
    %v3603 = vmax.f32 %v3601, %v3602
    %v3604 = vsel %vm2494, %v2797, -inf
    %v3605 = vrot.slane %v3604, 4
    %v3606 = vmax.f32 %v3604, %v3605
    %v3607 = vrot.slane %v3606, 2
    %v3608 = vmax.f32 %v3606, %v3607
    %v3609 = vrot.slane %v3608, 1
    %v3610 = vmax.f32 %v3608, %v3609
    %v3611 = vsel %vm2494, %v2798, -inf
    %v3612 = vrot.slane %v3611, 4
    %v3613 = vmax.f32 %v3611, %v3612
    %v3614 = vrot.slane %v3613, 2
    %v3615 = vmax.f32 %v3613, %v3614
    %v3616 = vrot.slane %v3615, 1
    %v3617 = vmax.f32 %v3615, %v3616
    %v3618 = vsel %vm2494, %v2799, -inf
    %v3619 = vrot.slane %v3618, 4
    %v3620 = vmax.f32 %v3618, %v3619
    %v3621 = vrot.slane %v3620, 2
    %v3622 = vmax.f32 %v3620, %v3621
    %v3623 = vrot.slane %v3622, 1
    %v3624 = vmax.f32 %v3622, %v3623
    %v3625 = vsel %vm2494, %v2801, -inf
    %v3626 = vrot.slane %v3625, 4
    %v3627 = vmax.f32 %v3625, %v3626
    %v3628 = vrot.slane %v3627, 2
    %v3629 = vmax.f32 %v3627, %v3628
    %v3630 = vrot.slane %v3629, 1
    %v3631 = vmax.f32 %v3629, %v3630
    %v3632 = vsel %vm2494, %v2802, -inf
    %v3633 = vrot.slane %v3632, 4
    %v3634 = vmax.f32 %v3632, %v3633
    %v3635 = vrot.slane %v3634, 2
    %v3636 = vmax.f32 %v3634, %v3635
    %v3637 = vrot.slane %v3636, 1
    %v3638 = vmax.f32 %v3636, %v3637
    %v3639 = vsel %vm2494, %v2803, -inf
    %v3640 = vrot.slane %v3639, 4
    %v3641 = vmax.f32 %v3639, %v3640
    %v3642 = vrot.slane %v3641, 2
    %v3643 = vmax.f32 %v3641, %v3642
    %v3644 = vrot.slane %v3643, 1
    %v3645 = vmax.f32 %v3643, %v3644
    %v3646 = vsel %vm2494, %v2805, -inf
    %v3647 = vrot.slane %v3646, 4
    %v3648 = vmax.f32 %v3646, %v3647
    %v3649 = vrot.slane %v3648, 2
    %v3650 = vmax.f32 %v3648, %v3649
    %v3651 = vrot.slane %v3650, 1
    %v3652 = vmax.f32 %v3650, %v3651
    %v3653 = vsel %vm2494, %v2806, -inf
    %v3654 = vrot.slane %v3653, 4
    %v3655 = vmax.f32 %v3653, %v3654
    %v3656 = vrot.slane %v3655, 2
    %v3657 = vmax.f32 %v3655, %v3656
    %v3658 = vrot.slane %v3657, 1
    %v3659 = vmax.f32 %v3657, %v3658
    %v3660 = vsel %vm2494, %v2807, -inf
    %v3661 = vrot.slane %v3660, 4
    %v3662 = vmax.f32 %v3660, %v3661
    %v3663 = vrot.slane %v3662, 2
    %v3664 = vmax.f32 %v3662, %v3663
    %v3665 = vrot.slane %v3664, 1
    %v3666 = vmax.f32 %v3664, %v3665
    %v3667 = vsel %vm2494, %v2809, -inf
    %v3668 = vrot.slane %v3667, 4
    %v3669 = vmax.f32 %v3667, %v3668
    %v3670 = vrot.slane %v3669, 2
    %v3671 = vmax.f32 %v3669, %v3670
    %v3672 = vrot.slane %v3671, 1
    %v3673 = vmax.f32 %v3671, %v3672
    %v3674 = vsel %vm2494, %v2810, -inf
    %v3675 = vrot.slane %v3674, 4
    %v3676 = vmax.f32 %v3674, %v3675
    %v3677 = vrot.slane %v3676, 2
    %v3678 = vmax.f32 %v3676, %v3677
    %v3679 = vrot.slane %v3678, 1
    %v3680 = vmax.f32 %v3678, %v3679
    %v3681 = vsel %vm2494, %v2811, -inf
    %v3682 = vrot.slane %v3681, 4
    %v3683 = vmax.f32 %v3681, %v3682
    %v3684 = vrot.slane %v3683, 2
    %v3685 = vmax.f32 %v3683, %v3684
    %v3686 = vrot.slane %v3685, 1
    %v3687 = vmax.f32 %v3685, %v3686
    %v3688 = vsel %vm2494, %v2813, -inf
    %v3689 = vrot.slane %v3688, 4
    %v3690 = vmax.f32 %v3688, %v3689
    %v3691 = vrot.slane %v3690, 2
    %v3692 = vmax.f32 %v3690, %v3691
    %v3693 = vrot.slane %v3692, 1
    %v3694 = vmax.f32 %v3692, %v3693
    %v3695 = vsel %vm2494, %v2814, -inf
    %v3696 = vrot.slane %v3695, 4
    %v3697 = vmax.f32 %v3695, %v3696
    %v3698 = vrot.slane %v3697, 2
    %v3699 = vmax.f32 %v3697, %v3698
    %v3700 = vrot.slane %v3699, 1
    %v3701 = vmax.f32 %v3699, %v3700
    %v3702 = vsel %vm2494, %v2815, -inf
    %v3703 = vrot.slane %v3702, 4
    %v3704 = vmax.f32 %v3702, %v3703
    %v3705 = vrot.slane %v3704, 2
    %v3706 = vmax.f32 %v3704, %v3705
    %v3707 = vrot.slane %v3706, 1
    %v3708 = vmax.f32 %v3706, %v3707
    %v3709 = vsel %vm2494, %v2817, -inf
    %v3710 = vrot.slane %v3709, 4
    %v3711 = vmax.f32 %v3709, %v3710
    %v3712 = vrot.slane %v3711, 2
    %v3713 = vmax.f32 %v3711, %v3712
    %v3714 = vrot.slane %v3713, 1
    %v3715 = vmax.f32 %v3713, %v3714
    %v3716 = vsel %vm2494, %v2818, -inf
    %v3717 = vrot.slane %v3716, 4
    %v3718 = vmax.f32 %v3716, %v3717
    %v3719 = vrot.slane %v3718, 2
    %v3720 = vmax.f32 %v3718, %v3719
    %v3721 = vrot.slane %v3720, 1
    %v3722 = vmax.f32 %v3720, %v3721
    %v3723 = vsel %vm2494, %v2819, -inf
    %v3724 = vrot.slane %v3723, 4
    %v3725 = vmax.f32 %v3723, %v3724
    %v3726 = vrot.slane %v3725, 2
    %v3727 = vmax.f32 %v3725, %v3726
    %v3728 = vrot.slane %v3727, 1
    %v3729 = vmax.f32 %v3727, %v3728
    %v3730 = vsel %vm2494, %v2821, -inf
    %v3731 = vrot.slane %v3730, 4
    %v3732 = vmax.f32 %v3730, %v3731
    %v3733 = vrot.slane %v3732, 2
    %v3734 = vmax.f32 %v3732, %v3733
    %v3735 = vrot.slane %v3734, 1
    %v3736 = vmax.f32 %v3734, %v3735
    %v3737 = vsel %vm2494, %v2822, -inf
    %v3738 = vrot.slane %v3737, 4
    %v3739 = vmax.f32 %v3737, %v3738
    %v3740 = vrot.slane %v3739, 2
    %v3741 = vmax.f32 %v3739, %v3740
    %v3742 = vrot.slane %v3741, 1
    %v3743 = vmax.f32 %v3741, %v3742
    %v3744 = vsel %vm2494, %v2823, -inf
    %v3745 = vrot.slane %v3744, 4
    %v3746 = vmax.f32 %v3744, %v3745
    %v3747 = vrot.slane %v3746, 2
    %v3748 = vmax.f32 %v3746, %v3747
    %v3749 = vrot.slane %v3748, 1
    %v3750 = vmax.f32 %v3748, %v3749
    %v3751 = vsel %vm2494, %v2825, -inf
    %v3752 = vrot.slane %v3751, 4
    %v3753 = vmax.f32 %v3751, %v3752
    %v3754 = vrot.slane %v3753, 2
    %v3755 = vmax.f32 %v3753, %v3754
    %v3756 = vrot.slane %v3755, 1
    %v3757 = vmax.f32 %v3755, %v3756
    %v3758 = vsel %vm2494, %v2826, -inf
    %v3759 = vrot.slane %v3758, 4
    %v3760 = vmax.f32 %v3758, %v3759
    %v3761 = vrot.slane %v3760, 2
    %v3762 = vmax.f32 %v3760, %v3761
    %v3763 = vrot.slane %v3762, 1
    %v3764 = vmax.f32 %v3762, %v3763
    %v3765 = vsel %vm2494, %v2827, -inf
    %v3766 = vrot.slane %v3765, 4
    %v3767 = vmax.f32 %v3765, %v3766
    %v3768 = vrot.slane %v3767, 2
    %v3769 = vmax.f32 %v3767, %v3768
    %v3770 = vrot.slane %v3769, 1
    %v3771 = vmax.f32 %v3769, %v3770
    %v3772 = vsel %vm2494, %v2829, -inf
    %v3773 = vrot.slane %v3772, 4
    %v3774 = vmax.f32 %v3772, %v3773
    %v3775 = vrot.slane %v3774, 2
    %v3776 = vmax.f32 %v3774, %v3775
    %v3777 = vrot.slane %v3776, 1
    %v3778 = vmax.f32 %v3776, %v3777
    %v3779 = vsel %vm2494, %v2830, -inf
    %v3780 = vrot.slane %v3779, 4
    %v3781 = vmax.f32 %v3779, %v3780
    %v3782 = vrot.slane %v3781, 2
    %v3783 = vmax.f32 %v3781, %v3782
    %v3784 = vrot.slane %v3783, 1
    %v3785 = vmax.f32 %v3783, %v3784
    %v3786 = vsel %vm2494, %v2831, -inf
    %v3787 = vrot.slane %v3786, 4
    %v3788 = vmax.f32 %v3786, %v3787
    %v3789 = vrot.slane %v3788, 2
    %v3790 = vmax.f32 %v3788, %v3789
    %v3791 = vrot.slane %v3790, 1
    %v3792 = vmax.f32 %v3790, %v3791
    %v3793 = vsel %vm2494, %v2833, -inf
    %v3794 = vrot.slane %v3793, 4
    %v3795 = vmax.f32 %v3793, %v3794
    %v3796 = vrot.slane %v3795, 2
    %v3797 = vmax.f32 %v3795, %v3796
    %v3798 = vrot.slane %v3797, 1
    %v3799 = vmax.f32 %v3797, %v3798
    %v3800 = vsel %vm2494, %v2834, -inf
    %v3801 = vrot.slane %v3800, 4
    %v3802 = vmax.f32 %v3800, %v3801
    %v3803 = vrot.slane %v3802, 2
    %v3804 = vmax.f32 %v3802, %v3803
    %v3805 = vrot.slane %v3804, 1
    %v3806 = vmax.f32 %v3804, %v3805
    %v3807 = vsel %vm2494, %v2835, -inf
    %v3808 = vrot.slane %v3807, 4
    %v3809 = vmax.f32 %v3807, %v3808
    %v3810 = vrot.slane %v3809, 2
    %v3811 = vmax.f32 %v3809, %v3810
    %v3812 = vrot.slane %v3811, 1
    %v3813 = vmax.f32 %v3811, %v3812
    %v3814 = vsel %vm2494, %v2837, -inf
    %v3815 = vrot.slane %v3814, 4
    %v3816 = vmax.f32 %v3814, %v3815
    %v3817 = vrot.slane %v3816, 2
    %v3818 = vmax.f32 %v3816, %v3817
    %v3819 = vrot.slane %v3818, 1
    %v3820 = vmax.f32 %v3818, %v3819
    %v3821 = vsel %vm2494, %v2838, -inf
    %v3822 = vrot.slane %v3821, 4
    %v3823 = vmax.f32 %v3821, %v3822
    %v3824 = vrot.slane %v3823, 2
    %v3825 = vmax.f32 %v3823, %v3824
    %v3826 = vrot.slane %v3825, 1
    %v3827 = vmax.f32 %v3825, %v3826
    %v3828 = vsel %vm2494, %v2839, -inf
    %v3829 = vrot.slane %v3828, 4
    %v3830 = vmax.f32 %v3828, %v3829
    %v3831 = vrot.slane %v3830, 2
    %v3832 = vmax.f32 %v3830, %v3831
    %v3833 = vrot.slane %v3832, 1
    %v3834 = vmax.f32 %v3832, %v3833
    %v3835 = vsel %vm2494, %v2841, -inf
    %v3836 = vrot.slane %v3835, 4
    %v3837 = vmax.f32 %v3835, %v3836
    %v3838 = vrot.slane %v3837, 2
    %v3839 = vmax.f32 %v3837, %v3838
    %v3840 = vrot.slane %v3839, 1
    %v3841 = vmax.f32 %v3839, %v3840
    %v3842 = vsel %vm2494, %v2842, -inf
    %v3843 = vrot.slane %v3842, 4
    %v3844 = vmax.f32 %v3842, %v3843
    %v3845 = vrot.slane %v3844, 2
    %v3846 = vmax.f32 %v3844, %v3845
    %v3847 = vrot.slane %v3846, 1
    %v3848 = vmax.f32 %v3846, %v3847
    %v3849 = vsel %vm2494, %v2843, -inf
    %v3850 = vrot.slane %v3849, 4
    %v3851 = vmax.f32 %v3849, %v3850
    %v3852 = vrot.slane %v3851, 2
    %v3853 = vmax.f32 %v3851, %v3852
    %v3854 = vrot.slane %v3853, 1
    %v3855 = vmax.f32 %v3853, %v3854
    %v3856 = vsel %vm2494, %v2845, -inf
    %v3857 = vrot.slane %v3856, 4
    %v3858 = vmax.f32 %v3856, %v3857
    %v3859 = vrot.slane %v3858, 2
    %v3860 = vmax.f32 %v3858, %v3859
    %v3861 = vrot.slane %v3860, 1
    %v3862 = vmax.f32 %v3860, %v3861
    %v3863 = vsel %vm2494, %v2846, -inf
    %v3864 = vrot.slane %v3863, 4
    %v3865 = vmax.f32 %v3863, %v3864
    %v3866 = vrot.slane %v3865, 2
    %v3867 = vmax.f32 %v3865, %v3866
    %v3868 = vrot.slane %v3867, 1
    %v3869 = vmax.f32 %v3867, %v3868
    %v3870 = vsel %vm2494, %v2847, -inf
    %v3871 = vrot.slane %v3870, 4
    %v3872 = vmax.f32 %v3870, %v3871
    %v3873 = vrot.slane %v3872, 2
    %v3874 = vmax.f32 %v3872, %v3873
    %v3875 = vrot.slane %v3874, 1
    %v3876 = vmax.f32 %v3874, %v3875
    %v3877 = vsel %vm2494, %v2849, -inf
    %v3878 = vrot.slane %v3877, 4
    %v3879 = vmax.f32 %v3877, %v3878
    %v3880 = vrot.slane %v3879, 2
    %v3881 = vmax.f32 %v3879, %v3880
    %v3882 = vrot.slane %v3881, 1
    %v3883 = vmax.f32 %v3881, %v3882
    %v3884 = vsel %vm2494, %v2850, -inf
    %v3885 = vrot.slane %v3884, 4
    %v3886 = vmax.f32 %v3884, %v3885
    %v3887 = vrot.slane %v3886, 2
    %v3888 = vmax.f32 %v3886, %v3887
    %v3889 = vrot.slane %v3888, 1
    %v3890 = vmax.f32 %v3888, %v3889
    %v3891 = vsel %vm2494, %v2851, -inf
    %v3892 = vrot.slane %v3891, 4
    %v3893 = vmax.f32 %v3891, %v3892
    %v3894 = vrot.slane %v3893, 2
    %v3895 = vmax.f32 %v3893, %v3894
    %v3896 = vrot.slane %v3895, 1
    %v3897 = vmax.f32 %v3895, %v3896
    %v3898 = vsel %vm2494, %v2853, -inf
    %v3899 = vrot.slane %v3898, 4
    %v3900 = vmax.f32 %v3898, %v3899
    %v3901 = vrot.slane %v3900, 2
    %v3902 = vmax.f32 %v3900, %v3901
    %v3903 = vrot.slane %v3902, 1
    %v3904 = vmax.f32 %v3902, %v3903
    %v3905 = vsel %vm2494, %v2854, -inf
    %v3906 = vrot.slane %v3905, 4
    %v3907 = vmax.f32 %v3905, %v3906
    %v3908 = vrot.slane %v3907, 2
    %v3909 = vmax.f32 %v3907, %v3908
    %v3910 = vrot.slane %v3909, 1
    %v3911 = vmax.f32 %v3909, %v3910
    %v3912 = vsel %vm2494, %v2855, -inf
    %v3913 = vrot.slane %v3912, 4
    %v3914 = vmax.f32 %v3912, %v3913
    %v3915 = vrot.slane %v3914, 2
    %v3916 = vmax.f32 %v3914, %v3915
    %v3917 = vrot.slane %v3916, 1
    %v3918 = vmax.f32 %v3916, %v3917
    %v3919 = vsel %vm2494, %v2857, -inf
    %v3920 = vrot.slane %v3919, 4
    %v3921 = vmax.f32 %v3919, %v3920
    %v3922 = vrot.slane %v3921, 2
    %v3923 = vmax.f32 %v3921, %v3922
    %v3924 = vrot.slane %v3923, 1
    %v3925 = vmax.f32 %v3923, %v3924
    %v3926 = vsel %vm2494, %v2858, -inf
    %v3927 = vrot.slane %v3926, 4
    %v3928 = vmax.f32 %v3926, %v3927
    %v3929 = vrot.slane %v3928, 2
    %v3930 = vmax.f32 %v3928, %v3929
    %v3931 = vrot.slane %v3930, 1
    %v3932 = vmax.f32 %v3930, %v3931
    %v3933 = vsel %vm2494, %v2859, -inf
    %v3934 = vrot.slane %v3933, 4
    %v3935 = vmax.f32 %v3933, %v3934
    %v3936 = vrot.slane %v3935, 2
    %v3937 = vmax.f32 %v3935, %v3936
    %v3938 = vrot.slane %v3937, 1
    %v3939 = vmax.f32 %v3937, %v3938
    %v3940 = vsel %vm2494, %v2861, -inf
    %v3941 = vrot.slane %v3940, 4
    %v3942 = vmax.f32 %v3940, %v3941
    %v3943 = vrot.slane %v3942, 2
    %v3944 = vmax.f32 %v3942, %v3943
    %v3945 = vrot.slane %v3944, 1
    %v3946 = vmax.f32 %v3944, %v3945
    %v3947 = vsel %vm2494, %v2862, -inf
    %v3948 = vrot.slane %v3947, 4
    %v3949 = vmax.f32 %v3947, %v3948
    %v3950 = vrot.slane %v3949, 2
    %v3951 = vmax.f32 %v3949, %v3950
    %v3952 = vrot.slane %v3951, 1
    %v3953 = vmax.f32 %v3951, %v3952
    %v3954 = vsel %vm2494, %v2863, -inf
    %v3955 = vrot.slane %v3954, 4
    %v3956 = vmax.f32 %v3954, %v3955
    %v3957 = vrot.slane %v3956, 2
    %v3958 = vmax.f32 %v3956, %v3957
    %v3959 = vrot.slane %v3958, 1
    %v3960 = vmax.f32 %v3958, %v3959
    %v3961 = vsel %vm2494, %v2865, -inf
    %v3962 = vrot.slane %v3961, 4
    %v3963 = vmax.f32 %v3961, %v3962
    %v3964 = vrot.slane %v3963, 2
    %v3965 = vmax.f32 %v3963, %v3964
    %v3966 = vrot.slane %v3965, 1
    %v3967 = vmax.f32 %v3965, %v3966
    %v3968 = vsel %vm2494, %v2866, -inf
    %v3969 = vrot.slane %v3968, 4
    %v3970 = vmax.f32 %v3968, %v3969
    %v3971 = vrot.slane %v3970, 2
    %v3972 = vmax.f32 %v3970, %v3971
    %v3973 = vrot.slane %v3972, 1
    %v3974 = vmax.f32 %v3972, %v3973
    %v3975 = vsel %vm2494, %v2867, -inf
    %v3976 = vrot.slane %v3975, 4
    %v3977 = vmax.f32 %v3975, %v3976
    %v3978 = vrot.slane %v3977, 2
    %v3979 = vmax.f32 %v3977, %v3978
    %v3980 = vrot.slane %v3979, 1
    %v3981 = vmax.f32 %v3979, %v3980
    %v3982 = vsel %vm2494, %v2869, -inf
    %v3983 = vrot.slane %v3982, 4
    %v3984 = vmax.f32 %v3982, %v3983
    %v3985 = vrot.slane %v3984, 2
    %v3986 = vmax.f32 %v3984, %v3985
    %v3987 = vrot.slane %v3986, 1
    %v3988 = vmax.f32 %v3986, %v3987
    %v3989 = vsel %vm2494, %v2870, -inf
    %v3990 = vrot.slane %v3989, 4
    %v3991 = vmax.f32 %v3989, %v3990
    %v3992 = vrot.slane %v3991, 2
    %v3993 = vmax.f32 %v3991, %v3992
    %v3994 = vrot.slane %v3993, 1
    %v3995 = vmax.f32 %v3993, %v3994
    %v3996 = vsel %vm2494, %v2871, -inf
    %v3997 = vrot.slane %v3996, 4
    %v3998 = vmax.f32 %v3996, %v3997
    %v3999 = vrot.slane %v3998, 2
    %v4000 = vmax.f32 %v3998, %v3999
    %v4001 = vrot.slane %v4000, 1
    %v4002 = vmax.f32 %v4000, %v4001
    %v4003 = vsel %vm2494, %v2873, -inf
    %v4004 = vrot.slane %v4003, 4
    %v4005 = vmax.f32 %v4003, %v4004
    %v4006 = vrot.slane %v4005, 2
    %v4007 = vmax.f32 %v4005, %v4006
    %v4008 = vrot.slane %v4007, 1
    %v4009 = vmax.f32 %v4007, %v4008
    %v4010 = vsel %vm2494, %v2874, -inf
    %v4011 = vrot.slane %v4010, 4
    %v4012 = vmax.f32 %v4010, %v4011
    %v4013 = vrot.slane %v4012, 2
    %v4014 = vmax.f32 %v4012, %v4013
    %v4015 = vrot.slane %v4014, 1
    %v4016 = vmax.f32 %v4014, %v4015
    %v4017 = vsel %vm2494, %v2875, -inf
    %v4018 = vrot.slane %v4017, 4
    %v4019 = vmax.f32 %v4017, %v4018
    %v4020 = vrot.slane %v4019, 2
    %v4021 = vmax.f32 %v4019, %v4020
    %v4022 = vrot.slane %v4021, 1
    %v4023 = vmax.f32 %v4021, %v4022
    %v4024 = vsel %vm2494, %v2877, -inf
    %v4025 = vrot.slane %v4024, 4
    %v4026 = vmax.f32 %v4024, %v4025
    %v4027 = vrot.slane %v4026, 2
    %v4028 = vmax.f32 %v4026, %v4027
    %v4029 = vrot.slane %v4028, 1
    %v4030 = vmax.f32 %v4028, %v4029
    %v4031 = vsel %vm2494, %v2878, -inf
    %v4032 = vrot.slane %v4031, 4
    %v4033 = vmax.f32 %v4031, %v4032
    %v4034 = vrot.slane %v4033, 2
    %v4035 = vmax.f32 %v4033, %v4034
    %v4036 = vrot.slane %v4035, 1
    %v4037 = vmax.f32 %v4035, %v4036
    %v4038 = vsel %vm2494, %v2879, -inf
    %v4039 = vrot.slane %v4038, 4
    %v4040 = vmax.f32 %v4038, %v4039
    %v4041 = vrot.slane %v4040, 2
    %v4042 = vmax.f32 %v4040, %v4041
    %v4043 = vrot.slane %v4042, 1
    %v4044 = vmax.f32 %v4042, %v4043
    %v4045 = vsel %vm2494, %v2881, -inf
    %v4046 = vrot.slane %v4045, 4
    %v4047 = vmax.f32 %v4045, %v4046
    %v4048 = vrot.slane %v4047, 2
    %v4049 = vmax.f32 %v4047, %v4048
    %v4050 = vrot.slane %v4049, 1
    %v4051 = vmax.f32 %v4049, %v4050
    %v4052 = vsel %vm2494, %v2882, -inf
    %v4053 = vrot.slane %v4052, 4
    %v4054 = vmax.f32 %v4052, %v4053
    %v4055 = vrot.slane %v4054, 2
    %v4056 = vmax.f32 %v4054, %v4055
    %v4057 = vrot.slane %v4056, 1
    %v4058 = vmax.f32 %v4056, %v4057
    %v4059 = vsel %vm2494, %v2883, -inf
    %v4060 = vrot.slane %v4059, 4
    %v4061 = vmax.f32 %v4059, %v4060
    %v4062 = vrot.slane %v4061, 2
    %v4063 = vmax.f32 %v4061, %v4062
    %v4064 = vrot.slane %v4063, 1
    %v4065 = vmax.f32 %v4063, %v4064
    %v4066 = vsel %vm2494, %v2885, -inf
    %v4067 = vrot.slane %v4066, 4
    %v4068 = vmax.f32 %v4066, %v4067
    %v4069 = vrot.slane %v4068, 2
    %v4070 = vmax.f32 %v4068, %v4069
    %v4071 = vrot.slane %v4070, 1
    %v4072 = vmax.f32 %v4070, %v4071
    %v4073 = vsel %vm2494, %v2886, -inf
    %v4074 = vrot.slane %v4073, 4
    %v4075 = vmax.f32 %v4073, %v4074
    %v4076 = vrot.slane %v4075, 2
    %v4077 = vmax.f32 %v4075, %v4076
    %v4078 = vrot.slane %v4077, 1
    %v4079 = vmax.f32 %v4077, %v4078
    %v4080 = vsel %vm2494, %v2887, -inf
    %v4081 = vrot.slane %v4080, 4
    %v4082 = vmax.f32 %v4080, %v4081
    %v4083 = vrot.slane %v4082, 2
    %v4084 = vmax.f32 %v4082, %v4083
    %v4085 = vrot.slane %v4084, 1
    %v4086 = vmax.f32 %v4084, %v4085
    %v4087 = vsel %vm2494, %v2889, -inf
    %v4088 = vrot.slane %v4087, 4
    %v4089 = vmax.f32 %v4087, %v4088
    %v4090 = vrot.slane %v4089, 2
    %v4091 = vmax.f32 %v4089, %v4090
    %v4092 = vrot.slane %v4091, 1
    %v4093 = vmax.f32 %v4091, %v4092
    %v4094 = vsel %vm2494, %v2890, -inf
    %v4095 = vrot.slane %v4094, 4
    %v4096 = vmax.f32 %v4094, %v4095
    %v4097 = vrot.slane %v4096, 2
    %v4098 = vmax.f32 %v4096, %v4097
    %v4099 = vrot.slane %v4098, 1
    %v4100 = vmax.f32 %v4098, %v4099
    %v4101 = vsel %vm2494, %v2891, -inf
    %v4102 = vrot.slane %v4101, 4
    %v4103 = vmax.f32 %v4101, %v4102
    %v4104 = vrot.slane %v4103, 2
    %v4105 = vmax.f32 %v4103, %v4104
    %v4106 = vrot.slane %v4105, 1
    %v4107 = vmax.f32 %v4105, %v4106
    %v4108 = vsel %vm2494, %v2893, -inf
    %v4109 = vrot.slane %v4108, 4
    %v4110 = vmax.f32 %v4108, %v4109
    %v4111 = vrot.slane %v4110, 2
    %v4112 = vmax.f32 %v4110, %v4111
    %v4113 = vrot.slane %v4112, 1
    %v4114 = vmax.f32 %v4112, %v4113
    %v4115 = vsel %vm2494, %v2894, -inf
    %v4116 = vrot.slane %v4115, 4
    %v4117 = vmax.f32 %v4115, %v4116
    %v4118 = vrot.slane %v4117, 2
    %v4119 = vmax.f32 %v4117, %v4118
    %v4120 = vrot.slane %v4119, 1
    %v4121 = vmax.f32 %v4119, %v4120
    %v4122 = vsel %vm2494, %v2895, -inf
    %v4123 = vrot.slane %v4122, 4
    %v4124 = vmax.f32 %v4122, %v4123
    %v4125 = vrot.slane %v4124, 2
    %v4126 = vmax.f32 %v4124, %v4125
    %v4127 = vrot.slane %v4126, 1
    %v4128 = vmax.f32 %v4126, %v4127
    %v4129 = vsel %vm2494, %v2897, -inf
    %v4130 = vrot.slane %v4129, 4
    %v4131 = vmax.f32 %v4129, %v4130
    %v4132 = vrot.slane %v4131, 2
    %v4133 = vmax.f32 %v4131, %v4132
    %v4134 = vrot.slane %v4133, 1
    %v4135 = vmax.f32 %v4133, %v4134
    %v4136 = vsel %vm2494, %v2898, -inf
    %v4137 = vrot.slane %v4136, 4
    %v4138 = vmax.f32 %v4136, %v4137
    %v4139 = vrot.slane %v4138, 2
    %v4140 = vmax.f32 %v4138, %v4139
    %v4141 = vrot.slane %v4140, 1
    %v4142 = vmax.f32 %v4140, %v4141
    %v4143 = vsel %vm2494, %v2899, -inf
    %v4144 = vrot.slane %v4143, 4
    %v4145 = vmax.f32 %v4143, %v4144
    %v4146 = vrot.slane %v4145, 2
    %v4147 = vmax.f32 %v4145, %v4146
    %v4148 = vrot.slane %v4147, 1
    %v4149 = vmax.f32 %v4147, %v4148
    %v4150 = vsel %vm2494, %v2901, -inf
    %v4151 = vrot.slane %v4150, 4
    %v4152 = vmax.f32 %v4150, %v4151
    %v4153 = vrot.slane %v4152, 2
    %v4154 = vmax.f32 %v4152, %v4153
    %v4155 = vrot.slane %v4154, 1
    %v4156 = vmax.f32 %v4154, %v4155
    %v4157 = vsel %vm2494, %v2902, -inf
    %v4158 = vrot.slane %v4157, 4
    %v4159 = vmax.f32 %v4157, %v4158
    %v4160 = vrot.slane %v4159, 2
    %v4161 = vmax.f32 %v4159, %v4160
    %v4162 = vrot.slane %v4161, 1
    %v4163 = vmax.f32 %v4161, %v4162
    %v4164 = vsel %vm2494, %v2903, -inf
    %v4165 = vrot.slane %v4164, 4
    %v4166 = vmax.f32 %v4164, %v4165
    %v4167 = vrot.slane %v4166, 2
    %v4168 = vmax.f32 %v4166, %v4167
    %v4169 = vrot.slane %v4168, 1
    %v4170 = vmax.f32 %v4168, %v4169
    %v4171 = vsel %vm2494, %v2905, -inf
    %v4172 = vrot.slane %v4171, 4
    %v4173 = vmax.f32 %v4171, %v4172
    %v4174 = vrot.slane %v4173, 2
    %v4175 = vmax.f32 %v4173, %v4174
    %v4176 = vrot.slane %v4175, 1
    %v4177 = vmax.f32 %v4175, %v4176
    %v4178 = vsel %vm2494, %v2906, -inf
    %v4179 = vrot.slane %v4178, 4
    %v4180 = vmax.f32 %v4178, %v4179
    %v4181 = vrot.slane %v4180, 2
    %v4182 = vmax.f32 %v4180, %v4181
    %v4183 = vrot.slane %v4182, 1
    %v4184 = vmax.f32 %v4182, %v4183
    %v4185 = vsel %vm2494, %v2907, -inf
    %v4186 = vrot.slane %v4185, 4
    %v4187 = vmax.f32 %v4185, %v4186
    %v4188 = vrot.slane %v4187, 2
    %v4189 = vmax.f32 %v4187, %v4188
    %v4190 = vrot.slane %v4189, 1
    %v4191 = vmax.f32 %v4189, %v4190
    %v4192 = vsel %vm2494, %v2909, -inf
    %v4193 = vrot.slane %v4192, 4
    %v4194 = vmax.f32 %v4192, %v4193
    %v4195 = vrot.slane %v4194, 2
    %v4196 = vmax.f32 %v4194, %v4195
    %v4197 = vrot.slane %v4196, 1
    %v4198 = vmax.f32 %v4196, %v4197
    %v4199 = vsel %vm2494, %v2910, -inf
    %v4200 = vrot.slane %v4199, 4
    %v4201 = vmax.f32 %v4199, %v4200
    %v4202 = vrot.slane %v4201, 2
    %v4203 = vmax.f32 %v4201, %v4202
    %v4204 = vrot.slane %v4203, 1
    %v4205 = vmax.f32 %v4203, %v4204
    %v4206 = vsel %vm2494, %v2911, -inf
    %v4207 = vrot.slane %v4206, 4
    %v4208 = vmax.f32 %v4206, %v4207
    %v4209 = vrot.slane %v4208, 2
    %v4210 = vmax.f32 %v4208, %v4209
    %v4211 = vrot.slane %v4210, 1
    %v4212 = vmax.f32 %v4210, %v4211
    %v4213 = vsel %vm2494, %v2913, -inf
    %v4214 = vrot.slane %v4213, 4
    %v4215 = vmax.f32 %v4213, %v4214
    %v4216 = vrot.slane %v4215, 2
    %v4217 = vmax.f32 %v4215, %v4216
    %v4218 = vrot.slane %v4217, 1
    %v4219 = vmax.f32 %v4217, %v4218
    %v4220 = vsel %vm2494, %v2914, -inf
    %v4221 = vrot.slane %v4220, 4
    %v4222 = vmax.f32 %v4220, %v4221
    %v4223 = vrot.slane %v4222, 2
    %v4224 = vmax.f32 %v4222, %v4223
    %v4225 = vrot.slane %v4224, 1
    %v4226 = vmax.f32 %v4224, %v4225
    %v4227 = vsel %vm2494, %v2915, -inf
    %v4228 = vrot.slane %v4227, 4
    %v4229 = vmax.f32 %v4227, %v4228
    %v4230 = vrot.slane %v4229, 2
    %v4231 = vmax.f32 %v4229, %v4230
    %v4232 = vrot.slane %v4231, 1
    %v4233 = vmax.f32 %v4231, %v4232
    %v4234 = vsel %vm2494, %v2917, -inf
    %v4235 = vrot.slane %v4234, 4
    %v4236 = vmax.f32 %v4234, %v4235
    %v4237 = vrot.slane %v4236, 2
    %v4238 = vmax.f32 %v4236, %v4237
    %v4239 = vrot.slane %v4238, 1
    %v4240 = vmax.f32 %v4238, %v4239
    %v4241 = vsel %vm2494, %v2918, -inf
    %v4242 = vrot.slane %v4241, 4
    %v4243 = vmax.f32 %v4241, %v4242
    %v4244 = vrot.slane %v4243, 2
    %v4245 = vmax.f32 %v4243, %v4244
    %v4246 = vrot.slane %v4245, 1
    %v4247 = vmax.f32 %v4245, %v4246
    %v4248 = vsel %vm2494, %v2919, -inf
    %v4249 = vrot.slane %v4248, 4
    %v4250 = vmax.f32 %v4248, %v4249
    %v4251 = vrot.slane %v4250, 2
    %v4252 = vmax.f32 %v4250, %v4251
    %v4253 = vrot.slane %v4252, 1
    %v4254 = vmax.f32 %v4252, %v4253
    %v4255 = vsel %vm2494, %v2921, -inf
    %v4256 = vrot.slane %v4255, 4
    %v4257 = vmax.f32 %v4255, %v4256
    %v4258 = vrot.slane %v4257, 2
    %v4259 = vmax.f32 %v4257, %v4258
    %v4260 = vrot.slane %v4259, 1
    %v4261 = vmax.f32 %v4259, %v4260
    %v4262 = vsel %vm2494, %v2922, -inf
    %v4263 = vrot.slane %v4262, 4
    %v4264 = vmax.f32 %v4262, %v4263
    %v4265 = vrot.slane %v4264, 2
    %v4266 = vmax.f32 %v4264, %v4265
    %v4267 = vrot.slane %v4266, 1
    %v4268 = vmax.f32 %v4266, %v4267
    %v4269 = vsel %vm2494, %v2923, -inf
    %v4270 = vrot.slane %v4269, 4
    %v4271 = vmax.f32 %v4269, %v4270
    %v4272 = vrot.slane %v4271, 2
    %v4273 = vmax.f32 %v4271, %v4272
    %v4274 = vrot.slane %v4273, 1
    %v4275 = vmax.f32 %v4273, %v4274
    %v4276 = vsel %vm2494, %v2925, -inf
    %v4277 = vrot.slane %v4276, 4
    %v4278 = vmax.f32 %v4276, %v4277
    %v4279 = vrot.slane %v4278, 2
    %v4280 = vmax.f32 %v4278, %v4279
    %v4281 = vrot.slane %v4280, 1
    %v4282 = vmax.f32 %v4280, %v4281
    %v4283 = vsel %vm2494, %v2926, -inf
    %v4284 = vrot.slane %v4283, 4
    %v4285 = vmax.f32 %v4283, %v4284
    %v4286 = vrot.slane %v4285, 2
    %v4287 = vmax.f32 %v4285, %v4286
    %v4288 = vrot.slane %v4287, 1
    %v4289 = vmax.f32 %v4287, %v4288
    %v4290 = vsel %vm2494, %v2927, -inf
    %v4291 = vrot.slane %v4290, 4
    %v4292 = vmax.f32 %v4290, %v4291
    %v4293 = vrot.slane %v4292, 2
    %v4294 = vmax.f32 %v4292, %v4293
    %v4295 = vrot.slane %v4294, 1
    %v4296 = vmax.f32 %v4294, %v4295
    %v4297 = vsel %vm2494, %v2929, -inf
    %v4298 = vrot.slane %v4297, 4
    %v4299 = vmax.f32 %v4297, %v4298
    %v4300 = vrot.slane %v4299, 2
    %v4301 = vmax.f32 %v4299, %v4300
    %v4302 = vrot.slane %v4301, 1
    %v4303 = vmax.f32 %v4301, %v4302
    %v4304 = vsel %vm2494, %v2930, -inf
    %v4305 = vrot.slane %v4304, 4
    %v4306 = vmax.f32 %v4304, %v4305
    %v4307 = vrot.slane %v4306, 2
    %v4308 = vmax.f32 %v4306, %v4307
    %v4309 = vrot.slane %v4308, 1
    %v4310 = vmax.f32 %v4308, %v4309
    %v4311 = vsel %vm2494, %v2931, -inf
    %v4312 = vrot.slane %v4311, 4
    %v4313 = vmax.f32 %v4311, %v4312
    %v4314 = vrot.slane %v4313, 2
    %v4315 = vmax.f32 %v4313, %v4314
    %v4316 = vrot.slane %v4315, 1
    %v4317 = vmax.f32 %v4315, %v4316
    %v4318 = vsel %vm2494, %v2933, -inf
    %v4319 = vrot.slane %v4318, 4
    %v4320 = vmax.f32 %v4318, %v4319
    %v4321 = vrot.slane %v4320, 2
    %v4322 = vmax.f32 %v4320, %v4321
    %v4323 = vrot.slane %v4322, 1
    %v4324 = vmax.f32 %v4322, %v4323
    %v4325 = vsel %vm2494, %v2934, -inf
    %v4326 = vrot.slane %v4325, 4
    %v4327 = vmax.f32 %v4325, %v4326
    %v4328 = vrot.slane %v4327, 2
    %v4329 = vmax.f32 %v4327, %v4328
    %v4330 = vrot.slane %v4329, 1
    %v4331 = vmax.f32 %v4329, %v4330
    %v4332 = vsel %vm2494, %v2935, -inf
    %v4333 = vrot.slane %v4332, 4
    %v4334 = vmax.f32 %v4332, %v4333
    %v4335 = vrot.slane %v4334, 2
    %v4336 = vmax.f32 %v4334, %v4335
    %v4337 = vrot.slane %v4336, 1
    %v4338 = vmax.f32 %v4336, %v4337
    %v4339 = vsel %vm2494, %v2937, -inf
    %v4340 = vrot.slane %v4339, 4
    %v4341 = vmax.f32 %v4339, %v4340
    %v4342 = vrot.slane %v4341, 2
    %v4343 = vmax.f32 %v4341, %v4342
    %v4344 = vrot.slane %v4343, 1
    %v4345 = vmax.f32 %v4343, %v4344
    %v4346 = vsel %vm2494, %v2938, -inf
    %v4347 = vrot.slane %v4346, 4
    %v4348 = vmax.f32 %v4346, %v4347
    %v4349 = vrot.slane %v4348, 2
    %v4350 = vmax.f32 %v4348, %v4349
    %v4351 = vrot.slane %v4350, 1
    %v4352 = vmax.f32 %v4350, %v4351
    %v4353 = vsel %vm2494, %v2939, -inf
    %v4354 = vrot.slane %v4353, 4
    %v4355 = vmax.f32 %v4353, %v4354
    %v4356 = vrot.slane %v4355, 2
    %v4357 = vmax.f32 %v4355, %v4356
    %v4358 = vrot.slane %v4357, 1
    %v4359 = vmax.f32 %v4357, %v4358
    %v4360 = vsel %vm2494, %v2941, -inf
    %v4361 = vrot.slane %v4360, 4
    %v4362 = vmax.f32 %v4360, %v4361
    %v4363 = vrot.slane %v4362, 2
    %v4364 = vmax.f32 %v4362, %v4363
    %v4365 = vrot.slane %v4364, 1
    %v4366 = vmax.f32 %v4364, %v4365
    %v4367 = vsel %vm2494, %v2942, -inf
    %v4368 = vrot.slane %v4367, 4
    %v4369 = vmax.f32 %v4367, %v4368
    %v4370 = vrot.slane %v4369, 2
    %v4371 = vmax.f32 %v4369, %v4370
    %v4372 = vrot.slane %v4371, 1
    %v4373 = vmax.f32 %v4371, %v4372
    %v4374 = vsel %vm2494, %v2943, -inf
    %v4375 = vrot.slane %v4374, 4
    %v4376 = vmax.f32 %v4374, %v4375
    %v4377 = vrot.slane %v4376, 2
    %v4378 = vmax.f32 %v4376, %v4377
    %v4379 = vrot.slane %v4378, 1
    %v4380 = vmax.f32 %v4378, %v4379
    %v4381 = vsel %vm2494, %v2945, -inf
    %v4382 = vrot.slane %v4381, 4
    %v4383 = vmax.f32 %v4381, %v4382
    %v4384 = vrot.slane %v4383, 2
    %v4385 = vmax.f32 %v4383, %v4384
    %v4386 = vrot.slane %v4385, 1
    %v4387 = vmax.f32 %v4385, %v4386
    %v4388 = vsel %vm2494, %v2946, -inf
    %v4389 = vrot.slane %v4388, 4
    %v4390 = vmax.f32 %v4388, %v4389
    %v4391 = vrot.slane %v4390, 2
    %v4392 = vmax.f32 %v4390, %v4391
    %v4393 = vrot.slane %v4392, 1
    %v4394 = vmax.f32 %v4392, %v4393
    %v4395 = vsel %vm2494, %v2947, -inf
    %v4396 = vrot.slane %v4395, 4
    %v4397 = vmax.f32 %v4395, %v4396
    %v4398 = vrot.slane %v4397, 2
    %v4399 = vmax.f32 %v4397, %v4398
    %v4400 = vrot.slane %v4399, 1
    %v4401 = vmax.f32 %v4399, %v4400
    %v4402 = vsel %vm2494, %v2949, -inf
    %v4403 = vrot.slane %v4402, 4
    %v4404 = vmax.f32 %v4402, %v4403
    %v4405 = vrot.slane %v4404, 2
    %v4406 = vmax.f32 %v4404, %v4405
    %v4407 = vrot.slane %v4406, 1
    %v4408 = vmax.f32 %v4406, %v4407
    %v4409 = vsel %vm2494, %v2950, -inf
    %v4410 = vrot.slane %v4409, 4
    %v4411 = vmax.f32 %v4409, %v4410
    %v4412 = vrot.slane %v4411, 2
    %v4413 = vmax.f32 %v4411, %v4412
    %v4414 = vrot.slane %v4413, 1
    %v4415 = vmax.f32 %v4413, %v4414
    %v4416 = vsel %vm2494, %v2951, -inf
    %v4417 = vrot.slane %v4416, 4
    %v4418 = vmax.f32 %v4416, %v4417
    %v4419 = vrot.slane %v4418, 2
    %v4420 = vmax.f32 %v4418, %v4419
    %v4421 = vrot.slane %v4420, 1
    %v4422 = vmax.f32 %v4420, %v4421
    %v4423 = vsel %vm2494, %v2953, -inf
    %v4424 = vrot.slane %v4423, 4
    %v4425 = vmax.f32 %v4423, %v4424
    %v4426 = vrot.slane %v4425, 2
    %v4427 = vmax.f32 %v4425, %v4426
    %v4428 = vrot.slane %v4427, 1
    %v4429 = vmax.f32 %v4427, %v4428
    %v4430 = vsel %vm2494, %v2954, -inf
    %v4431 = vrot.slane %v4430, 4
    %v4432 = vmax.f32 %v4430, %v4431
    %v4433 = vrot.slane %v4432, 2
    %v4434 = vmax.f32 %v4432, %v4433
    %v4435 = vrot.slane %v4434, 1
    %v4436 = vmax.f32 %v4434, %v4435
    %v4437 = vsel %vm2494, %v2955, -inf
    %v4438 = vrot.slane %v4437, 4
    %v4439 = vmax.f32 %v4437, %v4438
    %v4440 = vrot.slane %v4439, 2
    %v4441 = vmax.f32 %v4439, %v4440
    %v4442 = vrot.slane %v4441, 1
    %v4443 = vmax.f32 %v4441, %v4442
    %v4444 = vsel %vm2494, %v2957, -inf
    %v4445 = vrot.slane %v4444, 4
    %v4446 = vmax.f32 %v4444, %v4445
    %v4447 = vrot.slane %v4446, 2
    %v4448 = vmax.f32 %v4446, %v4447
    %v4449 = vrot.slane %v4448, 1
    %v4450 = vmax.f32 %v4448, %v4449
    %v4451 = vsel %vm2494, %v2958, -inf
    %v4452 = vrot.slane %v4451, 4
    %v4453 = vmax.f32 %v4451, %v4452
    %v4454 = vrot.slane %v4453, 2
    %v4455 = vmax.f32 %v4453, %v4454
    %v4456 = vrot.slane %v4455, 1
    %v4457 = vmax.f32 %v4455, %v4456
    %v4458 = vsel %vm2494, %v2959, -inf
    %v4459 = vrot.slane %v4458, 4
    %v4460 = vmax.f32 %v4458, %v4459
    %v4461 = vrot.slane %v4460, 2
    %v4462 = vmax.f32 %v4460, %v4461
    %v4463 = vrot.slane %v4462, 1
    %v4464 = vmax.f32 %v4462, %v4463
    %v4465 = vsel %vm2494, %v2961, -inf
    %v4466 = vrot.slane %v4465, 4
    %v4467 = vmax.f32 %v4465, %v4466
    %v4468 = vrot.slane %v4467, 2
    %v4469 = vmax.f32 %v4467, %v4468
    %v4470 = vrot.slane %v4469, 1
    %v4471 = vmax.f32 %v4469, %v4470
    %v4472 = vsel %vm2494, %v2962, -inf
    %v4473 = vrot.slane %v4472, 4
    %v4474 = vmax.f32 %v4472, %v4473
    %v4475 = vrot.slane %v4474, 2
    %v4476 = vmax.f32 %v4474, %v4475
    %v4477 = vrot.slane %v4476, 1
    %v4478 = vmax.f32 %v4476, %v4477
    %v4479 = vsel %vm2494, %v2963, -inf
    %v4480 = vrot.slane %v4479, 4
    %v4481 = vmax.f32 %v4479, %v4480
    %v4482 = vrot.slane %v4481, 2
    %v4483 = vmax.f32 %v4481, %v4482
    %v4484 = vrot.slane %v4483, 1
    %v4485 = vmax.f32 %v4483, %v4484
    %v4486 = vsel %vm2494, %v2965, -inf
    %v4487 = vrot.slane %v4486, 4
    %v4488 = vmax.f32 %v4486, %v4487
    %v4489 = vrot.slane %v4488, 2
    %v4490 = vmax.f32 %v4488, %v4489
    %v4491 = vrot.slane %v4490, 1
    %v4492 = vmax.f32 %v4490, %v4491
    %v4493 = vsel %vm2494, %v2966, -inf
    %v4494 = vrot.slane %v4493, 4
    %v4495 = vmax.f32 %v4493, %v4494
    %v4496 = vrot.slane %v4495, 2
    %v4497 = vmax.f32 %v4495, %v4496
    %v4498 = vrot.slane %v4497, 1
    %v4499 = vmax.f32 %v4497, %v4498
    %v4500 = vsel %vm2494, %v2967, -inf
    %v4501 = vrot.slane %v4500, 4
    %v4502 = vmax.f32 %v4500, %v4501
    %v4503 = vrot.slane %v4502, 2
    %v4504 = vmax.f32 %v4502, %v4503
    %v4505 = vrot.slane %v4504, 1
    %v4506 = vmax.f32 %v4504, %v4505
    %v4507 = vsel %vm2494, %v2969, -inf
    %v4508 = vrot.slane %v4507, 4
    %v4509 = vmax.f32 %v4507, %v4508
    %v4510 = vrot.slane %v4509, 2
    %v4511 = vmax.f32 %v4509, %v4510
    %v4512 = vrot.slane %v4511, 1
    %v4513 = vmax.f32 %v4511, %v4512
    %v4514 = vsel %vm2494, %v2970, -inf
    %v4515 = vrot.slane %v4514, 4
    %v4516 = vmax.f32 %v4514, %v4515
    %v4517 = vrot.slane %v4516, 2
    %v4518 = vmax.f32 %v4516, %v4517
    %v4519 = vrot.slane %v4518, 1
    %v4520 = vmax.f32 %v4518, %v4519
    %v4521 = vsel %vm2494, %v2971, -inf
    %v4522 = vrot.slane %v4521, 4
    %v4523 = vmax.f32 %v4521, %v4522
    %v4524 = vrot.slane %v4523, 2
    %v4525 = vmax.f32 %v4523, %v4524
    %v4526 = vrot.slane %v4525, 1
    %v4527 = vmax.f32 %v4525, %v4526
    %v4528 = vsel %vm2494, %v2973, -inf
    %v4529 = vrot.slane %v4528, 4
    %v4530 = vmax.f32 %v4528, %v4529
    %v4531 = vrot.slane %v4530, 2
    %v4532 = vmax.f32 %v4530, %v4531
    %v4533 = vrot.slane %v4532, 1
    %v4534 = vmax.f32 %v4532, %v4533
    %v4535 = vsel %vm2494, %v2974, -inf
    %v4536 = vrot.slane %v4535, 4
    %v4537 = vmax.f32 %v4535, %v4536
    %v4538 = vrot.slane %v4537, 2
    %v4539 = vmax.f32 %v4537, %v4538
    %v4540 = vrot.slane %v4539, 1
    %v4541 = vmax.f32 %v4539, %v4540
    %v4542 = vsel %vm2494, %v2975, -inf
    %v4543 = vrot.slane %v4542, 4
    %v4544 = vmax.f32 %v4542, %v4543
    %v4545 = vrot.slane %v4544, 2
    %v4546 = vmax.f32 %v4544, %v4545
    %v4547 = vrot.slane %v4546, 1
    %v4548 = vmax.f32 %v4546, %v4547
    %v4549 = vsel %vm2494, %v2977, -inf
    %v4550 = vrot.slane %v4549, 4
    %v4551 = vmax.f32 %v4549, %v4550
    %v4552 = vrot.slane %v4551, 2
    %v4553 = vmax.f32 %v4551, %v4552
    %v4554 = vrot.slane %v4553, 1
    %v4555 = vmax.f32 %v4553, %v4554
    %v4556 = vsel %vm2494, %v2978, -inf
    %v4557 = vrot.slane %v4556, 4
    %v4558 = vmax.f32 %v4556, %v4557
    %v4559 = vrot.slane %v4558, 2
    %v4560 = vmax.f32 %v4558, %v4559
    %v4561 = vrot.slane %v4560, 1
    %v4562 = vmax.f32 %v4560, %v4561
    %v4563 = vsel %vm2494, %v2979, -inf
    %v4564 = vrot.slane %v4563, 4
    %v4565 = vmax.f32 %v4563, %v4564
    %v4566 = vrot.slane %v4565, 2
    %v4567 = vmax.f32 %v4565, %v4566
    %v4568 = vrot.slane %v4567, 1
    %v4569 = vmax.f32 %v4567, %v4568
    %v4570 = vsel %vm2494, %v2981, -inf
    %v4571 = vrot.slane %v4570, 4
    %v4572 = vmax.f32 %v4570, %v4571
    %v4573 = vrot.slane %v4572, 2
    %v4574 = vmax.f32 %v4572, %v4573
    %v4575 = vrot.slane %v4574, 1
    %v4576 = vmax.f32 %v4574, %v4575
    %v4577 = vsel %vm2494, %v2982, -inf
    %v4578 = vrot.slane %v4577, 4
    %v4579 = vmax.f32 %v4577, %v4578
    %v4580 = vrot.slane %v4579, 2
    %v4581 = vmax.f32 %v4579, %v4580
    %v4582 = vrot.slane %v4581, 1
    %v4583 = vmax.f32 %v4581, %v4582
    %v4584 = vsel %vm2494, %v2983, -inf
    %v4585 = vrot.slane %v4584, 4
    %v4586 = vmax.f32 %v4584, %v4585
    %v4587 = vrot.slane %v4586, 2
    %v4588 = vmax.f32 %v4586, %v4587
    %v4589 = vrot.slane %v4588, 1
    %v4590 = vmax.f32 %v4588, %v4589
    %v4591 = vsel %vm2494, %v2985, -inf
    %v4592 = vrot.slane %v4591, 4
    %v4593 = vmax.f32 %v4591, %v4592
    %v4594 = vrot.slane %v4593, 2
    %v4595 = vmax.f32 %v4593, %v4594
    %v4596 = vrot.slane %v4595, 1
    %v4597 = vmax.f32 %v4595, %v4596
    %v4598 = vsel %vm2494, %v2986, -inf
    %v4599 = vrot.slane %v4598, 4
    %v4600 = vmax.f32 %v4598, %v4599
    %v4601 = vrot.slane %v4600, 2
    %v4602 = vmax.f32 %v4600, %v4601
    %v4603 = vrot.slane %v4602, 1
    %v4604 = vmax.f32 %v4602, %v4603
    %v4605 = vsel %vm2494, %v2987, -inf
    %v4606 = vrot.slane %v4605, 4
    %v4607 = vmax.f32 %v4605, %v4606
    %v4608 = vrot.slane %v4607, 2
    %v4609 = vmax.f32 %v4607, %v4608
    %v4610 = vrot.slane %v4609, 1
    %v4611 = vmax.f32 %v4609, %v4610
    %v4612 = vsel %vm2494, %v2989, -inf
    %v4613 = vrot.slane %v4612, 4
    %v4614 = vmax.f32 %v4612, %v4613
    %v4615 = vrot.slane %v4614, 2
    %v4616 = vmax.f32 %v4614, %v4615
    %v4617 = vrot.slane %v4616, 1
    %v4618 = vmax.f32 %v4616, %v4617
    %v4619 = vsel %vm2494, %v2990, -inf
    %v4620 = vrot.slane %v4619, 4
    %v4621 = vmax.f32 %v4619, %v4620
    %v4622 = vrot.slane %v4621, 2
    %v4623 = vmax.f32 %v4621, %v4622
    %v4624 = vrot.slane %v4623, 1
    %v4625 = vmax.f32 %v4623, %v4624
    %v4626 = vsel %vm2494, %v2991, -inf
    %v4627 = vrot.slane %v4626, 4
    %v4628 = vmax.f32 %v4626, %v4627
    %v4629 = vrot.slane %v4628, 2
    %v4630 = vmax.f32 %v4628, %v4629
    %v4631 = vrot.slane %v4630, 1
    %v4632 = vmax.f32 %v4630, %v4631
    %v4633 = vsel %vm2494, %v2993, -inf
    %v4634 = vrot.slane %v4633, 4
    %v4635 = vmax.f32 %v4633, %v4634
    %v4636 = vrot.slane %v4635, 2
    %v4637 = vmax.f32 %v4635, %v4636
    %v4638 = vrot.slane %v4637, 1
    %v4639 = vmax.f32 %v4637, %v4638
    %v4640 = vsel %vm2494, %v2994, -inf
    %v4641 = vrot.slane %v4640, 4
    %v4642 = vmax.f32 %v4640, %v4641
    %v4643 = vrot.slane %v4642, 2
    %v4644 = vmax.f32 %v4642, %v4643
    %v4645 = vrot.slane %v4644, 1
    %v4646 = vmax.f32 %v4644, %v4645
    %v4647 = vsel %vm2494, %v2995, -inf
    %v4648 = vrot.slane %v4647, 4
    %v4649 = vmax.f32 %v4647, %v4648
    %v4650 = vrot.slane %v4649, 2
    %v4651 = vmax.f32 %v4649, %v4650
    %v4652 = vrot.slane %v4651, 1
    %v4653 = vmax.f32 %v4651, %v4652
    %v4654 = vsel %vm2494, %v2997, -inf
    %v4655 = vrot.slane %v4654, 4
    %v4656 = vmax.f32 %v4654, %v4655
    %v4657 = vrot.slane %v4656, 2
    %v4658 = vmax.f32 %v4656, %v4657
    %v4659 = vrot.slane %v4658, 1
    %v4660 = vmax.f32 %v4658, %v4659
    %v4661 = vsel %vm2494, %v2998, -inf
    %v4662 = vrot.slane %v4661, 4
    %v4663 = vmax.f32 %v4661, %v4662
    %v4664 = vrot.slane %v4663, 2
    %v4665 = vmax.f32 %v4663, %v4664
    %v4666 = vrot.slane %v4665, 1
    %v4667 = vmax.f32 %v4665, %v4666
    %v4668 = vsel %vm2494, %v2999, -inf
    %v4669 = vrot.slane %v4668, 4
    %v4670 = vmax.f32 %v4668, %v4669
    %v4671 = vrot.slane %v4670, 2
    %v4672 = vmax.f32 %v4670, %v4671
    %v4673 = vrot.slane %v4672, 1
    %v4674 = vmax.f32 %v4672, %v4673
    %v4675 = vsel %vm2494, %v3001, -inf
    %v4676 = vrot.slane %v4675, 4
    %v4677 = vmax.f32 %v4675, %v4676
    %v4678 = vrot.slane %v4677, 2
    %v4679 = vmax.f32 %v4677, %v4678
    %v4680 = vrot.slane %v4679, 1
    %v4681 = vmax.f32 %v4679, %v4680
    %v4682 = vsel %vm2494, %v3002, -inf
    %v4683 = vrot.slane %v4682, 4
    %v4684 = vmax.f32 %v4682, %v4683
    %v4685 = vrot.slane %v4684, 2
    %v4686 = vmax.f32 %v4684, %v4685
    %v4687 = vrot.slane %v4686, 1
    %v4688 = vmax.f32 %v4686, %v4687
    %v4689 = vsel %vm2494, %v3003, -inf
    %v4690 = vrot.slane %v4689, 4
    %v4691 = vmax.f32 %v4689, %v4690
    %v4692 = vrot.slane %v4691, 2
    %v4693 = vmax.f32 %v4691, %v4692
    %v4694 = vrot.slane %v4693, 1
    %v4695 = vmax.f32 %v4693, %v4694
    %v4696 = vsel %vm2494, %v3005, -inf
    %v4697 = vrot.slane %v4696, 4
    %v4698 = vmax.f32 %v4696, %v4697
    %v4699 = vrot.slane %v4698, 2
    %v4700 = vmax.f32 %v4698, %v4699
    %v4701 = vrot.slane %v4700, 1
    %v4702 = vmax.f32 %v4700, %v4701
    %v4703 = vsel %vm2494, %v3006, -inf
    %v4704 = vrot.slane %v4703, 4
    %v4705 = vmax.f32 %v4703, %v4704
    %v4706 = vrot.slane %v4705, 2
    %v4707 = vmax.f32 %v4705, %v4706
    %v4708 = vrot.slane %v4707, 1
    %v4709 = vmax.f32 %v4707, %v4708
    %v4710 = vsel %vm2494, %v3007, -inf
    %v4711 = vrot.slane %v4710, 4
    %v4712 = vmax.f32 %v4710, %v4711
    %v4713 = vrot.slane %v4712, 2
    %v4714 = vmax.f32 %v4712, %v4713
    %v4715 = vrot.slane %v4714, 1
    %v4716 = vmax.f32 %v4714, %v4715
    %v4717 = vsel %vm2494, %v3009, -inf
    %v4718 = vrot.slane %v4717, 4
    %v4719 = vmax.f32 %v4717, %v4718
    %v4720 = vrot.slane %v4719, 2
    %v4721 = vmax.f32 %v4719, %v4720
    %v4722 = vrot.slane %v4721, 1
    %v4723 = vmax.f32 %v4721, %v4722
    %v4724 = vsel %vm2494, %v3010, -inf
    %v4725 = vrot.slane %v4724, 4
    %v4726 = vmax.f32 %v4724, %v4725
    %v4727 = vrot.slane %v4726, 2
    %v4728 = vmax.f32 %v4726, %v4727
    %v4729 = vrot.slane %v4728, 1
    %v4730 = vmax.f32 %v4728, %v4729
    %v4731 = vsel %vm2494, %v3011, -inf
    %v4732 = vrot.slane %v4731, 4
    %v4733 = vmax.f32 %v4731, %v4732
    %v4734 = vrot.slane %v4733, 2
    %v4735 = vmax.f32 %v4733, %v4734
    %v4736 = vrot.slane %v4735, 1
    %v4737 = vmax.f32 %v4735, %v4736
    %v4738 = vsel %vm2494, %v3013, -inf
    %v4739 = vrot.slane %v4738, 4
    %v4740 = vmax.f32 %v4738, %v4739
    %v4741 = vrot.slane %v4740, 2
    %v4742 = vmax.f32 %v4740, %v4741
    %v4743 = vrot.slane %v4742, 1
    %v4744 = vmax.f32 %v4742, %v4743
    %v4745 = vsel %vm2494, %v3014, -inf
    %v4746 = vrot.slane %v4745, 4
    %v4747 = vmax.f32 %v4745, %v4746
    %v4748 = vrot.slane %v4747, 2
    %v4749 = vmax.f32 %v4747, %v4748
    %v4750 = vrot.slane %v4749, 1
    %v4751 = vmax.f32 %v4749, %v4750
    %v4752 = vsel %vm2494, %v3015, -inf
    %v4753 = vrot.slane %v4752, 4
    %v4754 = vmax.f32 %v4752, %v4753
    %v4755 = vrot.slane %v4754, 2
    %v4756 = vmax.f32 %v4754, %v4755
    %v4757 = vrot.slane %v4756, 1
    %v4758 = vmax.f32 %v4756, %v4757
    %v4759 = vsel %vm2494, %v3017, -inf
    %v4760 = vrot.slane %v4759, 4
    %v4761 = vmax.f32 %v4759, %v4760
    %v4762 = vrot.slane %v4761, 2
    %v4763 = vmax.f32 %v4761, %v4762
    %v4764 = vrot.slane %v4763, 1
    %v4765 = vmax.f32 %v4763, %v4764
    %v4766 = vsel %vm2494, %v3018, -inf
    %v4767 = vrot.slane %v4766, 4
    %v4768 = vmax.f32 %v4766, %v4767
    %v4769 = vrot.slane %v4768, 2
    %v4770 = vmax.f32 %v4768, %v4769
    %v4771 = vrot.slane %v4770, 1
    %v4772 = vmax.f32 %v4770, %v4771
    %v4773 = vsel %vm2494, %v3019, -inf
    %v4774 = vrot.slane %v4773, 4
    %v4775 = vmax.f32 %v4773, %v4774
    %v4776 = vrot.slane %v4775, 2
    %v4777 = vmax.f32 %v4775, %v4776
    %v4778 = vrot.slane %v4777, 1
    %v4779 = vmax.f32 %v4777, %v4778
    %v4780 = vsel %vm2494, %v3021, -inf
    %v4781 = vrot.slane %v4780, 4
    %v4782 = vmax.f32 %v4780, %v4781
    %v4783 = vrot.slane %v4782, 2
    %v4784 = vmax.f32 %v4782, %v4783
    %v4785 = vrot.slane %v4784, 1
    %v4786 = vmax.f32 %v4784, %v4785
    %v4787 = vsel %vm2494, %v3022, -inf
    %v4788 = vrot.slane %v4787, 4
    %v4789 = vmax.f32 %v4787, %v4788
    %v4790 = vrot.slane %v4789, 2
    %v4791 = vmax.f32 %v4789, %v4790
    %v4792 = vrot.slane %v4791, 1
    %v4793 = vmax.f32 %v4791, %v4792
    %v4794 = vsel %vm2494, %v3023, -inf
    %v4795 = vrot.slane %v4794, 4
    %v4796 = vmax.f32 %v4794, %v4795
    %v4797 = vrot.slane %v4796, 2
    %v4798 = vmax.f32 %v4796, %v4797
    %v4799 = vrot.slane %v4798, 1
    %v4800 = vmax.f32 %v4798, %v4799
    %v4801 = vsel %vm2494, %v3025, -inf
    %v4802 = vrot.slane %v4801, 4
    %v4803 = vmax.f32 %v4801, %v4802
    %v4804 = vrot.slane %v4803, 2
    %v4805 = vmax.f32 %v4803, %v4804
    %v4806 = vrot.slane %v4805, 1
    %v4807 = vmax.f32 %v4805, %v4806
    %v4808 = vsel %vm2494, %v3026, -inf
    %v4809 = vrot.slane %v4808, 4
    %v4810 = vmax.f32 %v4808, %v4809
    %v4811 = vrot.slane %v4810, 2
    %v4812 = vmax.f32 %v4810, %v4811
    %v4813 = vrot.slane %v4812, 1
    %v4814 = vmax.f32 %v4812, %v4813
    %v4815 = vsel %vm2494, %v3027, -inf
    %v4816 = vrot.slane %v4815, 4
    %v4817 = vmax.f32 %v4815, %v4816
    %v4818 = vrot.slane %v4817, 2
    %v4819 = vmax.f32 %v4817, %v4818
    %v4820 = vrot.slane %v4819, 1
    %v4821 = vmax.f32 %v4819, %v4820
    %v4822 = vsel %vm2494, %v3029, -inf
    %v4823 = vrot.slane %v4822, 4
    %v4824 = vmax.f32 %v4822, %v4823
    %v4825 = vrot.slane %v4824, 2
    %v4826 = vmax.f32 %v4824, %v4825
    %v4827 = vrot.slane %v4826, 1
    %v4828 = vmax.f32 %v4826, %v4827
    %v4829 = vsel %vm2494, %v3030, -inf
    %v4830 = vrot.slane %v4829, 4
    %v4831 = vmax.f32 %v4829, %v4830
    %v4832 = vrot.slane %v4831, 2
    %v4833 = vmax.f32 %v4831, %v4832
    %v4834 = vrot.slane %v4833, 1
    %v4835 = vmax.f32 %v4833, %v4834
    %v4836 = vsel %vm2494, %v3031, -inf
    %v4837 = vrot.slane %v4836, 4
    %v4838 = vmax.f32 %v4836, %v4837
    %v4839 = vrot.slane %v4838, 2
    %v4840 = vmax.f32 %v4838, %v4839
    %v4841 = vrot.slane %v4840, 1
    %v4842 = vmax.f32 %v4840, %v4841
    %v4843 = vsel %vm2494, %v3033, -inf
    %v4844 = vrot.slane %v4843, 4
    %v4845 = vmax.f32 %v4843, %v4844
    %v4846 = vrot.slane %v4845, 2
    %v4847 = vmax.f32 %v4845, %v4846
    %v4848 = vrot.slane %v4847, 1
    %v4849 = vmax.f32 %v4847, %v4848
    %v4850 = vsel %vm2494, %v3034, -inf
    %v4851 = vrot.slane %v4850, 4
    %v4852 = vmax.f32 %v4850, %v4851
    %v4853 = vrot.slane %v4852, 2
    %v4854 = vmax.f32 %v4852, %v4853
    %v4855 = vrot.slane %v4854, 1
    %v4856 = vmax.f32 %v4854, %v4855
    %v4857 = vsel %vm2494, %v3035, -inf
    %v4858 = vrot.slane %v4857, 4
    %v4859 = vmax.f32 %v4857, %v4858
    %v4860 = vrot.slane %v4859, 2
    %v4861 = vmax.f32 %v4859, %v4860
    %v4862 = vrot.slane %v4861, 1
    %v4863 = vmax.f32 %v4861, %v4862
    %v4864 = vsel %vm2494, %v3037, -inf
    %v4865 = vrot.slane %v4864, 4
    %v4866 = vmax.f32 %v4864, %v4865
    %v4867 = vrot.slane %v4866, 2
    %v4868 = vmax.f32 %v4866, %v4867
    %v4869 = vrot.slane %v4868, 1
    %v4870 = vmax.f32 %v4868, %v4869
    %v4871 = vsel %vm2494, %v3038, -inf
    %v4872 = vrot.slane %v4871, 4
    %v4873 = vmax.f32 %v4871, %v4872
    %v4874 = vrot.slane %v4873, 2
    %v4875 = vmax.f32 %v4873, %v4874
    %v4876 = vrot.slane %v4875, 1
    %v4877 = vmax.f32 %v4875, %v4876
    %v4878 = vsel %vm2494, %v3039, -inf
    %v4879 = vrot.slane %v4878, 4
    %v4880 = vmax.f32 %v4878, %v4879
    %v4881 = vrot.slane %v4880, 2
    %v4882 = vmax.f32 %v4880, %v4881
    %v4883 = vrot.slane %v4882, 1
    %v4884 = vmax.f32 %v4882, %v4883
    %v4885 = vsel %vm2494, %v3041, -inf
    %v4886 = vrot.slane %v4885, 4
    %v4887 = vmax.f32 %v4885, %v4886
    %v4888 = vrot.slane %v4887, 2
    %v4889 = vmax.f32 %v4887, %v4888
    %v4890 = vrot.slane %v4889, 1
    %v4891 = vmax.f32 %v4889, %v4890
    %v4892 = vsel %vm2494, %v3042, -inf
    %v4893 = vrot.slane %v4892, 4
    %v4894 = vmax.f32 %v4892, %v4893
    %v4895 = vrot.slane %v4894, 2
    %v4896 = vmax.f32 %v4894, %v4895
    %v4897 = vrot.slane %v4896, 1
    %v4898 = vmax.f32 %v4896, %v4897
    %v4899 = vsel %vm2494, %v3043, -inf
    %v4900 = vrot.slane %v4899, 4
    %v4901 = vmax.f32 %v4899, %v4900
    %v4902 = vrot.slane %v4901, 2
    %v4903 = vmax.f32 %v4901, %v4902
    %v4904 = vrot.slane %v4903, 1
    %v4905 = vmax.f32 %v4903, %v4904
    %v4906 = vsel %vm2494, %v3045, -inf
    %v4907 = vrot.slane %v4906, 4
    %v4908 = vmax.f32 %v4906, %v4907
    %v4909 = vrot.slane %v4908, 2
    %v4910 = vmax.f32 %v4908, %v4909
    %v4911 = vrot.slane %v4910, 1
    %v4912 = vmax.f32 %v4910, %v4911
    %v4913 = vsel %vm2494, %v3046, -inf
    %v4914 = vrot.slane %v4913, 4
    %v4915 = vmax.f32 %v4913, %v4914
    %v4916 = vrot.slane %v4915, 2
    %v4917 = vmax.f32 %v4915, %v4916
    %v4918 = vrot.slane %v4917, 1
    %v4919 = vmax.f32 %v4917, %v4918
    %v4920 = vsel %vm2494, %v3047, -inf
    %v4921 = vrot.slane %v4920, 4
    %v4922 = vmax.f32 %v4920, %v4921
    %v4923 = vrot.slane %v4922, 2
    %v4924 = vmax.f32 %v4922, %v4923
    %v4925 = vrot.slane %v4924, 1
    %v4926 = vmax.f32 %v4924, %v4925
    %v4927 = vsel %vm2494, %v3049, -inf
    %v4928 = vrot.slane %v4927, 4
    %v4929 = vmax.f32 %v4927, %v4928
    %v4930 = vrot.slane %v4929, 2
    %v4931 = vmax.f32 %v4929, %v4930
    %v4932 = vrot.slane %v4931, 1
    %v4933 = vmax.f32 %v4931, %v4932
    %v4934 = vsel %vm2494, %v3050, -inf
    %v4935 = vrot.slane %v4934, 4
    %v4936 = vmax.f32 %v4934, %v4935
    %v4937 = vrot.slane %v4936, 2
    %v4938 = vmax.f32 %v4936, %v4937
    %v4939 = vrot.slane %v4938, 1
    %v4940 = vmax.f32 %v4938, %v4939
    %v4941 = vsel %vm2494, %v3051, -inf
    %v4942 = vrot.slane %v4941, 4
    %v4943 = vmax.f32 %v4941, %v4942
    %v4944 = vrot.slane %v4943, 2
    %v4945 = vmax.f32 %v4943, %v4944
    %v4946 = vrot.slane %v4945, 1
    %v4947 = vmax.f32 %v4945, %v4946
    %v4948 = vsel %vm2494, %v3053, -inf
    %v4949 = vrot.slane %v4948, 4
    %v4950 = vmax.f32 %v4948, %v4949
    %v4951 = vrot.slane %v4950, 2
    %v4952 = vmax.f32 %v4950, %v4951
    %v4953 = vrot.slane %v4952, 1
    %v4954 = vmax.f32 %v4952, %v4953
    %v4955 = vsel %vm2494, %v3054, -inf
    %v4956 = vrot.slane %v4955, 4
    %v4957 = vmax.f32 %v4955, %v4956
    %v4958 = vrot.slane %v4957, 2
    %v4959 = vmax.f32 %v4957, %v4958
    %v4960 = vrot.slane %v4959, 1
    %v4961 = vmax.f32 %v4959, %v4960
    %v4962 = vsel %vm2494, %v3055, -inf
    %v4963 = vrot.slane %v4962, 4
    %v4964 = vmax.f32 %v4962, %v4963
    %v4965 = vrot.slane %v4964, 2
    %v4966 = vmax.f32 %v4964, %v4965
    %v4967 = vrot.slane %v4966, 1
    %v4968 = vmax.f32 %v4966, %v4967
    %v4969 = vsel %vm2494, %v3057, -inf
    %v4970 = vrot.slane %v4969, 4
    %v4971 = vmax.f32 %v4969, %v4970
    %v4972 = vrot.slane %v4971, 2
    %v4973 = vmax.f32 %v4971, %v4972
    %v4974 = vrot.slane %v4973, 1
    %v4975 = vmax.f32 %v4973, %v4974
    %v4976 = vsel %vm2494, %v3058, -inf
    %v4977 = vrot.slane %v4976, 4
    %v4978 = vmax.f32 %v4976, %v4977
    %v4979 = vrot.slane %v4978, 2
    %v4980 = vmax.f32 %v4978, %v4979
    %v4981 = vrot.slane %v4980, 1
    %v4982 = vmax.f32 %v4980, %v4981
    %v4983 = vsel %vm2494, %v3059, -inf
    %v4984 = vrot.slane %v4983, 4
    %v4985 = vmax.f32 %v4983, %v4984
    %v4986 = vrot.slane %v4985, 2
    %v4987 = vmax.f32 %v4985, %v4986
    %v4988 = vrot.slane %v4987, 1
    %v4989 = vmax.f32 %v4987, %v4988
    %v4990 = vsel %vm2494, %v3061, -inf
    %v4991 = vrot.slane %v4990, 4
    %v4992 = vmax.f32 %v4990, %v4991
    %v4993 = vrot.slane %v4992, 2
    %v4994 = vmax.f32 %v4992, %v4993
    %v4995 = vrot.slane %v4994, 1
    %v4996 = vmax.f32 %v4994, %v4995
    %v4997 = vsel %vm2494, %v3062, -inf
    %v4998 = vrot.slane %v4997, 4
    %v4999 = vmax.f32 %v4997, %v4998
    %v5000 = vrot.slane %v4999, 2
    %v5001 = vmax.f32 %v4999, %v5000
    %v5002 = vrot.slane %v5001, 1
    %v5003 = vmax.f32 %v5001, %v5002
    %v5004 = vsel %vm2494, %v3063, -inf
    %v5005 = vrot.slane %v5004, 4
    %v5006 = vmax.f32 %v5004, %v5005
    %v5007 = vrot.slane %v5006, 2
    %v5008 = vmax.f32 %v5006, %v5007
    %v5009 = vrot.slane %v5008, 1
    %v5010 = vmax.f32 %v5008, %v5009
    %v5011 = vsel %vm2494, %v3065, -inf
    %v5012 = vrot.slane %v5011, 4
    %v5013 = vmax.f32 %v5011, %v5012
    %v5014 = vrot.slane %v5013, 2
    %v5015 = vmax.f32 %v5013, %v5014
    %v5016 = vrot.slane %v5015, 1
    %v5017 = vmax.f32 %v5015, %v5016
    %v5018 = vsel %vm2494, %v3066, -inf
    %v5019 = vrot.slane %v5018, 4
    %v5020 = vmax.f32 %v5018, %v5019
    %v5021 = vrot.slane %v5020, 2
    %v5022 = vmax.f32 %v5020, %v5021
    %v5023 = vrot.slane %v5022, 1
    %v5024 = vmax.f32 %v5022, %v5023
    %v5025 = vsel %vm2494, %v3067, -inf
    %v5026 = vrot.slane %v5025, 4
    %v5027 = vmax.f32 %v5025, %v5026
    %v5028 = vrot.slane %v5027, 2
    %v5029 = vmax.f32 %v5027, %v5028
    %v5030 = vrot.slane %v5029, 1
    %v5031 = vmax.f32 %v5029, %v5030
    %v5032 = vsel %vm2494, %v3069, -inf
    %v5033 = vrot.slane %v5032, 4
    %v5034 = vmax.f32 %v5032, %v5033
    %v5035 = vrot.slane %v5034, 2
    %v5036 = vmax.f32 %v5034, %v5035
    %v5037 = vrot.slane %v5036, 1
    %v5038 = vmax.f32 %v5036, %v5037
    %v5039 = vsel %vm2494, %v3070, -inf
    %v5040 = vrot.slane %v5039, 4
    %v5041 = vmax.f32 %v5039, %v5040
    %v5042 = vrot.slane %v5041, 2
    %v5043 = vmax.f32 %v5041, %v5042
    %v5044 = vrot.slane %v5043, 1
    %v5045 = vmax.f32 %v5043, %v5044
    %v5046 = vsel %vm2494, %v3071, -inf
    %v5047 = vrot.slane %v5046, 4
    %v5048 = vmax.f32 %v5046, %v5047
    %v5049 = vrot.slane %v5048, 2
    %v5050 = vmax.f32 %v5048, %v5049
    %v5051 = vrot.slane %v5050, 1
    %v5052 = vmax.f32 %v5050, %v5051
    %v5053 = vsel %vm2494, %v3073, -inf
    %v5054 = vrot.slane %v5053, 4
    %v5055 = vmax.f32 %v5053, %v5054
    %v5056 = vrot.slane %v5055, 2
    %v5057 = vmax.f32 %v5055, %v5056
    %v5058 = vrot.slane %v5057, 1
    %v5059 = vmax.f32 %v5057, %v5058
    %v5060 = vsel %vm2494, %v3074, -inf
    %v5061 = vrot.slane %v5060, 4
    %v5062 = vmax.f32 %v5060, %v5061
    %v5063 = vrot.slane %v5062, 2
    %v5064 = vmax.f32 %v5062, %v5063
    %v5065 = vrot.slane %v5064, 1
    %v5066 = vmax.f32 %v5064, %v5065
    %v5067 = vsel %vm2494, %v3075, -inf
    %v5068 = vrot.slane %v5067, 4
    %v5069 = vmax.f32 %v5067, %v5068
    %v5070 = vrot.slane %v5069, 2
    %v5071 = vmax.f32 %v5069, %v5070
    %v5072 = vrot.slane %v5071, 1
    %v5073 = vmax.f32 %v5071, %v5072
    %v5074 = vsel %vm2494, %v3077, -inf
    %v5075 = vrot.slane %v5074, 4
    %v5076 = vmax.f32 %v5074, %v5075
    %v5077 = vrot.slane %v5076, 2
    %v5078 = vmax.f32 %v5076, %v5077
    %v5079 = vrot.slane %v5078, 1
    %v5080 = vmax.f32 %v5078, %v5079
    %v5081 = vsel %vm2494, %v3078, -inf
    %v5082 = vrot.slane %v5081, 4
    %v5083 = vmax.f32 %v5081, %v5082
    %v5084 = vrot.slane %v5083, 2
    %v5085 = vmax.f32 %v5083, %v5084
    %v5086 = vrot.slane %v5085, 1
    %v5087 = vmax.f32 %v5085, %v5086
    %v5088 = vsel %vm2494, %v3079, -inf
    %v5089 = vrot.slane %v5088, 4
    %v5090 = vmax.f32 %v5088, %v5089
    %v5091 = vrot.slane %v5090, 2
    %v5092 = vmax.f32 %v5090, %v5091
    %v5093 = vrot.slane %v5092, 1
    %v5094 = vmax.f32 %v5092, %v5093
    %v5095 = vsel %vm2494, %v3081, -inf
    %v5096 = vrot.slane %v5095, 4
    %v5097 = vmax.f32 %v5095, %v5096
    %v5098 = vrot.slane %v5097, 2
    %v5099 = vmax.f32 %v5097, %v5098
    %v5100 = vrot.slane %v5099, 1
    %v5101 = vmax.f32 %v5099, %v5100
    %v5102 = vsel %vm2494, %v3082, -inf
    %v5103 = vrot.slane %v5102, 4
    %v5104 = vmax.f32 %v5102, %v5103
    %v5105 = vrot.slane %v5104, 2
    %v5106 = vmax.f32 %v5104, %v5105
    %v5107 = vrot.slane %v5106, 1
    %v5108 = vmax.f32 %v5106, %v5107
    %v5109 = vsel %vm2494, %v3083, -inf
    %v5110 = vrot.slane %v5109, 4
    %v5111 = vmax.f32 %v5109, %v5110
    %v5112 = vrot.slane %v5111, 2
    %v5113 = vmax.f32 %v5111, %v5112
    %v5114 = vrot.slane %v5113, 1
    %v5115 = vmax.f32 %v5113, %v5114
    %v5116 = vsel %vm2494, %v3085, -inf
    %v5117 = vrot.slane %v5116, 4
    %v5118 = vmax.f32 %v5116, %v5117
    %v5119 = vrot.slane %v5118, 2
    %v5120 = vmax.f32 %v5118, %v5119
    %v5121 = vrot.slane %v5120, 1
    %v5122 = vmax.f32 %v5120, %v5121
    %v5123 = vsel %vm2494, %v3086, -inf
    %v5124 = vrot.slane %v5123, 4
    %v5125 = vmax.f32 %v5123, %v5124
    %v5126 = vrot.slane %v5125, 2
    %v5127 = vmax.f32 %v5125, %v5126
    %v5128 = vrot.slane %v5127, 1
    %v5129 = vmax.f32 %v5127, %v5128
    %v5130 = vsel %vm2494, %v3087, -inf
    %v5131 = vrot.slane %v5130, 4
    %v5132 = vmax.f32 %v5130, %v5131
    %v5133 = vrot.slane %v5132, 2
    %v5134 = vmax.f32 %v5132, %v5133
    %v5135 = vrot.slane %v5134, 1
    %v5136 = vmax.f32 %v5134, %v5135
    %v5137 = vsel %vm2494, %v3089, -inf
    %v5138 = vrot.slane %v5137, 4
    %v5139 = vmax.f32 %v5137, %v5138
    %v5140 = vrot.slane %v5139, 2
    %v5141 = vmax.f32 %v5139, %v5140
    %v5142 = vrot.slane %v5141, 1
    %v5143 = vmax.f32 %v5141, %v5142
    %v5144 = vsel %vm2494, %v3090, -inf
    %v5145 = vrot.slane %v5144, 4
    %v5146 = vmax.f32 %v5144, %v5145
    %v5147 = vrot.slane %v5146, 2
    %v5148 = vmax.f32 %v5146, %v5147
    %v5149 = vrot.slane %v5148, 1
    %v5150 = vmax.f32 %v5148, %v5149
    %v5151 = vsel %vm2494, %v3091, -inf
    %v5152 = vrot.slane %v5151, 4
    %v5153 = vmax.f32 %v5151, %v5152
    %v5154 = vrot.slane %v5153, 2
    %v5155 = vmax.f32 %v5153, %v5154
    %v5156 = vrot.slane %v5155, 1
    %v5157 = vmax.f32 %v5155, %v5156
    %v5158 = vsel %vm2494, %v3093, -inf
    %v5159 = vrot.slane %v5158, 4
    %v5160 = vmax.f32 %v5158, %v5159
    %v5161 = vrot.slane %v5160, 2
    %v5162 = vmax.f32 %v5160, %v5161
    %v5163 = vrot.slane %v5162, 1
    %v5164 = vmax.f32 %v5162, %v5163
    %v5165 = vsel %vm2494, %v3094, -inf
    %v5166 = vrot.slane %v5165, 4
    %v5167 = vmax.f32 %v5165, %v5166
    %v5168 = vrot.slane %v5167, 2
    %v5169 = vmax.f32 %v5167, %v5168
    %v5170 = vrot.slane %v5169, 1
    %v5171 = vmax.f32 %v5169, %v5170
    %v5172 = vsel %vm2494, %v3095, -inf
    %v5173 = vrot.slane %v5172, 4
    %v5174 = vmax.f32 %v5172, %v5173
    %v5175 = vrot.slane %v5174, 2
    %v5176 = vmax.f32 %v5174, %v5175
    %v5177 = vrot.slane %v5176, 1
    %v5178 = vmax.f32 %v5176, %v5177
    %v5179 = vsel %vm2494, %v3097, -inf
    %v5180 = vrot.slane %v5179, 4
    %v5181 = vmax.f32 %v5179, %v5180
    %v5182 = vrot.slane %v5181, 2
    %v5183 = vmax.f32 %v5181, %v5182
    %v5184 = vrot.slane %v5183, 1
    %v5185 = vmax.f32 %v5183, %v5184
    %v5186 = vsel %vm2494, %v3098, -inf
    %v5187 = vrot.slane %v5186, 4
    %v5188 = vmax.f32 %v5186, %v5187
    %v5189 = vrot.slane %v5188, 2
    %v5190 = vmax.f32 %v5188, %v5189
    %v5191 = vrot.slane %v5190, 1
    %v5192 = vmax.f32 %v5190, %v5191
    %v5193 = vsel %vm2494, %v3099, -inf
    %v5194 = vrot.slane %v5193, 4
    %v5195 = vmax.f32 %v5193, %v5194
    %v5196 = vrot.slane %v5195, 2
    %v5197 = vmax.f32 %v5195, %v5196
    %v5198 = vrot.slane %v5197, 1
    %v5199 = vmax.f32 %v5197, %v5198
    %v5200 = vsel %vm2494, %v3101, -inf
    %v5201 = vrot.slane %v5200, 4
    %v5202 = vmax.f32 %v5200, %v5201
    %v5203 = vrot.slane %v5202, 2
    %v5204 = vmax.f32 %v5202, %v5203
    %v5205 = vrot.slane %v5204, 1
    %v5206 = vmax.f32 %v5204, %v5205
    %v5207 = vsel %vm2494, %v3102, -inf
    %v5208 = vrot.slane %v5207, 4
    %v5209 = vmax.f32 %v5207, %v5208
    %v5210 = vrot.slane %v5209, 2
    %v5211 = vmax.f32 %v5209, %v5210
    %v5212 = vrot.slane %v5211, 1
    %v5213 = vmax.f32 %v5211, %v5212
    %v5214 = vsel %vm2494, %v3103, -inf
    %v5215 = vrot.slane %v5214, 4
    %v5216 = vmax.f32 %v5214, %v5215
    %v5217 = vrot.slane %v5216, 2
    %v5218 = vmax.f32 %v5216, %v5217
    %v5219 = vrot.slane %v5218, 1
    %v5220 = vmax.f32 %v5218, %v5219
    %v5221 = vsel %vm2494, %v3105, -inf
    %v5222 = vrot.slane %v5221, 4
    %v5223 = vmax.f32 %v5221, %v5222
    %v5224 = vrot.slane %v5223, 2
    %v5225 = vmax.f32 %v5223, %v5224
    %v5226 = vrot.slane %v5225, 1
    %v5227 = vmax.f32 %v5225, %v5226
    %v5228 = vsel %vm2494, %v3106, -inf
    %v5229 = vrot.slane %v5228, 4
    %v5230 = vmax.f32 %v5228, %v5229
    %v5231 = vrot.slane %v5230, 2
    %v5232 = vmax.f32 %v5230, %v5231
    %v5233 = vrot.slane %v5232, 1
    %v5234 = vmax.f32 %v5232, %v5233
    %v5235 = vsel %vm2494, %v3107, -inf
    %v5236 = vrot.slane %v5235, 4
    %v5237 = vmax.f32 %v5235, %v5236
    %v5238 = vrot.slane %v5237, 2
    %v5239 = vmax.f32 %v5237, %v5238
    %v5240 = vrot.slane %v5239, 1
    %v5241 = vmax.f32 %v5239, %v5240
    %v5242 = vsel %vm2494, %v3109, -inf
    %v5243 = vrot.slane %v5242, 4
    %v5244 = vmax.f32 %v5242, %v5243
    %v5245 = vrot.slane %v5244, 2
    %v5246 = vmax.f32 %v5244, %v5245
    %v5247 = vrot.slane %v5246, 1
    %v5248 = vmax.f32 %v5246, %v5247
    %v5249 = vsel %vm2494, %v3110, -inf
    %v5250 = vrot.slane %v5249, 4
    %v5251 = vmax.f32 %v5249, %v5250
    %v5252 = vrot.slane %v5251, 2
    %v5253 = vmax.f32 %v5251, %v5252
    %v5254 = vrot.slane %v5253, 1
    %v5255 = vmax.f32 %v5253, %v5254
    %v5256 = vsel %vm2494, %v3111, -inf
    %v5257 = vrot.slane %v5256, 4
    %v5258 = vmax.f32 %v5256, %v5257
    %v5259 = vrot.slane %v5258, 2
    %v5260 = vmax.f32 %v5258, %v5259
    %v5261 = vrot.slane %v5260, 1
    %v5262 = vmax.f32 %v5260, %v5261
    %v5263 = vsel %vm2494, %v3113, -inf
    %v5264 = vrot.slane %v5263, 4
    %v5265 = vmax.f32 %v5263, %v5264
    %v5266 = vrot.slane %v5265, 2
    %v5267 = vmax.f32 %v5265, %v5266
    %v5268 = vrot.slane %v5267, 1
    %v5269 = vmax.f32 %v5267, %v5268
    %v5270 = vsel %vm2494, %v3114, -inf
    %v5271 = vrot.slane %v5270, 4
    %v5272 = vmax.f32 %v5270, %v5271
    %v5273 = vrot.slane %v5272, 2
    %v5274 = vmax.f32 %v5272, %v5273
    %v5275 = vrot.slane %v5274, 1
    %v5276 = vmax.f32 %v5274, %v5275
    %v5277 = vsel %vm2494, %v3115, -inf
    %v5278 = vrot.slane %v5277, 4
    %v5279 = vmax.f32 %v5277, %v5278
    %v5280 = vrot.slane %v5279, 2
    %v5281 = vmax.f32 %v5279, %v5280
    %v5282 = vrot.slane %v5281, 1
    %v5283 = vmax.f32 %v5281, %v5282
    %v5284 = vsel %vm2494, %v3117, -inf
    %v5285 = vrot.slane %v5284, 4
    %v5286 = vmax.f32 %v5284, %v5285
    %v5287 = vrot.slane %v5286, 2
    %v5288 = vmax.f32 %v5286, %v5287
    %v5289 = vrot.slane %v5288, 1
    %v5290 = vmax.f32 %v5288, %v5289
    %v5291 = vsel %vm2494, %v3118, -inf
    %v5292 = vrot.slane %v5291, 4
    %v5293 = vmax.f32 %v5291, %v5292
    %v5294 = vrot.slane %v5293, 2
    %v5295 = vmax.f32 %v5293, %v5294
    %v5296 = vrot.slane %v5295, 1
    %v5297 = vmax.f32 %v5295, %v5296
    %v5298 = vsel %vm2494, %v3119, -inf
    %v5299 = vrot.slane %v5298, 4
    %v5300 = vmax.f32 %v5298, %v5299
    %v5301 = vrot.slane %v5300, 2
    %v5302 = vmax.f32 %v5300, %v5301
    %v5303 = vrot.slane %v5302, 1
    %v5304 = vmax.f32 %v5302, %v5303
    %v5305 = vsel %vm2494, %v3121, -inf
    %v5306 = vrot.slane %v5305, 4
    %v5307 = vmax.f32 %v5305, %v5306
    %v5308 = vrot.slane %v5307, 2
    %v5309 = vmax.f32 %v5307, %v5308
    %v5310 = vrot.slane %v5309, 1
    %v5311 = vmax.f32 %v5309, %v5310
    %v5312 = vsel %vm2494, %v3122, -inf
    %v5313 = vrot.slane %v5312, 4
    %v5314 = vmax.f32 %v5312, %v5313
    %v5315 = vrot.slane %v5314, 2
    %v5316 = vmax.f32 %v5314, %v5315
    %v5317 = vrot.slane %v5316, 1
    %v5318 = vmax.f32 %v5316, %v5317
    %v5319 = vsel %vm2494, %v3123, -inf
    %v5320 = vrot.slane %v5319, 4
    %v5321 = vmax.f32 %v5319, %v5320
    %v5322 = vrot.slane %v5321, 2
    %v5323 = vmax.f32 %v5321, %v5322
    %v5324 = vrot.slane %v5323, 1
    %v5325 = vmax.f32 %v5323, %v5324
    %v5326 = vsel %vm2494, %v3125, -inf
    %v5327 = vrot.slane %v5326, 4
    %v5328 = vmax.f32 %v5326, %v5327
    %v5329 = vrot.slane %v5328, 2
    %v5330 = vmax.f32 %v5328, %v5329
    %v5331 = vrot.slane %v5330, 1
    %v5332 = vmax.f32 %v5330, %v5331
    %v5333 = vsel %vm2494, %v3126, -inf
    %v5334 = vrot.slane %v5333, 4
    %v5335 = vmax.f32 %v5333, %v5334
    %v5336 = vrot.slane %v5335, 2
    %v5337 = vmax.f32 %v5335, %v5336
    %v5338 = vrot.slane %v5337, 1
    %v5339 = vmax.f32 %v5337, %v5338
    %v5340 = vsel %vm2494, %v3127, -inf
    %v5341 = vrot.slane %v5340, 4
    %v5342 = vmax.f32 %v5340, %v5341
    %v5343 = vrot.slane %v5342, 2
    %v5344 = vmax.f32 %v5342, %v5343
    %v5345 = vrot.slane %v5344, 1
    %v5346 = vmax.f32 %v5344, %v5345
    %v5347 = vsel %vm2494, %v3129, -inf
    %v5348 = vrot.slane %v5347, 4
    %v5349 = vmax.f32 %v5347, %v5348
    %v5350 = vrot.slane %v5349, 2
    %v5351 = vmax.f32 %v5349, %v5350
    %v5352 = vrot.slane %v5351, 1
    %v5353 = vmax.f32 %v5351, %v5352
    %v5354 = vsel %vm2494, %v3130, -inf
    %v5355 = vrot.slane %v5354, 4
    %v5356 = vmax.f32 %v5354, %v5355
    %v5357 = vrot.slane %v5356, 2
    %v5358 = vmax.f32 %v5356, %v5357
    %v5359 = vrot.slane %v5358, 1
    %v5360 = vmax.f32 %v5358, %v5359
    %v5361 = vsel %vm2494, %v3131, -inf
    %v5362 = vrot.slane %v5361, 4
    %v5363 = vmax.f32 %v5361, %v5362
    %v5364 = vrot.slane %v5363, 2
    %v5365 = vmax.f32 %v5363, %v5364
    %v5366 = vrot.slane %v5365, 1
    %v5367 = vmax.f32 %v5365, %v5366
    %v5368 = vsel %vm2494, %v3133, -inf
    %v5369 = vrot.slane %v5368, 4
    %v5370 = vmax.f32 %v5368, %v5369
    %v5371 = vrot.slane %v5370, 2
    %v5372 = vmax.f32 %v5370, %v5371
    %v5373 = vrot.slane %v5372, 1
    %v5374 = vmax.f32 %v5372, %v5373
    %v5375 = vsel %vm2494, %v3134, -inf
    %v5376 = vrot.slane %v5375, 4
    %v5377 = vmax.f32 %v5375, %v5376
    %v5378 = vrot.slane %v5377, 2
    %v5379 = vmax.f32 %v5377, %v5378
    %v5380 = vrot.slane %v5379, 1
    %v5381 = vmax.f32 %v5379, %v5380
    %v5382 = vsel %vm2494, %v3135, -inf
    %v5383 = vrot.slane %v5382, 4
    %v5384 = vmax.f32 %v5382, %v5383
    %v5385 = vrot.slane %v5384, 2
    %v5386 = vmax.f32 %v5384, %v5385
    %v5387 = vrot.slane %v5386, 1
    %v5388 = vmax.f32 %v5386, %v5387
    %v5389 = vsel %vm2494, %v3137, -inf
    %v5390 = vrot.slane %v5389, 4
    %v5391 = vmax.f32 %v5389, %v5390
    %v5392 = vrot.slane %v5391, 2
    %v5393 = vmax.f32 %v5391, %v5392
    %v5394 = vrot.slane %v5393, 1
    %v5395 = vmax.f32 %v5393, %v5394
    %v5396 = vsel %vm2494, %v3138, -inf
    %v5397 = vrot.slane %v5396, 4
    %v5398 = vmax.f32 %v5396, %v5397
    %v5399 = vrot.slane %v5398, 2
    %v5400 = vmax.f32 %v5398, %v5399
    %v5401 = vrot.slane %v5400, 1
    %v5402 = vmax.f32 %v5400, %v5401
    %v5403 = vsel %vm2494, %v3139, -inf
    %v5404 = vrot.slane %v5403, 4
    %v5405 = vmax.f32 %v5403, %v5404
    %v5406 = vrot.slane %v5405, 2
    %v5407 = vmax.f32 %v5405, %v5406
    %v5408 = vrot.slane %v5407, 1
    %v5409 = vmax.f32 %v5407, %v5408
    %v5410 = vsel %vm2494, %v3141, -inf
    %v5411 = vrot.slane %v5410, 4
    %v5412 = vmax.f32 %v5410, %v5411
    %v5413 = vrot.slane %v5412, 2
    %v5414 = vmax.f32 %v5412, %v5413
    %v5415 = vrot.slane %v5414, 1
    %v5416 = vmax.f32 %v5414, %v5415
    %v5417 = vsel %vm2494, %v3142, -inf
    %v5418 = vrot.slane %v5417, 4
    %v5419 = vmax.f32 %v5417, %v5418
    %v5420 = vrot.slane %v5419, 2
    %v5421 = vmax.f32 %v5419, %v5420
    %v5422 = vrot.slane %v5421, 1
    %v5423 = vmax.f32 %v5421, %v5422
    %v5424 = vsel %vm2494, %v3143, -inf
    %v5425 = vrot.slane %v5424, 4
    %v5426 = vmax.f32 %v5424, %v5425
    %v5427 = vrot.slane %v5426, 2
    %v5428 = vmax.f32 %v5426, %v5427
    %v5429 = vrot.slane %v5428, 1
    %v5430 = vmax.f32 %v5428, %v5429
    %v5431 = vsel %vm2494, %v3145, -inf
    %v5432 = vrot.slane %v5431, 4
    %v5433 = vmax.f32 %v5431, %v5432
    %v5434 = vrot.slane %v5433, 2
    %v5435 = vmax.f32 %v5433, %v5434
    %v5436 = vrot.slane %v5435, 1
    %v5437 = vmax.f32 %v5435, %v5436
    %v5438 = vsel %vm2494, %v3146, -inf
    %v5439 = vrot.slane %v5438, 4
    %v5440 = vmax.f32 %v5438, %v5439
    %v5441 = vrot.slane %v5440, 2
    %v5442 = vmax.f32 %v5440, %v5441
    %v5443 = vrot.slane %v5442, 1
    %v5444 = vmax.f32 %v5442, %v5443
    %v5445 = vsel %vm2494, %v3147, -inf
    %v5446 = vrot.slane %v5445, 4
    %v5447 = vmax.f32 %v5445, %v5446
    %v5448 = vrot.slane %v5447, 2
    %v5449 = vmax.f32 %v5447, %v5448
    %v5450 = vrot.slane %v5449, 1
    %v5451 = vmax.f32 %v5449, %v5450
    %5644 = vrot.lane.b32.xlu0 %v3449, 64
    %v5645 = vpop.permute.xlu0 %5644
    %5646 = vrot.lane.b32.xlu0 %v3456, 64
    %v5647 = vpop.permute.xlu0 %5646
    %5648 = vrot.lane.b32.xlu0 %v3470, 64
    %v5649 = vpop.permute.xlu0 %5648
    %5650 = vrot.lane.b32.xlu0 %v3477, 64
    %v5651 = vpop.permute.xlu0 %5650
    %5652 = vrot.lane.b32.xlu0 %v3491, 64
    %v5653 = vpop.permute.xlu0 %5652
    %5654 = vrot.lane.b32.xlu0 %v3498, 64
    %v5655 = vpop.permute.xlu0 %5654
    %5656 = vrot.lane.b32.xlu0 %v3512, 64
    %v5657 = vpop.permute.xlu0 %5656
    %5658 = vrot.lane.b32.xlu0 %v3519, 64
    %v5659 = vpop.permute.xlu0 %5658
    %5660 = vrot.lane.b32.xlu0 %v3533, 64
    %v5661 = vpop.permute.xlu0 %5660
    %5662 = vrot.lane.b32.xlu0 %v3540, 64
    %v5663 = vpop.permute.xlu0 %5662
    %5664 = vrot.lane.b32.xlu0 %v3554, 64
    %v5665 = vpop.permute.xlu0 %5664
    %5666 = vrot.lane.b32.xlu0 %v3561, 64
    %v5667 = vpop.permute.xlu0 %5666
    %5668 = vrot.lane.b32.xlu0 %v3575, 64
    %v5669 = vpop.permute.xlu0 %5668
    %5670 = vrot.lane.b32.xlu0 %v3582, 64
    %v5671 = vpop.permute.xlu0 %5670
    %5672 = vrot.lane.b32.xlu0 %v3596, 64
    %v5673 = vpop.permute.xlu0 %5672
    %5674 = vrot.lane.b32.xlu0 %v3603, 64
    %v5675 = vpop.permute.xlu0 %5674
    %5676 = vrot.lane.b32.xlu0 %v3617, 64
    %v5677 = vpop.permute.xlu0 %5676
    %5678 = vrot.lane.b32.xlu0 %v3624, 64
    %v5679 = vpop.permute.xlu0 %5678
    %5680 = vrot.lane.b32.xlu0 %v3638, 64
    %v5681 = vpop.permute.xlu0 %5680
    %5682 = vrot.lane.b32.xlu0 %v3645, 64
    %v5683 = vpop.permute.xlu0 %5682
    %5684 = vrot.lane.b32.xlu0 %v3659, 64
    %v5685 = vpop.permute.xlu0 %5684
    %5686 = vrot.lane.b32.xlu0 %v3666, 64
    %v5687 = vpop.permute.xlu0 %5686
    %5688 = vrot.lane.b32.xlu0 %v3680, 64
    %v5689 = vpop.permute.xlu0 %5688
    %5690 = vrot.lane.b32.xlu0 %v3687, 64
    %v5691 = vpop.permute.xlu0 %5690
    %5692 = vrot.lane.b32.xlu0 %v3701, 64
    %v5693 = vpop.permute.xlu0 %5692
    %5694 = vrot.lane.b32.xlu0 %v3708, 64
    %v5695 = vpop.permute.xlu0 %5694
    %5696 = vrot.lane.b32.xlu0 %v3722, 64
    %v5697 = vpop.permute.xlu0 %5696
    %5698 = vrot.lane.b32.xlu0 %v3729, 64
    %v5699 = vpop.permute.xlu0 %5698
    %5700 = vrot.lane.b32.xlu0 %v3743, 64
    %v5701 = vpop.permute.xlu0 %5700
    %5702 = vrot.lane.b32.xlu0 %v3750, 64
    %v5703 = vpop.permute.xlu0 %5702
    %5704 = vrot.lane.b32.xlu0 %v3764, 64
    %v5705 = vpop.permute.xlu0 %5704
    %5706 = vrot.lane.b32.xlu0 %v3771, 64
    %v5707 = vpop.permute.xlu0 %5706
    %5708 = vrot.lane.b32.xlu0 %v3785, 64
    %v5709 = vpop.permute.xlu0 %5708
    %5710 = vrot.lane.b32.xlu0 %v3792, 64
    %v5711 = vpop.permute.xlu0 %5710
    %5712 = vrot.lane.b32.xlu0 %v3806, 64
    %v5713 = vpop.permute.xlu0 %5712
    %5714 = vrot.lane.b32.xlu0 %v3813, 64
    %v5715 = vpop.permute.xlu0 %5714
    %5716 = vrot.lane.b32.xlu0 %v3827, 64
    %v5717 = vpop.permute.xlu0 %5716
    %5718 = vrot.lane.b32.xlu0 %v3834, 64
    %v5719 = vpop.permute.xlu0 %5718
    %5720 = vrot.lane.b32.xlu0 %v3848, 64
    %v5721 = vpop.permute.xlu0 %5720
    %5722 = vrot.lane.b32.xlu0 %v3855, 64
    %v5723 = vpop.permute.xlu0 %5722
    %5724 = vrot.lane.b32.xlu0 %v3869, 64
    %v5725 = vpop.permute.xlu0 %5724
    %5726 = vrot.lane.b32.xlu0 %v3876, 64
    %v5727 = vpop.permute.xlu0 %5726
    %5728 = vrot.lane.b32.xlu0 %v3890, 64
    %v5729 = vpop.permute.xlu0 %5728
    %5730 = vrot.lane.b32.xlu0 %v3897, 64
    %v5731 = vpop.permute.xlu0 %5730
    %5732 = vrot.lane.b32.xlu0 %v3911, 64
    %v5733 = vpop.permute.xlu0 %5732
    %5734 = vrot.lane.b32.xlu0 %v3918, 64
    %v5735 = vpop.permute.xlu0 %5734
    %5736 = vrot.lane.b32.xlu0 %v3932, 64
    %v5737 = vpop.permute.xlu0 %5736
    %5738 = vrot.lane.b32.xlu0 %v3939, 64
    %v5739 = vpop.permute.xlu0 %5738
    %5740 = vrot.lane.b32.xlu0 %v3953, 64
    %v5741 = vpop.permute.xlu0 %5740
    %5742 = vrot.lane.b32.xlu0 %v3960, 64
    %v5743 = vpop.permute.xlu0 %5742
    %5744 = vrot.lane.b32.xlu0 %v3974, 64
    %v5745 = vpop.permute.xlu0 %5744
    %5746 = vrot.lane.b32.xlu0 %v3981, 64
    %v5747 = vpop.permute.xlu0 %5746
    %5748 = vrot.lane.b32.xlu0 %v3995, 64
    %v5749 = vpop.permute.xlu0 %5748
    %5750 = vrot.lane.b32.xlu0 %v4002, 64
    %v5751 = vpop.permute.xlu0 %5750
    %5752 = vrot.lane.b32.xlu0 %v4016, 64
    %v5753 = vpop.permute.xlu0 %5752
    %5754 = vrot.lane.b32.xlu0 %v4023, 64
    %v5755 = vpop.permute.xlu0 %5754
    %5756 = vrot.lane.b32.xlu0 %v4037, 64
    %v5757 = vpop.permute.xlu0 %5756
    %5758 = vrot.lane.b32.xlu0 %v4044, 64
    %v5759 = vpop.permute.xlu0 %5758
    %5760 = vrot.lane.b32.xlu0 %v4058, 64
    %v5761 = vpop.permute.xlu0 %5760
    %5762 = vrot.lane.b32.xlu0 %v4065, 64
    %v5763 = vpop.permute.xlu0 %5762
    %5764 = vrot.lane.b32.xlu0 %v4079, 64
    %v5765 = vpop.permute.xlu0 %5764
    %5766 = vrot.lane.b32.xlu0 %v4086, 64
    %v5767 = vpop.permute.xlu0 %5766
    %5768 = vrot.lane.b32.xlu0 %v4100, 64
    %v5769 = vpop.permute.xlu0 %5768
    %5770 = vrot.lane.b32.xlu0 %v4107, 64
    %v5771 = vpop.permute.xlu0 %5770
    %5772 = vrot.lane.b32.xlu0 %v4121, 64
    %v5773 = vpop.permute.xlu0 %5772
    %5774 = vrot.lane.b32.xlu0 %v4128, 64
    %v5775 = vpop.permute.xlu0 %5774
    %5776 = vrot.lane.b32.xlu0 %v4142, 64
    %v5777 = vpop.permute.xlu0 %5776
    %5778 = vrot.lane.b32.xlu0 %v4149, 64
    %v5779 = vpop.permute.xlu0 %5778
    %5780 = vrot.lane.b32.xlu0 %v4163, 64
    %v5781 = vpop.permute.xlu0 %5780
    %5782 = vrot.lane.b32.xlu0 %v4170, 64
    %v5783 = vpop.permute.xlu0 %5782
    %5784 = vrot.lane.b32.xlu0 %v4184, 64
    %v5785 = vpop.permute.xlu0 %5784
    %5786 = vrot.lane.b32.xlu0 %v4191, 64
    %v5787 = vpop.permute.xlu0 %5786
    %5788 = vrot.lane.b32.xlu0 %v4205, 64
    %v5789 = vpop.permute.xlu0 %5788
    %5790 = vrot.lane.b32.xlu0 %v4212, 64
    %v5791 = vpop.permute.xlu0 %5790
    %5792 = vrot.lane.b32.xlu0 %v4226, 64
    %v5793 = vpop.permute.xlu0 %5792
    %5794 = vrot.lane.b32.xlu0 %v4233, 64
    %v5795 = vpop.permute.xlu0 %5794
    %5796 = vrot.lane.b32.xlu0 %v4247, 64
    %v5797 = vpop.permute.xlu0 %5796
    %5798 = vrot.lane.b32.xlu0 %v4254, 64
    %v5799 = vpop.permute.xlu0 %5798
    %5800 = vrot.lane.b32.xlu0 %v4268, 64
    %v5801 = vpop.permute.xlu0 %5800
    %5802 = vrot.lane.b32.xlu0 %v4275, 64
    %v5803 = vpop.permute.xlu0 %5802
    %5804 = vrot.lane.b32.xlu0 %v4289, 64
    %v5805 = vpop.permute.xlu0 %5804
    %5806 = vrot.lane.b32.xlu0 %v4296, 64
    %v5807 = vpop.permute.xlu0 %5806
    %5808 = vrot.lane.b32.xlu0 %v4310, 64
    %v5809 = vpop.permute.xlu0 %5808
    %5810 = vrot.lane.b32.xlu0 %v4317, 64
    %v5811 = vpop.permute.xlu0 %5810
    %5812 = vrot.lane.b32.xlu0 %v4331, 64
    %v5813 = vpop.permute.xlu0 %5812
    %5814 = vrot.lane.b32.xlu0 %v4338, 64
    %v5815 = vpop.permute.xlu0 %5814
    %5816 = vrot.lane.b32.xlu0 %v4352, 64
    %v5817 = vpop.permute.xlu0 %5816
    %5818 = vrot.lane.b32.xlu0 %v4359, 64
    %v5819 = vpop.permute.xlu0 %5818
    %5820 = vrot.lane.b32.xlu0 %v4373, 64
    %v5821 = vpop.permute.xlu0 %5820
    %5822 = vrot.lane.b32.xlu0 %v4380, 64
    %v5823 = vpop.permute.xlu0 %5822
    %5824 = vrot.lane.b32.xlu0 %v4394, 64
    %v5825 = vpop.permute.xlu0 %5824
    %5826 = vrot.lane.b32.xlu0 %v4401, 64
    %v5827 = vpop.permute.xlu0 %5826
    %5828 = vrot.lane.b32.xlu0 %v4415, 64
    %v5829 = vpop.permute.xlu0 %5828
    %5830 = vrot.lane.b32.xlu0 %v4422, 64
    %v5831 = vpop.permute.xlu0 %5830
    %5832 = vrot.lane.b32.xlu0 %v4436, 64
    %v5833 = vpop.permute.xlu0 %5832
    %5834 = vrot.lane.b32.xlu0 %v4443, 64
    %v5835 = vpop.permute.xlu0 %5834
    %5836 = vrot.lane.b32.xlu0 %v4457, 64
    %v5837 = vpop.permute.xlu0 %5836
    %5838 = vrot.lane.b32.xlu0 %v4464, 64
    %v5839 = vpop.permute.xlu0 %5838
    %5840 = vrot.lane.b32.xlu0 %v4478, 64
    %v5841 = vpop.permute.xlu0 %5840
    %5842 = vrot.lane.b32.xlu0 %v4485, 64
    %v5843 = vpop.permute.xlu0 %5842
    %5844 = vrot.lane.b32.xlu0 %v4499, 64
    %v5845 = vpop.permute.xlu0 %5844
    %5846 = vrot.lane.b32.xlu0 %v4506, 64
    %v5847 = vpop.permute.xlu0 %5846
    %5848 = vrot.lane.b32.xlu0 %v4520, 64
    %v5849 = vpop.permute.xlu0 %5848
    %5850 = vrot.lane.b32.xlu0 %v4527, 64
    %v5851 = vpop.permute.xlu0 %5850
    %5852 = vrot.lane.b32.xlu0 %v4541, 64
    %v5853 = vpop.permute.xlu0 %5852
    %5854 = vrot.lane.b32.xlu0 %v4548, 64
    %v5855 = vpop.permute.xlu0 %5854
    %5856 = vrot.lane.b32.xlu0 %v4562, 64
    %v5857 = vpop.permute.xlu0 %5856
    %5858 = vrot.lane.b32.xlu0 %v4569, 64
    %v5859 = vpop.permute.xlu0 %5858
    %5860 = vrot.lane.b32.xlu0 %v4583, 64
    %v5861 = vpop.permute.xlu0 %5860
    %5862 = vrot.lane.b32.xlu0 %v4590, 64
    %v5863 = vpop.permute.xlu0 %5862
    %5864 = vrot.lane.b32.xlu0 %v4604, 64
    %v5865 = vpop.permute.xlu0 %5864
    %5866 = vrot.lane.b32.xlu0 %v4611, 64
    %v5867 = vpop.permute.xlu0 %5866
    %5868 = vrot.lane.b32.xlu0 %v4625, 64
    %v5869 = vpop.permute.xlu0 %5868
    %5870 = vrot.lane.b32.xlu0 %v4632, 64
    %v5871 = vpop.permute.xlu0 %5870
    %5872 = vrot.lane.b32.xlu0 %v4646, 64
    %v5873 = vpop.permute.xlu0 %5872
    %5874 = vrot.lane.b32.xlu0 %v4653, 64
    %v5875 = vpop.permute.xlu0 %5874
    %5876 = vrot.lane.b32.xlu0 %v4667, 64
    %v5877 = vpop.permute.xlu0 %5876
    %5878 = vrot.lane.b32.xlu0 %v4674, 64
    %v5879 = vpop.permute.xlu0 %5878
    %5880 = vrot.lane.b32.xlu0 %v4688, 64
    %v5881 = vpop.permute.xlu0 %5880
    %5882 = vrot.lane.b32.xlu0 %v4695, 64
    %v5883 = vpop.permute.xlu0 %5882
    %5884 = vrot.lane.b32.xlu0 %v4709, 64
    %v5885 = vpop.permute.xlu0 %5884
    %5886 = vrot.lane.b32.xlu0 %v4716, 64
    %v5887 = vpop.permute.xlu0 %5886
    %5888 = vrot.lane.b32.xlu0 %v4730, 64
    %v5889 = vpop.permute.xlu0 %5888
    %5890 = vrot.lane.b32.xlu0 %v4737, 64
    %v5891 = vpop.permute.xlu0 %5890
    %5892 = vrot.lane.b32.xlu0 %v4751, 64
    %v5893 = vpop.permute.xlu0 %5892
    %5894 = vrot.lane.b32.xlu0 %v4758, 64
    %v5895 = vpop.permute.xlu0 %5894
    %5896 = vrot.lane.b32.xlu0 %v4772, 64
    %v5897 = vpop.permute.xlu0 %5896
    %5898 = vrot.lane.b32.xlu0 %v4779, 64
    %v5899 = vpop.permute.xlu0 %5898
    %5900 = vrot.lane.b32.xlu0 %v4793, 64
    %v5901 = vpop.permute.xlu0 %5900
    %5902 = vrot.lane.b32.xlu0 %v4800, 64
    %v5903 = vpop.permute.xlu0 %5902
    %5904 = vrot.lane.b32.xlu0 %v4814, 64
    %v5905 = vpop.permute.xlu0 %5904
    %5906 = vrot.lane.b32.xlu0 %v4821, 64
    %v5907 = vpop.permute.xlu0 %5906
    %5908 = vrot.lane.b32.xlu0 %v4835, 64
    %v5909 = vpop.permute.xlu0 %5908
    %5910 = vrot.lane.b32.xlu0 %v4842, 64
    %v5911 = vpop.permute.xlu0 %5910
    %5912 = vrot.lane.b32.xlu0 %v4856, 64
    %v5913 = vpop.permute.xlu0 %5912
    %5914 = vrot.lane.b32.xlu0 %v4863, 64
    %v5915 = vpop.permute.xlu0 %5914
    %5916 = vrot.lane.b32.xlu0 %v4877, 64
    %v5917 = vpop.permute.xlu0 %5916
    %5918 = vrot.lane.b32.xlu0 %v4884, 64
    %v5919 = vpop.permute.xlu0 %5918
    %5920 = vrot.lane.b32.xlu0 %v4898, 64
    %v5921 = vpop.permute.xlu0 %5920
    %5922 = vrot.lane.b32.xlu0 %v4905, 64
    %v5923 = vpop.permute.xlu0 %5922
    %5924 = vrot.lane.b32.xlu0 %v4919, 64
    %v5925 = vpop.permute.xlu0 %5924
    %5926 = vrot.lane.b32.xlu0 %v4926, 64
    %v5927 = vpop.permute.xlu0 %5926
    %5928 = vrot.lane.b32.xlu0 %v4940, 64
    %v5929 = vpop.permute.xlu0 %5928
    %5930 = vrot.lane.b32.xlu0 %v4947, 64
    %v5931 = vpop.permute.xlu0 %5930
    %5932 = vrot.lane.b32.xlu0 %v4961, 64
    %v5933 = vpop.permute.xlu0 %5932
    %5934 = vrot.lane.b32.xlu0 %v4968, 64
    %v5935 = vpop.permute.xlu0 %5934
    %5936 = vrot.lane.b32.xlu0 %v4982, 64
    %v5937 = vpop.permute.xlu0 %5936
    %5938 = vrot.lane.b32.xlu0 %v4989, 64
    %v5939 = vpop.permute.xlu0 %5938
    %5940 = vrot.lane.b32.xlu0 %v5003, 64
    %v5941 = vpop.permute.xlu0 %5940
    %5942 = vrot.lane.b32.xlu0 %v5010, 64
    %v5943 = vpop.permute.xlu0 %5942
    %5944 = vrot.lane.b32.xlu0 %v5024, 64
    %v5945 = vpop.permute.xlu0 %5944
    %5946 = vrot.lane.b32.xlu0 %v5031, 64
    %v5947 = vpop.permute.xlu0 %5946
    %5948 = vrot.lane.b32.xlu0 %v5045, 64
    %v5949 = vpop.permute.xlu0 %5948
    %5950 = vrot.lane.b32.xlu0 %v5052, 64
    %v5951 = vpop.permute.xlu0 %5950
    %5952 = vrot.lane.b32.xlu0 %v5066, 64
    %v5953 = vpop.permute.xlu0 %5952
    %5954 = vrot.lane.b32.xlu0 %v5073, 64
    %v5955 = vpop.permute.xlu0 %5954
    %5956 = vrot.lane.b32.xlu0 %v5087, 64
    %v5957 = vpop.permute.xlu0 %5956
    %5958 = vrot.lane.b32.xlu0 %v5094, 64
    %v5959 = vpop.permute.xlu0 %5958
    %5960 = vrot.lane.b32.xlu0 %v5108, 64
    %v5961 = vpop.permute.xlu0 %5960
    %5962 = vrot.lane.b32.xlu0 %v5115, 64
    %v5963 = vpop.permute.xlu0 %5962
    %5964 = vrot.lane.b32.xlu0 %v5129, 64
    %v5965 = vpop.permute.xlu0 %5964
    %5966 = vrot.lane.b32.xlu0 %v5136, 64
    %v5967 = vpop.permute.xlu0 %5966
    %5968 = vrot.lane.b32.xlu0 %v5150, 64
    %v5969 = vpop.permute.xlu0 %5968
    %5970 = vrot.lane.b32.xlu0 %v5157, 64
    %v5971 = vpop.permute.xlu0 %5970
    %5972 = vrot.lane.b32.xlu0 %v5171, 64
    %v5973 = vpop.permute.xlu0 %5972
    %5974 = vrot.lane.b32.xlu0 %v5178, 64
    %v5975 = vpop.permute.xlu0 %5974
    %5976 = vrot.lane.b32.xlu0 %v5192, 64
    %v5977 = vpop.permute.xlu0 %5976
    %5978 = vrot.lane.b32.xlu0 %v5199, 64
    %v5979 = vpop.permute.xlu0 %5978
    %5980 = vrot.lane.b32.xlu0 %v5213, 64
    %v5981 = vpop.permute.xlu0 %5980
    %5982 = vrot.lane.b32.xlu0 %v5220, 64
    %v5983 = vpop.permute.xlu0 %5982
    %5984 = vrot.lane.b32.xlu0 %v5234, 64
    %v5985 = vpop.permute.xlu0 %5984
    %5986 = vrot.lane.b32.xlu0 %v5241, 64
    %v5987 = vpop.permute.xlu0 %5986
    %5988 = vrot.lane.b32.xlu0 %v5255, 64
    %v5989 = vpop.permute.xlu0 %5988
    %5990 = vrot.lane.b32.xlu0 %v5262, 64
    %v5991 = vpop.permute.xlu0 %5990
    %5992 = vrot.lane.b32.xlu0 %v5276, 64
    %v5993 = vpop.permute.xlu0 %5992
    %5994 = vrot.lane.b32.xlu0 %v5283, 64
    %v5995 = vpop.permute.xlu0 %5994
    %5996 = vrot.lane.b32.xlu0 %v5297, 64
    %v5997 = vpop.permute.xlu0 %5996
    %5998 = vrot.lane.b32.xlu0 %v5304, 64
    %v5999 = vpop.permute.xlu0 %5998
    %6000 = vrot.lane.b32.xlu0 %v5318, 64
    %v6001 = vpop.permute.xlu0 %6000
    %6002 = vrot.lane.b32.xlu0 %v5325, 64
    %v6003 = vpop.permute.xlu0 %6002
    %6004 = vrot.lane.b32.xlu0 %v5339, 64
    %v6005 = vpop.permute.xlu0 %6004
    %6006 = vrot.lane.b32.xlu0 %v5346, 64
    %v6007 = vpop.permute.xlu0 %6006
    %6008 = vrot.lane.b32.xlu0 %v5360, 64
    %v6009 = vpop.permute.xlu0 %6008
    %6010 = vrot.lane.b32.xlu0 %v5367, 64
    %v6011 = vpop.permute.xlu0 %6010
    %6012 = vrot.lane.b32.xlu0 %v5381, 64
    %v6013 = vpop.permute.xlu0 %6012
    %6014 = vrot.lane.b32.xlu0 %v5388, 64
    %v6015 = vpop.permute.xlu0 %6014
    %6016 = vrot.lane.b32.xlu0 %v5402, 64
    %v6017 = vpop.permute.xlu0 %6016
    %6018 = vrot.lane.b32.xlu0 %v5409, 64
    %v6019 = vpop.permute.xlu0 %6018
    %6020 = vrot.lane.b32.xlu0 %v5423, 64
    %v6021 = vpop.permute.xlu0 %6020
    %6022 = vrot.lane.b32.xlu0 %v5430, 64
    %v6023 = vpop.permute.xlu0 %6022
    %6024 = vrot.lane.b32.xlu0 %v5444, 64
    %v6025 = vpop.permute.xlu0 %6024
    %6026 = vrot.lane.b32.xlu0 %v5451, 64
    %v6027 = vpop.permute.xlu0 %6026
    %vm6028 = vcmask 523264
    %v6029 = vsel %vm6028, %v5645, %v5647
    %v6030 = vsel %vm6028, %v5649, %v5651
    %v6031 = vsel %vm6028, %v5653, %v5655
    %v6032 = vsel %vm6028, %v5657, %v5659
    %v6033 = vsel %vm6028, %v5661, %v5663
    %v6034 = vsel %vm6028, %v5665, %v5667
    %v6035 = vsel %vm6028, %v5669, %v5671
    %v6036 = vsel %vm6028, %v5673, %v5675
    %v6037 = vsel %vm6028, %v5677, %v5679
    %v6038 = vsel %vm6028, %v5681, %v5683
    %v6039 = vsel %vm6028, %v5685, %v5687
    %v6040 = vsel %vm6028, %v5689, %v5691
    %v6041 = vsel %vm6028, %v5693, %v5695
    %v6042 = vsel %vm6028, %v5697, %v5699
    %v6043 = vsel %vm6028, %v5701, %v5703
    %v6044 = vsel %vm6028, %v5705, %v5707
    %v6045 = vsel %vm6028, %v5709, %v5711
    %v6046 = vsel %vm6028, %v5713, %v5715
    %v6047 = vsel %vm6028, %v5717, %v5719
    %v6048 = vsel %vm6028, %v5721, %v5723
    %v6049 = vsel %vm6028, %v5725, %v5727
    %v6050 = vsel %vm6028, %v5729, %v5731
    %v6051 = vsel %vm6028, %v5733, %v5735
    %v6052 = vsel %vm6028, %v5737, %v5739
    %v6053 = vsel %vm6028, %v5741, %v5743
    %v6054 = vsel %vm6028, %v5745, %v5747
    %v6055 = vsel %vm6028, %v5749, %v5751
    %v6056 = vsel %vm6028, %v5753, %v5755
    %v6057 = vsel %vm6028, %v5757, %v5759
    %v6058 = vsel %vm6028, %v5761, %v5763
    %v6059 = vsel %vm6028, %v5765, %v5767
    %v6060 = vsel %vm6028, %v5769, %v5771
    %v6061 = vsel %vm6028, %v5773, %v5775
    %v6062 = vsel %vm6028, %v5777, %v5779
    %v6063 = vsel %vm6028, %v5781, %v5783
    %v6064 = vsel %vm6028, %v5785, %v5787
    %v6065 = vsel %vm6028, %v5789, %v5791
    %v6066 = vsel %vm6028, %v5793, %v5795
    %v6067 = vsel %vm6028, %v5797, %v5799
    %v6068 = vsel %vm6028, %v5801, %v5803
    %v6069 = vsel %vm6028, %v5805, %v5807
    %v6070 = vsel %vm6028, %v5809, %v5811
    %v6071 = vsel %vm6028, %v5813, %v5815
    %v6072 = vsel %vm6028, %v5817, %v5819
    %v6073 = vsel %vm6028, %v5821, %v5823
    %v6074 = vsel %vm6028, %v5825, %v5827
    %v6075 = vsel %vm6028, %v5829, %v5831
    %v6076 = vsel %vm6028, %v5833, %v5835
    %v6077 = vsel %vm6028, %v5837, %v5839
    %v6078 = vsel %vm6028, %v5841, %v5843
    %v6079 = vsel %vm6028, %v5845, %v5847
    %v6080 = vsel %vm6028, %v5849, %v5851
    %v6081 = vsel %vm6028, %v5853, %v5855
    %v6082 = vsel %vm6028, %v5857, %v5859
    %v6083 = vsel %vm6028, %v5861, %v5863
    %v6084 = vsel %vm6028, %v5865, %v5867
    %v6085 = vsel %vm6028, %v5869, %v5871
    %v6086 = vsel %vm6028, %v5873, %v5875
    %v6087 = vsel %vm6028, %v5877, %v5879
    %v6088 = vsel %vm6028, %v5881, %v5883
    %v6089 = vsel %vm6028, %v5885, %v5887
    %v6090 = vsel %vm6028, %v5889, %v5891
    %v6091 = vsel %vm6028, %v5893, %v5895
    %v6092 = vsel %vm6028, %v5897, %v5899
    %v6093 = vsel %vm6028, %v5901, %v5903
    %v6094 = vsel %vm6028, %v5905, %v5907
    %v6095 = vsel %vm6028, %v5909, %v5911
    %v6096 = vsel %vm6028, %v5913, %v5915
    %v6097 = vsel %vm6028, %v5917, %v5919
    %v6098 = vsel %vm6028, %v5921, %v5923
    %v6099 = vsel %vm6028, %v5925, %v5927
    %v6100 = vsel %vm6028, %v5929, %v5931
    %v6101 = vsel %vm6028, %v5933, %v5935
    %v6102 = vsel %vm6028, %v5937, %v5939
    %v6103 = vsel %vm6028, %v5941, %v5943
    %v6104 = vsel %vm6028, %v5945, %v5947
    %v6105 = vsel %vm6028, %v5949, %v5951
    %v6106 = vsel %vm6028, %v5953, %v5955
    %v6107 = vsel %vm6028, %v5957, %v5959
    %v6108 = vsel %vm6028, %v5961, %v5963
    %v6109 = vsel %vm6028, %v5965, %v5967
    %v6110 = vsel %vm6028, %v5969, %v5971
    %v6111 = vsel %vm6028, %v5973, %v5975
    %v6112 = vsel %vm6028, %v5977, %v5979
    %v6113 = vsel %vm6028, %v5981, %v5983
    %v6114 = vsel %vm6028, %v5985, %v5987
    %v6115 = vsel %vm6028, %v5989, %v5991
    %v6116 = vsel %vm6028, %v5993, %v5995
    %v6117 = vsel %vm6028, %v5997, %v5999
    %v6118 = vsel %vm6028, %v6001, %v6003
    %v6119 = vsel %vm6028, %v6005, %v6007
    %v6120 = vsel %vm6028, %v6009, %v6011
    %v6121 = vsel %vm6028, %v6013, %v6015
    %v6122 = vsel %vm6028, %v6017, %v6019
    %v6123 = vsel %vm6028, %v6021, %v6023
    %v6124 = vsel %vm6028, %v6025, %v6027
    %v6317 = vmax.f32 %v3442, %v6029
    %v6318 = vmax.f32 %v3449, %v5647
    %v6319 = vmax.f32 %v3463, %v6030
    %v6320 = vmax.f32 %v3470, %v5651
    %v6321 = vmax.f32 %v3484, %v6031
    %v6322 = vmax.f32 %v3491, %v5655
    %v6323 = vmax.f32 %v3505, %v6032
    %v6324 = vmax.f32 %v3512, %v5659
    %v6325 = vmax.f32 %v3526, %v6033
    %v6326 = vmax.f32 %v3533, %v5663
    %v6327 = vmax.f32 %v3547, %v6034
    %v6328 = vmax.f32 %v3554, %v5667
    %v6329 = vmax.f32 %v3568, %v6035
    %v6330 = vmax.f32 %v3575, %v5671
    %v6331 = vmax.f32 %v3589, %v6036
    %v6332 = vmax.f32 %v3596, %v5675
    %v6333 = vmax.f32 %v3610, %v6037
    %v6334 = vmax.f32 %v3617, %v5679
    %v6335 = vmax.f32 %v3631, %v6038
    %v6336 = vmax.f32 %v3638, %v5683
    %v6337 = vmax.f32 %v3652, %v6039
    %v6338 = vmax.f32 %v3659, %v5687
    %v6339 = vmax.f32 %v3673, %v6040
    %v6340 = vmax.f32 %v3680, %v5691
    %v6341 = vmax.f32 %v3694, %v6041
    %v6342 = vmax.f32 %v3701, %v5695
    %v6343 = vmax.f32 %v3715, %v6042
    %v6344 = vmax.f32 %v3722, %v5699
    %v6345 = vmax.f32 %v3736, %v6043
    %v6346 = vmax.f32 %v3743, %v5703
    %v6347 = vmax.f32 %v3757, %v6044
    %v6348 = vmax.f32 %v3764, %v5707
    %v6349 = vmax.f32 %v3778, %v6045
    %v6350 = vmax.f32 %v3785, %v5711
    %v6351 = vmax.f32 %v3799, %v6046
    %v6352 = vmax.f32 %v3806, %v5715
    %v6353 = vmax.f32 %v3820, %v6047
    %v6354 = vmax.f32 %v3827, %v5719
    %v6355 = vmax.f32 %v3841, %v6048
    %v6356 = vmax.f32 %v3848, %v5723
    %v6357 = vmax.f32 %v3862, %v6049
    %v6358 = vmax.f32 %v3869, %v5727
    %v6359 = vmax.f32 %v3883, %v6050
    %v6360 = vmax.f32 %v3890, %v5731
    %v6361 = vmax.f32 %v3904, %v6051
    %v6362 = vmax.f32 %v3911, %v5735
    %v6363 = vmax.f32 %v3925, %v6052
    %v6364 = vmax.f32 %v3932, %v5739
    %v6365 = vmax.f32 %v3946, %v6053
    %v6366 = vmax.f32 %v3953, %v5743
    %v6367 = vmax.f32 %v3967, %v6054
    %v6368 = vmax.f32 %v3974, %v5747
    %v6369 = vmax.f32 %v3988, %v6055
    %v6370 = vmax.f32 %v3995, %v5751
    %v6371 = vmax.f32 %v4009, %v6056
    %v6372 = vmax.f32 %v4016, %v5755
    %v6373 = vmax.f32 %v4030, %v6057
    %v6374 = vmax.f32 %v4037, %v5759
    %v6375 = vmax.f32 %v4051, %v6058
    %v6376 = vmax.f32 %v4058, %v5763
    %v6377 = vmax.f32 %v4072, %v6059
    %v6378 = vmax.f32 %v4079, %v5767
    %v6379 = vmax.f32 %v4093, %v6060
    %v6380 = vmax.f32 %v4100, %v5771
    %v6381 = vmax.f32 %v4114, %v6061
    %v6382 = vmax.f32 %v4121, %v5775
    %v6383 = vmax.f32 %v4135, %v6062
    %v6384 = vmax.f32 %v4142, %v5779
    %v6385 = vmax.f32 %v4156, %v6063
    %v6386 = vmax.f32 %v4163, %v5783
    %v6387 = vmax.f32 %v4177, %v6064
    %v6388 = vmax.f32 %v4184, %v5787
    %v6389 = vmax.f32 %v4198, %v6065
    %v6390 = vmax.f32 %v4205, %v5791
    %v6391 = vmax.f32 %v4219, %v6066
    %v6392 = vmax.f32 %v4226, %v5795
    %v6393 = vmax.f32 %v4240, %v6067
    %v6394 = vmax.f32 %v4247, %v5799
    %v6395 = vmax.f32 %v4261, %v6068
    %v6396 = vmax.f32 %v4268, %v5803
    %v6397 = vmax.f32 %v4282, %v6069
    %v6398 = vmax.f32 %v4289, %v5807
    %v6399 = vmax.f32 %v4303, %v6070
    %v6400 = vmax.f32 %v4310, %v5811
    %v6401 = vmax.f32 %v4324, %v6071
    %v6402 = vmax.f32 %v4331, %v5815
    %v6403 = vmax.f32 %v4345, %v6072
    %v6404 = vmax.f32 %v4352, %v5819
    %v6405 = vmax.f32 %v4366, %v6073
    %v6406 = vmax.f32 %v4373, %v5823
    %v6407 = vmax.f32 %v4387, %v6074
    %v6408 = vmax.f32 %v4394, %v5827
    %v6409 = vmax.f32 %v4408, %v6075
    %v6410 = vmax.f32 %v4415, %v5831
    %v6411 = vmax.f32 %v4429, %v6076
    %v6412 = vmax.f32 %v4436, %v5835
    %v6413 = vmax.f32 %v4450, %v6077
    %v6414 = vmax.f32 %v4457, %v5839
    %v6415 = vmax.f32 %v4471, %v6078
    %v6416 = vmax.f32 %v4478, %v5843
    %v6417 = vmax.f32 %v4492, %v6079
    %v6418 = vmax.f32 %v4499, %v5847
    %v6419 = vmax.f32 %v4513, %v6080
    %v6420 = vmax.f32 %v4520, %v5851
    %v6421 = vmax.f32 %v4534, %v6081
    %v6422 = vmax.f32 %v4541, %v5855
    %v6423 = vmax.f32 %v4555, %v6082
    %v6424 = vmax.f32 %v4562, %v5859
    %v6425 = vmax.f32 %v4576, %v6083
    %v6426 = vmax.f32 %v4583, %v5863
    %v6427 = vmax.f32 %v4597, %v6084
    %v6428 = vmax.f32 %v4604, %v5867
    %v6429 = vmax.f32 %v4618, %v6085
    %v6430 = vmax.f32 %v4625, %v5871
    %v6431 = vmax.f32 %v4639, %v6086
    %v6432 = vmax.f32 %v4646, %v5875
    %v6433 = vmax.f32 %v4660, %v6087
    %v6434 = vmax.f32 %v4667, %v5879
    %v6435 = vmax.f32 %v4681, %v6088
    %v6436 = vmax.f32 %v4688, %v5883
    %v6437 = vmax.f32 %v4702, %v6089
    %v6438 = vmax.f32 %v4709, %v5887
    %v6439 = vmax.f32 %v4723, %v6090
    %v6440 = vmax.f32 %v4730, %v5891
    %v6441 = vmax.f32 %v4744, %v6091
    %v6442 = vmax.f32 %v4751, %v5895
    %v6443 = vmax.f32 %v4765, %v6092
    %v6444 = vmax.f32 %v4772, %v5899
    %v6445 = vmax.f32 %v4786, %v6093
    %v6446 = vmax.f32 %v4793, %v5903
    %v6447 = vmax.f32 %v4807, %v6094
    %v6448 = vmax.f32 %v4814, %v5907
    %v6449 = vmax.f32 %v4828, %v6095
    %v6450 = vmax.f32 %v4835, %v5911
    %v6451 = vmax.f32 %v4849, %v6096
    %v6452 = vmax.f32 %v4856, %v5915
    %v6453 = vmax.f32 %v4870, %v6097
    %v6454 = vmax.f32 %v4877, %v5919
    %v6455 = vmax.f32 %v4891, %v6098
    %v6456 = vmax.f32 %v4898, %v5923
    %v6457 = vmax.f32 %v4912, %v6099
    %v6458 = vmax.f32 %v4919, %v5927
    %v6459 = vmax.f32 %v4933, %v6100
    %v6460 = vmax.f32 %v4940, %v5931
    %v6461 = vmax.f32 %v4954, %v6101
    %v6462 = vmax.f32 %v4961, %v5935
    %v6463 = vmax.f32 %v4975, %v6102
    %v6464 = vmax.f32 %v4982, %v5939
    %v6465 = vmax.f32 %v4996, %v6103
    %v6466 = vmax.f32 %v5003, %v5943
    %v6467 = vmax.f32 %v5017, %v6104
    %v6468 = vmax.f32 %v5024, %v5947
    %v6469 = vmax.f32 %v5038, %v6105
    %v6470 = vmax.f32 %v5045, %v5951
    %v6471 = vmax.f32 %v5059, %v6106
    %v6472 = vmax.f32 %v5066, %v5955
    %v6473 = vmax.f32 %v5080, %v6107
    %v6474 = vmax.f32 %v5087, %v5959
    %v6475 = vmax.f32 %v5101, %v6108
    %v6476 = vmax.f32 %v5108, %v5963
    %v6477 = vmax.f32 %v5122, %v6109
    %v6478 = vmax.f32 %v5129, %v5967
    %v6479 = vmax.f32 %v5143, %v6110
    %v6480 = vmax.f32 %v5150, %v5971
    %v6481 = vmax.f32 %v5164, %v6111
    %v6482 = vmax.f32 %v5171, %v5975
    %v6483 = vmax.f32 %v5185, %v6112
    %v6484 = vmax.f32 %v5192, %v5979
    %v6485 = vmax.f32 %v5206, %v6113
    %v6486 = vmax.f32 %v5213, %v5983
    %v6487 = vmax.f32 %v5227, %v6114
    %v6488 = vmax.f32 %v5234, %v5987
    %v6489 = vmax.f32 %v5248, %v6115
    %v6490 = vmax.f32 %v5255, %v5991
    %v6491 = vmax.f32 %v5269, %v6116
    %v6492 = vmax.f32 %v5276, %v5995
    %v6493 = vmax.f32 %v5290, %v6117
    %v6494 = vmax.f32 %v5297, %v5999
    %v6495 = vmax.f32 %v5311, %v6118
    %v6496 = vmax.f32 %v5318, %v6003
    %v6497 = vmax.f32 %v5332, %v6119
    %v6498 = vmax.f32 %v5339, %v6007
    %v6499 = vmax.f32 %v5353, %v6120
    %v6500 = vmax.f32 %v5360, %v6011
    %v6501 = vmax.f32 %v5374, %v6121
    %v6502 = vmax.f32 %v5381, %v6015
    %v6503 = vmax.f32 %v5395, %v6122
    %v6504 = vmax.f32 %v5402, %v6019
    %v6505 = vmax.f32 %v5416, %v6123
    %v6506 = vmax.f32 %v5423, %v6023
    %v6507 = vmax.f32 %v5437, %v6124
    %v6508 = vmax.f32 %v5444, %v6027
    %v6509 = vpack.c.bf16 %v6317, %v6317
    %v6510 = vpack.c.bf16 %v6318, %v6318
    %v6511 = vpack.c.bf16 %v6319, %v6319
    %v6512 = vpack.c.bf16 %v6320, %v6320
    %v6513 = vpack.c.bf16 %v6321, %v6321
    %v6514 = vpack.c.bf16 %v6322, %v6322
    %v6515 = vpack.c.bf16 %v6323, %v6323
    %v6516 = vpack.c.bf16 %v6324, %v6324
    %v6517 = vpack.c.bf16 %v6325, %v6325
    %v6518 = vpack.c.bf16 %v6326, %v6326
    %v6519 = vpack.c.bf16 %v6327, %v6327
    %v6520 = vpack.c.bf16 %v6328, %v6328
    %v6521 = vpack.c.bf16 %v6329, %v6329
    %v6522 = vpack.c.bf16 %v6330, %v6330
    %v6523 = vpack.c.bf16 %v6331, %v6331
    %v6524 = vpack.c.bf16 %v6332, %v6332
    %v6525 = vpack.c.bf16 %v6341, %v6341
    %v6526 = vpack.c.bf16 %v6342, %v6342
    %v6527 = vpack.c.bf16 %v6343, %v6343
    %v6528 = vpack.c.bf16 %v6344, %v6344
    %v6529 = vpack.c.bf16 %v6345, %v6345
    %v6530 = vpack.c.bf16 %v6346, %v6346
    %v6531 = vpack.c.bf16 %v6347, %v6347
    %v6532 = vpack.c.bf16 %v6348, %v6348
    %v6533 = vpack.c.bf16 %v6349, %v6349
    %v6534 = vpack.c.bf16 %v6350, %v6350
    %v6535 = vpack.c.bf16 %v6351, %v6351
    %v6536 = vpack.c.bf16 %v6352, %v6352
    %v6537 = vpack.c.bf16 %v6353, %v6353
    %v6538 = vpack.c.bf16 %v6354, %v6354
    %v6539 = vpack.c.bf16 %v6355, %v6355
    %v6540 = vpack.c.bf16 %v6356, %v6356
    %v6541 = vpack.c.bf16 %v6365, %v6365
    %v6542 = vpack.c.bf16 %v6366, %v6366
    %v6543 = vpack.c.bf16 %v6367, %v6367
    %v6544 = vpack.c.bf16 %v6368, %v6368
    %v6545 = vpack.c.bf16 %v6369, %v6369
    %v6546 = vpack.c.bf16 %v6370, %v6370
    %v6547 = vpack.c.bf16 %v6371, %v6371
    %v6548 = vpack.c.bf16 %v6372, %v6372
    %v6549 = vpack.c.bf16 %v6373, %v6373
    %v6550 = vpack.c.bf16 %v6374, %v6374
    %v6551 = vpack.c.bf16 %v6375, %v6375
    %v6552 = vpack.c.bf16 %v6376, %v6376
    %v6553 = vpack.c.bf16 %v6377, %v6377
    %v6554 = vpack.c.bf16 %v6378, %v6378
    %v6555 = vpack.c.bf16 %v6379, %v6379
    %v6556 = vpack.c.bf16 %v6380, %v6380
    %v6557 = vpack.c.bf16 %v6389, %v6389
    %v6558 = vpack.c.bf16 %v6390, %v6390
    %v6559 = vpack.c.bf16 %v6391, %v6391
    %v6560 = vpack.c.bf16 %v6392, %v6392
    %v6561 = vpack.c.bf16 %v6393, %v6393
    %v6562 = vpack.c.bf16 %v6394, %v6394
    %v6563 = vpack.c.bf16 %v6395, %v6395
    %v6564 = vpack.c.bf16 %v6396, %v6396
    %v6565 = vpack.c.bf16 %v6397, %v6397
    %v6566 = vpack.c.bf16 %v6398, %v6398
    %v6567 = vpack.c.bf16 %v6399, %v6399
    %v6568 = vpack.c.bf16 %v6400, %v6400
    %v6569 = vpack.c.bf16 %v6401, %v6401
    %v6570 = vpack.c.bf16 %v6402, %v6402
    %v6571 = vpack.c.bf16 %v6403, %v6403
    %v6572 = vpack.c.bf16 %v6404, %v6404
    %v6573 = vpack.c.bf16 %v6413, %v6413
    %v6574 = vpack.c.bf16 %v6414, %v6414
    %v6575 = vpack.c.bf16 %v6415, %v6415
    %v6576 = vpack.c.bf16 %v6416, %v6416
    %v6577 = vpack.c.bf16 %v6417, %v6417
    %v6578 = vpack.c.bf16 %v6418, %v6418
    %v6579 = vpack.c.bf16 %v6419, %v6419
    %v6580 = vpack.c.bf16 %v6420, %v6420
    %v6581 = vpack.c.bf16 %v6421, %v6421
    %v6582 = vpack.c.bf16 %v6422, %v6422
    %v6583 = vpack.c.bf16 %v6423, %v6423
    %v6584 = vpack.c.bf16 %v6424, %v6424
    %v6585 = vpack.c.bf16 %v6425, %v6425
    %v6586 = vpack.c.bf16 %v6426, %v6426
    %v6587 = vpack.c.bf16 %v6427, %v6427
    %v6588 = vpack.c.bf16 %v6428, %v6428
    %v6589 = vpack.c.bf16 %v6437, %v6437
    %v6590 = vpack.c.bf16 %v6438, %v6438
    %v6591 = vpack.c.bf16 %v6439, %v6439
    %v6592 = vpack.c.bf16 %v6440, %v6440
    %v6593 = vpack.c.bf16 %v6441, %v6441
    %v6594 = vpack.c.bf16 %v6442, %v6442
    %v6595 = vpack.c.bf16 %v6443, %v6443
    %v6596 = vpack.c.bf16 %v6444, %v6444
    %v6597 = vpack.c.bf16 %v6445, %v6445
    %v6598 = vpack.c.bf16 %v6446, %v6446
    %v6599 = vpack.c.bf16 %v6447, %v6447
    %v6600 = vpack.c.bf16 %v6448, %v6448
    %v6601 = vpack.c.bf16 %v6449, %v6449
    %v6602 = vpack.c.bf16 %v6450, %v6450
    %v6603 = vpack.c.bf16 %v6451, %v6451
    %v6604 = vpack.c.bf16 %v6452, %v6452
    %v6605 = vpack.c.bf16 %v6461, %v6461
    %v6606 = vpack.c.bf16 %v6462, %v6462
    %v6607 = vpack.c.bf16 %v6463, %v6463
    %v6608 = vpack.c.bf16 %v6464, %v6464
    %v6609 = vpack.c.bf16 %v6465, %v6465
    %v6610 = vpack.c.bf16 %v6466, %v6466
    %v6611 = vpack.c.bf16 %v6467, %v6467
    %v6612 = vpack.c.bf16 %v6468, %v6468
    %v6613 = vpack.c.bf16 %v6469, %v6469
    %v6614 = vpack.c.bf16 %v6470, %v6470
    %v6615 = vpack.c.bf16 %v6471, %v6471
    %v6616 = vpack.c.bf16 %v6472, %v6472
    %v6617 = vpack.c.bf16 %v6473, %v6473
    %v6618 = vpack.c.bf16 %v6474, %v6474
    %v6619 = vpack.c.bf16 %v6475, %v6475
    %v6620 = vpack.c.bf16 %v6476, %v6476
    %v6621 = vpack.c.bf16 %v6485, %v6485
    %v6622 = vpack.c.bf16 %v6486, %v6486
    %v6623 = vpack.c.bf16 %v6487, %v6487
    %v6624 = vpack.c.bf16 %v6488, %v6488
    %v6625 = vpack.c.bf16 %v6489, %v6489
    %v6626 = vpack.c.bf16 %v6490, %v6490
    %v6627 = vpack.c.bf16 %v6491, %v6491
    %v6628 = vpack.c.bf16 %v6492, %v6492
    %v6629 = vpack.c.bf16 %v6493, %v6493
    %v6630 = vpack.c.bf16 %v6494, %v6494
    %v6631 = vpack.c.bf16 %v6495, %v6495
    %v6632 = vpack.c.bf16 %v6496, %v6496
    %v6633 = vpack.c.bf16 %v6497, %v6497
    %v6634 = vpack.c.bf16 %v6498, %v6498
    %v6635 = vpack.c.bf16 %v6499, %v6499
    %v6636 = vpack.c.bf16 %v6500, %v6500
    %v6637 = vld [vmem:[#allocation4] sm:$0xff]
    %v6638 = vld [vmem:[#allocation4 + $0x8] sm:$0xff]
    %v6639 = vld [vmem:[#allocation4 + $0x10] sm:$0xff]
    %v6640 = vld [vmem:[#allocation4 + $0x18] sm:$0xff]
    %v6641 = vld [vmem:[#allocation4 + $0x20] sm:$0xff]
    %v6642 = vld [vmem:[#allocation4 + $0x28] sm:$0xff]
    %v6643 = vld [vmem:[#allocation4 + $0x30] sm:$0xff]
    %v6644 = vld [vmem:[#allocation4 + $0x38] sm:$0xff]
    %v6645 = vld [vmem:[#allocation4 + $0x40] sm:$0xff]
    %v6646 = vld [vmem:[#allocation4 + $0x48] sm:$0xff]
    %v6647 = vld [vmem:[#allocation4 + $0x50] sm:$0xff]
    %v6648 = vld [vmem:[#allocation4 + $0x58] sm:$0xff]
    %v6649 = vld [vmem:[#allocation4 + $0x60] sm:$0xff]
    %v6650 = vld [vmem:[#allocation4 + $0x68] sm:$0xff]
    %v6651 = vld [vmem:[#allocation4 + $0x70] sm:$0xff]
    %v6652 = vld [vmem:[#allocation4 + $0x78] sm:$0xff]
    %v6653 = vld [vmem:[#allocation4 + $0x80] sm:$0xff]
    %v6654 = vld [vmem:[#allocation4 + $0x88] sm:$0xff]
    %v6655 = vld [vmem:[#allocation4 + $0x90] sm:$0xff]
    %v6656 = vld [vmem:[#allocation4 + $0x98] sm:$0xff]
    %v6657 = vld [vmem:[#allocation4 + $0xa0] sm:$0xff]
    %v6658 = vld [vmem:[#allocation4 + $0xa8] sm:$0xff]
    %v6659 = vld [vmem:[#allocation4 + $0xb0] sm:$0xff]
    %v6660 = vld [vmem:[#allocation4 + $0xb8] sm:$0xff]
    %v6661 = vpack.c.bf16 %v6333, %v6333
    %v6662 = vpack.c.bf16 %v6334, %v6334
    %v6663 = vpack.c.bf16 %v6357, %v6357
    %v6664 = vpack.c.bf16 %v6358, %v6358
    %v6665 = vpack.c.bf16 %v6381, %v6381
    %v6666 = vpack.c.bf16 %v6382, %v6382
    %v6667 = vpack.c.bf16 %v6405, %v6405
    %v6668 = vpack.c.bf16 %v6406, %v6406
    %v6669 = vpack.c.bf16 %v6429, %v6429
    %v6670 = vpack.c.bf16 %v6430, %v6430
    %v6671 = vpack.c.bf16 %v6453, %v6453
    %v6672 = vpack.c.bf16 %v6454, %v6454
    %v6673 = vpack.c.bf16 %v6477, %v6477
    %v6674 = vpack.c.bf16 %v6478, %v6478
    %v6675 = vpack.c.bf16 %v6501, %v6501
    %v6676 = vpack.c.bf16 %v6502, %v6502
    %s6677 = scalar_lea.vmem [#allocation4], 192
    %v6678 = vld [vmem:[%s6677] sm:$0xff]
    %v6679 = vld [vmem:[%s6677 + $0x8] sm:$0xff]
    %v6680 = vld [vmem:[%s6677 + $0x10] sm:$0xff]
    %v6681 = vld [vmem:[%s6677 + $0x18] sm:$0xff]
    %v6682 = vld [vmem:[%s6677 + $0x20] sm:$0xff]
    %v6683 = vld [vmem:[%s6677 + $0x28] sm:$0xff]
    %v6684 = vld [vmem:[%s6677 + $0x30] sm:$0xff]
    %v6685 = vld [vmem:[%s6677 + $0x38] sm:$0xff]
    %v6686 = vld [vmem:[%s6677 + $0x40] sm:$0xff]
    %v6687 = vld [vmem:[%s6677 + $0x48] sm:$0xff]
    %v6688 = vld [vmem:[%s6677 + $0x50] sm:$0xff]
    %v6689 = vld [vmem:[%s6677 + $0x58] sm:$0xff]
    %v6690 = vld [vmem:[%s6677 + $0x60] sm:$0xff]
    %v6691 = vld [vmem:[%s6677 + $0x68] sm:$0xff]
    %v6692 = vld [vmem:[%s6677 + $0x70] sm:$0xff]
    %v6693 = vld [vmem:[%s6677 + $0x78] sm:$0xff]
    %v6694 = vld [vmem:[%s6677 + $0x80] sm:$0xff]
    %v6695 = vld [vmem:[%s6677 + $0x88] sm:$0xff]
    %v6696 = vld [vmem:[%s6677 + $0x90] sm:$0xff]
    %v6697 = vld [vmem:[%s6677 + $0x98] sm:$0xff]
    %v6698 = vld [vmem:[%s6677 + $0xa0] sm:$0xff]
    %v6699 = vld [vmem:[%s6677 + $0xa8] sm:$0xff]
    %v6700 = vld [vmem:[%s6677 + $0xb0] sm:$0xff]
    %v6701 = vld [vmem:[%s6677 + $0xb8] sm:$0xff]
    %v6830 = vunpack.c.l.b16 %v6511
    %v6831 = vunpack.c.l.b16 %v6512
    %v6832 = vunpack.c.l.b16 %v6513
    %v6833 = vunpack.c.l.b16 %v6514
    %v6834 = vunpack.c.l.b16 %v6515
    %v6835 = vunpack.c.l.b16 %v6516
    %v6836 = vunpack.c.l.b16 %v6517
    %v6837 = vunpack.c.l.b16 %v6518
    %v6838 = vunpack.c.l.b16 %v6519
    %v6839 = vunpack.c.l.b16 %v6520
    %v6840 = vunpack.c.l.b16 %v6521
    %v6841 = vunpack.c.l.b16 %v6522
    %v6842 = vunpack.c.l.b16 %v6523
    %v6843 = vunpack.c.l.b16 %v6524
    %v6844 = vunpack.c.l.b16 %v6661
    %v6845 = vunpack.c.l.b16 %v6662
    %v6846 = vunpack.c.l.b16 %v6527
    %v6847 = vunpack.c.l.b16 %v6528
    %v6848 = vunpack.c.l.b16 %v6529
    %v6849 = vunpack.c.l.b16 %v6530
    %v6850 = vunpack.c.l.b16 %v6531
    %v6851 = vunpack.c.l.b16 %v6532
    %v6852 = vunpack.c.l.b16 %v6533
    %v6853 = vunpack.c.l.b16 %v6534
    %v6854 = vunpack.c.l.b16 %v6535
    %v6855 = vunpack.c.l.b16 %v6536
    %v6856 = vunpack.c.l.b16 %v6537
    %v6857 = vunpack.c.l.b16 %v6538
    %v6858 = vunpack.c.l.b16 %v6539
    %v6859 = vunpack.c.l.b16 %v6540
    %v6860 = vunpack.c.l.b16 %v6663
    %v6861 = vunpack.c.l.b16 %v6664
    %v6862 = vunpack.c.l.b16 %v6543
    %v6863 = vunpack.c.l.b16 %v6544
    %v6864 = vunpack.c.l.b16 %v6545
    %v6865 = vunpack.c.l.b16 %v6546
    %v6866 = vunpack.c.l.b16 %v6547
    %v6867 = vunpack.c.l.b16 %v6548
    %v6868 = vunpack.c.l.b16 %v6549
    %v6869 = vunpack.c.l.b16 %v6550
    %v6870 = vunpack.c.l.b16 %v6551
    %v6871 = vunpack.c.l.b16 %v6552
    %v6872 = vunpack.c.l.b16 %v6553
    %v6873 = vunpack.c.l.b16 %v6554
    %v6874 = vunpack.c.l.b16 %v6555
    %v6875 = vunpack.c.l.b16 %v6556
    %v6876 = vunpack.c.l.b16 %v6665
    %v6877 = vunpack.c.l.b16 %v6666
    %v6878 = vunpack.c.l.b16 %v6559
    %v6879 = vunpack.c.l.b16 %v6560
    %v6880 = vunpack.c.l.b16 %v6561
    %v6881 = vunpack.c.l.b16 %v6562
    %v6882 = vunpack.c.l.b16 %v6563
    %v6883 = vunpack.c.l.b16 %v6564
    %v6884 = vunpack.c.l.b16 %v6565
    %v6885 = vunpack.c.l.b16 %v6566
    %v6886 = vunpack.c.l.b16 %v6567
    %v6887 = vunpack.c.l.b16 %v6568
    %v6888 = vunpack.c.l.b16 %v6569
    %v6889 = vunpack.c.l.b16 %v6570
    %v6890 = vunpack.c.l.b16 %v6571
    %v6891 = vunpack.c.l.b16 %v6572
    %v6892 = vunpack.c.l.b16 %v6667
    %v6893 = vunpack.c.l.b16 %v6668
    %v6894 = vunpack.c.l.b16 %v6575
    %v6895 = vunpack.c.l.b16 %v6576
    %v6896 = vunpack.c.l.b16 %v6577
    %v6897 = vunpack.c.l.b16 %v6578
    %v6898 = vunpack.c.l.b16 %v6579
    %v6899 = vunpack.c.l.b16 %v6580
    %v6900 = vunpack.c.l.b16 %v6581
    %v6901 = vunpack.c.l.b16 %v6582
    %v6902 = vunpack.c.l.b16 %v6583
    %v6903 = vunpack.c.l.b16 %v6584
    %v6904 = vunpack.c.l.b16 %v6585
    %v6905 = vunpack.c.l.b16 %v6586
    %v6906 = vunpack.c.l.b16 %v6587
    %v6907 = vunpack.c.l.b16 %v6588
    %v6908 = vunpack.c.l.b16 %v6669
    %v6909 = vunpack.c.l.b16 %v6670
    %v6910 = vunpack.c.l.b16 %v6591
    %v6911 = vunpack.c.l.b16 %v6592
    %v6912 = vunpack.c.l.b16 %v6593
    %v6913 = vunpack.c.l.b16 %v6594
    %v6914 = vunpack.c.l.b16 %v6595
    %v6915 = vunpack.c.l.b16 %v6596
    %v6916 = vunpack.c.l.b16 %v6597
    %v6917 = vunpack.c.l.b16 %v6598
    %v6918 = vunpack.c.l.b16 %v6599
    %v6919 = vunpack.c.l.b16 %v6600
    %v6920 = vunpack.c.l.b16 %v6601
    %v6921 = vunpack.c.l.b16 %v6602
    %v6922 = vunpack.c.l.b16 %v6603
    %v6923 = vunpack.c.l.b16 %v6604
    %v6924 = vunpack.c.l.b16 %v6671
    %v6925 = vunpack.c.l.b16 %v6672
    %v6926 = vunpack.c.l.b16 %v6607
    %v6927 = vunpack.c.l.b16 %v6608
    %v6928 = vunpack.c.l.b16 %v6609
    %v6929 = vunpack.c.l.b16 %v6610
    %v6930 = vunpack.c.l.b16 %v6611
    %v6931 = vunpack.c.l.b16 %v6612
    %v6932 = vunpack.c.l.b16 %v6613
    %v6933 = vunpack.c.l.b16 %v6614
    %v6934 = vunpack.c.l.b16 %v6615
    %v6935 = vunpack.c.l.b16 %v6616
    %v6936 = vunpack.c.l.b16 %v6617
    %v6937 = vunpack.c.l.b16 %v6618
    %v6938 = vunpack.c.l.b16 %v6619
    %v6939 = vunpack.c.l.b16 %v6620
    %v6940 = vunpack.c.l.b16 %v6673
    %v6941 = vunpack.c.l.b16 %v6674
    %v6942 = vunpack.c.l.b16 %v6623
    %v6943 = vunpack.c.l.b16 %v6624
    %v6944 = vunpack.c.l.b16 %v6625
    %v6945 = vunpack.c.l.b16 %v6626
    %v6946 = vunpack.c.l.b16 %v6627
    %v6947 = vunpack.c.l.b16 %v6628
    %v6948 = vunpack.c.l.b16 %v6629
    %v6949 = vunpack.c.l.b16 %v6630
    %v6950 = vunpack.c.l.b16 %v6631
    %v6951 = vunpack.c.l.b16 %v6632
    %v6952 = vunpack.c.l.b16 %v6633
    %v6953 = vunpack.c.l.b16 %v6634
    %v6954 = vunpack.c.l.b16 %v6635
    %v6955 = vunpack.c.l.b16 %v6636
    %v6956 = vunpack.c.l.b16 %v6675
    %v6957 = vunpack.c.l.b16 %v6676
    %v6958 = vrot.slane %v6832, 7
    %vm6959 = vcmask 1041409
    %v6960 = vsel %vm6959, %v6958, %v6830
    %v6961 = vrot.slane %v6834, 6
    %vm6962 = vcmask 1042434
    %v6963 = vsel %vm6962, %v6961, %v6960
    %v6964 = vrot.slane %v6836, 5
    %vm6965 = vcmask 1043459
    %v6966 = vsel %vm6965, %v6964, %v6963
    %v6967 = vrot.slane %v6838, 4
    %vm6968 = vcmask 1044484
    %v6969 = vsel %vm6968, %v6967, %v6966
    %v6970 = vrot.slane %v6840, 3
    %vm6971 = vcmask 1045509
    %v6972 = vsel %vm6971, %v6970, %v6969
    %v6973 = vrot.slane %v6842, 2
    %vm6974 = vcmask 1046534
    %v6975 = vsel %vm6974, %v6973, %v6972
    %v6976 = vrot.slane %v6844, 1
    %vm6977 = vcmask 1047559
    %v6978 = vsel %vm6977, %v6976, %v6975
    %v6979 = vrot.slane %v6833, 7
    %v6980 = vsel %vm6959, %v6979, %v6831
    %v6981 = vrot.slane %v6835, 6
    %v6982 = vsel %vm6962, %v6981, %v6980
    %v6983 = vrot.slane %v6837, 5
    %v6984 = vsel %vm6965, %v6983, %v6982
    %v6985 = vrot.slane %v6839, 4
    %v6986 = vsel %vm6968, %v6985, %v6984
    %v6987 = vrot.slane %v6841, 3
    %v6988 = vsel %vm6971, %v6987, %v6986
    %v6989 = vrot.slane %v6843, 2
    %v6990 = vsel %vm6974, %v6989, %v6988
    %v6991 = vrot.slane %v6845, 1
    %v6992 = vsel %vm6977, %v6991, %v6990
    %v6993 = vrot.slane %v6848, 7
    %v6994 = vsel %vm6959, %v6993, %v6846
    %v6995 = vrot.slane %v6850, 6
    %v6996 = vsel %vm6962, %v6995, %v6994
    %v6997 = vrot.slane %v6852, 5
    %v6998 = vsel %vm6965, %v6997, %v6996
    %v6999 = vrot.slane %v6854, 4
    %v7000 = vsel %vm6968, %v6999, %v6998
    %v7001 = vrot.slane %v6856, 3
    %v7002 = vsel %vm6971, %v7001, %v7000
    %v7003 = vrot.slane %v6858, 2
    %v7004 = vsel %vm6974, %v7003, %v7002
    %v7005 = vrot.slane %v6860, 1
    %v7006 = vsel %vm6977, %v7005, %v7004
    %v7007 = vrot.slane %v6849, 7
    %v7008 = vsel %vm6959, %v7007, %v6847
    %v7009 = vrot.slane %v6851, 6
    %v7010 = vsel %vm6962, %v7009, %v7008
    %v7011 = vrot.slane %v6853, 5
    %v7012 = vsel %vm6965, %v7011, %v7010
    %v7013 = vrot.slane %v6855, 4
    %v7014 = vsel %vm6968, %v7013, %v7012
    %v7015 = vrot.slane %v6857, 3
    %v7016 = vsel %vm6971, %v7015, %v7014
    %v7017 = vrot.slane %v6859, 2
    %v7018 = vsel %vm6974, %v7017, %v7016
    %v7019 = vrot.slane %v6861, 1
    %v7020 = vsel %vm6977, %v7019, %v7018
    %v7021 = vrot.slane %v6864, 7
    %v7022 = vsel %vm6959, %v7021, %v6862
    %v7023 = vrot.slane %v6866, 6
    %v7024 = vsel %vm6962, %v7023, %v7022
    %v7025 = vrot.slane %v6868, 5
    %v7026 = vsel %vm6965, %v7025, %v7024
    %v7027 = vrot.slane %v6870, 4
    %v7028 = vsel %vm6968, %v7027, %v7026
    %v7029 = vrot.slane %v6872, 3
    %v7030 = vsel %vm6971, %v7029, %v7028
    %v7031 = vrot.slane %v6874, 2
    %v7032 = vsel %vm6974, %v7031, %v7030
    %v7033 = vrot.slane %v6876, 1
    %v7034 = vsel %vm6977, %v7033, %v7032
    %v7035 = vrot.slane %v6865, 7
    %v7036 = vsel %vm6959, %v7035, %v6863
    %v7037 = vrot.slane %v6867, 6
    %v7038 = vsel %vm6962, %v7037, %v7036
    %v7039 = vrot.slane %v6869, 5
    %v7040 = vsel %vm6965, %v7039, %v7038
    %v7041 = vrot.slane %v6871, 4
    %v7042 = vsel %vm6968, %v7041, %v7040
    %v7043 = vrot.slane %v6873, 3
    %v7044 = vsel %vm6971, %v7043, %v7042
    %v7045 = vrot.slane %v6875, 2
    %v7046 = vsel %vm6974, %v7045, %v7044
    %v7047 = vrot.slane %v6877, 1
    %v7048 = vsel %vm6977, %v7047, %v7046
    %v7049 = vrot.slane %v6880, 7
    %v7050 = vsel %vm6959, %v7049, %v6878
    %v7051 = vrot.slane %v6882, 6
    %v7052 = vsel %vm6962, %v7051, %v7050
    %v7053 = vrot.slane %v6884, 5
    %v7054 = vsel %vm6965, %v7053, %v7052
    %v7055 = vrot.slane %v6886, 4
    %v7056 = vsel %vm6968, %v7055, %v7054
    %v7057 = vrot.slane %v6888, 3
    %v7058 = vsel %vm6971, %v7057, %v7056
    %v7059 = vrot.slane %v6890, 2
    %v7060 = vsel %vm6974, %v7059, %v7058
    %v7061 = vrot.slane %v6892, 1
    %v7062 = vsel %vm6977, %v7061, %v7060
    %v7063 = vrot.slane %v6881, 7
    %v7064 = vsel %vm6959, %v7063, %v6879
    %v7065 = vrot.slane %v6883, 6
    %v7066 = vsel %vm6962, %v7065, %v7064
    %v7067 = vrot.slane %v6885, 5
    %v7068 = vsel %vm6965, %v7067, %v7066
    %v7069 = vrot.slane %v6887, 4
    %v7070 = vsel %vm6968, %v7069, %v7068
    %v7071 = vrot.slane %v6889, 3
    %v7072 = vsel %vm6971, %v7071, %v7070
    %v7073 = vrot.slane %v6891, 2
    %v7074 = vsel %vm6974, %v7073, %v7072
    %v7075 = vrot.slane %v6893, 1
    %v7076 = vsel %vm6977, %v7075, %v7074
    %v7077 = vrot.slane %v6896, 7
    %v7078 = vsel %vm6959, %v7077, %v6894
    %v7079 = vrot.slane %v6898, 6
    %v7080 = vsel %vm6962, %v7079, %v7078
    %v7081 = vrot.slane %v6900, 5
    %v7082 = vsel %vm6965, %v7081, %v7080
    %v7083 = vrot.slane %v6902, 4
    %v7084 = vsel %vm6968, %v7083, %v7082
    %v7085 = vrot.slane %v6904, 3
    %v7086 = vsel %vm6971, %v7085, %v7084
    %v7087 = vrot.slane %v6906, 2
    %v7088 = vsel %vm6974, %v7087, %v7086
    %v7089 = vrot.slane %v6908, 1
    %v7090 = vsel %vm6977, %v7089, %v7088
    %v7091 = vrot.slane %v6897, 7
    %v7092 = vsel %vm6959, %v7091, %v6895
    %v7093 = vrot.slane %v6899, 6
    %v7094 = vsel %vm6962, %v7093, %v7092
    %v7095 = vrot.slane %v6901, 5
    %v7096 = vsel %vm6965, %v7095, %v7094
    %v7097 = vrot.slane %v6903, 4
    %v7098 = vsel %vm6968, %v7097, %v7096
    %v7099 = vrot.slane %v6905, 3
    %v7100 = vsel %vm6971, %v7099, %v7098
    %v7101 = vrot.slane %v6907, 2
    %v7102 = vsel %vm6974, %v7101, %v7100
    %v7103 = vrot.slane %v6909, 1
    %v7104 = vsel %vm6977, %v7103, %v7102
    %v7105 = vrot.slane %v6912, 7
    %v7106 = vsel %vm6959, %v7105, %v6910
    %v7107 = vrot.slane %v6914, 6
    %v7108 = vsel %vm6962, %v7107, %v7106
    %v7109 = vrot.slane %v6916, 5
    %v7110 = vsel %vm6965, %v7109, %v7108
    %v7111 = vrot.slane %v6918, 4
    %v7112 = vsel %vm6968, %v7111, %v7110
    %v7113 = vrot.slane %v6920, 3
    %v7114 = vsel %vm6971, %v7113, %v7112
    %v7115 = vrot.slane %v6922, 2
    %v7116 = vsel %vm6974, %v7115, %v7114
    %v7117 = vrot.slane %v6924, 1
    %v7118 = vsel %vm6977, %v7117, %v7116
    %v7119 = vrot.slane %v6913, 7
    %v7120 = vsel %vm6959, %v7119, %v6911
    %v7121 = vrot.slane %v6915, 6
    %v7122 = vsel %vm6962, %v7121, %v7120
    %v7123 = vrot.slane %v6917, 5
    %v7124 = vsel %vm6965, %v7123, %v7122
    %v7125 = vrot.slane %v6919, 4
    %v7126 = vsel %vm6968, %v7125, %v7124
    %v7127 = vrot.slane %v6921, 3
    %v7128 = vsel %vm6971, %v7127, %v7126
    %v7129 = vrot.slane %v6923, 2
    %v7130 = vsel %vm6974, %v7129, %v7128
    %v7131 = vrot.slane %v6925, 1
    %v7132 = vsel %vm6977, %v7131, %v7130
    %v7133 = vrot.slane %v6928, 7
    %v7134 = vsel %vm6959, %v7133, %v6926
    %v7135 = vrot.slane %v6930, 6
    %v7136 = vsel %vm6962, %v7135, %v7134
    %v7137 = vrot.slane %v6932, 5
    %v7138 = vsel %vm6965, %v7137, %v7136
    %v7139 = vrot.slane %v6934, 4
    %v7140 = vsel %vm6968, %v7139, %v7138
    %v7141 = vrot.slane %v6936, 3
    %v7142 = vsel %vm6971, %v7141, %v7140
    %v7143 = vrot.slane %v6938, 2
    %v7144 = vsel %vm6974, %v7143, %v7142
    %v7145 = vrot.slane %v6940, 1
    %v7146 = vsel %vm6977, %v7145, %v7144
    %v7147 = vrot.slane %v6929, 7
    %v7148 = vsel %vm6959, %v7147, %v6927
    %v7149 = vrot.slane %v6931, 6
    %v7150 = vsel %vm6962, %v7149, %v7148
    %v7151 = vrot.slane %v6933, 5
    %v7152 = vsel %vm6965, %v7151, %v7150
    %v7153 = vrot.slane %v6935, 4
    %v7154 = vsel %vm6968, %v7153, %v7152
    %v7155 = vrot.slane %v6937, 3
    %v7156 = vsel %vm6971, %v7155, %v7154
    %v7157 = vrot.slane %v6939, 2
    %v7158 = vsel %vm6974, %v7157, %v7156
    %v7159 = vrot.slane %v6941, 1
    %v7160 = vsel %vm6977, %v7159, %v7158
    %v7161 = vrot.slane %v6944, 7
    %v7162 = vsel %vm6959, %v7161, %v6942
    %v7163 = vrot.slane %v6946, 6
    %v7164 = vsel %vm6962, %v7163, %v7162
    %v7165 = vrot.slane %v6948, 5
    %v7166 = vsel %vm6965, %v7165, %v7164
    %v7167 = vrot.slane %v6950, 4
    %v7168 = vsel %vm6968, %v7167, %v7166
    %v7169 = vrot.slane %v6952, 3
    %v7170 = vsel %vm6971, %v7169, %v7168
    %v7171 = vrot.slane %v6954, 2
    %v7172 = vsel %vm6974, %v7171, %v7170
    %v7173 = vrot.slane %v6956, 1
    %v7174 = vsel %vm6977, %v7173, %v7172
    %v7175 = vrot.slane %v6945, 7
    %v7176 = vsel %vm6959, %v7175, %v6943
    %v7177 = vrot.slane %v6947, 6
    %v7178 = vsel %vm6962, %v7177, %v7176
    %v7179 = vrot.slane %v6949, 5
    %v7180 = vsel %vm6965, %v7179, %v7178
    %v7181 = vrot.slane %v6951, 4
    %v7182 = vsel %vm6968, %v7181, %v7180
    %v7183 = vrot.slane %v6953, 3
    %v7184 = vsel %vm6971, %v7183, %v7182
    %v7185 = vrot.slane %v6955, 2
    %v7186 = vsel %vm6974, %v7185, %v7184
    %v7187 = vrot.slane %v6957, 1
    %v7188 = vsel %vm6977, %v7187, %v7186
    %v7189 = vpack.c.b16 %v7006, %v6978
    %v7190 = vpack.c.b16 %v7020, %v6992
    %v7191 = vpack.c.b16 %v7062, %v7034
    %v7192 = vpack.c.b16 %v7076, %v7048
    %v7193 = vpack.c.b16 %v7118, %v7090
    %v7194 = vpack.c.b16 %v7132, %v7104
    %v7195 = vpack.c.b16 %v7174, %v7146
    %v7196 = vpack.c.b16 %v7188, %v7160
    %v7225 = vunpack.c.l.b16 %v6678
    %v7226 = vunpack.c.h.b16 %v6678
    %v7227 = vunpack.c.l.b16 %v6679
    %v7228 = vunpack.c.h.b16 %v6679
    %v7229 = vunpack.c.l.b16 %v6680
    %v7230 = vunpack.c.h.b16 %v6680
    %v7231 = vunpack.c.l.b16 %v6681
    %v7232 = vunpack.c.h.b16 %v6681
    %v7233 = vunpack.c.l.b16 %v6682
    %v7234 = vunpack.c.h.b16 %v6682
    %v7235 = vunpack.c.l.b16 %v6683
    %v7236 = vunpack.c.h.b16 %v6683
    %v7237 = vunpack.c.l.b16 %v6684
    %v7238 = vunpack.c.h.b16 %v6684
    %v7239 = vunpack.c.l.b16 %v6685
    %v7240 = vunpack.c.h.b16 %v6685
    %v7241 = vunpack.c.l.b16 %v6686
    %v7242 = vunpack.c.h.b16 %v6686
    %v7243 = vunpack.c.l.b16 %v6687
    %v7244 = vunpack.c.h.b16 %v6687
    %v7245 = vunpack.c.l.b16 %v6688
    %v7246 = vunpack.c.h.b16 %v6688
    %v7247 = vunpack.c.l.b16 %v6689
    %v7248 = vunpack.c.h.b16 %v6689
    %v7249 = vunpack.c.l.b16 %v6690
    %v7250 = vunpack.c.h.b16 %v6690
    %v7251 = vunpack.c.l.b16 %v6691
    %v7252 = vunpack.c.h.b16 %v6691
    %v7253 = vunpack.c.l.b16 %v6692
    %v7254 = vunpack.c.h.b16 %v6692
    %v7255 = vunpack.c.l.b16 %v6693
    %v7256 = vunpack.c.h.b16 %v6693
    %v7257 = vunpack.c.l.b16 %v6694
    %v7258 = vunpack.c.h.b16 %v6694
    %v7259 = vunpack.c.l.b16 %v6695
    %v7260 = vunpack.c.h.b16 %v6695
    %v7261 = vunpack.c.l.b16 %v6696
    %v7262 = vunpack.c.h.b16 %v6696
    %v7263 = vunpack.c.l.b16 %v6697
    %v7264 = vunpack.c.h.b16 %v6697
    %v7265 = vunpack.c.l.b16 %v6698
    %v7266 = vunpack.c.h.b16 %v6698
    %v7267 = vunpack.c.l.b16 %v6699
    %v7268 = vunpack.c.h.b16 %v6699
    %v7269 = vunpack.c.l.b16 %v6700
    %v7270 = vunpack.c.h.b16 %v6700
    %v7271 = vunpack.c.l.b16 %v6701
    %v7272 = vunpack.c.h.b16 %v6701
    %v7273 = vpack.c.b16 %v7227, %v7225
    %v7274 = vpack.c.b16 %v7228, %v7226
    %v7275 = vpack.c.b16 %v7231, %v7229
    %v7276 = vpack.c.b16 %v7232, %v7230
    %v7277 = vpack.c.b16 %v7235, %v7233
    %v7278 = vpack.c.b16 %v7236, %v7234
    %v7279 = vpack.c.b16 %v7239, %v7237
    %v7280 = vpack.c.b16 %v7240, %v7238
    %v7281 = vpack.c.b16 %v7243, %v7241
    %v7282 = vpack.c.b16 %v7244, %v7242
    %v7283 = vpack.c.b16 %v7247, %v7245
    %v7284 = vpack.c.b16 %v7248, %v7246
    %v7285 = vpack.c.b16 %v7251, %v7249
    %v7286 = vpack.c.b16 %v7252, %v7250
    %v7287 = vpack.c.b16 %v7255, %v7253
    %v7288 = vpack.c.b16 %v7256, %v7254
    %v7289 = vpack.c.b16 %v7259, %v7257
    %v7290 = vpack.c.b16 %v7260, %v7258
    %v7291 = vpack.c.b16 %v7263, %v7261
    %v7292 = vpack.c.b16 %v7264, %v7262
    %v7293 = vpack.c.b16 %v7267, %v7265
    %v7294 = vpack.c.b16 %v7268, %v7266
    %v7295 = vpack.c.b16 %v7271, %v7269
    %v7296 = vpack.c.b16 %v7272, %v7270
    %v7322 = vsel %vm6028, %v7190, 0
    %v7325 = vsel %vm6028, %v7192, 0
    %v7328 = vsel %vm6028, %v7194, 0
    %v7331 = vsel %vm6028, %v7196, 0
    %7333 = vmatpush.bf16.msra.mxu0 %v7287
    %7334 = vmatpush.bf16.msra.mxu0 %v7285
    %7335 = vmatpush.bf16.msra.mxu0 %v7283
    %7336 = vmatpush.bf16.msra.mxu0 %v7281
    %7337 = vmatpush.bf16.msra.mxu0 %v7279
    %7338 = vmatpush.bf16.msra.mxu0 %v7277
    %7339 = vmatpush.bf16.msra.mxu0 %v7275
    %7340 = vmatpush.bf16.msra.mxu0 %v7273
    %7341 = vmatmul.bf16.gmra.mxu0 %v7189
    %v7342 = vpop.f32.mrf.mxu0
    %v7343 = vadd.f32 0.0, %v7342
    %v7344 = vpop.f32.mrf.mxu0
    %v7345 = vadd.f32 0.0, %v7344
    %7346 = vmatmul.bf16.gmra.mxu0 %v7191
    %v7347 = vpop.f32.mrf.mxu0
    %v7348 = vadd.f32 0.0, %v7347
    %v7349 = vpop.f32.mrf.mxu0
    %v7350 = vadd.f32 0.0, %v7349
    %7351 = vmatmul.bf16.gmra.mxu0 %v7193
    %v7352 = vpop.f32.mrf.mxu0
    %v7353 = vadd.f32 0.0, %v7352
    %v7354 = vpop.f32.mrf.mxu0
    %v7355 = vadd.f32 0.0, %v7354
    %7356 = vmatmul.bf16.gmra.mxu0 %v7195
    %v7357 = vpop.f32.mrf.mxu0
    %v7358 = vadd.f32 0.0, %v7357
    %v7359 = vpop.f32.mrf.mxu0
    %v7360 = vadd.f32 0.0, %v7359
    %7361 = vdwg.mxu0
    %7362 = vmatpush.bf16.msra.mxu0 0
    %7363 = vmatpush.bf16.msra.mxu0 0
    %7364 = vmatpush.bf16.msra.mxu0 0
    %7365 = vmatpush.bf16.msra.mxu0 0
    %7366 = vmatpush.bf16.msra.mxu0 %v7295
    %7367 = vmatpush.bf16.msra.mxu0 %v7293
    %7368 = vmatpush.bf16.msra.mxu0 %v7291
    %7369 = vmatpush.bf16.msra.mxu0 %v7289
    %7370 = vmatmul.bf16.gmra.mxu0 %v7322
    %v7371 = vpop.f32.mrf.mxu0
    %v7372 = vadd.f32 %v7343, %v7371
    %v7373 = vpop.f32.mrf.mxu0
    %v7374 = vadd.f32 %v7345, %v7373
    %7375 = vmatmul.bf16.gmra.mxu0 %v7325
    %v7376 = vpop.f32.mrf.mxu0
    %v7377 = vadd.f32 %v7348, %v7376
    %v7378 = vpop.f32.mrf.mxu0
    %v7379 = vadd.f32 %v7350, %v7378
    %7380 = vmatmul.bf16.gmra.mxu0 %v7328
    %v7381 = vpop.f32.mrf.mxu0
    %v7382 = vadd.f32 %v7353, %v7381
    %v7383 = vpop.f32.mrf.mxu0
    %v7384 = vadd.f32 %v7355, %v7383
    %7385 = vmatmul.bf16.gmra.mxu0 %v7331
    %v7386 = vpop.f32.mrf.mxu0
    %v7387 = vadd.f32 %v7358, %v7386
    %v7388 = vpop.f32.mrf.mxu0
    %v7389 = vadd.f32 %v7360, %v7388
    %7390 = vdwg.mxu0
    %7391 = vmatpush.bf16.msra.mxu0 %v7288
    %7392 = vmatpush.bf16.msra.mxu0 %v7286
    %7393 = vmatpush.bf16.msra.mxu0 %v7284
    %7394 = vmatpush.bf16.msra.mxu0 %v7282
    %7395 = vmatpush.bf16.msra.mxu0 %v7280
    %7396 = vmatpush.bf16.msra.mxu0 %v7278
    %7397 = vmatpush.bf16.msra.mxu0 %v7276
    %7398 = vmatpush.bf16.msra.mxu0 %v7274
    %7399 = vmatmul.bf16.gmra.mxu0 %v7189
    %v7400 = vpop.f32.mrf.mxu0
    %v7401 = vadd.f32 0.0, %v7400
    %v7402 = vpop.f32.mrf.mxu0
    %v7403 = vadd.f32 0.0, %v7402
    %7404 = vmatmul.bf16.gmra.mxu0 %v7191
    %v7405 = vpop.f32.mrf.mxu0
    %v7406 = vadd.f32 0.0, %v7405
    %v7407 = vpop.f32.mrf.mxu0
    %v7408 = vadd.f32 0.0, %v7407
    %7409 = vmatmul.bf16.gmra.mxu0 %v7193
    %v7410 = vpop.f32.mrf.mxu0
    %v7411 = vadd.f32 0.0, %v7410
    %v7412 = vpop.f32.mrf.mxu0
    %v7413 = vadd.f32 0.0, %v7412
    %7414 = vmatmul.bf16.gmra.mxu0 %v7195
    %v7415 = vpop.f32.mrf.mxu0
    %v7416 = vadd.f32 0.0, %v7415
    %v7417 = vpop.f32.mrf.mxu0
    %v7418 = vadd.f32 0.0, %v7417
    %7419 = vdwg.mxu0
    %7420 = vmatpush.bf16.msra.mxu0 0
    %7421 = vmatpush.bf16.msra.mxu0 0
    %7422 = vmatpush.bf16.msra.mxu0 0
    %7423 = vmatpush.bf16.msra.mxu0 0
    %7424 = vmatpush.bf16.msra.mxu0 %v7296
    %7425 = vmatpush.bf16.msra.mxu0 %v7294
    %7426 = vmatpush.bf16.msra.mxu0 %v7292
    %7427 = vmatpush.bf16.msra.mxu0 %v7290
    %7428 = vmatmul.bf16.gmra.mxu0 %v7322
    %v7429 = vpop.f32.mrf.mxu0
    %v7430 = vadd.f32 %v7401, %v7429
    %v7431 = vpop.f32.mrf.mxu0
    %v7432 = vadd.f32 %v7403, %v7431
    %7433 = vmatmul.bf16.gmra.mxu0 %v7325
    %v7434 = vpop.f32.mrf.mxu0
    %v7435 = vadd.f32 %v7406, %v7434
    %v7436 = vpop.f32.mrf.mxu0
    %v7437 = vadd.f32 %v7408, %v7436
    %7438 = vmatmul.bf16.gmra.mxu0 %v7328
    %v7439 = vpop.f32.mrf.mxu0
    %v7440 = vadd.f32 %v7411, %v7439
    %v7441 = vpop.f32.mrf.mxu0
    %v7442 = vadd.f32 %v7413, %v7441
    %7443 = vmatmul.bf16.gmra.mxu0 %v7331
    %v7444 = vpop.f32.mrf.mxu0
    %v7445 = vadd.f32 %v7416, %v7444
    %v7446 = vpop.f32.mrf.mxu0
    %v7447 = vadd.f32 %v7418, %v7446
    %7448 = vdwg.mxu0
    %v7465 = vunpack.c.l.b16 %v6509
    %v7466 = vunpack.c.l.b16 %v6510
    %v7467 = vunpack.c.l.b16 %v6525
    %v7468 = vunpack.c.l.b16 %v6526
    %v7469 = vunpack.c.l.b16 %v6541
    %v7470 = vunpack.c.l.b16 %v6542
    %v7471 = vunpack.c.l.b16 %v6557
    %v7472 = vunpack.c.l.b16 %v6558
    %v7473 = vunpack.c.l.b16 %v6573
    %v7474 = vunpack.c.l.b16 %v6574
    %v7475 = vunpack.c.l.b16 %v6589
    %v7476 = vunpack.c.l.b16 %v6590
    %v7477 = vunpack.c.l.b16 %v6605
    %v7478 = vunpack.c.l.b16 %v6606
    %v7479 = vunpack.c.l.b16 %v6621
    %v7480 = vunpack.c.l.b16 %v6622
    %v7481 = vrot.slane %v6830, 7
    %v7482 = vsel %vm6959, %v7481, %v7465
    %v7483 = vrot.slane %v6832, 6
    %v7484 = vsel %vm6962, %v7483, %v7482
    %v7485 = vrot.slane %v6834, 5
    %v7486 = vsel %vm6965, %v7485, %v7484
    %v7487 = vrot.slane %v6836, 4
    %v7488 = vsel %vm6968, %v7487, %v7486
    %v7489 = vrot.slane %v6838, 3
    %v7490 = vsel %vm6971, %v7489, %v7488
    %v7491 = vrot.slane %v6840, 2
    %v7492 = vsel %vm6974, %v7491, %v7490
    %v7493 = vrot.slane %v6842, 1
    %v7494 = vsel %vm6977, %v7493, %v7492
    %v7495 = vrot.slane %v6831, 7
    %v7496 = vsel %vm6959, %v7495, %v7466
    %v7497 = vrot.slane %v6833, 6
    %v7498 = vsel %vm6962, %v7497, %v7496
    %v7499 = vrot.slane %v6835, 5
    %v7500 = vsel %vm6965, %v7499, %v7498
    %v7501 = vrot.slane %v6837, 4
    %v7502 = vsel %vm6968, %v7501, %v7500
    %v7503 = vrot.slane %v6839, 3
    %v7504 = vsel %vm6971, %v7503, %v7502
    %v7505 = vrot.slane %v6841, 2
    %v7506 = vsel %vm6974, %v7505, %v7504
    %v7507 = vrot.slane %v6843, 1
    %v7508 = vsel %vm6977, %v7507, %v7506
    %v7509 = vrot.slane %v6846, 7
    %v7510 = vsel %vm6959, %v7509, %v7467
    %v7511 = vrot.slane %v6848, 6
    %v7512 = vsel %vm6962, %v7511, %v7510
    %v7513 = vrot.slane %v6850, 5
    %v7514 = vsel %vm6965, %v7513, %v7512
    %v7515 = vrot.slane %v6852, 4
    %v7516 = vsel %vm6968, %v7515, %v7514
    %v7517 = vrot.slane %v6854, 3
    %v7518 = vsel %vm6971, %v7517, %v7516
    %v7519 = vrot.slane %v6856, 2
    %v7520 = vsel %vm6974, %v7519, %v7518
    %v7521 = vrot.slane %v6858, 1
    %v7522 = vsel %vm6977, %v7521, %v7520
    %v7523 = vrot.slane %v6847, 7
    %v7524 = vsel %vm6959, %v7523, %v7468
    %v7525 = vrot.slane %v6849, 6
    %v7526 = vsel %vm6962, %v7525, %v7524
    %v7527 = vrot.slane %v6851, 5
    %v7528 = vsel %vm6965, %v7527, %v7526
    %v7529 = vrot.slane %v6853, 4
    %v7530 = vsel %vm6968, %v7529, %v7528
    %v7531 = vrot.slane %v6855, 3
    %v7532 = vsel %vm6971, %v7531, %v7530
    %v7533 = vrot.slane %v6857, 2
    %v7534 = vsel %vm6974, %v7533, %v7532
    %v7535 = vrot.slane %v6859, 1
    %v7536 = vsel %vm6977, %v7535, %v7534
    %v7537 = vrot.slane %v6862, 7
    %v7538 = vsel %vm6959, %v7537, %v7469
    %v7539 = vrot.slane %v6864, 6
    %v7540 = vsel %vm6962, %v7539, %v7538
    %v7541 = vrot.slane %v6866, 5
    %v7542 = vsel %vm6965, %v7541, %v7540
    %v7543 = vrot.slane %v6868, 4
    %v7544 = vsel %vm6968, %v7543, %v7542
    %v7545 = vrot.slane %v6870, 3
    %v7546 = vsel %vm6971, %v7545, %v7544
    %v7547 = vrot.slane %v6872, 2
    %v7548 = vsel %vm6974, %v7547, %v7546
    %v7549 = vrot.slane %v6874, 1
    %v7550 = vsel %vm6977, %v7549, %v7548
    %v7551 = vrot.slane %v6863, 7
    %v7552 = vsel %vm6959, %v7551, %v7470
    %v7553 = vrot.slane %v6865, 6
    %v7554 = vsel %vm6962, %v7553, %v7552
    %v7555 = vrot.slane %v6867, 5
    %v7556 = vsel %vm6965, %v7555, %v7554
    %v7557 = vrot.slane %v6869, 4
    %v7558 = vsel %vm6968, %v7557, %v7556
    %v7559 = vrot.slane %v6871, 3
    %v7560 = vsel %vm6971, %v7559, %v7558
    %v7561 = vrot.slane %v6873, 2
    %v7562 = vsel %vm6974, %v7561, %v7560
    %v7563 = vrot.slane %v6875, 1
    %v7564 = vsel %vm6977, %v7563, %v7562
    %v7565 = vrot.slane %v6878, 7
    %v7566 = vsel %vm6959, %v7565, %v7471
    %v7567 = vrot.slane %v6880, 6
    %v7568 = vsel %vm6962, %v7567, %v7566
    %v7569 = vrot.slane %v6882, 5
    %v7570 = vsel %vm6965, %v7569, %v7568
    %v7571 = vrot.slane %v6884, 4
    %v7572 = vsel %vm6968, %v7571, %v7570
    %v7573 = vrot.slane %v6886, 3
    %v7574 = vsel %vm6971, %v7573, %v7572
    %v7575 = vrot.slane %v6888, 2
    %v7576 = vsel %vm6974, %v7575, %v7574
    %v7577 = vrot.slane %v6890, 1
    %v7578 = vsel %vm6977, %v7577, %v7576
    %v7579 = vrot.slane %v6879, 7
    %v7580 = vsel %vm6959, %v7579, %v7472
    %v7581 = vrot.slane %v6881, 6
    %v7582 = vsel %vm6962, %v7581, %v7580
    %v7583 = vrot.slane %v6883, 5
    %v7584 = vsel %vm6965, %v7583, %v7582
    %v7585 = vrot.slane %v6885, 4
    %v7586 = vsel %vm6968, %v7585, %v7584
    %v7587 = vrot.slane %v6887, 3
    %v7588 = vsel %vm6971, %v7587, %v7586
    %v7589 = vrot.slane %v6889, 2
    %v7590 = vsel %vm6974, %v7589, %v7588
    %v7591 = vrot.slane %v6891, 1
    %v7592 = vsel %vm6977, %v7591, %v7590
    %v7593 = vrot.slane %v6894, 7
    %v7594 = vsel %vm6959, %v7593, %v7473
    %v7595 = vrot.slane %v6896, 6
    %v7596 = vsel %vm6962, %v7595, %v7594
    %v7597 = vrot.slane %v6898, 5
    %v7598 = vsel %vm6965, %v7597, %v7596
    %v7599 = vrot.slane %v6900, 4
    %v7600 = vsel %vm6968, %v7599, %v7598
    %v7601 = vrot.slane %v6902, 3
    %v7602 = vsel %vm6971, %v7601, %v7600
    %v7603 = vrot.slane %v6904, 2
    %v7604 = vsel %vm6974, %v7603, %v7602
    %v7605 = vrot.slane %v6906, 1
    %v7606 = vsel %vm6977, %v7605, %v7604
    %v7607 = vrot.slane %v6895, 7
    %v7608 = vsel %vm6959, %v7607, %v7474
    %v7609 = vrot.slane %v6897, 6
    %v7610 = vsel %vm6962, %v7609, %v7608
    %v7611 = vrot.slane %v6899, 5
    %v7612 = vsel %vm6965, %v7611, %v7610
    %v7613 = vrot.slane %v6901, 4
    %v7614 = vsel %vm6968, %v7613, %v7612
    %v7615 = vrot.slane %v6903, 3
    %v7616 = vsel %vm6971, %v7615, %v7614
    %v7617 = vrot.slane %v6905, 2
    %v7618 = vsel %vm6974, %v7617, %v7616
    %v7619 = vrot.slane %v6907, 1
    %v7620 = vsel %vm6977, %v7619, %v7618
    %v7621 = vrot.slane %v6910, 7
    %v7622 = vsel %vm6959, %v7621, %v7475
    %v7623 = vrot.slane %v6912, 6
    %v7624 = vsel %vm6962, %v7623, %v7622
    %v7625 = vrot.slane %v6914, 5
    %v7626 = vsel %vm6965, %v7625, %v7624
    %v7627 = vrot.slane %v6916, 4
    %v7628 = vsel %vm6968, %v7627, %v7626
    %v7629 = vrot.slane %v6918, 3
    %v7630 = vsel %vm6971, %v7629, %v7628
    %v7631 = vrot.slane %v6920, 2
    %v7632 = vsel %vm6974, %v7631, %v7630
    %v7633 = vrot.slane %v6922, 1
    %v7634 = vsel %vm6977, %v7633, %v7632
    %v7635 = vrot.slane %v6911, 7
    %v7636 = vsel %vm6959, %v7635, %v7476
    %v7637 = vrot.slane %v6913, 6
    %v7638 = vsel %vm6962, %v7637, %v7636
    %v7639 = vrot.slane %v6915, 5
    %v7640 = vsel %vm6965, %v7639, %v7638
    %v7641 = vrot.slane %v6917, 4
    %v7642 = vsel %vm6968, %v7641, %v7640
    %v7643 = vrot.slane %v6919, 3
    %v7644 = vsel %vm6971, %v7643, %v7642
    %v7645 = vrot.slane %v6921, 2
    %v7646 = vsel %vm6974, %v7645, %v7644
    %v7647 = vrot.slane %v6923, 1
    %v7648 = vsel %vm6977, %v7647, %v7646
    %v7649 = vrot.slane %v6926, 7
    %v7650 = vsel %vm6959, %v7649, %v7477
    %v7651 = vrot.slane %v6928, 6
    %v7652 = vsel %vm6962, %v7651, %v7650
    %v7653 = vrot.slane %v6930, 5
    %v7654 = vsel %vm6965, %v7653, %v7652
    %v7655 = vrot.slane %v6932, 4
    %v7656 = vsel %vm6968, %v7655, %v7654
    %v7657 = vrot.slane %v6934, 3
    %v7658 = vsel %vm6971, %v7657, %v7656
    %v7659 = vrot.slane %v6936, 2
    %v7660 = vsel %vm6974, %v7659, %v7658
    %v7661 = vrot.slane %v6938, 1
    %v7662 = vsel %vm6977, %v7661, %v7660
    %v7663 = vrot.slane %v6927, 7
    %v7664 = vsel %vm6959, %v7663, %v7478
    %v7665 = vrot.slane %v6929, 6
    %v7666 = vsel %vm6962, %v7665, %v7664
    %v7667 = vrot.slane %v6931, 5
    %v7668 = vsel %vm6965, %v7667, %v7666
    %v7669 = vrot.slane %v6933, 4
    %v7670 = vsel %vm6968, %v7669, %v7668
    %v7671 = vrot.slane %v6935, 3
    %v7672 = vsel %vm6971, %v7671, %v7670
    %v7673 = vrot.slane %v6937, 2
    %v7674 = vsel %vm6974, %v7673, %v7672
    %v7675 = vrot.slane %v6939, 1
    %v7676 = vsel %vm6977, %v7675, %v7674
    %v7677 = vrot.slane %v6942, 7
    %v7678 = vsel %vm6959, %v7677, %v7479
    %v7679 = vrot.slane %v6944, 6
    %v7680 = vsel %vm6962, %v7679, %v7678
    %v7681 = vrot.slane %v6946, 5
    %v7682 = vsel %vm6965, %v7681, %v7680
    %v7683 = vrot.slane %v6948, 4
    %v7684 = vsel %vm6968, %v7683, %v7682
    %v7685 = vrot.slane %v6950, 3
    %v7686 = vsel %vm6971, %v7685, %v7684
    %v7687 = vrot.slane %v6952, 2
    %v7688 = vsel %vm6974, %v7687, %v7686
    %v7689 = vrot.slane %v6954, 1
    %v7690 = vsel %vm6977, %v7689, %v7688
    %v7691 = vrot.slane %v6943, 7
    %v7692 = vsel %vm6959, %v7691, %v7480
    %v7693 = vrot.slane %v6945, 6
    %v7694 = vsel %vm6962, %v7693, %v7692
    %v7695 = vrot.slane %v6947, 5
    %v7696 = vsel %vm6965, %v7695, %v7694
    %v7697 = vrot.slane %v6949, 4
    %v7698 = vsel %vm6968, %v7697, %v7696
    %v7699 = vrot.slane %v6951, 3
    %v7700 = vsel %vm6971, %v7699, %v7698
    %v7701 = vrot.slane %v6953, 2
    %v7702 = vsel %vm6974, %v7701, %v7700
    %v7703 = vrot.slane %v6955, 1
    %v7704 = vsel %vm6977, %v7703, %v7702
    %v7705 = vpack.c.b16 %v7522, %v7494
    %v7706 = vpack.c.b16 %v7536, %v7508
    %v7707 = vpack.c.b16 %v7578, %v7550
    %v7708 = vpack.c.b16 %v7592, %v7564
    %v7709 = vpack.c.b16 %v7634, %v7606
    %v7710 = vpack.c.b16 %v7648, %v7620
    %v7711 = vpack.c.b16 %v7690, %v7662
    %v7712 = vpack.c.b16 %v7704, %v7676
    %v7741 = vunpack.c.l.b16 %v6637
    %v7742 = vunpack.c.h.b16 %v6637
    %v7743 = vunpack.c.l.b16 %v6638
    %v7744 = vunpack.c.h.b16 %v6638
    %v7745 = vunpack.c.l.b16 %v6639
    %v7746 = vunpack.c.h.b16 %v6639
    %v7747 = vunpack.c.l.b16 %v6640
    %v7748 = vunpack.c.h.b16 %v6640
    %v7749 = vunpack.c.l.b16 %v6641
    %v7750 = vunpack.c.h.b16 %v6641
    %v7751 = vunpack.c.l.b16 %v6642
    %v7752 = vunpack.c.h.b16 %v6642
    %v7753 = vunpack.c.l.b16 %v6643
    %v7754 = vunpack.c.h.b16 %v6643
    %v7755 = vunpack.c.l.b16 %v6644
    %v7756 = vunpack.c.h.b16 %v6644
    %v7757 = vunpack.c.l.b16 %v6645
    %v7758 = vunpack.c.h.b16 %v6645
    %v7759 = vunpack.c.l.b16 %v6646
    %v7760 = vunpack.c.h.b16 %v6646
    %v7761 = vunpack.c.l.b16 %v6647
    %v7762 = vunpack.c.h.b16 %v6647
    %v7763 = vunpack.c.l.b16 %v6648
    %v7764 = vunpack.c.h.b16 %v6648
    %v7765 = vunpack.c.l.b16 %v6649
    %v7766 = vunpack.c.h.b16 %v6649
    %v7767 = vunpack.c.l.b16 %v6650
    %v7768 = vunpack.c.h.b16 %v6650
    %v7769 = vunpack.c.l.b16 %v6651
    %v7770 = vunpack.c.h.b16 %v6651
    %v7771 = vunpack.c.l.b16 %v6652
    %v7772 = vunpack.c.h.b16 %v6652
    %v7773 = vunpack.c.l.b16 %v6653
    %v7774 = vunpack.c.h.b16 %v6653
    %v7775 = vunpack.c.l.b16 %v6654
    %v7776 = vunpack.c.h.b16 %v6654
    %v7777 = vunpack.c.l.b16 %v6655
    %v7778 = vunpack.c.h.b16 %v6655
    %v7779 = vunpack.c.l.b16 %v6656
    %v7780 = vunpack.c.h.b16 %v6656
    %v7781 = vunpack.c.l.b16 %v6657
    %v7782 = vunpack.c.h.b16 %v6657
    %v7783 = vunpack.c.l.b16 %v6658
    %v7784 = vunpack.c.h.b16 %v6658
    %v7785 = vunpack.c.l.b16 %v6659
    %v7786 = vunpack.c.h.b16 %v6659
    %v7787 = vunpack.c.l.b16 %v6660
    %v7788 = vunpack.c.h.b16 %v6660
    %v7789 = vpack.c.b16 %v7743, %v7741
    %v7790 = vpack.c.b16 %v7744, %v7742
    %v7791 = vpack.c.b16 %v7747, %v7745
    %v7792 = vpack.c.b16 %v7748, %v7746
    %v7793 = vpack.c.b16 %v7751, %v7749
    %v7794 = vpack.c.b16 %v7752, %v7750
    %v7795 = vpack.c.b16 %v7755, %v7753
    %v7796 = vpack.c.b16 %v7756, %v7754
    %v7797 = vpack.c.b16 %v7759, %v7757
    %v7798 = vpack.c.b16 %v7760, %v7758
    %v7799 = vpack.c.b16 %v7763, %v7761
    %v7800 = vpack.c.b16 %v7764, %v7762
    %v7801 = vpack.c.b16 %v7767, %v7765
    %v7802 = vpack.c.b16 %v7768, %v7766
    %v7803 = vpack.c.b16 %v7771, %v7769
    %v7804 = vpack.c.b16 %v7772, %v7770
    %v7805 = vpack.c.b16 %v7775, %v7773
    %v7806 = vpack.c.b16 %v7776, %v7774
    %v7807 = vpack.c.b16 %v7779, %v7777
    %v7808 = vpack.c.b16 %v7780, %v7778
    %v7809 = vpack.c.b16 %v7783, %v7781
    %v7810 = vpack.c.b16 %v7784, %v7782
    %v7811 = vpack.c.b16 %v7787, %v7785
    %v7812 = vpack.c.b16 %v7788, %v7786
    %v7838 = vsel %vm6028, %v7706, 0
    %v7841 = vsel %vm6028, %v7708, 0
    %v7844 = vsel %vm6028, %v7710, 0
    %v7847 = vsel %vm6028, %v7712, 0
    %7849 = vmatpush.bf16.msra.mxu0 %v7803
    %7850 = vmatpush.bf16.msra.mxu0 %v7801
    %7851 = vmatpush.bf16.msra.mxu0 %v7799
    %7852 = vmatpush.bf16.msra.mxu0 %v7797
    %7853 = vmatpush.bf16.msra.mxu0 %v7795
    %7854 = vmatpush.bf16.msra.mxu0 %v7793
    %7855 = vmatpush.bf16.msra.mxu0 %v7791
    %7856 = vmatpush.bf16.msra.mxu0 %v7789
    %7857 = vmatmul.bf16.gmra.mxu0 %v7705
    %v7858 = vpop.f32.mrf.mxu0
    %v7859 = vadd.f32 %v7372, %v7858
    %v7860 = vpop.f32.mrf.mxu0
    %v7861 = vadd.f32 %v7374, %v7860
    %7862 = vmatmul.bf16.gmra.mxu0 %v7707
    %v7863 = vpop.f32.mrf.mxu0
    %v7864 = vadd.f32 %v7377, %v7863
    %v7865 = vpop.f32.mrf.mxu0
    %v7866 = vadd.f32 %v7379, %v7865
    %7867 = vmatmul.bf16.gmra.mxu0 %v7709
    %v7868 = vpop.f32.mrf.mxu0
    %v7869 = vadd.f32 %v7382, %v7868
    %v7870 = vpop.f32.mrf.mxu0
    %v7871 = vadd.f32 %v7384, %v7870
    %7872 = vmatmul.bf16.gmra.mxu0 %v7711
    %v7873 = vpop.f32.mrf.mxu0
    %v7874 = vadd.f32 %v7387, %v7873
    %v7875 = vpop.f32.mrf.mxu0
    %v7876 = vadd.f32 %v7389, %v7875
    %7877 = vdwg.mxu0
    %7878 = vmatpush.bf16.msra.mxu0 0
    %7879 = vmatpush.bf16.msra.mxu0 0
    %7880 = vmatpush.bf16.msra.mxu0 0
    %7881 = vmatpush.bf16.msra.mxu0 0
    %7882 = vmatpush.bf16.msra.mxu0 %v7811
    %7883 = vmatpush.bf16.msra.mxu0 %v7809
    %7884 = vmatpush.bf16.msra.mxu0 %v7807
    %7885 = vmatpush.bf16.msra.mxu0 %v7805
    %7886 = vmatmul.bf16.gmra.mxu0 %v7838
    %v7887 = vpop.f32.mrf.mxu0
    %v7888 = vadd.f32 %v7859, %v7887
    %v7889 = vpop.f32.mrf.mxu0
    %v7890 = vadd.f32 %v7861, %v7889
    %7891 = vmatmul.bf16.gmra.mxu0 %v7841
    %v7892 = vpop.f32.mrf.mxu0
    %v7893 = vadd.f32 %v7864, %v7892
    %v7894 = vpop.f32.mrf.mxu0
    %v7895 = vadd.f32 %v7866, %v7894
    %7896 = vmatmul.bf16.gmra.mxu0 %v7844
    %v7897 = vpop.f32.mrf.mxu0
    %v7898 = vadd.f32 %v7869, %v7897
    %v7899 = vpop.f32.mrf.mxu0
    %v7900 = vadd.f32 %v7871, %v7899
    %7901 = vmatmul.bf16.gmra.mxu0 %v7847
    %v7902 = vpop.f32.mrf.mxu0
    %v7903 = vadd.f32 %v7874, %v7902
    %v7904 = vpop.f32.mrf.mxu0
    %v7905 = vadd.f32 %v7876, %v7904
    %7906 = vdwg.mxu0
    %7907 = vmatpush.bf16.msra.mxu0 %v7804
    %7908 = vmatpush.bf16.msra.mxu0 %v7802
    %7909 = vmatpush.bf16.msra.mxu0 %v7800
    %7910 = vmatpush.bf16.msra.mxu0 %v7798
    %7911 = vmatpush.bf16.msra.mxu0 %v7796
    %7912 = vmatpush.bf16.msra.mxu0 %v7794
    %7913 = vmatpush.bf16.msra.mxu0 %v7792
    %7914 = vmatpush.bf16.msra.mxu0 %v7790
    %7915 = vmatmul.bf16.gmra.mxu0 %v7705
    %v7916 = vpop.f32.mrf.mxu0
    %v7917 = vadd.f32 %v7430, %v7916
    %v7918 = vpop.f32.mrf.mxu0
    %v7919 = vadd.f32 %v7432, %v7918
    %7920 = vmatmul.bf16.gmra.mxu0 %v7707
    %v7921 = vpop.f32.mrf.mxu0
    %v7922 = vadd.f32 %v7435, %v7921
    %v7923 = vpop.f32.mrf.mxu0
    %v7924 = vadd.f32 %v7437, %v7923
    %7925 = vmatmul.bf16.gmra.mxu0 %v7709
    %v7926 = vpop.f32.mrf.mxu0
    %v7927 = vadd.f32 %v7440, %v7926
    %v7928 = vpop.f32.mrf.mxu0
    %v7929 = vadd.f32 %v7442, %v7928
    %7930 = vmatmul.bf16.gmra.mxu0 %v7711
    %v7931 = vpop.f32.mrf.mxu0
    %v7932 = vadd.f32 %v7445, %v7931
    %v7933 = vpop.f32.mrf.mxu0
    %v7934 = vadd.f32 %v7447, %v7933
    %7935 = vdwg.mxu0
    %7936 = vmatpush.bf16.msra.mxu0 0
    %7937 = vmatpush.bf16.msra.mxu0 0
    %7938 = vmatpush.bf16.msra.mxu0 0
    %7939 = vmatpush.bf16.msra.mxu0 0
    %7940 = vmatpush.bf16.msra.mxu0 %v7812
    %7941 = vmatpush.bf16.msra.mxu0 %v7810
    %7942 = vmatpush.bf16.msra.mxu0 %v7808
    %7943 = vmatpush.bf16.msra.mxu0 %v7806
    %7944 = vmatmul.bf16.gmra.mxu0 %v7838
    %v7945 = vpop.f32.mrf.mxu0
    %v7946 = vadd.f32 %v7917, %v7945
    %v7947 = vpop.f32.mrf.mxu0
    %v7948 = vadd.f32 %v7919, %v7947
    %7949 = vmatmul.bf16.gmra.mxu0 %v7841
    %v7950 = vpop.f32.mrf.mxu0
    %v7951 = vadd.f32 %v7922, %v7950
    %v7952 = vpop.f32.mrf.mxu0
    %v7953 = vadd.f32 %v7924, %v7952
    %7954 = vmatmul.bf16.gmra.mxu0 %v7844
    %v7955 = vpop.f32.mrf.mxu0
    %v7956 = vadd.f32 %v7927, %v7955
    %v7957 = vpop.f32.mrf.mxu0
    %v7958 = vadd.f32 %v7929, %v7957
    %7959 = vmatmul.bf16.gmra.mxu0 %v7847
    %v7960 = vpop.f32.mrf.mxu0
    %v7961 = vadd.f32 %v7932, %v7960
    %v7962 = vpop.f32.mrf.mxu0
    %v7963 = vadd.f32 %v7934, %v7962
    %7964 = vdwg.mxu0
    %v7965 = vpack.c.bf16 %v6335, %v6335
    %v7966 = vpack.c.bf16 %v6336, %v6336
    %v7967 = vpack.c.bf16 %v6359, %v6359
    %v7968 = vpack.c.bf16 %v6360, %v6360
    %v7969 = vpack.c.bf16 %v6383, %v6383
    %v7970 = vpack.c.bf16 %v6384, %v6384
    %v7971 = vpack.c.bf16 %v6407, %v6407
    %v7972 = vpack.c.bf16 %v6408, %v6408
    %v7973 = vpack.c.bf16 %v6431, %v6431
    %v7974 = vpack.c.bf16 %v6432, %v6432
    %v7975 = vpack.c.bf16 %v6455, %v6455
    %v7976 = vpack.c.bf16 %v6456, %v6456
    %v7977 = vpack.c.bf16 %v6479, %v6479
    %v7978 = vpack.c.bf16 %v6480, %v6480
    %v7979 = vpack.c.bf16 %v6503, %v6503
    %v7980 = vpack.c.bf16 %v6504, %v6504
    %s7981 = scalar_lea.vmem [#allocation4], 384
    %v7982 = vld [vmem:[%s7981] sm:$0xff]
    %v7983 = vld [vmem:[%s7981 + $0x8] sm:$0xff]
    %v7984 = vld [vmem:[%s7981 + $0x10] sm:$0xff]
    %v7985 = vld [vmem:[%s7981 + $0x18] sm:$0xff]
    %v7986 = vld [vmem:[%s7981 + $0x20] sm:$0xff]
    %v7987 = vld [vmem:[%s7981 + $0x28] sm:$0xff]
    %v7988 = vld [vmem:[%s7981 + $0x30] sm:$0xff]
    %v7989 = vld [vmem:[%s7981 + $0x38] sm:$0xff]
    %v7990 = vld [vmem:[%s7981 + $0x40] sm:$0xff]
    %v7991 = vld [vmem:[%s7981 + $0x48] sm:$0xff]
    %v7992 = vld [vmem:[%s7981 + $0x50] sm:$0xff]
    %v7993 = vld [vmem:[%s7981 + $0x58] sm:$0xff]
    %v7994 = vld [vmem:[%s7981 + $0x60] sm:$0xff]
    %v7995 = vld [vmem:[%s7981 + $0x68] sm:$0xff]
    %v7996 = vld [vmem:[%s7981 + $0x70] sm:$0xff]
    %v7997 = vld [vmem:[%s7981 + $0x78] sm:$0xff]
    %v7998 = vld [vmem:[%s7981 + $0x80] sm:$0xff]
    %v7999 = vld [vmem:[%s7981 + $0x88] sm:$0xff]
    %v8000 = vld [vmem:[%s7981 + $0x90] sm:$0xff]
    %v8001 = vld [vmem:[%s7981 + $0x98] sm:$0xff]
    %v8002 = vld [vmem:[%s7981 + $0xa0] sm:$0xff]
    %v8003 = vld [vmem:[%s7981 + $0xa8] sm:$0xff]
    %v8004 = vld [vmem:[%s7981 + $0xb0] sm:$0xff]
    %v8005 = vld [vmem:[%s7981 + $0xb8] sm:$0xff]
    %v8022 = vunpack.c.l.b16 %v7965
    %v8023 = vunpack.c.l.b16 %v7966
    %v8024 = vunpack.c.l.b16 %v7967
    %v8025 = vunpack.c.l.b16 %v7968
    %v8026 = vunpack.c.l.b16 %v7969
    %v8027 = vunpack.c.l.b16 %v7970
    %v8028 = vunpack.c.l.b16 %v7971
    %v8029 = vunpack.c.l.b16 %v7972
    %v8030 = vunpack.c.l.b16 %v7973
    %v8031 = vunpack.c.l.b16 %v7974
    %v8032 = vunpack.c.l.b16 %v7975
    %v8033 = vunpack.c.l.b16 %v7976
    %v8034 = vunpack.c.l.b16 %v7977
    %v8035 = vunpack.c.l.b16 %v7978
    %v8036 = vunpack.c.l.b16 %v7979
    %v8037 = vunpack.c.l.b16 %v7980
    %v8038 = vrot.slane %v6834, 7
    %v8039 = vsel %vm6959, %v8038, %v6832
    %v8040 = vrot.slane %v6836, 6
    %v8041 = vsel %vm6962, %v8040, %v8039
    %v8042 = vrot.slane %v6838, 5
    %v8043 = vsel %vm6965, %v8042, %v8041
    %v8044 = vrot.slane %v6840, 4
    %v8045 = vsel %vm6968, %v8044, %v8043
    %v8046 = vrot.slane %v6842, 3
    %v8047 = vsel %vm6971, %v8046, %v8045
    %v8048 = vrot.slane %v6844, 2
    %v8049 = vsel %vm6974, %v8048, %v8047
    %v8050 = vrot.slane %v8022, 1
    %v8051 = vsel %vm6977, %v8050, %v8049
    %v8052 = vrot.slane %v6835, 7
    %v8053 = vsel %vm6959, %v8052, %v6833
    %v8054 = vrot.slane %v6837, 6
    %v8055 = vsel %vm6962, %v8054, %v8053
    %v8056 = vrot.slane %v6839, 5
    %v8057 = vsel %vm6965, %v8056, %v8055
    %v8058 = vrot.slane %v6841, 4
    %v8059 = vsel %vm6968, %v8058, %v8057
    %v8060 = vrot.slane %v6843, 3
    %v8061 = vsel %vm6971, %v8060, %v8059
    %v8062 = vrot.slane %v6845, 2
    %v8063 = vsel %vm6974, %v8062, %v8061
    %v8064 = vrot.slane %v8023, 1
    %v8065 = vsel %vm6977, %v8064, %v8063
    %v8066 = vrot.slane %v6850, 7
    %v8067 = vsel %vm6959, %v8066, %v6848
    %v8068 = vrot.slane %v6852, 6
    %v8069 = vsel %vm6962, %v8068, %v8067
    %v8070 = vrot.slane %v6854, 5
    %v8071 = vsel %vm6965, %v8070, %v8069
    %v8072 = vrot.slane %v6856, 4
    %v8073 = vsel %vm6968, %v8072, %v8071
    %v8074 = vrot.slane %v6858, 3
    %v8075 = vsel %vm6971, %v8074, %v8073
    %v8076 = vrot.slane %v6860, 2
    %v8077 = vsel %vm6974, %v8076, %v8075
    %v8078 = vrot.slane %v8024, 1
    %v8079 = vsel %vm6977, %v8078, %v8077
    %v8080 = vrot.slane %v6851, 7
    %v8081 = vsel %vm6959, %v8080, %v6849
    %v8082 = vrot.slane %v6853, 6
    %v8083 = vsel %vm6962, %v8082, %v8081
    %v8084 = vrot.slane %v6855, 5
    %v8085 = vsel %vm6965, %v8084, %v8083
    %v8086 = vrot.slane %v6857, 4
    %v8087 = vsel %vm6968, %v8086, %v8085
    %v8088 = vrot.slane %v6859, 3
    %v8089 = vsel %vm6971, %v8088, %v8087
    %v8090 = vrot.slane %v6861, 2
    %v8091 = vsel %vm6974, %v8090, %v8089
    %v8092 = vrot.slane %v8025, 1
    %v8093 = vsel %vm6977, %v8092, %v8091
    %v8094 = vrot.slane %v6866, 7
    %v8095 = vsel %vm6959, %v8094, %v6864
    %v8096 = vrot.slane %v6868, 6
    %v8097 = vsel %vm6962, %v8096, %v8095
    %v8098 = vrot.slane %v6870, 5
    %v8099 = vsel %vm6965, %v8098, %v8097
    %v8100 = vrot.slane %v6872, 4
    %v8101 = vsel %vm6968, %v8100, %v8099
    %v8102 = vrot.slane %v6874, 3
    %v8103 = vsel %vm6971, %v8102, %v8101
    %v8104 = vrot.slane %v6876, 2
    %v8105 = vsel %vm6974, %v8104, %v8103
    %v8106 = vrot.slane %v8026, 1
    %v8107 = vsel %vm6977, %v8106, %v8105
    %v8108 = vrot.slane %v6867, 7
    %v8109 = vsel %vm6959, %v8108, %v6865
    %v8110 = vrot.slane %v6869, 6
    %v8111 = vsel %vm6962, %v8110, %v8109
    %v8112 = vrot.slane %v6871, 5
    %v8113 = vsel %vm6965, %v8112, %v8111
    %v8114 = vrot.slane %v6873, 4
    %v8115 = vsel %vm6968, %v8114, %v8113
    %v8116 = vrot.slane %v6875, 3
    %v8117 = vsel %vm6971, %v8116, %v8115
    %v8118 = vrot.slane %v6877, 2
    %v8119 = vsel %vm6974, %v8118, %v8117
    %v8120 = vrot.slane %v8027, 1
    %v8121 = vsel %vm6977, %v8120, %v8119
    %v8122 = vrot.slane %v6882, 7
    %v8123 = vsel %vm6959, %v8122, %v6880
    %v8124 = vrot.slane %v6884, 6
    %v8125 = vsel %vm6962, %v8124, %v8123
    %v8126 = vrot.slane %v6886, 5
    %v8127 = vsel %vm6965, %v8126, %v8125
    %v8128 = vrot.slane %v6888, 4
    %v8129 = vsel %vm6968, %v8128, %v8127
    %v8130 = vrot.slane %v6890, 3
    %v8131 = vsel %vm6971, %v8130, %v8129
    %v8132 = vrot.slane %v6892, 2
    %v8133 = vsel %vm6974, %v8132, %v8131
    %v8134 = vrot.slane %v8028, 1
    %v8135 = vsel %vm6977, %v8134, %v8133
    %v8136 = vrot.slane %v6883, 7
    %v8137 = vsel %vm6959, %v8136, %v6881
    %v8138 = vrot.slane %v6885, 6
    %v8139 = vsel %vm6962, %v8138, %v8137
    %v8140 = vrot.slane %v6887, 5
    %v8141 = vsel %vm6965, %v8140, %v8139
    %v8142 = vrot.slane %v6889, 4
    %v8143 = vsel %vm6968, %v8142, %v8141
    %v8144 = vrot.slane %v6891, 3
    %v8145 = vsel %vm6971, %v8144, %v8143
    %v8146 = vrot.slane %v6893, 2
    %v8147 = vsel %vm6974, %v8146, %v8145
    %v8148 = vrot.slane %v8029, 1
    %v8149 = vsel %vm6977, %v8148, %v8147
    %v8150 = vrot.slane %v6898, 7
    %v8151 = vsel %vm6959, %v8150, %v6896
    %v8152 = vrot.slane %v6900, 6
    %v8153 = vsel %vm6962, %v8152, %v8151
    %v8154 = vrot.slane %v6902, 5
    %v8155 = vsel %vm6965, %v8154, %v8153
    %v8156 = vrot.slane %v6904, 4
    %v8157 = vsel %vm6968, %v8156, %v8155
    %v8158 = vrot.slane %v6906, 3
    %v8159 = vsel %vm6971, %v8158, %v8157
    %v8160 = vrot.slane %v6908, 2
    %v8161 = vsel %vm6974, %v8160, %v8159
    %v8162 = vrot.slane %v8030, 1
    %v8163 = vsel %vm6977, %v8162, %v8161
    %v8164 = vrot.slane %v6899, 7
    %v8165 = vsel %vm6959, %v8164, %v6897
    %v8166 = vrot.slane %v6901, 6
    %v8167 = vsel %vm6962, %v8166, %v8165
    %v8168 = vrot.slane %v6903, 5
    %v8169 = vsel %vm6965, %v8168, %v8167
    %v8170 = vrot.slane %v6905, 4
    %v8171 = vsel %vm6968, %v8170, %v8169
    %v8172 = vrot.slane %v6907, 3
    %v8173 = vsel %vm6971, %v8172, %v8171
    %v8174 = vrot.slane %v6909, 2
    %v8175 = vsel %vm6974, %v8174, %v8173
    %v8176 = vrot.slane %v8031, 1
    %v8177 = vsel %vm6977, %v8176, %v8175
    %v8178 = vrot.slane %v6914, 7
    %v8179 = vsel %vm6959, %v8178, %v6912
    %v8180 = vrot.slane %v6916, 6
    %v8181 = vsel %vm6962, %v8180, %v8179
    %v8182 = vrot.slane %v6918, 5
    %v8183 = vsel %vm6965, %v8182, %v8181
    %v8184 = vrot.slane %v6920, 4
    %v8185 = vsel %vm6968, %v8184, %v8183
    %v8186 = vrot.slane %v6922, 3
    %v8187 = vsel %vm6971, %v8186, %v8185
    %v8188 = vrot.slane %v6924, 2
    %v8189 = vsel %vm6974, %v8188, %v8187
    %v8190 = vrot.slane %v8032, 1
    %v8191 = vsel %vm6977, %v8190, %v8189
    %v8192 = vrot.slane %v6915, 7
    %v8193 = vsel %vm6959, %v8192, %v6913
    %v8194 = vrot.slane %v6917, 6
    %v8195 = vsel %vm6962, %v8194, %v8193
    %v8196 = vrot.slane %v6919, 5
    %v8197 = vsel %vm6965, %v8196, %v8195
    %v8198 = vrot.slane %v6921, 4
    %v8199 = vsel %vm6968, %v8198, %v8197
    %v8200 = vrot.slane %v6923, 3
    %v8201 = vsel %vm6971, %v8200, %v8199
    %v8202 = vrot.slane %v6925, 2
    %v8203 = vsel %vm6974, %v8202, %v8201
    %v8204 = vrot.slane %v8033, 1
    %v8205 = vsel %vm6977, %v8204, %v8203
    %v8206 = vrot.slane %v6930, 7
    %v8207 = vsel %vm6959, %v8206, %v6928
    %v8208 = vrot.slane %v6932, 6
    %v8209 = vsel %vm6962, %v8208, %v8207
    %v8210 = vrot.slane %v6934, 5
    %v8211 = vsel %vm6965, %v8210, %v8209
    %v8212 = vrot.slane %v6936, 4
    %v8213 = vsel %vm6968, %v8212, %v8211
    %v8214 = vrot.slane %v6938, 3
    %v8215 = vsel %vm6971, %v8214, %v8213
    %v8216 = vrot.slane %v6940, 2
    %v8217 = vsel %vm6974, %v8216, %v8215
    %v8218 = vrot.slane %v8034, 1
    %v8219 = vsel %vm6977, %v8218, %v8217
    %v8220 = vrot.slane %v6931, 7
    %v8221 = vsel %vm6959, %v8220, %v6929
    %v8222 = vrot.slane %v6933, 6
    %v8223 = vsel %vm6962, %v8222, %v8221
    %v8224 = vrot.slane %v6935, 5
    %v8225 = vsel %vm6965, %v8224, %v8223
    %v8226 = vrot.slane %v6937, 4
    %v8227 = vsel %vm6968, %v8226, %v8225
    %v8228 = vrot.slane %v6939, 3
    %v8229 = vsel %vm6971, %v8228, %v8227
    %v8230 = vrot.slane %v6941, 2
    %v8231 = vsel %vm6974, %v8230, %v8229
    %v8232 = vrot.slane %v8035, 1
    %v8233 = vsel %vm6977, %v8232, %v8231
    %v8234 = vrot.slane %v6946, 7
    %v8235 = vsel %vm6959, %v8234, %v6944
    %v8236 = vrot.slane %v6948, 6
    %v8237 = vsel %vm6962, %v8236, %v8235
    %v8238 = vrot.slane %v6950, 5
    %v8239 = vsel %vm6965, %v8238, %v8237
    %v8240 = vrot.slane %v6952, 4
    %v8241 = vsel %vm6968, %v8240, %v8239
    %v8242 = vrot.slane %v6954, 3
    %v8243 = vsel %vm6971, %v8242, %v8241
    %v8244 = vrot.slane %v6956, 2
    %v8245 = vsel %vm6974, %v8244, %v8243
    %v8246 = vrot.slane %v8036, 1
    %v8247 = vsel %vm6977, %v8246, %v8245
    %v8248 = vrot.slane %v6947, 7
    %v8249 = vsel %vm6959, %v8248, %v6945
    %v8250 = vrot.slane %v6949, 6
    %v8251 = vsel %vm6962, %v8250, %v8249
    %v8252 = vrot.slane %v6951, 5
    %v8253 = vsel %vm6965, %v8252, %v8251
    %v8254 = vrot.slane %v6953, 4
    %v8255 = vsel %vm6968, %v8254, %v8253
    %v8256 = vrot.slane %v6955, 3
    %v8257 = vsel %vm6971, %v8256, %v8255
    %v8258 = vrot.slane %v6957, 2
    %v8259 = vsel %vm6974, %v8258, %v8257
    %v8260 = vrot.slane %v8037, 1
    %v8261 = vsel %vm6977, %v8260, %v8259
    %v8262 = vpack.c.b16 %v8079, %v8051
    %v8263 = vpack.c.b16 %v8093, %v8065
    %v8264 = vpack.c.b16 %v8135, %v8107
    %v8265 = vpack.c.b16 %v8149, %v8121
    %v8266 = vpack.c.b16 %v8191, %v8163
    %v8267 = vpack.c.b16 %v8205, %v8177
    %v8268 = vpack.c.b16 %v8247, %v8219
    %v8269 = vpack.c.b16 %v8261, %v8233
    %v8298 = vunpack.c.l.b16 %v7982
    %v8299 = vunpack.c.h.b16 %v7982
    %v8300 = vunpack.c.l.b16 %v7983
    %v8301 = vunpack.c.h.b16 %v7983
    %v8302 = vunpack.c.l.b16 %v7984
    %v8303 = vunpack.c.h.b16 %v7984
    %v8304 = vunpack.c.l.b16 %v7985
    %v8305 = vunpack.c.h.b16 %v7985
    %v8306 = vunpack.c.l.b16 %v7986
    %v8307 = vunpack.c.h.b16 %v7986
    %v8308 = vunpack.c.l.b16 %v7987
    %v8309 = vunpack.c.h.b16 %v7987
    %v8310 = vunpack.c.l.b16 %v7988
    %v8311 = vunpack.c.h.b16 %v7988
    %v8312 = vunpack.c.l.b16 %v7989
    %v8313 = vunpack.c.h.b16 %v7989
    %v8314 = vunpack.c.l.b16 %v7990
    %v8315 = vunpack.c.h.b16 %v7990
    %v8316 = vunpack.c.l.b16 %v7991
    %v8317 = vunpack.c.h.b16 %v7991
    %v8318 = vunpack.c.l.b16 %v7992
    %v8319 = vunpack.c.h.b16 %v7992
    %v8320 = vunpack.c.l.b16 %v7993
    %v8321 = vunpack.c.h.b16 %v7993
    %v8322 = vunpack.c.l.b16 %v7994
    %v8323 = vunpack.c.h.b16 %v7994
    %v8324 = vunpack.c.l.b16 %v7995
    %v8325 = vunpack.c.h.b16 %v7995
    %v8326 = vunpack.c.l.b16 %v7996
    %v8327 = vunpack.c.h.b16 %v7996
    %v8328 = vunpack.c.l.b16 %v7997
    %v8329 = vunpack.c.h.b16 %v7997
    %v8330 = vunpack.c.l.b16 %v7998
    %v8331 = vunpack.c.h.b16 %v7998
    %v8332 = vunpack.c.l.b16 %v7999
    %v8333 = vunpack.c.h.b16 %v7999
    %v8334 = vunpack.c.l.b16 %v8000
    %v8335 = vunpack.c.h.b16 %v8000
    %v8336 = vunpack.c.l.b16 %v8001
    %v8337 = vunpack.c.h.b16 %v8001
    %v8338 = vunpack.c.l.b16 %v8002
    %v8339 = vunpack.c.h.b16 %v8002
    %v8340 = vunpack.c.l.b16 %v8003
    %v8341 = vunpack.c.h.b16 %v8003
    %v8342 = vunpack.c.l.b16 %v8004
    %v8343 = vunpack.c.h.b16 %v8004
    %v8344 = vunpack.c.l.b16 %v8005
    %v8345 = vunpack.c.h.b16 %v8005
    %v8346 = vpack.c.b16 %v8300, %v8298
    %v8347 = vpack.c.b16 %v8301, %v8299
    %v8348 = vpack.c.b16 %v8304, %v8302
    %v8349 = vpack.c.b16 %v8305, %v8303
    %v8350 = vpack.c.b16 %v8308, %v8306
    %v8351 = vpack.c.b16 %v8309, %v8307
    %v8352 = vpack.c.b16 %v8312, %v8310
    %v8353 = vpack.c.b16 %v8313, %v8311
    %v8354 = vpack.c.b16 %v8316, %v8314
    %v8355 = vpack.c.b16 %v8317, %v8315
    %v8356 = vpack.c.b16 %v8320, %v8318
    %v8357 = vpack.c.b16 %v8321, %v8319
    %v8358 = vpack.c.b16 %v8324, %v8322
    %v8359 = vpack.c.b16 %v8325, %v8323
    %v8360 = vpack.c.b16 %v8328, %v8326
    %v8361 = vpack.c.b16 %v8329, %v8327
    %v8362 = vpack.c.b16 %v8332, %v8330
    %v8363 = vpack.c.b16 %v8333, %v8331
    %v8364 = vpack.c.b16 %v8336, %v8334
    %v8365 = vpack.c.b16 %v8337, %v8335
    %v8366 = vpack.c.b16 %v8340, %v8338
    %v8367 = vpack.c.b16 %v8341, %v8339
    %v8368 = vpack.c.b16 %v8344, %v8342
    %v8369 = vpack.c.b16 %v8345, %v8343
    %v8395 = vsel %vm6028, %v8263, 0
    %v8398 = vsel %vm6028, %v8265, 0
    %v8401 = vsel %vm6028, %v8267, 0
    %v8404 = vsel %vm6028, %v8269, 0
    %8406 = vmatpush.bf16.msra.mxu0 %v8360
    %8407 = vmatpush.bf16.msra.mxu0 %v8358
    %8408 = vmatpush.bf16.msra.mxu0 %v8356
    %8409 = vmatpush.bf16.msra.mxu0 %v8354
    %8410 = vmatpush.bf16.msra.mxu0 %v8352
    %8411 = vmatpush.bf16.msra.mxu0 %v8350
    %8412 = vmatpush.bf16.msra.mxu0 %v8348
    %8413 = vmatpush.bf16.msra.mxu0 %v8346
    %8414 = vmatmul.bf16.gmra.mxu0 %v8262
    %v8415 = vpop.f32.mrf.mxu0
    %v8416 = vadd.f32 0.0, %v8415
    %v8417 = vpop.f32.mrf.mxu0
    %v8418 = vadd.f32 0.0, %v8417
    %8419 = vmatmul.bf16.gmra.mxu0 %v8264
    %v8420 = vpop.f32.mrf.mxu0
    %v8421 = vadd.f32 0.0, %v8420
    %v8422 = vpop.f32.mrf.mxu0
    %v8423 = vadd.f32 0.0, %v8422
    %8424 = vmatmul.bf16.gmra.mxu0 %v8266
    %v8425 = vpop.f32.mrf.mxu0
    %v8426 = vadd.f32 0.0, %v8425
    %v8427 = vpop.f32.mrf.mxu0
    %v8428 = vadd.f32 0.0, %v8427
    %8429 = vmatmul.bf16.gmra.mxu0 %v8268
    %v8430 = vpop.f32.mrf.mxu0
    %v8431 = vadd.f32 0.0, %v8430
    %v8432 = vpop.f32.mrf.mxu0
    %v8433 = vadd.f32 0.0, %v8432
    %8434 = vdwg.mxu0
    %8435 = vmatpush.bf16.msra.mxu0 0
    %8436 = vmatpush.bf16.msra.mxu0 0
    %8437 = vmatpush.bf16.msra.mxu0 0
    %8438 = vmatpush.bf16.msra.mxu0 0
    %8439 = vmatpush.bf16.msra.mxu0 %v8368
    %8440 = vmatpush.bf16.msra.mxu0 %v8366
    %8441 = vmatpush.bf16.msra.mxu0 %v8364
    %8442 = vmatpush.bf16.msra.mxu0 %v8362
    %8443 = vmatmul.bf16.gmra.mxu0 %v8395
    %v8444 = vpop.f32.mrf.mxu0
    %v8445 = vadd.f32 %v8416, %v8444
    %v8446 = vpop.f32.mrf.mxu0
    %v8447 = vadd.f32 %v8418, %v8446
    %8448 = vmatmul.bf16.gmra.mxu0 %v8398
    %v8449 = vpop.f32.mrf.mxu0
    %v8450 = vadd.f32 %v8421, %v8449
    %v8451 = vpop.f32.mrf.mxu0
    %v8452 = vadd.f32 %v8423, %v8451
    %8453 = vmatmul.bf16.gmra.mxu0 %v8401
    %v8454 = vpop.f32.mrf.mxu0
    %v8455 = vadd.f32 %v8426, %v8454
    %v8456 = vpop.f32.mrf.mxu0
    %v8457 = vadd.f32 %v8428, %v8456
    %8458 = vmatmul.bf16.gmra.mxu0 %v8404
    %v8459 = vpop.f32.mrf.mxu0
    %v8460 = vadd.f32 %v8431, %v8459
    %v8461 = vpop.f32.mrf.mxu0
    %v8462 = vadd.f32 %v8433, %v8461
    %8463 = vdwg.mxu0
    %8464 = vmatpush.bf16.msra.mxu0 %v8361
    %8465 = vmatpush.bf16.msra.mxu0 %v8359
    %8466 = vmatpush.bf16.msra.mxu0 %v8357
    %8467 = vmatpush.bf16.msra.mxu0 %v8355
    %8468 = vmatpush.bf16.msra.mxu0 %v8353
    %8469 = vmatpush.bf16.msra.mxu0 %v8351
    %8470 = vmatpush.bf16.msra.mxu0 %v8349
    %8471 = vmatpush.bf16.msra.mxu0 %v8347
    %8472 = vmatmul.bf16.gmra.mxu0 %v8262
    %v8473 = vpop.f32.mrf.mxu0
    %v8474 = vadd.f32 0.0, %v8473
    %v8475 = vpop.f32.mrf.mxu0
    %v8476 = vadd.f32 0.0, %v8475
    %8477 = vmatmul.bf16.gmra.mxu0 %v8264
    %v8478 = vpop.f32.mrf.mxu0
    %v8479 = vadd.f32 0.0, %v8478
    %v8480 = vpop.f32.mrf.mxu0
    %v8481 = vadd.f32 0.0, %v8480
    %8482 = vmatmul.bf16.gmra.mxu0 %v8266
    %v8483 = vpop.f32.mrf.mxu0
    %v8484 = vadd.f32 0.0, %v8483
    %v8485 = vpop.f32.mrf.mxu0
    %v8486 = vadd.f32 0.0, %v8485
    %8487 = vmatmul.bf16.gmra.mxu0 %v8268
    %v8488 = vpop.f32.mrf.mxu0
    %v8489 = vadd.f32 0.0, %v8488
    %v8490 = vpop.f32.mrf.mxu0
    %v8491 = vadd.f32 0.0, %v8490
    %8492 = vdwg.mxu0
    %8493 = vmatpush.bf16.msra.mxu0 0
    %8494 = vmatpush.bf16.msra.mxu0 0
    %8495 = vmatpush.bf16.msra.mxu0 0
    %8496 = vmatpush.bf16.msra.mxu0 0
    %8497 = vmatpush.bf16.msra.mxu0 %v8369
    %8498 = vmatpush.bf16.msra.mxu0 %v8367
    %8499 = vmatpush.bf16.msra.mxu0 %v8365
    %8500 = vmatpush.bf16.msra.mxu0 %v8363
    %8501 = vmatmul.bf16.gmra.mxu0 %v8395
    %v8502 = vpop.f32.mrf.mxu0
    %v8503 = vadd.f32 %v8474, %v8502
    %v8504 = vpop.f32.mrf.mxu0
    %v8505 = vadd.f32 %v8476, %v8504
    %8506 = vmatmul.bf16.gmra.mxu0 %v8398
    %v8507 = vpop.f32.mrf.mxu0
    %v8508 = vadd.f32 %v8479, %v8507
    %v8509 = vpop.f32.mrf.mxu0
    %v8510 = vadd.f32 %v8481, %v8509
    %8511 = vmatmul.bf16.gmra.mxu0 %v8401
    %v8512 = vpop.f32.mrf.mxu0
    %v8513 = vadd.f32 %v8484, %v8512
    %v8514 = vpop.f32.mrf.mxu0
    %v8515 = vadd.f32 %v8486, %v8514
    %8516 = vmatmul.bf16.gmra.mxu0 %v8404
    %v8517 = vpop.f32.mrf.mxu0
    %v8518 = vadd.f32 %v8489, %v8517
    %v8519 = vpop.f32.mrf.mxu0
    %v8520 = vadd.f32 %v8491, %v8519
    %8521 = vdwg.mxu0
    %v8522 = vadd.f32 %v7888, %v8445
    %v8523 = vadd.f32 %v7946, %v8503
    %v8524 = vadd.f32 %v7890, %v8447
    %v8525 = vadd.f32 %v7948, %v8505
    %v8526 = vadd.f32 %v7893, %v8450
    %v8527 = vadd.f32 %v7951, %v8508
    %v8528 = vadd.f32 %v7895, %v8452
    %v8529 = vadd.f32 %v7953, %v8510
    %v8530 = vadd.f32 %v7898, %v8455
    %v8531 = vadd.f32 %v7956, %v8513
    %v8532 = vadd.f32 %v7900, %v8457
    %v8533 = vadd.f32 %v7958, %v8515
    %v8534 = vadd.f32 %v7903, %v8460
    %v8535 = vadd.f32 %v7961, %v8518
    %v8536 = vadd.f32 %v7905, %v8462
    %v8537 = vadd.f32 %v7963, %v8520
    %v8538 = vpack.c.bf16 %v6337, %v6337
    %v8539 = vpack.c.bf16 %v6338, %v6338
    %v8540 = vpack.c.bf16 %v6361, %v6361
    %v8541 = vpack.c.bf16 %v6362, %v6362
    %v8542 = vpack.c.bf16 %v6385, %v6385
    %v8543 = vpack.c.bf16 %v6386, %v6386
    %v8544 = vpack.c.bf16 %v6409, %v6409
    %v8545 = vpack.c.bf16 %v6410, %v6410
    %v8546 = vpack.c.bf16 %v6433, %v6433
    %v8547 = vpack.c.bf16 %v6434, %v6434
    %v8548 = vpack.c.bf16 %v6457, %v6457
    %v8549 = vpack.c.bf16 %v6458, %v6458
    %v8550 = vpack.c.bf16 %v6481, %v6481
    %v8551 = vpack.c.bf16 %v6482, %v6482
    %v8552 = vpack.c.bf16 %v6505, %v6505
    %v8553 = vpack.c.bf16 %v6506, %v6506
    %s8554 = scalar_lea.vmem [#allocation4], 576
    %v8555 = vld [vmem:[%s8554] sm:$0xff]
    %v8556 = vld [vmem:[%s8554 + $0x8] sm:$0xff]
    %v8557 = vld [vmem:[%s8554 + $0x10] sm:$0xff]
    %v8558 = vld [vmem:[%s8554 + $0x18] sm:$0xff]
    %v8559 = vld [vmem:[%s8554 + $0x20] sm:$0xff]
    %v8560 = vld [vmem:[%s8554 + $0x28] sm:$0xff]
    %v8561 = vld [vmem:[%s8554 + $0x30] sm:$0xff]
    %v8562 = vld [vmem:[%s8554 + $0x38] sm:$0xff]
    %v8563 = vld [vmem:[%s8554 + $0x40] sm:$0xff]
    %v8564 = vld [vmem:[%s8554 + $0x48] sm:$0xff]
    %v8565 = vld [vmem:[%s8554 + $0x50] sm:$0xff]
    %v8566 = vld [vmem:[%s8554 + $0x58] sm:$0xff]
    %v8567 = vld [vmem:[%s8554 + $0x60] sm:$0xff]
    %v8568 = vld [vmem:[%s8554 + $0x68] sm:$0xff]
    %v8569 = vld [vmem:[%s8554 + $0x70] sm:$0xff]
    %v8570 = vld [vmem:[%s8554 + $0x78] sm:$0xff]
    %v8571 = vld [vmem:[%s8554 + $0x80] sm:$0xff]
    %v8572 = vld [vmem:[%s8554 + $0x88] sm:$0xff]
    %v8573 = vld [vmem:[%s8554 + $0x90] sm:$0xff]
    %v8574 = vld [vmem:[%s8554 + $0x98] sm:$0xff]
    %v8575 = vld [vmem:[%s8554 + $0xa0] sm:$0xff]
    %v8576 = vld [vmem:[%s8554 + $0xa8] sm:$0xff]
    %v8577 = vld [vmem:[%s8554 + $0xb0] sm:$0xff]
    %v8578 = vld [vmem:[%s8554 + $0xb8] sm:$0xff]
    %v8595 = vunpack.c.l.b16 %v8538
    %v8596 = vunpack.c.l.b16 %v8539
    %v8597 = vunpack.c.l.b16 %v8540
    %v8598 = vunpack.c.l.b16 %v8541
    %v8599 = vunpack.c.l.b16 %v8542
    %v8600 = vunpack.c.l.b16 %v8543
    %v8601 = vunpack.c.l.b16 %v8544
    %v8602 = vunpack.c.l.b16 %v8545
    %v8603 = vunpack.c.l.b16 %v8546
    %v8604 = vunpack.c.l.b16 %v8547
    %v8605 = vunpack.c.l.b16 %v8548
    %v8606 = vunpack.c.l.b16 %v8549
    %v8607 = vunpack.c.l.b16 %v8550
    %v8608 = vunpack.c.l.b16 %v8551
    %v8609 = vunpack.c.l.b16 %v8552
    %v8610 = vunpack.c.l.b16 %v8553
    %v8611 = vrot.slane %v6836, 7
    %v8612 = vsel %vm6959, %v8611, %v6834
    %v8613 = vrot.slane %v6838, 6
    %v8614 = vsel %vm6962, %v8613, %v8612
    %v8615 = vrot.slane %v6840, 5
    %v8616 = vsel %vm6965, %v8615, %v8614
    %v8617 = vrot.slane %v6842, 4
    %v8618 = vsel %vm6968, %v8617, %v8616
    %v8619 = vrot.slane %v6844, 3
    %v8620 = vsel %vm6971, %v8619, %v8618
    %v8621 = vrot.slane %v8022, 2
    %v8622 = vsel %vm6974, %v8621, %v8620
    %v8623 = vrot.slane %v8595, 1
    %v8624 = vsel %vm6977, %v8623, %v8622
    %v8625 = vrot.slane %v6837, 7
    %v8626 = vsel %vm6959, %v8625, %v6835
    %v8627 = vrot.slane %v6839, 6
    %v8628 = vsel %vm6962, %v8627, %v8626
    %v8629 = vrot.slane %v6841, 5
    %v8630 = vsel %vm6965, %v8629, %v8628
    %v8631 = vrot.slane %v6843, 4
    %v8632 = vsel %vm6968, %v8631, %v8630
    %v8633 = vrot.slane %v6845, 3
    %v8634 = vsel %vm6971, %v8633, %v8632
    %v8635 = vrot.slane %v8023, 2
    %v8636 = vsel %vm6974, %v8635, %v8634
    %v8637 = vrot.slane %v8596, 1
    %v8638 = vsel %vm6977, %v8637, %v8636
    %v8639 = vrot.slane %v6852, 7
    %v8640 = vsel %vm6959, %v8639, %v6850
    %v8641 = vrot.slane %v6854, 6
    %v8642 = vsel %vm6962, %v8641, %v8640
    %v8643 = vrot.slane %v6856, 5
    %v8644 = vsel %vm6965, %v8643, %v8642
    %v8645 = vrot.slane %v6858, 4
    %v8646 = vsel %vm6968, %v8645, %v8644
    %v8647 = vrot.slane %v6860, 3
    %v8648 = vsel %vm6971, %v8647, %v8646
    %v8649 = vrot.slane %v8024, 2
    %v8650 = vsel %vm6974, %v8649, %v8648
    %v8651 = vrot.slane %v8597, 1
    %v8652 = vsel %vm6977, %v8651, %v8650
    %v8653 = vrot.slane %v6853, 7
    %v8654 = vsel %vm6959, %v8653, %v6851
    %v8655 = vrot.slane %v6855, 6
    %v8656 = vsel %vm6962, %v8655, %v8654
    %v8657 = vrot.slane %v6857, 5
    %v8658 = vsel %vm6965, %v8657, %v8656
    %v8659 = vrot.slane %v6859, 4
    %v8660 = vsel %vm6968, %v8659, %v8658
    %v8661 = vrot.slane %v6861, 3
    %v8662 = vsel %vm6971, %v8661, %v8660
    %v8663 = vrot.slane %v8025, 2
    %v8664 = vsel %vm6974, %v8663, %v8662
    %v8665 = vrot.slane %v8598, 1
    %v8666 = vsel %vm6977, %v8665, %v8664
    %v8667 = vrot.slane %v6868, 7
    %v8668 = vsel %vm6959, %v8667, %v6866
    %v8669 = vrot.slane %v6870, 6
    %v8670 = vsel %vm6962, %v8669, %v8668
    %v8671 = vrot.slane %v6872, 5
    %v8672 = vsel %vm6965, %v8671, %v8670
    %v8673 = vrot.slane %v6874, 4
    %v8674 = vsel %vm6968, %v8673, %v8672
    %v8675 = vrot.slane %v6876, 3
    %v8676 = vsel %vm6971, %v8675, %v8674
    %v8677 = vrot.slane %v8026, 2
    %v8678 = vsel %vm6974, %v8677, %v8676
    %v8679 = vrot.slane %v8599, 1
    %v8680 = vsel %vm6977, %v8679, %v8678
    %v8681 = vrot.slane %v6869, 7
    %v8682 = vsel %vm6959, %v8681, %v6867
    %v8683 = vrot.slane %v6871, 6
    %v8684 = vsel %vm6962, %v8683, %v8682
    %v8685 = vrot.slane %v6873, 5
    %v8686 = vsel %vm6965, %v8685, %v8684
    %v8687 = vrot.slane %v6875, 4
    %v8688 = vsel %vm6968, %v8687, %v8686
    %v8689 = vrot.slane %v6877, 3
    %v8690 = vsel %vm6971, %v8689, %v8688
    %v8691 = vrot.slane %v8027, 2
    %v8692 = vsel %vm6974, %v8691, %v8690
    %v8693 = vrot.slane %v8600, 1
    %v8694 = vsel %vm6977, %v8693, %v8692
    %v8695 = vrot.slane %v6884, 7
    %v8696 = vsel %vm6959, %v8695, %v6882
    %v8697 = vrot.slane %v6886, 6
    %v8698 = vsel %vm6962, %v8697, %v8696
    %v8699 = vrot.slane %v6888, 5
    %v8700 = vsel %vm6965, %v8699, %v8698
    %v8701 = vrot.slane %v6890, 4
    %v8702 = vsel %vm6968, %v8701, %v8700
    %v8703 = vrot.slane %v6892, 3
    %v8704 = vsel %vm6971, %v8703, %v8702
    %v8705 = vrot.slane %v8028, 2
    %v8706 = vsel %vm6974, %v8705, %v8704
    %v8707 = vrot.slane %v8601, 1
    %v8708 = vsel %vm6977, %v8707, %v8706
    %v8709 = vrot.slane %v6885, 7
    %v8710 = vsel %vm6959, %v8709, %v6883
    %v8711 = vrot.slane %v6887, 6
    %v8712 = vsel %vm6962, %v8711, %v8710
    %v8713 = vrot.slane %v6889, 5
    %v8714 = vsel %vm6965, %v8713, %v8712
    %v8715 = vrot.slane %v6891, 4
    %v8716 = vsel %vm6968, %v8715, %v8714
    %v8717 = vrot.slane %v6893, 3
    %v8718 = vsel %vm6971, %v8717, %v8716
    %v8719 = vrot.slane %v8029, 2
    %v8720 = vsel %vm6974, %v8719, %v8718
    %v8721 = vrot.slane %v8602, 1
    %v8722 = vsel %vm6977, %v8721, %v8720
    %v8723 = vrot.slane %v6900, 7
    %v8724 = vsel %vm6959, %v8723, %v6898
    %v8725 = vrot.slane %v6902, 6
    %v8726 = vsel %vm6962, %v8725, %v8724
    %v8727 = vrot.slane %v6904, 5
    %v8728 = vsel %vm6965, %v8727, %v8726
    %v8729 = vrot.slane %v6906, 4
    %v8730 = vsel %vm6968, %v8729, %v8728
    %v8731 = vrot.slane %v6908, 3
    %v8732 = vsel %vm6971, %v8731, %v8730
    %v8733 = vrot.slane %v8030, 2
    %v8734 = vsel %vm6974, %v8733, %v8732
    %v8735 = vrot.slane %v8603, 1
    %v8736 = vsel %vm6977, %v8735, %v8734
    %v8737 = vrot.slane %v6901, 7
    %v8738 = vsel %vm6959, %v8737, %v6899
    %v8739 = vrot.slane %v6903, 6
    %v8740 = vsel %vm6962, %v8739, %v8738
    %v8741 = vrot.slane %v6905, 5
    %v8742 = vsel %vm6965, %v8741, %v8740
    %v8743 = vrot.slane %v6907, 4
    %v8744 = vsel %vm6968, %v8743, %v8742
    %v8745 = vrot.slane %v6909, 3
    %v8746 = vsel %vm6971, %v8745, %v8744
    %v8747 = vrot.slane %v8031, 2
    %v8748 = vsel %vm6974, %v8747, %v8746
    %v8749 = vrot.slane %v8604, 1
    %v8750 = vsel %vm6977, %v8749, %v8748
    %v8751 = vrot.slane %v6916, 7
    %v8752 = vsel %vm6959, %v8751, %v6914
    %v8753 = vrot.slane %v6918, 6
    %v8754 = vsel %vm6962, %v8753, %v8752
    %v8755 = vrot.slane %v6920, 5
    %v8756 = vsel %vm6965, %v8755, %v8754
    %v8757 = vrot.slane %v6922, 4
    %v8758 = vsel %vm6968, %v8757, %v8756
    %v8759 = vrot.slane %v6924, 3
    %v8760 = vsel %vm6971, %v8759, %v8758
    %v8761 = vrot.slane %v8032, 2
    %v8762 = vsel %vm6974, %v8761, %v8760
    %v8763 = vrot.slane %v8605, 1
    %v8764 = vsel %vm6977, %v8763, %v8762
    %v8765 = vrot.slane %v6917, 7
    %v8766 = vsel %vm6959, %v8765, %v6915
    %v8767 = vrot.slane %v6919, 6
    %v8768 = vsel %vm6962, %v8767, %v8766
    %v8769 = vrot.slane %v6921, 5
    %v8770 = vsel %vm6965, %v8769, %v8768
    %v8771 = vrot.slane %v6923, 4
    %v8772 = vsel %vm6968, %v8771, %v8770
    %v8773 = vrot.slane %v6925, 3
    %v8774 = vsel %vm6971, %v8773, %v8772
    %v8775 = vrot.slane %v8033, 2
    %v8776 = vsel %vm6974, %v8775, %v8774
    %v8777 = vrot.slane %v8606, 1
    %v8778 = vsel %vm6977, %v8777, %v8776
    %v8779 = vrot.slane %v6932, 7
    %v8780 = vsel %vm6959, %v8779, %v6930
    %v8781 = vrot.slane %v6934, 6
    %v8782 = vsel %vm6962, %v8781, %v8780
    %v8783 = vrot.slane %v6936, 5
    %v8784 = vsel %vm6965, %v8783, %v8782
    %v8785 = vrot.slane %v6938, 4
    %v8786 = vsel %vm6968, %v8785, %v8784
    %v8787 = vrot.slane %v6940, 3
    %v8788 = vsel %vm6971, %v8787, %v8786
    %v8789 = vrot.slane %v8034, 2
    %v8790 = vsel %vm6974, %v8789, %v8788
    %v8791 = vrot.slane %v8607, 1
    %v8792 = vsel %vm6977, %v8791, %v8790
    %v8793 = vrot.slane %v6933, 7
    %v8794 = vsel %vm6959, %v8793, %v6931
    %v8795 = vrot.slane %v6935, 6
    %v8796 = vsel %vm6962, %v8795, %v8794
    %v8797 = vrot.slane %v6937, 5
    %v8798 = vsel %vm6965, %v8797, %v8796
    %v8799 = vrot.slane %v6939, 4
    %v8800 = vsel %vm6968, %v8799, %v8798
    %v8801 = vrot.slane %v6941, 3
    %v8802 = vsel %vm6971, %v8801, %v8800
    %v8803 = vrot.slane %v8035, 2
    %v8804 = vsel %vm6974, %v8803, %v8802
    %v8805 = vrot.slane %v8608, 1
    %v8806 = vsel %vm6977, %v8805, %v8804
    %v8807 = vrot.slane %v6948, 7
    %v8808 = vsel %vm6959, %v8807, %v6946
    %v8809 = vrot.slane %v6950, 6
    %v8810 = vsel %vm6962, %v8809, %v8808
    %v8811 = vrot.slane %v6952, 5
    %v8812 = vsel %vm6965, %v8811, %v8810
    %v8813 = vrot.slane %v6954, 4
    %v8814 = vsel %vm6968, %v8813, %v8812
    %v8815 = vrot.slane %v6956, 3
    %v8816 = vsel %vm6971, %v8815, %v8814
    %v8817 = vrot.slane %v8036, 2
    %v8818 = vsel %vm6974, %v8817, %v8816
    %v8819 = vrot.slane %v8609, 1
    %v8820 = vsel %vm6977, %v8819, %v8818
    %v8821 = vrot.slane %v6949, 7
    %v8822 = vsel %vm6959, %v8821, %v6947
    %v8823 = vrot.slane %v6951, 6
    %v8824 = vsel %vm6962, %v8823, %v8822
    %v8825 = vrot.slane %v6953, 5
    %v8826 = vsel %vm6965, %v8825, %v8824
    %v8827 = vrot.slane %v6955, 4
    %v8828 = vsel %vm6968, %v8827, %v8826
    %v8829 = vrot.slane %v6957, 3
    %v8830 = vsel %vm6971, %v8829, %v8828
    %v8831 = vrot.slane %v8037, 2
    %v8832 = vsel %vm6974, %v8831, %v8830
    %v8833 = vrot.slane %v8610, 1
    %v8834 = vsel %vm6977, %v8833, %v8832
    %v8835 = vpack.c.b16 %v8652, %v8624
    %v8836 = vpack.c.b16 %v8666, %v8638
    %v8837 = vpack.c.b16 %v8708, %v8680
    %v8838 = vpack.c.b16 %v8722, %v8694
    %v8839 = vpack.c.b16 %v8764, %v8736
    %v8840 = vpack.c.b16 %v8778, %v8750
    %v8841 = vpack.c.b16 %v8820, %v8792
    %v8842 = vpack.c.b16 %v8834, %v8806
    %v8871 = vunpack.c.l.b16 %v8555
    %v8872 = vunpack.c.h.b16 %v8555
    %v8873 = vunpack.c.l.b16 %v8556
    %v8874 = vunpack.c.h.b16 %v8556
    %v8875 = vunpack.c.l.b16 %v8557
    %v8876 = vunpack.c.h.b16 %v8557
    %v8877 = vunpack.c.l.b16 %v8558
    %v8878 = vunpack.c.h.b16 %v8558
    %v8879 = vunpack.c.l.b16 %v8559
    %v8880 = vunpack.c.h.b16 %v8559
    %v8881 = vunpack.c.l.b16 %v8560
    %v8882 = vunpack.c.h.b16 %v8560
    %v8883 = vunpack.c.l.b16 %v8561
    %v8884 = vunpack.c.h.b16 %v8561
    %v8885 = vunpack.c.l.b16 %v8562
    %v8886 = vunpack.c.h.b16 %v8562
    %v8887 = vunpack.c.l.b16 %v8563
    %v8888 = vunpack.c.h.b16 %v8563
    %v8889 = vunpack.c.l.b16 %v8564
    %v8890 = vunpack.c.h.b16 %v8564
    %v8891 = vunpack.c.l.b16 %v8565
    %v8892 = vunpack.c.h.b16 %v8565
    %v8893 = vunpack.c.l.b16 %v8566
    %v8894 = vunpack.c.h.b16 %v8566
    %v8895 = vunpack.c.l.b16 %v8567
    %v8896 = vunpack.c.h.b16 %v8567
    %v8897 = vunpack.c.l.b16 %v8568
    %v8898 = vunpack.c.h.b16 %v8568
    %v8899 = vunpack.c.l.b16 %v8569
    %v8900 = vunpack.c.h.b16 %v8569
    %v8901 = vunpack.c.l.b16 %v8570
    %v8902 = vunpack.c.h.b16 %v8570
    %v8903 = vunpack.c.l.b16 %v8571
    %v8904 = vunpack.c.h.b16 %v8571
    %v8905 = vunpack.c.l.b16 %v8572
    %v8906 = vunpack.c.h.b16 %v8572
    %v8907 = vunpack.c.l.b16 %v8573
    %v8908 = vunpack.c.h.b16 %v8573
    %v8909 = vunpack.c.l.b16 %v8574
    %v8910 = vunpack.c.h.b16 %v8574
    %v8911 = vunpack.c.l.b16 %v8575
    %v8912 = vunpack.c.h.b16 %v8575
    %v8913 = vunpack.c.l.b16 %v8576
    %v8914 = vunpack.c.h.b16 %v8576
    %v8915 = vunpack.c.l.b16 %v8577
    %v8916 = vunpack.c.h.b16 %v8577
    %v8917 = vunpack.c.l.b16 %v8578
    %v8918 = vunpack.c.h.b16 %v8578
    %v8919 = vpack.c.b16 %v8873, %v8871
    %v8920 = vpack.c.b16 %v8874, %v8872
    %v8921 = vpack.c.b16 %v8877, %v8875
    %v8922 = vpack.c.b16 %v8878, %v8876
    %v8923 = vpack.c.b16 %v8881, %v8879
    %v8924 = vpack.c.b16 %v8882, %v8880
    %v8925 = vpack.c.b16 %v8885, %v8883
    %v8926 = vpack.c.b16 %v8886, %v8884
    %v8927 = vpack.c.b16 %v8889, %v8887
    %v8928 = vpack.c.b16 %v8890, %v8888
    %v8929 = vpack.c.b16 %v8893, %v8891
    %v8930 = vpack.c.b16 %v8894, %v8892
    %v8931 = vpack.c.b16 %v8897, %v8895
    %v8932 = vpack.c.b16 %v8898, %v8896
    %v8933 = vpack.c.b16 %v8901, %v8899
    %v8934 = vpack.c.b16 %v8902, %v8900
    %v8935 = vpack.c.b16 %v8905, %v8903
    %v8936 = vpack.c.b16 %v8906, %v8904
    %v8937 = vpack.c.b16 %v8909, %v8907
    %v8938 = vpack.c.b16 %v8910, %v8908
    %v8939 = vpack.c.b16 %v8913, %v8911
    %v8940 = vpack.c.b16 %v8914, %v8912
    %v8941 = vpack.c.b16 %v8917, %v8915
    %v8942 = vpack.c.b16 %v8918, %v8916
    %v8968 = vsel %vm6028, %v8836, 0
    %v8971 = vsel %vm6028, %v8838, 0
    %v8974 = vsel %vm6028, %v8840, 0
    %v8977 = vsel %vm6028, %v8842, 0
    %8979 = vmatpush.bf16.msra.mxu0 %v8933
    %8980 = vmatpush.bf16.msra.mxu0 %v8931
    %8981 = vmatpush.bf16.msra.mxu0 %v8929
    %8982 = vmatpush.bf16.msra.mxu0 %v8927
    %8983 = vmatpush.bf16.msra.mxu0 %v8925
    %8984 = vmatpush.bf16.msra.mxu0 %v8923
    %8985 = vmatpush.bf16.msra.mxu0 %v8921
    %8986 = vmatpush.bf16.msra.mxu0 %v8919
    %8987 = vmatmul.bf16.gmra.mxu0 %v8835
    %v8988 = vpop.f32.mrf.mxu0
    %v8989 = vadd.f32 0.0, %v8988
    %v8990 = vpop.f32.mrf.mxu0
    %v8991 = vadd.f32 0.0, %v8990
    %8992 = vmatmul.bf16.gmra.mxu0 %v8837
    %v8993 = vpop.f32.mrf.mxu0
    %v8994 = vadd.f32 0.0, %v8993
    %v8995 = vpop.f32.mrf.mxu0
    %v8996 = vadd.f32 0.0, %v8995
    %8997 = vmatmul.bf16.gmra.mxu0 %v8839
    %v8998 = vpop.f32.mrf.mxu0
    %v8999 = vadd.f32 0.0, %v8998
    %v9000 = vpop.f32.mrf.mxu0
    %v9001 = vadd.f32 0.0, %v9000
    %9002 = vmatmul.bf16.gmra.mxu0 %v8841
    %v9003 = vpop.f32.mrf.mxu0
    %v9004 = vadd.f32 0.0, %v9003
    %v9005 = vpop.f32.mrf.mxu0
    %v9006 = vadd.f32 0.0, %v9005
    %9007 = vdwg.mxu0
    %9008 = vmatpush.bf16.msra.mxu0 0
    %9009 = vmatpush.bf16.msra.mxu0 0
    %9010 = vmatpush.bf16.msra.mxu0 0
    %9011 = vmatpush.bf16.msra.mxu0 0
    %9012 = vmatpush.bf16.msra.mxu0 %v8941
    %9013 = vmatpush.bf16.msra.mxu0 %v8939
    %9014 = vmatpush.bf16.msra.mxu0 %v8937
    %9015 = vmatpush.bf16.msra.mxu0 %v8935
    %9016 = vmatmul.bf16.gmra.mxu0 %v8968
    %v9017 = vpop.f32.mrf.mxu0
    %v9018 = vadd.f32 %v8989, %v9017
    %v9019 = vpop.f32.mrf.mxu0
    %v9020 = vadd.f32 %v8991, %v9019
    %9021 = vmatmul.bf16.gmra.mxu0 %v8971
    %v9022 = vpop.f32.mrf.mxu0
    %v9023 = vadd.f32 %v8994, %v9022
    %v9024 = vpop.f32.mrf.mxu0
    %v9025 = vadd.f32 %v8996, %v9024
    %9026 = vmatmul.bf16.gmra.mxu0 %v8974
    %v9027 = vpop.f32.mrf.mxu0
    %v9028 = vadd.f32 %v8999, %v9027
    %v9029 = vpop.f32.mrf.mxu0
    %v9030 = vadd.f32 %v9001, %v9029
    %9031 = vmatmul.bf16.gmra.mxu0 %v8977
    %v9032 = vpop.f32.mrf.mxu0
    %v9033 = vadd.f32 %v9004, %v9032
    %v9034 = vpop.f32.mrf.mxu0
    %v9035 = vadd.f32 %v9006, %v9034
    %9036 = vdwg.mxu0
    %9037 = vmatpush.bf16.msra.mxu0 %v8934
    %9038 = vmatpush.bf16.msra.mxu0 %v8932
    %9039 = vmatpush.bf16.msra.mxu0 %v8930
    %9040 = vmatpush.bf16.msra.mxu0 %v8928
    %9041 = vmatpush.bf16.msra.mxu0 %v8926
    %9042 = vmatpush.bf16.msra.mxu0 %v8924
    %9043 = vmatpush.bf16.msra.mxu0 %v8922
    %9044 = vmatpush.bf16.msra.mxu0 %v8920
    %9045 = vmatmul.bf16.gmra.mxu0 %v8835
    %v9046 = vpop.f32.mrf.mxu0
    %v9047 = vadd.f32 0.0, %v9046
    %v9048 = vpop.f32.mrf.mxu0
    %v9049 = vadd.f32 0.0, %v9048
    %9050 = vmatmul.bf16.gmra.mxu0 %v8837
    %v9051 = vpop.f32.mrf.mxu0
    %v9052 = vadd.f32 0.0, %v9051
    %v9053 = vpop.f32.mrf.mxu0
    %v9054 = vadd.f32 0.0, %v9053
    %9055 = vmatmul.bf16.gmra.mxu0 %v8839
    %v9056 = vpop.f32.mrf.mxu0
    %v9057 = vadd.f32 0.0, %v9056
    %v9058 = vpop.f32.mrf.mxu0
    %v9059 = vadd.f32 0.0, %v9058
    %9060 = vmatmul.bf16.gmra.mxu0 %v8841
    %v9061 = vpop.f32.mrf.mxu0
    %v9062 = vadd.f32 0.0, %v9061
    %v9063 = vpop.f32.mrf.mxu0
    %v9064 = vadd.f32 0.0, %v9063
    %9065 = vdwg.mxu0
    %9066 = vmatpush.bf16.msra.mxu0 0
    %9067 = vmatpush.bf16.msra.mxu0 0
    %9068 = vmatpush.bf16.msra.mxu0 0
    %9069 = vmatpush.bf16.msra.mxu0 0
    %9070 = vmatpush.bf16.msra.mxu0 %v8942
    %9071 = vmatpush.bf16.msra.mxu0 %v8940
    %9072 = vmatpush.bf16.msra.mxu0 %v8938
    %9073 = vmatpush.bf16.msra.mxu0 %v8936
    %9074 = vmatmul.bf16.gmra.mxu0 %v8968
    %v9075 = vpop.f32.mrf.mxu0
    %v9076 = vadd.f32 %v9047, %v9075
    %v9077 = vpop.f32.mrf.mxu0
    %v9078 = vadd.f32 %v9049, %v9077
    %9079 = vmatmul.bf16.gmra.mxu0 %v8971
    %v9080 = vpop.f32.mrf.mxu0
    %v9081 = vadd.f32 %v9052, %v9080
    %v9082 = vpop.f32.mrf.mxu0
    %v9083 = vadd.f32 %v9054, %v9082
    %9084 = vmatmul.bf16.gmra.mxu0 %v8974
    %v9085 = vpop.f32.mrf.mxu0
    %v9086 = vadd.f32 %v9057, %v9085
    %v9087 = vpop.f32.mrf.mxu0
    %v9088 = vadd.f32 %v9059, %v9087
    %9089 = vmatmul.bf16.gmra.mxu0 %v8977
    %v9090 = vpop.f32.mrf.mxu0
    %v9091 = vadd.f32 %v9062, %v9090
    %v9092 = vpop.f32.mrf.mxu0
    %v9093 = vadd.f32 %v9064, %v9092
    %9094 = vdwg.mxu0
    %v9095 = vadd.f32 %v8522, %v9018
    %v9096 = vadd.f32 %v8523, %v9076
    %v9097 = vadd.f32 %v8524, %v9020
    %v9098 = vadd.f32 %v8525, %v9078
    %v9099 = vadd.f32 %v8526, %v9023
    %v9100 = vadd.f32 %v8527, %v9081
    %v9101 = vadd.f32 %v8528, %v9025
    %v9102 = vadd.f32 %v8529, %v9083
    %v9103 = vadd.f32 %v8530, %v9028
    %v9104 = vadd.f32 %v8531, %v9086
    %v9105 = vadd.f32 %v8532, %v9030
    %v9106 = vadd.f32 %v8533, %v9088
    %v9107 = vadd.f32 %v8534, %v9033
    %v9108 = vadd.f32 %v8535, %v9091
    %v9109 = vadd.f32 %v8536, %v9035
    %v9110 = vadd.f32 %v8537, %v9093
    %v9111 = vpack.c.bf16 %v6339, %v6339
    %v9112 = vpack.c.bf16 %v6340, %v6340
    %v9113 = vpack.c.bf16 %v6363, %v6363
    %v9114 = vpack.c.bf16 %v6364, %v6364
    %v9115 = vpack.c.bf16 %v6387, %v6387
    %v9116 = vpack.c.bf16 %v6388, %v6388
    %v9117 = vpack.c.bf16 %v6411, %v6411
    %v9118 = vpack.c.bf16 %v6412, %v6412
    %v9119 = vpack.c.bf16 %v6435, %v6435
    %v9120 = vpack.c.bf16 %v6436, %v6436
    %v9121 = vpack.c.bf16 %v6459, %v6459
    %v9122 = vpack.c.bf16 %v6460, %v6460
    %v9123 = vpack.c.bf16 %v6483, %v6483
    %v9124 = vpack.c.bf16 %v6484, %v6484
    %v9125 = vpack.c.bf16 %v6507, %v6507
    %v9126 = vpack.c.bf16 %v6508, %v6508
    %s9127 = scalar_lea.vmem [#allocation4], 768
    %v9128 = vld [vmem:[%s9127] sm:$0xff]
    %v9129 = vld [vmem:[%s9127 + $0x8] sm:$0xff]
    %v9130 = vld [vmem:[%s9127 + $0x10] sm:$0xff]
    %v9131 = vld [vmem:[%s9127 + $0x18] sm:$0xff]
    %v9132 = vld [vmem:[%s9127 + $0x20] sm:$0xff]
    %v9133 = vld [vmem:[%s9127 + $0x28] sm:$0xff]
    %v9134 = vld [vmem:[%s9127 + $0x30] sm:$0xff]
    %v9135 = vld [vmem:[%s9127 + $0x38] sm:$0xff]
    %v9136 = vld [vmem:[%s9127 + $0x40] sm:$0xff]
    %v9137 = vld [vmem:[%s9127 + $0x48] sm:$0xff]
    %v9138 = vld [vmem:[%s9127 + $0x50] sm:$0xff]
    %v9139 = vld [vmem:[%s9127 + $0x58] sm:$0xff]
    %v9140 = vld [vmem:[%s9127 + $0x60] sm:$0xff]
    %v9141 = vld [vmem:[%s9127 + $0x68] sm:$0xff]
    %v9142 = vld [vmem:[%s9127 + $0x70] sm:$0xff]
    %v9143 = vld [vmem:[%s9127 + $0x78] sm:$0xff]
    %v9144 = vld [vmem:[%s9127 + $0x80] sm:$0xff]
    %v9145 = vld [vmem:[%s9127 + $0x88] sm:$0xff]
    %v9146 = vld [vmem:[%s9127 + $0x90] sm:$0xff]
    %v9147 = vld [vmem:[%s9127 + $0x98] sm:$0xff]
    %v9148 = vld [vmem:[%s9127 + $0xa0] sm:$0xff]
    %v9149 = vld [vmem:[%s9127 + $0xa8] sm:$0xff]
    %v9150 = vld [vmem:[%s9127 + $0xb0] sm:$0xff]
    %v9151 = vld [vmem:[%s9127 + $0xb8] sm:$0xff]
    %v9168 = vunpack.c.l.b16 %v9111
    %v9169 = vunpack.c.l.b16 %v9112
    %v9170 = vunpack.c.l.b16 %v9113
    %v9171 = vunpack.c.l.b16 %v9114
    %v9172 = vunpack.c.l.b16 %v9115
    %v9173 = vunpack.c.l.b16 %v9116
    %v9174 = vunpack.c.l.b16 %v9117
    %v9175 = vunpack.c.l.b16 %v9118
    %v9176 = vunpack.c.l.b16 %v9119
    %v9177 = vunpack.c.l.b16 %v9120
    %v9178 = vunpack.c.l.b16 %v9121
    %v9179 = vunpack.c.l.b16 %v9122
    %v9180 = vunpack.c.l.b16 %v9123
    %v9181 = vunpack.c.l.b16 %v9124
    %v9182 = vunpack.c.l.b16 %v9125
    %v9183 = vunpack.c.l.b16 %v9126
    %v9184 = vrot.slane %v6838, 7
    %v9185 = vsel %vm6959, %v9184, %v6836
    %v9186 = vrot.slane %v6840, 6
    %v9187 = vsel %vm6962, %v9186, %v9185
    %v9188 = vrot.slane %v6842, 5
    %v9189 = vsel %vm6965, %v9188, %v9187
    %v9190 = vrot.slane %v6844, 4
    %v9191 = vsel %vm6968, %v9190, %v9189
    %v9192 = vrot.slane %v8022, 3
    %v9193 = vsel %vm6971, %v9192, %v9191
    %v9194 = vrot.slane %v8595, 2
    %v9195 = vsel %vm6974, %v9194, %v9193
    %v9196 = vrot.slane %v9168, 1
    %v9197 = vsel %vm6977, %v9196, %v9195
    %v9198 = vrot.slane %v6839, 7
    %v9199 = vsel %vm6959, %v9198, %v6837
    %v9200 = vrot.slane %v6841, 6
    %v9201 = vsel %vm6962, %v9200, %v9199
    %v9202 = vrot.slane %v6843, 5
    %v9203 = vsel %vm6965, %v9202, %v9201
    %v9204 = vrot.slane %v6845, 4
    %v9205 = vsel %vm6968, %v9204, %v9203
    %v9206 = vrot.slane %v8023, 3
    %v9207 = vsel %vm6971, %v9206, %v9205
    %v9208 = vrot.slane %v8596, 2
    %v9209 = vsel %vm6974, %v9208, %v9207
    %v9210 = vrot.slane %v9169, 1
    %v9211 = vsel %vm6977, %v9210, %v9209
    %v9212 = vrot.slane %v6854, 7
    %v9213 = vsel %vm6959, %v9212, %v6852
    %v9214 = vrot.slane %v6856, 6
    %v9215 = vsel %vm6962, %v9214, %v9213
    %v9216 = vrot.slane %v6858, 5
    %v9217 = vsel %vm6965, %v9216, %v9215
    %v9218 = vrot.slane %v6860, 4
    %v9219 = vsel %vm6968, %v9218, %v9217
    %v9220 = vrot.slane %v8024, 3
    %v9221 = vsel %vm6971, %v9220, %v9219
    %v9222 = vrot.slane %v8597, 2
    %v9223 = vsel %vm6974, %v9222, %v9221
    %v9224 = vrot.slane %v9170, 1
    %v9225 = vsel %vm6977, %v9224, %v9223
    %v9226 = vrot.slane %v6855, 7
    %v9227 = vsel %vm6959, %v9226, %v6853
    %v9228 = vrot.slane %v6857, 6
    %v9229 = vsel %vm6962, %v9228, %v9227
    %v9230 = vrot.slane %v6859, 5
    %v9231 = vsel %vm6965, %v9230, %v9229
    %v9232 = vrot.slane %v6861, 4
    %v9233 = vsel %vm6968, %v9232, %v9231
    %v9234 = vrot.slane %v8025, 3
    %v9235 = vsel %vm6971, %v9234, %v9233
    %v9236 = vrot.slane %v8598, 2
    %v9237 = vsel %vm6974, %v9236, %v9235
    %v9238 = vrot.slane %v9171, 1
    %v9239 = vsel %vm6977, %v9238, %v9237
    %v9240 = vrot.slane %v6870, 7
    %v9241 = vsel %vm6959, %v9240, %v6868
    %v9242 = vrot.slane %v6872, 6
    %v9243 = vsel %vm6962, %v9242, %v9241
    %v9244 = vrot.slane %v6874, 5
    %v9245 = vsel %vm6965, %v9244, %v9243
    %v9246 = vrot.slane %v6876, 4
    %v9247 = vsel %vm6968, %v9246, %v9245
    %v9248 = vrot.slane %v8026, 3
    %v9249 = vsel %vm6971, %v9248, %v9247
    %v9250 = vrot.slane %v8599, 2
    %v9251 = vsel %vm6974, %v9250, %v9249
    %v9252 = vrot.slane %v9172, 1
    %v9253 = vsel %vm6977, %v9252, %v9251
    %v9254 = vrot.slane %v6871, 7
    %v9255 = vsel %vm6959, %v9254, %v6869
    %v9256 = vrot.slane %v6873, 6
    %v9257 = vsel %vm6962, %v9256, %v9255
    %v9258 = vrot.slane %v6875, 5
    %v9259 = vsel %vm6965, %v9258, %v9257
    %v9260 = vrot.slane %v6877, 4
    %v9261 = vsel %vm6968, %v9260, %v9259
    %v9262 = vrot.slane %v8027, 3
    %v9263 = vsel %vm6971, %v9262, %v9261
    %v9264 = vrot.slane %v8600, 2
    %v9265 = vsel %vm6974, %v9264, %v9263
    %v9266 = vrot.slane %v9173, 1
    %v9267 = vsel %vm6977, %v9266, %v9265
    %v9268 = vrot.slane %v6886, 7
    %v9269 = vsel %vm6959, %v9268, %v6884
    %v9270 = vrot.slane %v6888, 6
    %v9271 = vsel %vm6962, %v9270, %v9269
    %v9272 = vrot.slane %v6890, 5
    %v9273 = vsel %vm6965, %v9272, %v9271
    %v9274 = vrot.slane %v6892, 4
    %v9275 = vsel %vm6968, %v9274, %v9273
    %v9276 = vrot.slane %v8028, 3
    %v9277 = vsel %vm6971, %v9276, %v9275
    %v9278 = vrot.slane %v8601, 2
    %v9279 = vsel %vm6974, %v9278, %v9277
    %v9280 = vrot.slane %v9174, 1
    %v9281 = vsel %vm6977, %v9280, %v9279
    %v9282 = vrot.slane %v6887, 7
    %v9283 = vsel %vm6959, %v9282, %v6885
    %v9284 = vrot.slane %v6889, 6
    %v9285 = vsel %vm6962, %v9284, %v9283
    %v9286 = vrot.slane %v6891, 5
    %v9287 = vsel %vm6965, %v9286, %v9285
    %v9288 = vrot.slane %v6893, 4
    %v9289 = vsel %vm6968, %v9288, %v9287
    %v9290 = vrot.slane %v8029, 3
    %v9291 = vsel %vm6971, %v9290, %v9289
    %v9292 = vrot.slane %v8602, 2
    %v9293 = vsel %vm6974, %v9292, %v9291
    %v9294 = vrot.slane %v9175, 1
    %v9295 = vsel %vm6977, %v9294, %v9293
    %v9296 = vrot.slane %v6902, 7
    %v9297 = vsel %vm6959, %v9296, %v6900
    %v9298 = vrot.slane %v6904, 6
    %v9299 = vsel %vm6962, %v9298, %v9297
    %v9300 = vrot.slane %v6906, 5
    %v9301 = vsel %vm6965, %v9300, %v9299
    %v9302 = vrot.slane %v6908, 4
    %v9303 = vsel %vm6968, %v9302, %v9301
    %v9304 = vrot.slane %v8030, 3
    %v9305 = vsel %vm6971, %v9304, %v9303
    %v9306 = vrot.slane %v8603, 2
    %v9307 = vsel %vm6974, %v9306, %v9305
    %v9308 = vrot.slane %v9176, 1
    %v9309 = vsel %vm6977, %v9308, %v9307
    %v9310 = vrot.slane %v6903, 7
    %v9311 = vsel %vm6959, %v9310, %v6901
    %v9312 = vrot.slane %v6905, 6
    %v9313 = vsel %vm6962, %v9312, %v9311
    %v9314 = vrot.slane %v6907, 5
    %v9315 = vsel %vm6965, %v9314, %v9313
    %v9316 = vrot.slane %v6909, 4
    %v9317 = vsel %vm6968, %v9316, %v9315
    %v9318 = vrot.slane %v8031, 3
    %v9319 = vsel %vm6971, %v9318, %v9317
    %v9320 = vrot.slane %v8604, 2
    %v9321 = vsel %vm6974, %v9320, %v9319
    %v9322 = vrot.slane %v9177, 1
    %v9323 = vsel %vm6977, %v9322, %v9321
    %v9324 = vrot.slane %v6918, 7
    %v9325 = vsel %vm6959, %v9324, %v6916
    %v9326 = vrot.slane %v6920, 6
    %v9327 = vsel %vm6962, %v9326, %v9325
    %v9328 = vrot.slane %v6922, 5
    %v9329 = vsel %vm6965, %v9328, %v9327
    %v9330 = vrot.slane %v6924, 4
    %v9331 = vsel %vm6968, %v9330, %v9329
    %v9332 = vrot.slane %v8032, 3
    %v9333 = vsel %vm6971, %v9332, %v9331
    %v9334 = vrot.slane %v8605, 2
    %v9335 = vsel %vm6974, %v9334, %v9333
    %v9336 = vrot.slane %v9178, 1
    %v9337 = vsel %vm6977, %v9336, %v9335
    %v9338 = vrot.slane %v6919, 7
    %v9339 = vsel %vm6959, %v9338, %v6917
    %v9340 = vrot.slane %v6921, 6
    %v9341 = vsel %vm6962, %v9340, %v9339
    %v9342 = vrot.slane %v6923, 5
    %v9343 = vsel %vm6965, %v9342, %v9341
    %v9344 = vrot.slane %v6925, 4
    %v9345 = vsel %vm6968, %v9344, %v9343
    %v9346 = vrot.slane %v8033, 3
    %v9347 = vsel %vm6971, %v9346, %v9345
    %v9348 = vrot.slane %v8606, 2
    %v9349 = vsel %vm6974, %v9348, %v9347
    %v9350 = vrot.slane %v9179, 1
    %v9351 = vsel %vm6977, %v9350, %v9349
    %v9352 = vrot.slane %v6934, 7
    %v9353 = vsel %vm6959, %v9352, %v6932
    %v9354 = vrot.slane %v6936, 6
    %v9355 = vsel %vm6962, %v9354, %v9353
    %v9356 = vrot.slane %v6938, 5
    %v9357 = vsel %vm6965, %v9356, %v9355
    %v9358 = vrot.slane %v6940, 4
    %v9359 = vsel %vm6968, %v9358, %v9357
    %v9360 = vrot.slane %v8034, 3
    %v9361 = vsel %vm6971, %v9360, %v9359
    %v9362 = vrot.slane %v8607, 2
    %v9363 = vsel %vm6974, %v9362, %v9361
    %v9364 = vrot.slane %v9180, 1
    %v9365 = vsel %vm6977, %v9364, %v9363
    %v9366 = vrot.slane %v6935, 7
    %v9367 = vsel %vm6959, %v9366, %v6933
    %v9368 = vrot.slane %v6937, 6
    %v9369 = vsel %vm6962, %v9368, %v9367
    %v9370 = vrot.slane %v6939, 5
    %v9371 = vsel %vm6965, %v9370, %v9369
    %v9372 = vrot.slane %v6941, 4
    %v9373 = vsel %vm6968, %v9372, %v9371
    %v9374 = vrot.slane %v8035, 3
    %v9375 = vsel %vm6971, %v9374, %v9373
    %v9376 = vrot.slane %v8608, 2
    %v9377 = vsel %vm6974, %v9376, %v9375
    %v9378 = vrot.slane %v9181, 1
    %v9379 = vsel %vm6977, %v9378, %v9377
    %v9380 = vrot.slane %v6950, 7
    %v9381 = vsel %vm6959, %v9380, %v6948
    %v9382 = vrot.slane %v6952, 6
    %v9383 = vsel %vm6962, %v9382, %v9381
    %v9384 = vrot.slane %v6954, 5
    %v9385 = vsel %vm6965, %v9384, %v9383
    %v9386 = vrot.slane %v6956, 4
    %v9387 = vsel %vm6968, %v9386, %v9385
    %v9388 = vrot.slane %v8036, 3
    %v9389 = vsel %vm6971, %v9388, %v9387
    %v9390 = vrot.slane %v8609, 2
    %v9391 = vsel %vm6974, %v9390, %v9389
    %v9392 = vrot.slane %v9182, 1
    %v9393 = vsel %vm6977, %v9392, %v9391
    %v9394 = vrot.slane %v6951, 7
    %v9395 = vsel %vm6959, %v9394, %v6949
    %v9396 = vrot.slane %v6953, 6
    %v9397 = vsel %vm6962, %v9396, %v9395
    %v9398 = vrot.slane %v6955, 5
    %v9399 = vsel %vm6965, %v9398, %v9397
    %v9400 = vrot.slane %v6957, 4
    %v9401 = vsel %vm6968, %v9400, %v9399
    %v9402 = vrot.slane %v8037, 3
    %v9403 = vsel %vm6971, %v9402, %v9401
    %v9404 = vrot.slane %v8610, 2
    %v9405 = vsel %vm6974, %v9404, %v9403
    %v9406 = vrot.slane %v9183, 1
    %v9407 = vsel %vm6977, %v9406, %v9405
    %v9408 = vpack.c.b16 %v9225, %v9197
    %v9409 = vpack.c.b16 %v9239, %v9211
    %v9410 = vpack.c.b16 %v9281, %v9253
    %v9411 = vpack.c.b16 %v9295, %v9267
    %v9412 = vpack.c.b16 %v9337, %v9309
    %v9413 = vpack.c.b16 %v9351, %v9323
    %v9414 = vpack.c.b16 %v9393, %v9365
    %v9415 = vpack.c.b16 %v9407, %v9379
    %v9444 = vunpack.c.l.b16 %v9128
    %v9445 = vunpack.c.h.b16 %v9128
    %v9446 = vunpack.c.l.b16 %v9129
    %v9447 = vunpack.c.h.b16 %v9129
    %v9448 = vunpack.c.l.b16 %v9130
    %v9449 = vunpack.c.h.b16 %v9130
    %v9450 = vunpack.c.l.b16 %v9131
    %v9451 = vunpack.c.h.b16 %v9131
    %v9452 = vunpack.c.l.b16 %v9132
    %v9453 = vunpack.c.h.b16 %v9132
    %v9454 = vunpack.c.l.b16 %v9133
    %v9455 = vunpack.c.h.b16 %v9133
    %v9456 = vunpack.c.l.b16 %v9134
    %v9457 = vunpack.c.h.b16 %v9134
    %v9458 = vunpack.c.l.b16 %v9135
    %v9459 = vunpack.c.h.b16 %v9135
    %v9460 = vunpack.c.l.b16 %v9136
    %v9461 = vunpack.c.h.b16 %v9136
    %v9462 = vunpack.c.l.b16 %v9137
    %v9463 = vunpack.c.h.b16 %v9137
    %v9464 = vunpack.c.l.b16 %v9138
    %v9465 = vunpack.c.h.b16 %v9138
    %v9466 = vunpack.c.l.b16 %v9139
    %v9467 = vunpack.c.h.b16 %v9139
    %v9468 = vunpack.c.l.b16 %v9140
    %v9469 = vunpack.c.h.b16 %v9140
    %v9470 = vunpack.c.l.b16 %v9141
    %v9471 = vunpack.c.h.b16 %v9141
    %v9472 = vunpack.c.l.b16 %v9142
    %v9473 = vunpack.c.h.b16 %v9142
    %v9474 = vunpack.c.l.b16 %v9143
    %v9475 = vunpack.c.h.b16 %v9143
    %v9476 = vunpack.c.l.b16 %v9144
    %v9477 = vunpack.c.h.b16 %v9144
    %v9478 = vunpack.c.l.b16 %v9145
    %v9479 = vunpack.c.h.b16 %v9145
    %v9480 = vunpack.c.l.b16 %v9146
    %v9481 = vunpack.c.h.b16 %v9146
    %v9482 = vunpack.c.l.b16 %v9147
    %v9483 = vunpack.c.h.b16 %v9147
    %v9484 = vunpack.c.l.b16 %v9148
    %v9485 = vunpack.c.h.b16 %v9148
    %v9486 = vunpack.c.l.b16 %v9149
    %v9487 = vunpack.c.h.b16 %v9149
    %v9488 = vunpack.c.l.b16 %v9150
    %v9489 = vunpack.c.h.b16 %v9150
    %v9490 = vunpack.c.l.b16 %v9151
    %v9491 = vunpack.c.h.b16 %v9151
    %v9492 = vpack.c.b16 %v9446, %v9444
    %v9493 = vpack.c.b16 %v9447, %v9445
    %v9494 = vpack.c.b16 %v9450, %v9448
    %v9495 = vpack.c.b16 %v9451, %v9449
    %v9496 = vpack.c.b16 %v9454, %v9452
    %v9497 = vpack.c.b16 %v9455, %v9453
    %v9498 = vpack.c.b16 %v9458, %v9456
    %v9499 = vpack.c.b16 %v9459, %v9457
    %v9500 = vpack.c.b16 %v9462, %v9460
    %v9501 = vpack.c.b16 %v9463, %v9461
    %v9502 = vpack.c.b16 %v9466, %v9464
    %v9503 = vpack.c.b16 %v9467, %v9465
    %v9504 = vpack.c.b16 %v9470, %v9468
    %v9505 = vpack.c.b16 %v9471, %v9469
    %v9506 = vpack.c.b16 %v9474, %v9472
    %v9507 = vpack.c.b16 %v9475, %v9473
    %v9508 = vpack.c.b16 %v9478, %v9476
    %v9509 = vpack.c.b16 %v9479, %v9477
    %v9510 = vpack.c.b16 %v9482, %v9480
    %v9511 = vpack.c.b16 %v9483, %v9481
    %v9512 = vpack.c.b16 %v9486, %v9484
    %v9513 = vpack.c.b16 %v9487, %v9485
    %v9514 = vpack.c.b16 %v9490, %v9488
    %v9515 = vpack.c.b16 %v9491, %v9489
    %v9541 = vsel %vm6028, %v9409, 0
    %v9544 = vsel %vm6028, %v9411, 0
    %v9547 = vsel %vm6028, %v9413, 0
    %v9550 = vsel %vm6028, %v9415, 0
    %9552 = vmatpush.bf16.msra.mxu0 %v9506
    %9553 = vmatpush.bf16.msra.mxu0 %v9504
    %9554 = vmatpush.bf16.msra.mxu0 %v9502
    %9555 = vmatpush.bf16.msra.mxu0 %v9500
    %9556 = vmatpush.bf16.msra.mxu0 %v9498
    %9557 = vmatpush.bf16.msra.mxu0 %v9496
    %9558 = vmatpush.bf16.msra.mxu0 %v9494
    %9559 = vmatpush.bf16.msra.mxu0 %v9492
    %9560 = vmatmul.bf16.gmra.mxu0 %v9408
    %v9561 = vpop.f32.mrf.mxu0
    %v9562 = vadd.f32 0.0, %v9561
    %v9563 = vpop.f32.mrf.mxu0
    %v9564 = vadd.f32 0.0, %v9563
    %9565 = vmatmul.bf16.gmra.mxu0 %v9410
    %v9566 = vpop.f32.mrf.mxu0
    %v9567 = vadd.f32 0.0, %v9566
    %v9568 = vpop.f32.mrf.mxu0
    %v9569 = vadd.f32 0.0, %v9568
    %9570 = vmatmul.bf16.gmra.mxu0 %v9412
    %v9571 = vpop.f32.mrf.mxu0
    %v9572 = vadd.f32 0.0, %v9571
    %v9573 = vpop.f32.mrf.mxu0
    %v9574 = vadd.f32 0.0, %v9573
    %9575 = vmatmul.bf16.gmra.mxu0 %v9414
    %v9576 = vpop.f32.mrf.mxu0
    %v9577 = vadd.f32 0.0, %v9576
    %v9578 = vpop.f32.mrf.mxu0
    %v9579 = vadd.f32 0.0, %v9578
    %9580 = vdwg.mxu0
    %9581 = vmatpush.bf16.msra.mxu0 0
    %9582 = vmatpush.bf16.msra.mxu0 0
    %9583 = vmatpush.bf16.msra.mxu0 0
    %9584 = vmatpush.bf16.msra.mxu0 0
    %9585 = vmatpush.bf16.msra.mxu0 %v9514
    %9586 = vmatpush.bf16.msra.mxu0 %v9512
    %9587 = vmatpush.bf16.msra.mxu0 %v9510
    %9588 = vmatpush.bf16.msra.mxu0 %v9508
    %9589 = vmatmul.bf16.gmra.mxu0 %v9541
    %v9590 = vpop.f32.mrf.mxu0
    %v9591 = vadd.f32 %v9562, %v9590
    %v9592 = vpop.f32.mrf.mxu0
    %v9593 = vadd.f32 %v9564, %v9592
    %9594 = vmatmul.bf16.gmra.mxu0 %v9544
    %v9595 = vpop.f32.mrf.mxu0
    %v9596 = vadd.f32 %v9567, %v9595
    %v9597 = vpop.f32.mrf.mxu0
    %v9598 = vadd.f32 %v9569, %v9597
    %9599 = vmatmul.bf16.gmra.mxu0 %v9547
    %v9600 = vpop.f32.mrf.mxu0
    %v9601 = vadd.f32 %v9572, %v9600
    %v9602 = vpop.f32.mrf.mxu0
    %v9603 = vadd.f32 %v9574, %v9602
    %9604 = vmatmul.bf16.gmra.mxu0 %v9550
    %v9605 = vpop.f32.mrf.mxu0
    %v9606 = vadd.f32 %v9577, %v9605
    %v9607 = vpop.f32.mrf.mxu0
    %v9608 = vadd.f32 %v9579, %v9607
    %9609 = vdwg.mxu0
    %9610 = vmatpush.bf16.msra.mxu0 %v9507
    %9611 = vmatpush.bf16.msra.mxu0 %v9505
    %9612 = vmatpush.bf16.msra.mxu0 %v9503
    %9613 = vmatpush.bf16.msra.mxu0 %v9501
    %9614 = vmatpush.bf16.msra.mxu0 %v9499
    %9615 = vmatpush.bf16.msra.mxu0 %v9497
    %9616 = vmatpush.bf16.msra.mxu0 %v9495
    %9617 = vmatpush.bf16.msra.mxu0 %v9493
    %9618 = vmatmul.bf16.gmra.mxu0 %v9408
    %v9619 = vpop.f32.mrf.mxu0
    %v9620 = vadd.f32 0.0, %v9619
    %v9621 = vpop.f32.mrf.mxu0
    %v9622 = vadd.f32 0.0, %v9621
    %9623 = vmatmul.bf16.gmra.mxu0 %v9410
    %v9624 = vpop.f32.mrf.mxu0
    %v9625 = vadd.f32 0.0, %v9624
    %v9626 = vpop.f32.mrf.mxu0
    %v9627 = vadd.f32 0.0, %v9626
    %9628 = vmatmul.bf16.gmra.mxu0 %v9412
    %v9629 = vpop.f32.mrf.mxu0
    %v9630 = vadd.f32 0.0, %v9629
    %v9631 = vpop.f32.mrf.mxu0
    %v9632 = vadd.f32 0.0, %v9631
    %9633 = vmatmul.bf16.gmra.mxu0 %v9414
    %v9634 = vpop.f32.mrf.mxu0
    %v9635 = vadd.f32 0.0, %v9634
    %v9636 = vpop.f32.mrf.mxu0
    %v9637 = vadd.f32 0.0, %v9636
    %9638 = vdwg.mxu0
    %9639 = vmatpush.bf16.msra.mxu0 0
    %9640 = vmatpush.bf16.msra.mxu0 0
    %9641 = vmatpush.bf16.msra.mxu0 0
    %9642 = vmatpush.bf16.msra.mxu0 0
    %9643 = vmatpush.bf16.msra.mxu0 %v9515
    %9644 = vmatpush.bf16.msra.mxu0 %v9513
    %9645 = vmatpush.bf16.msra.mxu0 %v9511
    %9646 = vmatpush.bf16.msra.mxu0 %v9509
    %9647 = vmatmul.bf16.gmra.mxu0 %v9541
    %v9648 = vpop.f32.mrf.mxu0
    %v9649 = vadd.f32 %v9620, %v9648
    %v9650 = vpop.f32.mrf.mxu0
    %v9651 = vadd.f32 %v9622, %v9650
    %9652 = vmatmul.bf16.gmra.mxu0 %v9544
    %v9653 = vpop.f32.mrf.mxu0
    %v9654 = vadd.f32 %v9625, %v9653
    %v9655 = vpop.f32.mrf.mxu0
    %v9656 = vadd.f32 %v9627, %v9655
    %9657 = vmatmul.bf16.gmra.mxu0 %v9547
    %v9658 = vpop.f32.mrf.mxu0
    %v9659 = vadd.f32 %v9630, %v9658
    %v9660 = vpop.f32.mrf.mxu0
    %v9661 = vadd.f32 %v9632, %v9660
    %9662 = vmatmul.bf16.gmra.mxu0 %v9550
    %v9663 = vpop.f32.mrf.mxu0
    %v9664 = vadd.f32 %v9635, %v9663
    %v9665 = vpop.f32.mrf.mxu0
    %v9666 = vadd.f32 %v9637, %v9665
    %9667 = vdwg.mxu0
    %v9668 = vadd.f32 %v9095, %v9591
    %v9669 = vadd.f32 %v9096, %v9649
    %v9670 = vadd.f32 %v9097, %v9593
    %v9671 = vadd.f32 %v9098, %v9651
    %v9672 = vadd.f32 %v9099, %v9596
    %v9673 = vadd.f32 %v9100, %v9654
    %v9674 = vadd.f32 %v9101, %v9598
    %v9675 = vadd.f32 %v9102, %v9656
    %v9676 = vadd.f32 %v9103, %v9601
    %v9677 = vadd.f32 %v9104, %v9659
    %v9678 = vadd.f32 %v9105, %v9603
    %v9679 = vadd.f32 %v9106, %v9661
    %v9680 = vadd.f32 %v9107, %v9606
    %v9681 = vadd.f32 %v9108, %v9664
    %v9682 = vadd.f32 %v9109, %v9608
    %v9683 = vadd.f32 %v9110, %v9666
    %v9684 = vld [vmem:[%s4] sm:$0x3]
    %v9686 = vperm.slane %v9684, 0
    %v9687 = vperm.slane %v9684, 1
    %v9690 = vadd.f32 %v9668, %v9686
    %v9691 = vadd.f32 %v9669, %v9687
    %v9692 = vadd.f32 %v9670, %v9686
    %v9693 = vadd.f32 %v9671, %v9687
    %v9694 = vadd.f32 %v9672, %v9686
    %v9695 = vadd.f32 %v9673, %v9687
    %v9696 = vadd.f32 %v9674, %v9686
    %v9697 = vadd.f32 %v9675, %v9687
    %v9698 = vadd.f32 %v9676, %v9686
    %v9699 = vadd.f32 %v9677, %v9687
    %v9700 = vadd.f32 %v9678, %v9686
    %v9701 = vadd.f32 %v9679, %v9687
    %v9702 = vadd.f32 %v9680, %v9686
    %v9703 = vadd.f32 %v9681, %v9687
    %v9704 = vadd.f32 %v9682, %v9686
    %v9705 = vadd.f32 %v9683, %v9687
    %v9706 = vmax.f32 %v9690, 0.0
    %v9707 = vmax.f32 %v9691, 0.0
    %v9708 = vmax.f32 %v9692, 0.0
    %v9709 = vmax.f32 %v9693, 0.0
    %v9710 = vmax.f32 %v9694, 0.0
    %v9711 = vmax.f32 %v9695, 0.0
    %v9712 = vmax.f32 %v9696, 0.0
    %v9713 = vmax.f32 %v9697, 0.0
    %v9714 = vmax.f32 %v9698, 0.0
    %v9715 = vmax.f32 %v9699, 0.0
    %v9716 = vmax.f32 %v9700, 0.0
    %v9717 = vmax.f32 %v9701, 0.0
    %v9718 = vmax.f32 %v9702, 0.0
    %v9719 = vmax.f32 %v9703, 0.0
    %v9720 = vmax.f32 %v9704, 0.0
    %v9721 = vmax.f32 %v9705, 0.0
    %v9738 = vrot.slane %v9707, 6
    %v9739 = vrot.slane %v9709, 6
    %v9740 = vrot.slane %v9711, 6
    %v9741 = vrot.slane %v9713, 6
    %v9742 = vrot.slane %v9715, 6
    %v9743 = vrot.slane %v9717, 6
    %v9744 = vrot.slane %v9719, 6
    %v9745 = vrot.slane %v9721, 6
    %v9746 = vsel %vm2494, %v9706, %v9738
    %v9747 = vsel %vm2497, %v9706, %v9738
    %v9748 = vrot.slane %v9747, 2
    %v9749 = vsel %vm2502, %v9706, %v9738
    %v9750 = vrot.slane %v9749, 4
    %v9751 = vsel %vm2506, %v9738, %v9706
    %v9752 = vrot.slane %v9751, 6
    %v9753 = vsel %vm2494, %v9708, %v9739
    %v9754 = vsel %vm2497, %v9708, %v9739
    %v9755 = vrot.slane %v9754, 2
    %v9756 = vsel %vm2502, %v9708, %v9739
    %v9757 = vrot.slane %v9756, 4
    %v9758 = vsel %vm2506, %v9739, %v9708
    %v9759 = vrot.slane %v9758, 6
    %v9760 = vsel %vm2494, %v9710, %v9740
    %v9761 = vsel %vm2497, %v9710, %v9740
    %v9762 = vrot.slane %v9761, 2
    %v9763 = vsel %vm2502, %v9710, %v9740
    %v9764 = vrot.slane %v9763, 4
    %v9765 = vsel %vm2506, %v9740, %v9710
    %v9766 = vrot.slane %v9765, 6
    %v9767 = vsel %vm2494, %v9712, %v9741
    %v9768 = vsel %vm2497, %v9712, %v9741
    %v9769 = vrot.slane %v9768, 2
    %v9770 = vsel %vm2502, %v9712, %v9741
    %v9771 = vrot.slane %v9770, 4
    %v9772 = vsel %vm2506, %v9741, %v9712
    %v9773 = vrot.slane %v9772, 6
    %v9774 = vsel %vm2494, %v9714, %v9742
    %v9775 = vsel %vm2497, %v9714, %v9742
    %v9776 = vrot.slane %v9775, 2
    %v9777 = vsel %vm2502, %v9714, %v9742
    %v9778 = vrot.slane %v9777, 4
    %v9779 = vsel %vm2506, %v9742, %v9714
    %v9780 = vrot.slane %v9779, 6
    %v9781 = vsel %vm2494, %v9716, %v9743
    %v9782 = vsel %vm2497, %v9716, %v9743
    %v9783 = vrot.slane %v9782, 2
    %v9784 = vsel %vm2502, %v9716, %v9743
    %v9785 = vrot.slane %v9784, 4
    %v9786 = vsel %vm2506, %v9743, %v9716
    %v9787 = vrot.slane %v9786, 6
    %v9788 = vsel %vm2494, %v9718, %v9744
    %v9789 = vsel %vm2497, %v9718, %v9744
    %v9790 = vrot.slane %v9789, 2
    %v9791 = vsel %vm2502, %v9718, %v9744
    %v9792 = vrot.slane %v9791, 4
    %v9793 = vsel %vm2506, %v9744, %v9718
    %v9794 = vrot.slane %v9793, 6
    %v9795 = vsel %vm2494, %v9720, %v9745
    %v9796 = vsel %vm2497, %v9720, %v9745
    %v9797 = vrot.slane %v9796, 2
    %v9798 = vsel %vm2502, %v9720, %v9745
    %v9799 = vrot.slane %v9798, 4
    %v9800 = vsel %vm2506, %v9745, %v9720
    %v9801 = vrot.slane %v9800, 6
    %9802 = vst [vmem:[#allocation1] ss:$4 sm:$0xff] %v9746
    %v9803 = vld.sshfl [vmem:[#allocation1] sm:$0xff pattern:$0x73625140]
    %v9804 = vld.sshfl [vmem:[#allocation1 + $0x8] sm:$0xff pattern:$0x73625140]
    %s9805 = scalar_lea.vmem [#allocation1], 32
    %9806 = vst [vmem:[%s9805] ss:$4 sm:$0xff] %v9748
    %v9807 = vld.sshfl [vmem:[#allocation1 + $0x20] sm:$0xff pattern:$0x73625140]
    %v9808 = vld.sshfl [vmem:[#allocation1 + $0x28] sm:$0xff pattern:$0x73625140]
    %9809 = vst [vmem:[#allocation1] ss:$4 sm:$0xff] %v9750
    %v9810 = vld.sshfl [vmem:[#allocation1] sm:$0xff pattern:$0x73625140]
    %v9811 = vld.sshfl [vmem:[#allocation1 + $0x8] sm:$0xff pattern:$0x73625140]
    %9812 = vst [vmem:[%s9805] ss:$4 sm:$0xff] %v9752
    %v9813 = vld.sshfl [vmem:[#allocation1 + $0x20] sm:$0xff pattern:$0x73625140]
    %v9814 = vld.sshfl [vmem:[#allocation1 + $0x28] sm:$0xff pattern:$0x73625140]
    %9815 = vst [vmem:[#allocation1] ss:$4 sm:$0xff] %v9753
    %v9816 = vld.sshfl [vmem:[#allocation1] sm:$0xff pattern:$0x73625140]
    %v9817 = vld.sshfl [vmem:[#allocation1 + $0x8] sm:$0xff pattern:$0x73625140]
    %9818 = vst [vmem:[%s9805] ss:$4 sm:$0xff] %v9755
    %v9819 = vld.sshfl [vmem:[#allocation1 + $0x20] sm:$0xff pattern:$0x73625140]
    %v9820 = vld.sshfl [vmem:[#allocation1 + $0x28] sm:$0xff pattern:$0x73625140]
    %9821 = vst [vmem:[#allocation1] ss:$4 sm:$0xff] %v9757
    %v9822 = vld.sshfl [vmem:[#allocation1] sm:$0xff pattern:$0x73625140]
    %v9823 = vld.sshfl [vmem:[#allocation1 + $0x8] sm:$0xff pattern:$0x73625140]
    %9824 = vst [vmem:[%s9805] ss:$4 sm:$0xff] %v9759
    %v9825 = vld.sshfl [vmem:[#allocation1 + $0x20] sm:$0xff pattern:$0x73625140]
    %v9826 = vld.sshfl [vmem:[#allocation1 + $0x28] sm:$0xff pattern:$0x73625140]
    %9827 = vst [vmem:[#allocation1] ss:$4 sm:$0xff] %v9760
    %v9828 = vld.sshfl [vmem:[#allocation1] sm:$0xff pattern:$0x73625140]
    %v9829 = vld.sshfl [vmem:[#allocation1 + $0x8] sm:$0xff pattern:$0x73625140]
    %9830 = vst [vmem:[%s9805] ss:$4 sm:$0xff] %v9762
    %v9831 = vld.sshfl [vmem:[#allocation1 + $0x20] sm:$0xff pattern:$0x73625140]
    %v9832 = vld.sshfl [vmem:[#allocation1 + $0x28] sm:$0xff pattern:$0x73625140]
    %9833 = vst [vmem:[#allocation1] ss:$4 sm:$0xff] %v9764
    %v9834 = vld.sshfl [vmem:[#allocation1] sm:$0xff pattern:$0x73625140]
    %v9835 = vld.sshfl [vmem:[#allocation1 + $0x8] sm:$0xff pattern:$0x73625140]
    %9836 = vst [vmem:[%s9805] ss:$4 sm:$0xff] %v9766
    %v9837 = vld.sshfl [vmem:[#allocation1 + $0x20] sm:$0xff pattern:$0x73625140]
    %v9838 = vld.sshfl [vmem:[#allocation1 + $0x28] sm:$0xff pattern:$0x73625140]
    %9839 = vst [vmem:[#allocation1] ss:$4 sm:$0xff] %v9767
    %v9840 = vld.sshfl [vmem:[#allocation1] sm:$0xff pattern:$0x73625140]
    %v9841 = vld.sshfl [vmem:[#allocation1 + $0x8] sm:$0xff pattern:$0x73625140]
    %9842 = vst [vmem:[%s9805] ss:$4 sm:$0xff] %v9769
    %v9843 = vld.sshfl [vmem:[#allocation1 + $0x20] sm:$0xff pattern:$0x73625140]
    %v9844 = vld.sshfl [vmem:[#allocation1 + $0x28] sm:$0xff pattern:$0x73625140]
    %9845 = vst [vmem:[#allocation1] ss:$4 sm:$0xff] %v9771
    %v9846 = vld.sshfl [vmem:[#allocation1] sm:$0xff pattern:$0x73625140]
    %v9847 = vld.sshfl [vmem:[#allocation1 + $0x8] sm:$0xff pattern:$0x73625140]
    %9848 = vst [vmem:[%s9805] ss:$4 sm:$0xff] %v9773
    %v9849 = vld.sshfl [vmem:[#allocation1 + $0x20] sm:$0xff pattern:$0x73625140]
    %v9850 = vld.sshfl [vmem:[#allocation1 + $0x28] sm:$0xff pattern:$0x73625140]
    %9851 = vst [vmem:[#allocation1] ss:$4 sm:$0xff] %v9774
    %v9852 = vld.sshfl [vmem:[#allocation1] sm:$0xff pattern:$0x73625140]
    %v9853 = vld.sshfl [vmem:[#allocation1 + $0x8] sm:$0xff pattern:$0x73625140]
    %9854 = vst [vmem:[%s9805] ss:$4 sm:$0xff] %v9776
    %v9855 = vld.sshfl [vmem:[#allocation1 + $0x20] sm:$0xff pattern:$0x73625140]
    %v9856 = vld.sshfl [vmem:[#allocation1 + $0x28] sm:$0xff pattern:$0x73625140]
    %9857 = vst [vmem:[#allocation1] ss:$4 sm:$0xff] %v9778
    %v9858 = vld.sshfl [vmem:[#allocation1] sm:$0xff pattern:$0x73625140]
    %v9859 = vld.sshfl [vmem:[#allocation1 + $0x8] sm:$0xff pattern:$0x73625140]
    %9860 = vst [vmem:[%s9805] ss:$4 sm:$0xff] %v9780
    %v9861 = vld.sshfl [vmem:[#allocation1 + $0x20] sm:$0xff pattern:$0x73625140]
    %v9862 = vld.sshfl [vmem:[#allocation1 + $0x28] sm:$0xff pattern:$0x73625140]
    %9863 = vst [vmem:[#allocation1] ss:$4 sm:$0xff] %v9781
    %v9864 = vld.sshfl [vmem:[#allocation1] sm:$0xff pattern:$0x73625140]
    %v9865 = vld.sshfl [vmem:[#allocation1 + $0x8] sm:$0xff pattern:$0x73625140]
    %9866 = vst [vmem:[%s9805] ss:$4 sm:$0xff] %v9783
    %v9867 = vld.sshfl [vmem:[#allocation1 + $0x20] sm:$0xff pattern:$0x73625140]
    %v9868 = vld.sshfl [vmem:[#allocation1 + $0x28] sm:$0xff pattern:$0x73625140]
    %9869 = vst [vmem:[#allocation1] ss:$4 sm:$0xff] %v9785
    %v9870 = vld.sshfl [vmem:[#allocation1] sm:$0xff pattern:$0x73625140]
    %v9871 = vld.sshfl [vmem:[#allocation1 + $0x8] sm:$0xff pattern:$0x73625140]
    %9872 = vst [vmem:[%s9805] ss:$4 sm:$0xff] %v9787
    %v9873 = vld.sshfl [vmem:[#allocation1 + $0x20] sm:$0xff pattern:$0x73625140]
    %v9874 = vld.sshfl [vmem:[#allocation1 + $0x28] sm:$0xff pattern:$0x73625140]
    %9875 = vst [vmem:[#allocation1] ss:$4 sm:$0xff] %v9788
    %v9876 = vld.sshfl [vmem:[#allocation1] sm:$0xff pattern:$0x73625140]
    %v9877 = vld.sshfl [vmem:[#allocation1 + $0x8] sm:$0xff pattern:$0x73625140]
    %9878 = vst [vmem:[%s9805] ss:$4 sm:$0xff] %v9790
    %v9879 = vld.sshfl [vmem:[#allocation1 + $0x20] sm:$0xff pattern:$0x73625140]
    %v9880 = vld.sshfl [vmem:[#allocation1 + $0x28] sm:$0xff pattern:$0x73625140]
    %9881 = vst [vmem:[#allocation1] ss:$4 sm:$0xff] %v9792
    %v9882 = vld.sshfl [vmem:[#allocation1] sm:$0xff pattern:$0x73625140]
    %v9883 = vld.sshfl [vmem:[#allocation1 + $0x8] sm:$0xff pattern:$0x73625140]
    %9884 = vst [vmem:[%s9805] ss:$4 sm:$0xff] %v9794
    %v9885 = vld.sshfl [vmem:[#allocation1 + $0x20] sm:$0xff pattern:$0x73625140]
    %v9886 = vld.sshfl [vmem:[#allocation1 + $0x28] sm:$0xff pattern:$0x73625140]
    %9887 = vst [vmem:[#allocation1] ss:$4 sm:$0xff] %v9795
    %v9888 = vld.sshfl [vmem:[#allocation1] sm:$0xff pattern:$0x73625140]
    %v9889 = vld.sshfl [vmem:[#allocation1 + $0x8] sm:$0xff pattern:$0x73625140]
    %9890 = vst [vmem:[%s9805] ss:$4 sm:$0xff] %v9797
    %v9891 = vld.sshfl [vmem:[#allocation1 + $0x20] sm:$0xff pattern:$0x73625140]
    %v9892 = vld.sshfl [vmem:[#allocation1 + $0x28] sm:$0xff pattern:$0x73625140]
    %9893 = vst [vmem:[#allocation1] ss:$4 sm:$0xff] %v9799
    %v9894 = vld.sshfl [vmem:[#allocation1] sm:$0xff pattern:$0x73625140]
    %v9895 = vld.sshfl [vmem:[#allocation1 + $0x8] sm:$0xff pattern:$0x73625140]
    %9896 = vst [vmem:[%s9805] ss:$4 sm:$0xff] %v9801
    %v9897 = vld.sshfl [vmem:[#allocation1 + $0x20] sm:$0xff pattern:$0x73625140]
    %v9898 = vld.sshfl [vmem:[#allocation1 + $0x28] sm:$0xff pattern:$0x73625140]
    %v9963 = vsel %vm2494, %v9803, -inf
    %v9964 = vrot.slane %v9963, 4
    %v9965 = vmax.f32 %v9963, %v9964
    %v9966 = vrot.slane %v9965, 2
    %v9967 = vmax.f32 %v9965, %v9966
    %v9968 = vrot.slane %v9967, 1
    %v9969 = vmax.f32 %v9967, %v9968
    %v9970 = vsel %vm2494, %v9804, -inf
    %v9971 = vrot.slane %v9970, 4
    %v9972 = vmax.f32 %v9970, %v9971
    %v9973 = vrot.slane %v9972, 2
    %v9974 = vmax.f32 %v9972, %v9973
    %v9975 = vrot.slane %v9974, 1
    %v9976 = vmax.f32 %v9974, %v9975
    %v9977 = vsel %vm2494, %v9807, -inf
    %v9978 = vrot.slane %v9977, 4
    %v9979 = vmax.f32 %v9977, %v9978
    %v9980 = vrot.slane %v9979, 2
    %v9981 = vmax.f32 %v9979, %v9980
    %v9982 = vrot.slane %v9981, 1
    %v9983 = vmax.f32 %v9981, %v9982
    %v9984 = vsel %vm2494, %v9808, -inf
    %v9985 = vrot.slane %v9984, 4
    %v9986 = vmax.f32 %v9984, %v9985
    %v9987 = vrot.slane %v9986, 2
    %v9988 = vmax.f32 %v9986, %v9987
    %v9989 = vrot.slane %v9988, 1
    %v9990 = vmax.f32 %v9988, %v9989
    %v9991 = vsel %vm2494, %v9810, -inf
    %v9992 = vrot.slane %v9991, 4
    %v9993 = vmax.f32 %v9991, %v9992
    %v9994 = vrot.slane %v9993, 2
    %v9995 = vmax.f32 %v9993, %v9994
    %v9996 = vrot.slane %v9995, 1
    %v9997 = vmax.f32 %v9995, %v9996
    %v9998 = vsel %vm2494, %v9811, -inf
    %v9999 = vrot.slane %v9998, 4
    %v10000 = vmax.f32 %v9998, %v9999
    %v10001 = vrot.slane %v10000, 2
    %v10002 = vmax.f32 %v10000, %v10001
    %v10003 = vrot.slane %v10002, 1
    %v10004 = vmax.f32 %v10002, %v10003
    %v10005 = vsel %vm2494, %v9813, -inf
    %v10006 = vrot.slane %v10005, 4
    %v10007 = vmax.f32 %v10005, %v10006
    %v10008 = vrot.slane %v10007, 2
    %v10009 = vmax.f32 %v10007, %v10008
    %v10010 = vrot.slane %v10009, 1
    %v10011 = vmax.f32 %v10009, %v10010
    %v10012 = vsel %vm2494, %v9814, -inf
    %v10013 = vrot.slane %v10012, 4
    %v10014 = vmax.f32 %v10012, %v10013
    %v10015 = vrot.slane %v10014, 2
    %v10016 = vmax.f32 %v10014, %v10015
    %v10017 = vrot.slane %v10016, 1
    %v10018 = vmax.f32 %v10016, %v10017
    %v10019 = vsel %vm2494, %v9816, -inf
    %v10020 = vrot.slane %v10019, 4
    %v10021 = vmax.f32 %v10019, %v10020
    %v10022 = vrot.slane %v10021, 2
    %v10023 = vmax.f32 %v10021, %v10022
    %v10024 = vrot.slane %v10023, 1
    %v10025 = vmax.f32 %v10023, %v10024
    %v10026 = vsel %vm2494, %v9817, -inf
    %v10027 = vrot.slane %v10026, 4
    %v10028 = vmax.f32 %v10026, %v10027
    %v10029 = vrot.slane %v10028, 2
    %v10030 = vmax.f32 %v10028, %v10029
    %v10031 = vrot.slane %v10030, 1
    %v10032 = vmax.f32 %v10030, %v10031
    %v10033 = vsel %vm2494, %v9819, -inf
    %v10034 = vrot.slane %v10033, 4
    %v10035 = vmax.f32 %v10033, %v10034
    %v10036 = vrot.slane %v10035, 2
    %v10037 = vmax.f32 %v10035, %v10036
    %v10038 = vrot.slane %v10037, 1
    %v10039 = vmax.f32 %v10037, %v10038
    %v10040 = vsel %vm2494, %v9820, -inf
    %v10041 = vrot.slane %v10040, 4
    %v10042 = vmax.f32 %v10040, %v10041
    %v10043 = vrot.slane %v10042, 2
    %v10044 = vmax.f32 %v10042, %v10043
    %v10045 = vrot.slane %v10044, 1
    %v10046 = vmax.f32 %v10044, %v10045
    %v10047 = vsel %vm2494, %v9822, -inf
    %v10048 = vrot.slane %v10047, 4
    %v10049 = vmax.f32 %v10047, %v10048
    %v10050 = vrot.slane %v10049, 2
    %v10051 = vmax.f32 %v10049, %v10050
    %v10052 = vrot.slane %v10051, 1
    %v10053 = vmax.f32 %v10051, %v10052
    %v10054 = vsel %vm2494, %v9823, -inf
    %v10055 = vrot.slane %v10054, 4
    %v10056 = vmax.f32 %v10054, %v10055
    %v10057 = vrot.slane %v10056, 2
    %v10058 = vmax.f32 %v10056, %v10057
    %v10059 = vrot.slane %v10058, 1
    %v10060 = vmax.f32 %v10058, %v10059
    %v10061 = vsel %vm2494, %v9825, -inf
    %v10062 = vrot.slane %v10061, 4
    %v10063 = vmax.f32 %v10061, %v10062
    %v10064 = vrot.slane %v10063, 2
    %v10065 = vmax.f32 %v10063, %v10064
    %v10066 = vrot.slane %v10065, 1
    %v10067 = vmax.f32 %v10065, %v10066
    %v10068 = vsel %vm2494, %v9826, -inf
    %v10069 = vrot.slane %v10068, 4
    %v10070 = vmax.f32 %v10068, %v10069
    %v10071 = vrot.slane %v10070, 2
    %v10072 = vmax.f32 %v10070, %v10071
    %v10073 = vrot.slane %v10072, 1
    %v10074 = vmax.f32 %v10072, %v10073
    %v10075 = vsel %vm2494, %v9828, -inf
    %v10076 = vrot.slane %v10075, 4
    %v10077 = vmax.f32 %v10075, %v10076
    %v10078 = vrot.slane %v10077, 2
    %v10079 = vmax.f32 %v10077, %v10078
    %v10080 = vrot.slane %v10079, 1
    %v10081 = vmax.f32 %v10079, %v10080
    %v10082 = vsel %vm2494, %v9829, -inf
    %v10083 = vrot.slane %v10082, 4
    %v10084 = vmax.f32 %v10082, %v10083
    %v10085 = vrot.slane %v10084, 2
    %v10086 = vmax.f32 %v10084, %v10085
    %v10087 = vrot.slane %v10086, 1
    %v10088 = vmax.f32 %v10086, %v10087
    %v10089 = vsel %vm2494, %v9831, -inf
    %v10090 = vrot.slane %v10089, 4
    %v10091 = vmax.f32 %v10089, %v10090
    %v10092 = vrot.slane %v10091, 2
    %v10093 = vmax.f32 %v10091, %v10092
    %v10094 = vrot.slane %v10093, 1
    %v10095 = vmax.f32 %v10093, %v10094
    %v10096 = vsel %vm2494, %v9832, -inf
    %v10097 = vrot.slane %v10096, 4
    %v10098 = vmax.f32 %v10096, %v10097
    %v10099 = vrot.slane %v10098, 2
    %v10100 = vmax.f32 %v10098, %v10099
    %v10101 = vrot.slane %v10100, 1
    %v10102 = vmax.f32 %v10100, %v10101
    %v10103 = vsel %vm2494, %v9834, -inf
    %v10104 = vrot.slane %v10103, 4
    %v10105 = vmax.f32 %v10103, %v10104
    %v10106 = vrot.slane %v10105, 2
    %v10107 = vmax.f32 %v10105, %v10106
    %v10108 = vrot.slane %v10107, 1
    %v10109 = vmax.f32 %v10107, %v10108
    %v10110 = vsel %vm2494, %v9835, -inf
    %v10111 = vrot.slane %v10110, 4
    %v10112 = vmax.f32 %v10110, %v10111
    %v10113 = vrot.slane %v10112, 2
    %v10114 = vmax.f32 %v10112, %v10113
    %v10115 = vrot.slane %v10114, 1
    %v10116 = vmax.f32 %v10114, %v10115
    %v10117 = vsel %vm2494, %v9837, -inf
    %v10118 = vrot.slane %v10117, 4
    %v10119 = vmax.f32 %v10117, %v10118
    %v10120 = vrot.slane %v10119, 2
    %v10121 = vmax.f32 %v10119, %v10120
    %v10122 = vrot.slane %v10121, 1
    %v10123 = vmax.f32 %v10121, %v10122
    %v10124 = vsel %vm2494, %v9838, -inf
    %v10125 = vrot.slane %v10124, 4
    %v10126 = vmax.f32 %v10124, %v10125
    %v10127 = vrot.slane %v10126, 2
    %v10128 = vmax.f32 %v10126, %v10127
    %v10129 = vrot.slane %v10128, 1
    %v10130 = vmax.f32 %v10128, %v10129
    %v10131 = vsel %vm2494, %v9840, -inf
    %v10132 = vrot.slane %v10131, 4
    %v10133 = vmax.f32 %v10131, %v10132
    %v10134 = vrot.slane %v10133, 2
    %v10135 = vmax.f32 %v10133, %v10134
    %v10136 = vrot.slane %v10135, 1
    %v10137 = vmax.f32 %v10135, %v10136
    %v10138 = vsel %vm2494, %v9841, -inf
    %v10139 = vrot.slane %v10138, 4
    %v10140 = vmax.f32 %v10138, %v10139
    %v10141 = vrot.slane %v10140, 2
    %v10142 = vmax.f32 %v10140, %v10141
    %v10143 = vrot.slane %v10142, 1
    %v10144 = vmax.f32 %v10142, %v10143
    %v10145 = vsel %vm2494, %v9843, -inf
    %v10146 = vrot.slane %v10145, 4
    %v10147 = vmax.f32 %v10145, %v10146
    %v10148 = vrot.slane %v10147, 2
    %v10149 = vmax.f32 %v10147, %v10148
    %v10150 = vrot.slane %v10149, 1
    %v10151 = vmax.f32 %v10149, %v10150
    %v10152 = vsel %vm2494, %v9844, -inf
    %v10153 = vrot.slane %v10152, 4
    %v10154 = vmax.f32 %v10152, %v10153
    %v10155 = vrot.slane %v10154, 2
    %v10156 = vmax.f32 %v10154, %v10155
    %v10157 = vrot.slane %v10156, 1
    %v10158 = vmax.f32 %v10156, %v10157
    %v10159 = vsel %vm2494, %v9846, -inf
    %v10160 = vrot.slane %v10159, 4
    %v10161 = vmax.f32 %v10159, %v10160
    %v10162 = vrot.slane %v10161, 2
    %v10163 = vmax.f32 %v10161, %v10162
    %v10164 = vrot.slane %v10163, 1
    %v10165 = vmax.f32 %v10163, %v10164
    %v10166 = vsel %vm2494, %v9847, -inf
    %v10167 = vrot.slane %v10166, 4
    %v10168 = vmax.f32 %v10166, %v10167
    %v10169 = vrot.slane %v10168, 2
    %v10170 = vmax.f32 %v10168, %v10169
    %v10171 = vrot.slane %v10170, 1
    %v10172 = vmax.f32 %v10170, %v10171
    %v10173 = vsel %vm2494, %v9849, -inf
    %v10174 = vrot.slane %v10173, 4
    %v10175 = vmax.f32 %v10173, %v10174
    %v10176 = vrot.slane %v10175, 2
    %v10177 = vmax.f32 %v10175, %v10176
    %v10178 = vrot.slane %v10177, 1
    %v10179 = vmax.f32 %v10177, %v10178
    %v10180 = vsel %vm2494, %v9850, -inf
    %v10181 = vrot.slane %v10180, 4
    %v10182 = vmax.f32 %v10180, %v10181
    %v10183 = vrot.slane %v10182, 2
    %v10184 = vmax.f32 %v10182, %v10183
    %v10185 = vrot.slane %v10184, 1
    %v10186 = vmax.f32 %v10184, %v10185
    %v10187 = vsel %vm2494, %v9852, -inf
    %v10188 = vrot.slane %v10187, 4
    %v10189 = vmax.f32 %v10187, %v10188
    %v10190 = vrot.slane %v10189, 2
    %v10191 = vmax.f32 %v10189, %v10190
    %v10192 = vrot.slane %v10191, 1
    %v10193 = vmax.f32 %v10191, %v10192
    %v10194 = vsel %vm2494, %v9853, -inf
    %v10195 = vrot.slane %v10194, 4
    %v10196 = vmax.f32 %v10194, %v10195
    %v10197 = vrot.slane %v10196, 2
    %v10198 = vmax.f32 %v10196, %v10197
    %v10199 = vrot.slane %v10198, 1
    %v10200 = vmax.f32 %v10198, %v10199
    %v10201 = vsel %vm2494, %v9855, -inf
    %v10202 = vrot.slane %v10201, 4
    %v10203 = vmax.f32 %v10201, %v10202
    %v10204 = vrot.slane %v10203, 2
    %v10205 = vmax.f32 %v10203, %v10204
    %v10206 = vrot.slane %v10205, 1
    %v10207 = vmax.f32 %v10205, %v10206
    %v10208 = vsel %vm2494, %v9856, -inf
    %v10209 = vrot.slane %v10208, 4
    %v10210 = vmax.f32 %v10208, %v10209
    %v10211 = vrot.slane %v10210, 2
    %v10212 = vmax.f32 %v10210, %v10211
    %v10213 = vrot.slane %v10212, 1
    %v10214 = vmax.f32 %v10212, %v10213
    %v10215 = vsel %vm2494, %v9858, -inf
    %v10216 = vrot.slane %v10215, 4
    %v10217 = vmax.f32 %v10215, %v10216
    %v10218 = vrot.slane %v10217, 2
    %v10219 = vmax.f32 %v10217, %v10218
    %v10220 = vrot.slane %v10219, 1
    %v10221 = vmax.f32 %v10219, %v10220
    %v10222 = vsel %vm2494, %v9859, -inf
    %v10223 = vrot.slane %v10222, 4
    %v10224 = vmax.f32 %v10222, %v10223
    %v10225 = vrot.slane %v10224, 2
    %v10226 = vmax.f32 %v10224, %v10225
    %v10227 = vrot.slane %v10226, 1
    %v10228 = vmax.f32 %v10226, %v10227
    %v10229 = vsel %vm2494, %v9861, -inf
    %v10230 = vrot.slane %v10229, 4
    %v10231 = vmax.f32 %v10229, %v10230
    %v10232 = vrot.slane %v10231, 2
    %v10233 = vmax.f32 %v10231, %v10232
    %v10234 = vrot.slane %v10233, 1
    %v10235 = vmax.f32 %v10233, %v10234
    %v10236 = vsel %vm2494, %v9862, -inf
    %v10237 = vrot.slane %v10236, 4
    %v10238 = vmax.f32 %v10236, %v10237
    %v10239 = vrot.slane %v10238, 2
    %v10240 = vmax.f32 %v10238, %v10239
    %v10241 = vrot.slane %v10240, 1
    %v10242 = vmax.f32 %v10240, %v10241
    %v10243 = vsel %vm2494, %v9864, -inf
    %v10244 = vrot.slane %v10243, 4
    %v10245 = vmax.f32 %v10243, %v10244
    %v10246 = vrot.slane %v10245, 2
    %v10247 = vmax.f32 %v10245, %v10246
    %v10248 = vrot.slane %v10247, 1
    %v10249 = vmax.f32 %v10247, %v10248
    %v10250 = vsel %vm2494, %v9865, -inf
    %v10251 = vrot.slane %v10250, 4
    %v10252 = vmax.f32 %v10250, %v10251
    %v10253 = vrot.slane %v10252, 2
    %v10254 = vmax.f32 %v10252, %v10253
    %v10255 = vrot.slane %v10254, 1
    %v10256 = vmax.f32 %v10254, %v10255
    %v10257 = vsel %vm2494, %v9867, -inf
    %v10258 = vrot.slane %v10257, 4
    %v10259 = vmax.f32 %v10257, %v10258
    %v10260 = vrot.slane %v10259, 2
    %v10261 = vmax.f32 %v10259, %v10260
    %v10262 = vrot.slane %v10261, 1
    %v10263 = vmax.f32 %v10261, %v10262
    %v10264 = vsel %vm2494, %v9868, -inf
    %v10265 = vrot.slane %v10264, 4
    %v10266 = vmax.f32 %v10264, %v10265
    %v10267 = vrot.slane %v10266, 2
    %v10268 = vmax.f32 %v10266, %v10267
    %v10269 = vrot.slane %v10268, 1
    %v10270 = vmax.f32 %v10268, %v10269
    %v10271 = vsel %vm2494, %v9870, -inf
    %v10272 = vrot.slane %v10271, 4
    %v10273 = vmax.f32 %v10271, %v10272
    %v10274 = vrot.slane %v10273, 2
    %v10275 = vmax.f32 %v10273, %v10274
    %v10276 = vrot.slane %v10275, 1
    %v10277 = vmax.f32 %v10275, %v10276
    %v10278 = vsel %vm2494, %v9871, -inf
    %v10279 = vrot.slane %v10278, 4
    %v10280 = vmax.f32 %v10278, %v10279
    %v10281 = vrot.slane %v10280, 2
    %v10282 = vmax.f32 %v10280, %v10281
    %v10283 = vrot.slane %v10282, 1
    %v10284 = vmax.f32 %v10282, %v10283
    %v10285 = vsel %vm2494, %v9873, -inf
    %v10286 = vrot.slane %v10285, 4
    %v10287 = vmax.f32 %v10285, %v10286
    %v10288 = vrot.slane %v10287, 2
    %v10289 = vmax.f32 %v10287, %v10288
    %v10290 = vrot.slane %v10289, 1
    %v10291 = vmax.f32 %v10289, %v10290
    %v10292 = vsel %vm2494, %v9874, -inf
    %v10293 = vrot.slane %v10292, 4
    %v10294 = vmax.f32 %v10292, %v10293
    %v10295 = vrot.slane %v10294, 2
    %v10296 = vmax.f32 %v10294, %v10295
    %v10297 = vrot.slane %v10296, 1
    %v10298 = vmax.f32 %v10296, %v10297
    %v10299 = vsel %vm2494, %v9876, -inf
    %v10300 = vrot.slane %v10299, 4
    %v10301 = vmax.f32 %v10299, %v10300
    %v10302 = vrot.slane %v10301, 2
    %v10303 = vmax.f32 %v10301, %v10302
    %v10304 = vrot.slane %v10303, 1
    %v10305 = vmax.f32 %v10303, %v10304
    %v10306 = vsel %vm2494, %v9877, -inf
    %v10307 = vrot.slane %v10306, 4
    %v10308 = vmax.f32 %v10306, %v10307
    %v10309 = vrot.slane %v10308, 2
    %v10310 = vmax.f32 %v10308, %v10309
    %v10311 = vrot.slane %v10310, 1
    %v10312 = vmax.f32 %v10310, %v10311
    %v10313 = vsel %vm2494, %v9879, -inf
    %v10314 = vrot.slane %v10313, 4
    %v10315 = vmax.f32 %v10313, %v10314
    %v10316 = vrot.slane %v10315, 2
    %v10317 = vmax.f32 %v10315, %v10316
    %v10318 = vrot.slane %v10317, 1
    %v10319 = vmax.f32 %v10317, %v10318
    %v10320 = vsel %vm2494, %v9880, -inf
    %v10321 = vrot.slane %v10320, 4
    %v10322 = vmax.f32 %v10320, %v10321
    %v10323 = vrot.slane %v10322, 2
    %v10324 = vmax.f32 %v10322, %v10323
    %v10325 = vrot.slane %v10324, 1
    %v10326 = vmax.f32 %v10324, %v10325
    %v10327 = vsel %vm2494, %v9882, -inf
    %v10328 = vrot.slane %v10327, 4
    %v10329 = vmax.f32 %v10327, %v10328
    %v10330 = vrot.slane %v10329, 2
    %v10331 = vmax.f32 %v10329, %v10330
    %v10332 = vrot.slane %v10331, 1
    %v10333 = vmax.f32 %v10331, %v10332
    %v10334 = vsel %vm2494, %v9883, -inf
    %v10335 = vrot.slane %v10334, 4
    %v10336 = vmax.f32 %v10334, %v10335
    %v10337 = vrot.slane %v10336, 2
    %v10338 = vmax.f32 %v10336, %v10337
    %v10339 = vrot.slane %v10338, 1
    %v10340 = vmax.f32 %v10338, %v10339
    %v10341 = vsel %vm2494, %v9885, -inf
    %v10342 = vrot.slane %v10341, 4
    %v10343 = vmax.f32 %v10341, %v10342
    %v10344 = vrot.slane %v10343, 2
    %v10345 = vmax.f32 %v10343, %v10344
    %v10346 = vrot.slane %v10345, 1
    %v10347 = vmax.f32 %v10345, %v10346
    %v10348 = vsel %vm2494, %v9886, -inf
    %v10349 = vrot.slane %v10348, 4
    %v10350 = vmax.f32 %v10348, %v10349
    %v10351 = vrot.slane %v10350, 2
    %v10352 = vmax.f32 %v10350, %v10351
    %v10353 = vrot.slane %v10352, 1
    %v10354 = vmax.f32 %v10352, %v10353
    %v10355 = vsel %vm2494, %v9888, -inf
    %v10356 = vrot.slane %v10355, 4
    %v10357 = vmax.f32 %v10355, %v10356
    %v10358 = vrot.slane %v10357, 2
    %v10359 = vmax.f32 %v10357, %v10358
    %v10360 = vrot.slane %v10359, 1
    %v10361 = vmax.f32 %v10359, %v10360
    %v10362 = vsel %vm2494, %v9889, -inf
    %v10363 = vrot.slane %v10362, 4
    %v10364 = vmax.f32 %v10362, %v10363
    %v10365 = vrot.slane %v10364, 2
    %v10366 = vmax.f32 %v10364, %v10365
    %v10367 = vrot.slane %v10366, 1
    %v10368 = vmax.f32 %v10366, %v10367
    %v10369 = vsel %vm2494, %v9891, -inf
    %v10370 = vrot.slane %v10369, 4
    %v10371 = vmax.f32 %v10369, %v10370
    %v10372 = vrot.slane %v10371, 2
    %v10373 = vmax.f32 %v10371, %v10372
    %v10374 = vrot.slane %v10373, 1
    %v10375 = vmax.f32 %v10373, %v10374
    %v10376 = vsel %vm2494, %v9892, -inf
    %v10377 = vrot.slane %v10376, 4
    %v10378 = vmax.f32 %v10376, %v10377
    %v10379 = vrot.slane %v10378, 2
    %v10380 = vmax.f32 %v10378, %v10379
    %v10381 = vrot.slane %v10380, 1
    %v10382 = vmax.f32 %v10380, %v10381
    %v10383 = vsel %vm2494, %v9894, -inf
    %v10384 = vrot.slane %v10383, 4
    %v10385 = vmax.f32 %v10383, %v10384
    %v10386 = vrot.slane %v10385, 2
    %v10387 = vmax.f32 %v10385, %v10386
    %v10388 = vrot.slane %v10387, 1
    %v10389 = vmax.f32 %v10387, %v10388
    %v10390 = vsel %vm2494, %v9895, -inf
    %v10391 = vrot.slane %v10390, 4
    %v10392 = vmax.f32 %v10390, %v10391
    %v10393 = vrot.slane %v10392, 2
    %v10394 = vmax.f32 %v10392, %v10393
    %v10395 = vrot.slane %v10394, 1
    %v10396 = vmax.f32 %v10394, %v10395
    %v10397 = vsel %vm2494, %v9897, -inf
    %v10398 = vrot.slane %v10397, 4
    %v10399 = vmax.f32 %v10397, %v10398
    %v10400 = vrot.slane %v10399, 2
    %v10401 = vmax.f32 %v10399, %v10400
    %v10402 = vrot.slane %v10401, 1
    %v10403 = vmax.f32 %v10401, %v10402
    %v10404 = vsel %vm2494, %v9898, -inf
    %v10405 = vrot.slane %v10404, 4
    %v10406 = vmax.f32 %v10404, %v10405
    %v10407 = vrot.slane %v10406, 2
    %v10408 = vmax.f32 %v10406, %v10407
    %v10409 = vrot.slane %v10408, 1
    %v10410 = vmax.f32 %v10408, %v10409
    %v10411 = vmax.f32 %v9969, %v9976
    %v10412 = vmax.f32 %v9983, %v9990
    %v10413 = vmax.f32 %v9997, %v10004
    %v10414 = vmax.f32 %v10011, %v10018
    %v10415 = vmax.f32 %v10025, %v10032
    %v10416 = vmax.f32 %v10039, %v10046
    %v10417 = vmax.f32 %v10053, %v10060
    %v10418 = vmax.f32 %v10067, %v10074
    %v10419 = vmax.f32 %v10081, %v10088
    %v10420 = vmax.f32 %v10095, %v10102
    %v10421 = vmax.f32 %v10109, %v10116
    %v10422 = vmax.f32 %v10123, %v10130
    %v10423 = vmax.f32 %v10137, %v10144
    %v10424 = vmax.f32 %v10151, %v10158
    %v10425 = vmax.f32 %v10165, %v10172
    %v10426 = vmax.f32 %v10179, %v10186
    %v10427 = vmax.f32 %v10193, %v10200
    %v10428 = vmax.f32 %v10207, %v10214
    %v10429 = vmax.f32 %v10221, %v10228
    %v10430 = vmax.f32 %v10235, %v10242
    %v10431 = vmax.f32 %v10249, %v10256
    %v10432 = vmax.f32 %v10263, %v10270
    %v10433 = vmax.f32 %v10277, %v10284
    %v10434 = vmax.f32 %v10291, %v10298
    %v10435 = vmax.f32 %v10305, %v10312
    %v10436 = vmax.f32 %v10319, %v10326
    %v10437 = vmax.f32 %v10333, %v10340
    %v10438 = vmax.f32 %v10347, %v10354
    %v10439 = vmax.f32 %v10361, %v10368
    %v10440 = vmax.f32 %v10375, %v10382
    %v10441 = vmax.f32 %v10389, %v10396
    %v10442 = vmax.f32 %v10403, %v10410
    %v10443 = vpack.c.bf16 %v10411, %v10411
    %v10444 = vpack.c.bf16 %v10415, %v10415
    %v10445 = vpack.c.bf16 %v10419, %v10419
    %v10446 = vpack.c.bf16 %v10423, %v10423
    %v10447 = vpack.c.bf16 %v10427, %v10427
    %v10448 = vpack.c.bf16 %v10431, %v10431
    %v10449 = vpack.c.bf16 %v10435, %v10435
    %v10450 = vpack.c.bf16 %v10439, %v10439
    %v10451 = vld [vmem:[%s5] sm:$0xff]
    %v10452 = vld [vmem:[%s5 + $0x8] sm:$0xff]
    %v10453 = vld [vmem:[%s5 + $0x10] sm:$0xff]
    %v10454 = vld [vmem:[%s5 + $0x18] sm:$0xff]
    %v10455 = vld [vmem:[%s5 + $0x20] sm:$0xff]
    %v10456 = vld [vmem:[%s5 + $0x28] sm:$0xff]
    %v10457 = vld [vmem:[%s5 + $0x30] sm:$0xff]
    %v10458 = vld [vmem:[%s5 + $0x38] sm:$0xff]
    %v10459 = vld [vmem:[%s5 + $0x40] sm:$0xff]
    %v10460 = vld [vmem:[%s5 + $0x48] sm:$0xff]
    %v10461 = vld [vmem:[%s5 + $0x50] sm:$0xff]
    %v10462 = vld [vmem:[%s5 + $0x58] sm:$0xff]
    %v10463 = vld [vmem:[%s5 + $0x60] sm:$0xff]
    %v10464 = vld [vmem:[%s5 + $0x68] sm:$0xff]
    %v10465 = vld [vmem:[%s5 + $0x70] sm:$0xff]
    %v10466 = vld [vmem:[%s5 + $0x78] sm:$0xff]
    %v10467 = vpack.c.bf16 %v10412, %v10412
    %v10468 = vpack.c.bf16 %v10416, %v10416
    %v10469 = vpack.c.bf16 %v10420, %v10420
    %v10470 = vpack.c.bf16 %v10424, %v10424
    %v10471 = vpack.c.bf16 %v10428, %v10428
    %v10472 = vpack.c.bf16 %v10432, %v10432
    %v10473 = vpack.c.bf16 %v10436, %v10436
    %v10474 = vpack.c.bf16 %v10440, %v10440
    %s10475 = scalar_lea.vmem %s5, 128
    %v10476 = vld [vmem:[%s10475] sm:$0xff]
    %v10477 = vld [vmem:[%s10475 + $0x8] sm:$0xff]
    %v10478 = vld [vmem:[%s10475 + $0x10] sm:$0xff]
    %v10479 = vld [vmem:[%s10475 + $0x18] sm:$0xff]
    %v10480 = vld [vmem:[%s10475 + $0x20] sm:$0xff]
    %v10481 = vld [vmem:[%s10475 + $0x28] sm:$0xff]
    %v10482 = vld [vmem:[%s10475 + $0x30] sm:$0xff]
    %v10483 = vld [vmem:[%s10475 + $0x38] sm:$0xff]
    %v10484 = vld [vmem:[%s10475 + $0x40] sm:$0xff]
    %v10485 = vld [vmem:[%s10475 + $0x48] sm:$0xff]
    %v10486 = vld [vmem:[%s10475 + $0x50] sm:$0xff]
    %v10487 = vld [vmem:[%s10475 + $0x58] sm:$0xff]
    %v10488 = vld [vmem:[%s10475 + $0x60] sm:$0xff]
    %v10489 = vld [vmem:[%s10475 + $0x68] sm:$0xff]
    %v10490 = vld [vmem:[%s10475 + $0x70] sm:$0xff]
    %v10491 = vld [vmem:[%s10475 + $0x78] sm:$0xff]
    %v10500 = vunpack.c.l.b16 %v10467
    %v10501 = vunpack.c.l.b16 %v10468
    %v10502 = vunpack.c.l.b16 %v10469
    %v10503 = vunpack.c.l.b16 %v10470
    %v10504 = vunpack.c.l.b16 %v10471
    %v10505 = vunpack.c.l.b16 %v10472
    %v10506 = vunpack.c.l.b16 %v10473
    %v10507 = vunpack.c.l.b16 %v10474
    %v10508 = vsel %vm6959, %v10501, %v10500
    %v10509 = vsel %vm6962, %v10502, %v10508
    %v10510 = vsel %vm6965, %v10503, %v10509
    %v10511 = vsel %vm6968, %v10504, %v10510
    %v10512 = vsel %vm6971, %v10505, %v10511
    %v10513 = vsel %vm6974, %v10506, %v10512
    %v10514 = vsel %vm6977, %v10507, %v10513
    %v10515 = vpack.c.b16 %v10514, %v10514
    %v10533 = vunpack.c.l.b16 %v10476
    %v10534 = vunpack.c.h.b16 %v10476
    %v10535 = vunpack.c.l.b16 %v10477
    %v10536 = vunpack.c.h.b16 %v10477
    %v10537 = vunpack.c.l.b16 %v10478
    %v10538 = vunpack.c.h.b16 %v10478
    %v10539 = vunpack.c.l.b16 %v10479
    %v10540 = vunpack.c.h.b16 %v10479
    %v10541 = vunpack.c.l.b16 %v10480
    %v10542 = vunpack.c.h.b16 %v10480
    %v10543 = vunpack.c.l.b16 %v10481
    %v10544 = vunpack.c.h.b16 %v10481
    %v10545 = vunpack.c.l.b16 %v10482
    %v10546 = vunpack.c.h.b16 %v10482
    %v10547 = vunpack.c.l.b16 %v10483
    %v10548 = vunpack.c.h.b16 %v10483
    %v10549 = vunpack.c.l.b16 %v10484
    %v10550 = vunpack.c.h.b16 %v10484
    %v10551 = vunpack.c.l.b16 %v10485
    %v10552 = vunpack.c.h.b16 %v10485
    %v10553 = vunpack.c.l.b16 %v10486
    %v10554 = vunpack.c.h.b16 %v10486
    %v10555 = vunpack.c.l.b16 %v10487
    %v10556 = vunpack.c.h.b16 %v10487
    %v10557 = vunpack.c.l.b16 %v10488
    %v10558 = vunpack.c.h.b16 %v10488
    %v10559 = vunpack.c.l.b16 %v10489
    %v10560 = vunpack.c.h.b16 %v10489
    %v10561 = vunpack.c.l.b16 %v10490
    %v10562 = vunpack.c.h.b16 %v10490
    %v10563 = vunpack.c.l.b16 %v10491
    %v10564 = vunpack.c.h.b16 %v10491
    %v10565 = vpack.c.b16 %v10535, %v10533
    %v10566 = vpack.c.b16 %v10536, %v10534
    %v10567 = vpack.c.b16 %v10539, %v10537
    %v10568 = vpack.c.b16 %v10540, %v10538
    %v10569 = vpack.c.b16 %v10543, %v10541
    %v10570 = vpack.c.b16 %v10544, %v10542
    %v10571 = vpack.c.b16 %v10547, %v10545
    %v10572 = vpack.c.b16 %v10548, %v10546
    %v10573 = vpack.c.b16 %v10551, %v10549
    %v10574 = vpack.c.b16 %v10552, %v10550
    %v10575 = vpack.c.b16 %v10555, %v10553
    %v10576 = vpack.c.b16 %v10556, %v10554
    %v10577 = vpack.c.b16 %v10559, %v10557
    %v10578 = vpack.c.b16 %v10560, %v10558
    %v10579 = vpack.c.b16 %v10563, %v10561
    %v10580 = vpack.c.b16 %v10564, %v10562
    %10597 = vmatpush.bf16.msra.mxu0 %v10579
    %10598 = vmatpush.bf16.msra.mxu0 %v10577
    %10599 = vmatpush.bf16.msra.mxu0 %v10575
    %10600 = vmatpush.bf16.msra.mxu0 %v10573
    %10601 = vmatpush.bf16.msra.mxu0 %v10571
    %10602 = vmatpush.bf16.msra.mxu0 %v10569
    %10603 = vmatpush.bf16.msra.mxu0 %v10567
    %10604 = vmatpush.bf16.msra.mxu0 %v10565
    %10605 = vmatmul.bf16.gmra.mxu0 %v10515
    %v10606 = vpop.f32.mrf.mxu0
    %v10607 = vadd.f32 0.0, %v10606
    %v10608 = vpop.f32.mrf.mxu0
    %10609 = vdwg.mxu0
    %10610 = vmatpush.bf16.msra.mxu0 %v10580
    %10611 = vmatpush.bf16.msra.mxu0 %v10578
    %10612 = vmatpush.bf16.msra.mxu0 %v10576
    %10613 = vmatpush.bf16.msra.mxu0 %v10574
    %10614 = vmatpush.bf16.msra.mxu0 %v10572
    %10615 = vmatpush.bf16.msra.mxu0 %v10570
    %10616 = vmatpush.bf16.msra.mxu0 %v10568
    %10617 = vmatpush.bf16.msra.mxu0 %v10566
    %10618 = vmatmul.bf16.gmra.mxu0 %v10515
    %v10619 = vpop.f32.mrf.mxu0
    %v10620 = vadd.f32 0.0, %v10619
    %v10621 = vpop.f32.mrf.mxu0
    %10622 = vdwg.mxu0
    %v10631 = vunpack.c.l.b16 %v10443
    %v10632 = vunpack.c.l.b16 %v10444
    %v10633 = vunpack.c.l.b16 %v10445
    %v10634 = vunpack.c.l.b16 %v10446
    %v10635 = vunpack.c.l.b16 %v10447
    %v10636 = vunpack.c.l.b16 %v10448
    %v10637 = vunpack.c.l.b16 %v10449
    %v10638 = vunpack.c.l.b16 %v10450
    %v10639 = vsel %vm6959, %v10632, %v10631
    %v10640 = vsel %vm6962, %v10633, %v10639
    %v10641 = vsel %vm6965, %v10634, %v10640
    %v10642 = vsel %vm6968, %v10635, %v10641
    %v10643 = vsel %vm6971, %v10636, %v10642
    %v10644 = vsel %vm6974, %v10637, %v10643
    %v10645 = vsel %vm6977, %v10638, %v10644
    %v10646 = vpack.c.b16 %v10645, %v10645
    %v10664 = vunpack.c.l.b16 %v10451
    %v10665 = vunpack.c.h.b16 %v10451
    %v10666 = vunpack.c.l.b16 %v10452
    %v10667 = vunpack.c.h.b16 %v10452
    %v10668 = vunpack.c.l.b16 %v10453
    %v10669 = vunpack.c.h.b16 %v10453
    %v10670 = vunpack.c.l.b16 %v10454
    %v10671 = vunpack.c.h.b16 %v10454
    %v10672 = vunpack.c.l.b16 %v10455
    %v10673 = vunpack.c.h.b16 %v10455
    %v10674 = vunpack.c.l.b16 %v10456
    %v10675 = vunpack.c.h.b16 %v10456
    %v10676 = vunpack.c.l.b16 %v10457
    %v10677 = vunpack.c.h.b16 %v10457
    %v10678 = vunpack.c.l.b16 %v10458
    %v10679 = vunpack.c.h.b16 %v10458
    %v10680 = vunpack.c.l.b16 %v10459
    %v10681 = vunpack.c.h.b16 %v10459
    %v10682 = vunpack.c.l.b16 %v10460
    %v10683 = vunpack.c.h.b16 %v10460
    %v10684 = vunpack.c.l.b16 %v10461
    %v10685 = vunpack.c.h.b16 %v10461
    %v10686 = vunpack.c.l.b16 %v10462
    %v10687 = vunpack.c.h.b16 %v10462
    %v10688 = vunpack.c.l.b16 %v10463
    %v10689 = vunpack.c.h.b16 %v10463
    %v10690 = vunpack.c.l.b16 %v10464
    %v10691 = vunpack.c.h.b16 %v10464
    %v10692 = vunpack.c.l.b16 %v10465
    %v10693 = vunpack.c.h.b16 %v10465
    %v10694 = vunpack.c.l.b16 %v10466
    %v10695 = vunpack.c.h.b16 %v10466
    %v10696 = vpack.c.b16 %v10666, %v10664
    %v10697 = vpack.c.b16 %v10667, %v10665
    %v10698 = vpack.c.b16 %v10670, %v10668
    %v10699 = vpack.c.b16 %v10671, %v10669
    %v10700 = vpack.c.b16 %v10674, %v10672
    %v10701 = vpack.c.b16 %v10675, %v10673
    %v10702 = vpack.c.b16 %v10678, %v10676
    %v10703 = vpack.c.b16 %v10679, %v10677
    %v10704 = vpack.c.b16 %v10682, %v10680
    %v10705 = vpack.c.b16 %v10683, %v10681
    %v10706 = vpack.c.b16 %v10686, %v10684
    %v10707 = vpack.c.b16 %v10687, %v10685
    %v10708 = vpack.c.b16 %v10690, %v10688
    %v10709 = vpack.c.b16 %v10691, %v10689
    %v10710 = vpack.c.b16 %v10694, %v10692
    %v10711 = vpack.c.b16 %v10695, %v10693
    %10728 = vmatpush.bf16.msra.mxu0 %v10710
    %10729 = vmatpush.bf16.msra.mxu0 %v10708
    %10730 = vmatpush.bf16.msra.mxu0 %v10706
    %10731 = vmatpush.bf16.msra.mxu0 %v10704
    %10732 = vmatpush.bf16.msra.mxu0 %v10702
    %10733 = vmatpush.bf16.msra.mxu0 %v10700
    %10734 = vmatpush.bf16.msra.mxu0 %v10698
    %10735 = vmatpush.bf16.msra.mxu0 %v10696
    %10736 = vmatmul.bf16.gmra.mxu0 %v10646
    %v10737 = vpop.f32.mrf.mxu0
    %v10738 = vadd.f32 %v10607, %v10737
    %v10739 = vpop.f32.mrf.mxu0
    %10740 = vdwg.mxu0
    %10741 = vmatpush.bf16.msra.mxu0 %v10711
    %10742 = vmatpush.bf16.msra.mxu0 %v10709
    %10743 = vmatpush.bf16.msra.mxu0 %v10707
    %10744 = vmatpush.bf16.msra.mxu0 %v10705
    %10745 = vmatpush.bf16.msra.mxu0 %v10703
    %10746 = vmatpush.bf16.msra.mxu0 %v10701
    %10747 = vmatpush.bf16.msra.mxu0 %v10699
    %10748 = vmatpush.bf16.msra.mxu0 %v10697
    %10749 = vmatmul.bf16.gmra.mxu0 %v10646
    %v10750 = vpop.f32.mrf.mxu0
    %v10751 = vadd.f32 %v10620, %v10750
    %v10752 = vpop.f32.mrf.mxu0
    %10753 = vdwg.mxu0
    %v10754 = vpack.c.bf16 %v10413, %v10413
    %v10755 = vpack.c.bf16 %v10417, %v10417
    %v10756 = vpack.c.bf16 %v10421, %v10421
    %v10757 = vpack.c.bf16 %v10425, %v10425
    %v10758 = vpack.c.bf16 %v10429, %v10429
    %v10759 = vpack.c.bf16 %v10433, %v10433
    %v10760 = vpack.c.bf16 %v10437, %v10437
    %v10761 = vpack.c.bf16 %v10441, %v10441
    %s10762 = scalar_lea.vmem %s5, 256
    %v10763 = vld [vmem:[%s10762] sm:$0xff]
    %v10764 = vld [vmem:[%s10762 + $0x8] sm:$0xff]
    %v10765 = vld [vmem:[%s10762 + $0x10] sm:$0xff]
    %v10766 = vld [vmem:[%s10762 + $0x18] sm:$0xff]
    %v10767 = vld [vmem:[%s10762 + $0x20] sm:$0xff]
    %v10768 = vld [vmem:[%s10762 + $0x28] sm:$0xff]
    %v10769 = vld [vmem:[%s10762 + $0x30] sm:$0xff]
    %v10770 = vld [vmem:[%s10762 + $0x38] sm:$0xff]
    %v10771 = vld [vmem:[%s10762 + $0x40] sm:$0xff]
    %v10772 = vld [vmem:[%s10762 + $0x48] sm:$0xff]
    %v10773 = vld [vmem:[%s10762 + $0x50] sm:$0xff]
    %v10774 = vld [vmem:[%s10762 + $0x58] sm:$0xff]
    %v10775 = vld [vmem:[%s10762 + $0x60] sm:$0xff]
    %v10776 = vld [vmem:[%s10762 + $0x68] sm:$0xff]
    %v10777 = vld [vmem:[%s10762 + $0x70] sm:$0xff]
    %v10778 = vld [vmem:[%s10762 + $0x78] sm:$0xff]
    %v10787 = vunpack.c.l.b16 %v10754
    %v10788 = vunpack.c.l.b16 %v10755
    %v10789 = vunpack.c.l.b16 %v10756
    %v10790 = vunpack.c.l.b16 %v10757
    %v10791 = vunpack.c.l.b16 %v10758
    %v10792 = vunpack.c.l.b16 %v10759
    %v10793 = vunpack.c.l.b16 %v10760
    %v10794 = vunpack.c.l.b16 %v10761
    %v10795 = vsel %vm6959, %v10788, %v10787
    %v10796 = vsel %vm6962, %v10789, %v10795
    %v10797 = vsel %vm6965, %v10790, %v10796
    %v10798 = vsel %vm6968, %v10791, %v10797
    %v10799 = vsel %vm6971, %v10792, %v10798
    %v10800 = vsel %vm6974, %v10793, %v10799
    %v10801 = vsel %vm6977, %v10794, %v10800
    %v10802 = vpack.c.b16 %v10801, %v10801
    %v10820 = vunpack.c.l.b16 %v10763
    %v10821 = vunpack.c.h.b16 %v10763
    %v10822 = vunpack.c.l.b16 %v10764
    %v10823 = vunpack.c.h.b16 %v10764
    %v10824 = vunpack.c.l.b16 %v10765
    %v10825 = vunpack.c.h.b16 %v10765
    %v10826 = vunpack.c.l.b16 %v10766
    %v10827 = vunpack.c.h.b16 %v10766
    %v10828 = vunpack.c.l.b16 %v10767
    %v10829 = vunpack.c.h.b16 %v10767
    %v10830 = vunpack.c.l.b16 %v10768
    %v10831 = vunpack.c.h.b16 %v10768
    %v10832 = vunpack.c.l.b16 %v10769
    %v10833 = vunpack.c.h.b16 %v10769
    %v10834 = vunpack.c.l.b16 %v10770
    %v10835 = vunpack.c.h.b16 %v10770
    %v10836 = vunpack.c.l.b16 %v10771
    %v10837 = vunpack.c.h.b16 %v10771
    %v10838 = vunpack.c.l.b16 %v10772
    %v10839 = vunpack.c.h.b16 %v10772
    %v10840 = vunpack.c.l.b16 %v10773
    %v10841 = vunpack.c.h.b16 %v10773
    %v10842 = vunpack.c.l.b16 %v10774
    %v10843 = vunpack.c.h.b16 %v10774
    %v10844 = vunpack.c.l.b16 %v10775
    %v10845 = vunpack.c.h.b16 %v10775
    %v10846 = vunpack.c.l.b16 %v10776
    %v10847 = vunpack.c.h.b16 %v10776
    %v10848 = vunpack.c.l.b16 %v10777
    %v10849 = vunpack.c.h.b16 %v10777
    %v10850 = vunpack.c.l.b16 %v10778
    %v10851 = vunpack.c.h.b16 %v10778
    %v10852 = vpack.c.b16 %v10822, %v10820
    %v10853 = vpack.c.b16 %v10823, %v10821
    %v10854 = vpack.c.b16 %v10826, %v10824
    %v10855 = vpack.c.b16 %v10827, %v10825
    %v10856 = vpack.c.b16 %v10830, %v10828
    %v10857 = vpack.c.b16 %v10831, %v10829
    %v10858 = vpack.c.b16 %v10834, %v10832
    %v10859 = vpack.c.b16 %v10835, %v10833
    %v10860 = vpack.c.b16 %v10838, %v10836
    %v10861 = vpack.c.b16 %v10839, %v10837
    %v10862 = vpack.c.b16 %v10842, %v10840
    %v10863 = vpack.c.b16 %v10843, %v10841
    %v10864 = vpack.c.b16 %v10846, %v10844
    %v10865 = vpack.c.b16 %v10847, %v10845
    %v10866 = vpack.c.b16 %v10850, %v10848
    %v10867 = vpack.c.b16 %v10851, %v10849
    %10884 = vmatpush.bf16.msra.mxu0 %v10866
    %10885 = vmatpush.bf16.msra.mxu0 %v10864
    %10886 = vmatpush.bf16.msra.mxu0 %v10862
    %10887 = vmatpush.bf16.msra.mxu0 %v10860
    %10888 = vmatpush.bf16.msra.mxu0 %v10858
    %10889 = vmatpush.bf16.msra.mxu0 %v10856
    %10890 = vmatpush.bf16.msra.mxu0 %v10854
    %10891 = vmatpush.bf16.msra.mxu0 %v10852
    %10892 = vmatmul.bf16.gmra.mxu0 %v10802
    %v10893 = vpop.f32.mrf.mxu0
    %v10894 = vadd.f32 0.0, %v10893
    %v10895 = vpop.f32.mrf.mxu0
    %10896 = vdwg.mxu0
    %10897 = vmatpush.bf16.msra.mxu0 %v10867
    %10898 = vmatpush.bf16.msra.mxu0 %v10865
    %10899 = vmatpush.bf16.msra.mxu0 %v10863
    %10900 = vmatpush.bf16.msra.mxu0 %v10861
    %10901 = vmatpush.bf16.msra.mxu0 %v10859
    %10902 = vmatpush.bf16.msra.mxu0 %v10857
    %10903 = vmatpush.bf16.msra.mxu0 %v10855
    %10904 = vmatpush.bf16.msra.mxu0 %v10853
    %10905 = vmatmul.bf16.gmra.mxu0 %v10802
    %v10906 = vpop.f32.mrf.mxu0
    %v10907 = vadd.f32 0.0, %v10906
    %v10908 = vpop.f32.mrf.mxu0
    %10909 = vdwg.mxu0
    %v10910 = vadd.f32 %v10738, %v10894
    %v10911 = vadd.f32 %v10751, %v10907
    %v10912 = vpack.c.bf16 %v10414, %v10414
    %v10913 = vpack.c.bf16 %v10418, %v10418
    %v10914 = vpack.c.bf16 %v10422, %v10422
    %v10915 = vpack.c.bf16 %v10426, %v10426
    %v10916 = vpack.c.bf16 %v10430, %v10430
    %v10917 = vpack.c.bf16 %v10434, %v10434
    %v10918 = vpack.c.bf16 %v10438, %v10438
    %v10919 = vpack.c.bf16 %v10442, %v10442
    %s10920 = scalar_lea.vmem %s5, 384
    %v10921 = vld [vmem:[%s10920] sm:$0xff]
    %v10922 = vld [vmem:[%s10920 + $0x8] sm:$0xff]
    %v10923 = vld [vmem:[%s10920 + $0x10] sm:$0xff]
    %v10924 = vld [vmem:[%s10920 + $0x18] sm:$0xff]
    %v10925 = vld [vmem:[%s10920 + $0x20] sm:$0xff]
    %v10926 = vld [vmem:[%s10920 + $0x28] sm:$0xff]
    %v10927 = vld [vmem:[%s10920 + $0x30] sm:$0xff]
    %v10928 = vld [vmem:[%s10920 + $0x38] sm:$0xff]
    %v10929 = vld [vmem:[%s10920 + $0x40] sm:$0xff]
    %v10930 = vld [vmem:[%s10920 + $0x48] sm:$0xff]
    %v10931 = vld [vmem:[%s10920 + $0x50] sm:$0xff]
    %v10932 = vld [vmem:[%s10920 + $0x58] sm:$0xff]
    %v10933 = vld [vmem:[%s10920 + $0x60] sm:$0xff]
    %v10934 = vld [vmem:[%s10920 + $0x68] sm:$0xff]
    %v10935 = vld [vmem:[%s10920 + $0x70] sm:$0xff]
    %v10936 = vld [vmem:[%s10920 + $0x78] sm:$0xff]
    %v10945 = vunpack.c.l.b16 %v10912
    %v10946 = vunpack.c.l.b16 %v10913
    %v10947 = vunpack.c.l.b16 %v10914
    %v10948 = vunpack.c.l.b16 %v10915
    %v10949 = vunpack.c.l.b16 %v10916
    %v10950 = vunpack.c.l.b16 %v10917
    %v10951 = vunpack.c.l.b16 %v10918
    %v10952 = vunpack.c.l.b16 %v10919
    %v10953 = vsel %vm6959, %v10946, %v10945
    %v10954 = vsel %vm6962, %v10947, %v10953
    %v10955 = vsel %vm6965, %v10948, %v10954
    %v10956 = vsel %vm6968, %v10949, %v10955
    %v10957 = vsel %vm6971, %v10950, %v10956
    %v10958 = vsel %vm6974, %v10951, %v10957
    %v10959 = vsel %vm6977, %v10952, %v10958
    %v10960 = vpack.c.b16 %v10959, %v10959
    %v10978 = vunpack.c.l.b16 %v10921
    %v10979 = vunpack.c.h.b16 %v10921
    %v10980 = vunpack.c.l.b16 %v10922
    %v10981 = vunpack.c.h.b16 %v10922
    %v10982 = vunpack.c.l.b16 %v10923
    %v10983 = vunpack.c.h.b16 %v10923
    %v10984 = vunpack.c.l.b16 %v10924
    %v10985 = vunpack.c.h.b16 %v10924
    %v10986 = vunpack.c.l.b16 %v10925
    %v10987 = vunpack.c.h.b16 %v10925
    %v10988 = vunpack.c.l.b16 %v10926
    %v10989 = vunpack.c.h.b16 %v10926
    %v10990 = vunpack.c.l.b16 %v10927
    %v10991 = vunpack.c.h.b16 %v10927
    %v10992 = vunpack.c.l.b16 %v10928
    %v10993 = vunpack.c.h.b16 %v10928
    %v10994 = vunpack.c.l.b16 %v10929
    %v10995 = vunpack.c.h.b16 %v10929
    %v10996 = vunpack.c.l.b16 %v10930
    %v10997 = vunpack.c.h.b16 %v10930
    %v10998 = vunpack.c.l.b16 %v10931
    %v10999 = vunpack.c.h.b16 %v10931
    %v11000 = vunpack.c.l.b16 %v10932
    %v11001 = vunpack.c.h.b16 %v10932
    %v11002 = vunpack.c.l.b16 %v10933
    %v11003 = vunpack.c.h.b16 %v10933
    %v11004 = vunpack.c.l.b16 %v10934
    %v11005 = vunpack.c.h.b16 %v10934
    %v11006 = vunpack.c.l.b16 %v10935
    %v11007 = vunpack.c.h.b16 %v10935
    %v11008 = vunpack.c.l.b16 %v10936
    %v11009 = vunpack.c.h.b16 %v10936
    %v11010 = vpack.c.b16 %v10980, %v10978
    %v11011 = vpack.c.b16 %v10981, %v10979
    %v11012 = vpack.c.b16 %v10984, %v10982
    %v11013 = vpack.c.b16 %v10985, %v10983
    %v11014 = vpack.c.b16 %v10988, %v10986
    %v11015 = vpack.c.b16 %v10989, %v10987
    %v11016 = vpack.c.b16 %v10992, %v10990
    %v11017 = vpack.c.b16 %v10993, %v10991
    %v11018 = vpack.c.b16 %v10996, %v10994
    %v11019 = vpack.c.b16 %v10997, %v10995
    %v11020 = vpack.c.b16 %v11000, %v10998
    %v11021 = vpack.c.b16 %v11001, %v10999
    %v11022 = vpack.c.b16 %v11004, %v11002
    %v11023 = vpack.c.b16 %v11005, %v11003
    %v11024 = vpack.c.b16 %v11008, %v11006
    %v11025 = vpack.c.b16 %v11009, %v11007
    %11042 = vmatpush.bf16.msra.mxu0 %v11024
    %11043 = vmatpush.bf16.msra.mxu0 %v11022
    %11044 = vmatpush.bf16.msra.mxu0 %v11020
    %11045 = vmatpush.bf16.msra.mxu0 %v11018
    %11046 = vmatpush.bf16.msra.mxu0 %v11016
    %11047 = vmatpush.bf16.msra.mxu0 %v11014
    %11048 = vmatpush.bf16.msra.mxu0 %v11012
    %11049 = vmatpush.bf16.msra.mxu0 %v11010
    %11050 = vmatmul.bf16.gmra.mxu0 %v10960
    %v11051 = vpop.f32.mrf.mxu0
    %v11052 = vadd.f32 0.0, %v11051
    %v11053 = vpop.f32.mrf.mxu0
    %11054 = vdwg.mxu0
    %11055 = vmatpush.bf16.msra.mxu0 %v11025
    %11056 = vmatpush.bf16.msra.mxu0 %v11023
    %11057 = vmatpush.bf16.msra.mxu0 %v11021
    %11058 = vmatpush.bf16.msra.mxu0 %v11019
    %11059 = vmatpush.bf16.msra.mxu0 %v11017
    %11060 = vmatpush.bf16.msra.mxu0 %v11015
    %11061 = vmatpush.bf16.msra.mxu0 %v11013
    %11062 = vmatpush.bf16.msra.mxu0 %v11011
    %11063 = vmatmul.bf16.gmra.mxu0 %v10960
    %v11064 = vpop.f32.mrf.mxu0
    %v11065 = vadd.f32 0.0, %v11064
    %v11066 = vpop.f32.mrf.mxu0
    %11067 = vdwg.mxu0
    %v11068 = vadd.f32 %v10910, %v11052
    %v11069 = vadd.f32 %v10911, %v11065
    %v11070 = vld [vmem:[%s6] sm:$0x3]
    %v11072 = vperm.slane %v11070, 0
    %v11073 = vperm.slane %v11070, 1
    %v11076 = vadd.f32 %v11068, %v11072
    %v11077 = vadd.f32 %v11069, %v11073
    %v11078 = vmax.f32 %v11076, 0.0
    %v11079 = vmax.f32 %v11077, 0.0
    %v11080 = vpack.c.bf16 %v11078, %v11078
    %v11081 = vpack.c.bf16 %v11079, %v11079
    %v11082 = vld [vmem:[#allocation6] sm:$0xf]
    %v11083 = vld [vmem:[#allocation6 + $0x4] sm:$0xf]
    %v11084 = vld [vmem:[#allocation6 + $0x8] sm:$0xf]
    %v11085 = vld [vmem:[#allocation6 + $0xc] sm:$0xf]
    %v11086 = vld [vmem:[#allocation6 + $0x10] sm:$0xf]
    %v11087 = vld [vmem:[#allocation6 + $0x14] sm:$0xf]
    %v11088 = vld [vmem:[#allocation6 + $0x18] sm:$0xf]
    %v11089 = vld [vmem:[#allocation6 + $0x1c] sm:$0xf]
    %v11090 = vld [vmem:[#allocation6 + $0x20] sm:$0xf]
    %v11091 = vld [vmem:[#allocation6 + $0x24] sm:$0xf]
    %v11092 = vld [vmem:[#allocation6 + $0x28] sm:$0xf]
    %v11093 = vld [vmem:[#allocation6 + $0x2c] sm:$0xf]
    %v11094 = vld [vmem:[#allocation6 + $0x30] sm:$0xf]
    %v11095 = vld [vmem:[#allocation6 + $0x34] sm:$0xf]
    %v11096 = vld [vmem:[#allocation6 + $0x38] sm:$0xf]
    %v11097 = vld [vmem:[#allocation6 + $0x3c] sm:$0xf]
    %v11098 = vld [vmem:[#allocation6 + $0x40] sm:$0xf]
    %v11099 = vld [vmem:[#allocation6 + $0x44] sm:$0xf]
    %v11100 = vld [vmem:[#allocation6 + $0x48] sm:$0xf]
    %v11101 = vld [vmem:[#allocation6 + $0x4c] sm:$0xf]
    %v11102 = vld [vmem:[#allocation6 + $0x50] sm:$0xf]
    %v11103 = vld [vmem:[#allocation6 + $0x54] sm:$0xf]
    %v11104 = vld [vmem:[#allocation6 + $0x58] sm:$0xf]
    %v11105 = vld [vmem:[#allocation6 + $0x5c] sm:$0xf]
    %v11106 = vld [vmem:[#allocation6 + $0x60] sm:$0xf]
    %v11107 = vld [vmem:[#allocation6 + $0x64] sm:$0xf]
    %v11108 = vld [vmem:[#allocation6 + $0x68] sm:$0xf]
    %v11109 = vld [vmem:[#allocation6 + $0x6c] sm:$0xf]
    %v11110 = vld [vmem:[#allocation6 + $0x70] sm:$0xf]
    %v11111 = vld [vmem:[#allocation6 + $0x74] sm:$0xf]
    %v11112 = vld [vmem:[#allocation6 + $0x78] sm:$0xf]
    %v11113 = vld [vmem:[#allocation6 + $0x7c] sm:$0xf]
    %v11114 = vld [vmem:[%s8] sm:$0x1]
    %v11116 = vperm.slane %v11114, 0
    %v11150 = vunpack.c.l.b16 %v11082
    %v11151 = vunpack.c.l.b16 %v11083
    %v11152 = vunpack.c.l.b16 %v11084
    %v11153 = vunpack.c.l.b16 %v11085
    %v11154 = vunpack.c.l.b16 %v11086
    %v11155 = vunpack.c.l.b16 %v11087
    %v11156 = vunpack.c.l.b16 %v11088
    %v11157 = vunpack.c.l.b16 %v11089
    %v11158 = vunpack.c.l.b16 %v11090
    %v11159 = vunpack.c.l.b16 %v11091
    %v11160 = vunpack.c.l.b16 %v11092
    %v11161 = vunpack.c.l.b16 %v11093
    %v11162 = vunpack.c.l.b16 %v11094
    %v11163 = vunpack.c.l.b16 %v11095
    %v11164 = vunpack.c.l.b16 %v11096
    %v11165 = vunpack.c.l.b16 %v11097
    %v11166 = vunpack.c.l.b16 %v11098
    %v11167 = vunpack.c.l.b16 %v11099
    %v11168 = vunpack.c.l.b16 %v11100
    %v11169 = vunpack.c.l.b16 %v11101
    %v11170 = vunpack.c.l.b16 %v11102
    %v11171 = vunpack.c.l.b16 %v11103
    %v11172 = vunpack.c.l.b16 %v11104
    %v11173 = vunpack.c.l.b16 %v11105
    %v11174 = vunpack.c.l.b16 %v11106
    %v11175 = vunpack.c.l.b16 %v11107
    %v11176 = vunpack.c.l.b16 %v11108
    %v11177 = vunpack.c.l.b16 %v11109
    %v11178 = vunpack.c.l.b16 %v11110
    %v11179 = vunpack.c.l.b16 %v11111
    %v11180 = vunpack.c.l.b16 %v11112
    %v11181 = vunpack.c.l.b16 %v11113
    %v11182 = vpack.c.b16 %v11151, %v11150
    %v11183 = vpack.c.b16 %v11153, %v11152
    %v11184 = vpack.c.b16 %v11155, %v11154
    %v11185 = vpack.c.b16 %v11157, %v11156
    %v11186 = vpack.c.b16 %v11159, %v11158
    %v11187 = vpack.c.b16 %v11161, %v11160
    %v11188 = vpack.c.b16 %v11163, %v11162
    %v11189 = vpack.c.b16 %v11165, %v11164
    %v11190 = vpack.c.b16 %v11167, %v11166
    %v11191 = vpack.c.b16 %v11169, %v11168
    %v11192 = vpack.c.b16 %v11171, %v11170
    %v11193 = vpack.c.b16 %v11173, %v11172
    %v11194 = vpack.c.b16 %v11175, %v11174
    %v11195 = vpack.c.b16 %v11177, %v11176
    %v11196 = vpack.c.b16 %v11179, %v11178
    %v11197 = vpack.c.b16 %v11181, %v11180
    %11214 = vmatpush.bf16.msra.mxu0 %v11189
    %11215 = vmatpush.bf16.msra.mxu0 %v11188
    %11216 = vmatpush.bf16.msra.mxu0 %v11187
    %11217 = vmatpush.bf16.msra.mxu0 %v11186
    %11218 = vmatpush.bf16.msra.mxu0 %v11185
    %11219 = vmatpush.bf16.msra.mxu0 %v11184
    %11220 = vmatpush.bf16.msra.mxu0 %v11183
    %11221 = vmatpush.bf16.msra.mxu0 %v11182
    %11222 = vmatmul.bf16.gmra.mxu0 %v11080
    %v11223 = vpop.f32.mrf.mxu0
    %v11224 = vadd.f32 %v11116, %v11223
    %v11225 = vpop.f32.mrf.mxu0
    %11226 = vdwg.mxu0
    %11227 = vmatpush.bf16.msra.mxu0 %v11197
    %11228 = vmatpush.bf16.msra.mxu0 %v11196
    %11229 = vmatpush.bf16.msra.mxu0 %v11195
    %11230 = vmatpush.bf16.msra.mxu0 %v11194
    %11231 = vmatpush.bf16.msra.mxu0 %v11193
    %11232 = vmatpush.bf16.msra.mxu0 %v11192
    %11233 = vmatpush.bf16.msra.mxu0 %v11191
    %11234 = vmatpush.bf16.msra.mxu0 %v11190
    %11235 = vmatmul.bf16.gmra.mxu0 %v11081
    %v11236 = vpop.f32.mrf.mxu0
    %v11237 = vadd.f32 %v11224, %v11236
    %v11238 = vpop.f32.mrf.mxu0
    %11239 = vdwg.mxu0
    %11240 = vst [vmem:[%s9] sm:$0xff] %v11237
    // Predicated region
    $region50: #{cnn_forward.1} parent=1 // pred_check
      _
    $region51: #{cnn_forward.1} parent=1 // pred_check_branch
      %11242 = sbr.rel (0) target = $region53
    $region52: #{cnn_forward.1} parent=1 // pred_region
      _
    $region53: #{cnn_forward.1} parent=1 // pred_fallthru
      _
    // Predicated region
    $region54: #{cnn_forward.1} parent=1 // pred_check
      _
    $region55: #{cnn_forward.1} parent=1 // pred_check_branch
      %11244 = sbr.rel (0) target = $region57
    $region56: #{cnn_forward.1} parent=1 // pred_region
      _
    $region57: #{cnn_forward.1} parent=1 // pred_fallthru
      _
    %11245 = vsyncpa [#allocation3], 1
    %11246 = vsyncpa [#allocation5], 1

</llo_original>
